<compile_context>
chip_gen: v5e
topology: v5e:2x2
jax: 0.10.0
libtpu: 0.0.40
codegen_flags: <defaults>
</compile_context>

<pallas_src>
import functools
import math

import jax
import jax.numpy as jnp
from jax.experimental import pallas as pl
from jax.experimental.pallas import tpu as pltpu

# torch_geometric MLP uses BatchNorm1d between layers; in eval mode with fresh
# running stats (mean=0, var=1) this is x / sqrt(1 + eps).
BN_EVAL_SCALE = (1.0 + 1e-5) ** -0.5


def _round_up(v, m):
    return ((v + m - 1) // m) * m


def _sigmoid(x):
    # explicit form (guaranteed Mosaic lowering via exp)
    return 1.0 / (1.0 + jnp.exp(-x))


# ----------------------------- Pallas kernels ------------------------------ #

def sa_conv_kernel(x_ref, pos_ref, nbr_ref, ctr_ref,
                   w1x, w1p, b1, w2, b2, w3, b3, out_ref, *, C, K):
    """PointNetConv for one batch element.

    x_ref  : (1, npb, Fx)  per-point features (Fx may be zero-padded to 128)
    pos_ref: (1, npb, 3)   per-point positions
    nbr_ref: (1, 1, E)     E = C*K flattened neighbour indices (padded w/ dups)
    ctr_ref: (1, 1, E)     flattened centre indices (each repeated K times)
    out_ref: (1, C, Fout)  ReLU(max over K neighbours of MLP([x_j, pos_j-pos_i]))
    """
    x = x_ref[0]                       # (npb, Fx) f32
    pos = pos_ref[0]                   # (npb, 3)  f32
    npb = x.shape[0]
    E = C * K
    nbr = nbr_ref[0]                   # (1, E) int32
    ctr = ctr_ref[0]                   # (1, E) int32

    # Layer-1 projection *before* gathering (the linear layer and the gather
    # commute): K x less matmul work and no per-edge concat / Fin padding.
    gx = jnp.dot(x.astype(jnp.bfloat16), w1x[...],
                 preferred_element_type=jnp.float32)              # (npb, H1)
    gp = jnp.dot(pos.astype(jnp.bfloat16), w1p[...],
                 preferred_element_type=jnp.float32)              # (npb, H1)

    # In-kernel neighbour gather as one-hot matmuls on the MXU; the edge tensor
    # never touches HBM.  (At these sizes the O(E*npb) one-hot is negligible.)
    # TODO(synk): for large npb, switch to a dynamic-gather / DMA-gather path.
    pid = jax.lax.broadcasted_iota(jnp.int32, (npb, E), 0)
    sel_nbr = (pid == nbr).astype(jnp.float32)                    # (npb, E)
    sel_ctr = (pid == ctr).astype(jnp.float32)                    # (npb, E)
    dn = (((0,), (0,)), ((), ()))                                 # contract point dim

    # h1[e] = W_x x_j(e) + W_p (pos_j(e) - pos_i(e)) + b1
    h = (jax.lax.dot_general(sel_nbr, gx + gp, dn,
                             preferred_element_type=jnp.float32)
         - jax.lax.dot_general(sel_ctr, gp, dn,
                               preferred_element_type=jnp.float32)
         + b1[...])                                               # (E, H1)

    h = _sigmoid(h * BN_EVAL_SCALE)
    h = jnp.dot(h.astype(jnp.bfloat16), w2[...],
                preferred_element_type=jnp.float32) + b2[...]
    h = _sigmoid(h * BN_EVAL_SCALE)
    h = jnp.dot(h.astype(jnp.bfloat16), w3[...],
                preferred_element_type=jnp.float32) + b3[...]     # (E, Fout)

    # max-aggregate over the K neighbours of each centre, then ReLU.
    h = h.reshape(C, K, h.shape[-1])
    out_ref[0] = jnp.maximum(jnp.max(h, axis=1), 0.0)


def global_sa_kernel(x_ref, pos_ref, w1x, w1p, b1, w2, b2, w3, b3, out_ref,
                     *, B, C):
    """softmax(global_max_pool(ReLU(MLP([x, pos])))) for contiguous equal batches."""
    fx = x_ref.shape[-1]
    x = x_ref[...].reshape(B * C, fx)
    pos = pos_ref[...].reshape(B * C, 3)

    h = (jnp.dot(x.astype(jnp.bfloat16), w1x[...],
                 preferred_element_type=jnp.float32)
         + jnp.dot(pos.astype(jnp.bfloat16), w1p[...],
                   preferred_element_type=jnp.float32)
         + b1[...])
    h = _sigmoid(h * BN_EVAL_SCALE)
    h = jnp.dot(h.astype(jnp.bfloat16), w2[...],
                preferred_element_type=jnp.float32) + b2[...]
    h = _sigmoid(h * BN_EVAL_SCALE)
    h = jnp.dot(h.astype(jnp.bfloat16), w3[...],
                preferred_element_type=jnp.float32) + b3[...]     # (B*C, Fout)
    h = jnp.maximum(h, 0.0)                                       # F.relu

    pooled = jnp.max(h.reshape(B, C, h.shape[-1]), axis=1)        # per-batch max pool
    z = pooled - jnp.max(pooled, axis=-1, keepdims=True)          # F.softmax(dim=1)
    e = jnp.exp(z)
    out_ref[...] = e / jnp.sum(e, axis=-1, keepdims=True)


# ----------------------------- kernel wrappers ------------------------------ #

def sa_conv(xb, posb, nbr_flat, ctr_flat, p, *, C, K):
    B, npb, fx = xb.shape
    E = C * K
    fout = p["w3"].shape[1]
    kernel = functools.partial(sa_conv_kernel, C=C, K=K)
    weight_names = ("w1x", "w1p", "b1", "w2", "b2", "w3", "b3")
    wspecs = [pl.BlockSpec(p[k].shape, lambda b: (0, 0)) for k in weight_names]
    return pl.pallas_call(
        kernel,
        out_shape=jax.ShapeDtypeStruct((B, C, fout), jnp.float32),
        grid=(B,),
        in_specs=[
            pl.BlockSpec((1, npb, fx), lambda b: (b, 0, 0)),
            pl.BlockSpec((1, npb, 3), lambda b: (b, 0, 0)),
            pl.BlockSpec((1, 1, E), lambda b: (b, 0, 0)),
            pl.BlockSpec((1, 1, E), lambda b: (b, 0, 0)),
            *wspecs,
        ],
        out_specs=pl.BlockSpec((1, C, fout), lambda b: (b, 0, 0)),
        compiler_params=pltpu.CompilerParams(dimension_semantics=("parallel",)),
    )(xb, posb, nbr_flat, ctr_flat, *(p[k] for k in weight_names))


def global_sa(xb, posb, p):
    B, C, _ = xb.shape
    fout = p["w3"].shape[1]
    kernel = functools.partial(global_sa_kernel, B=B, C=C)
    return pl.pallas_call(
        kernel,
        out_shape=jax.ShapeDtypeStruct((B, fout), jnp.float32),
    )(xb, posb, p["w1x"], p["w1p"], p["b1"], p["w2"], p["b2"], p["w3"], p["b3"])


# ------------------------------- JAX glue ---------------------------------- #

def fps_per_batch(pos_b, n_samples):
    # Deterministic farthest point sampling starting at index 0.
    # TODO(synk): torch_cluster.fps defaults to random_start=True (nondeterministic);
    # we use a fixed start point for reproducibility.
    d0 = jnp.sum((pos_b - pos_b[0]) ** 2, axis=-1)
    sel0 = jnp.zeros((n_samples,), jnp.int32)

    def body(i, carry):
        dists, sel = carry
        nxt = jnp.argmax(dists).astype(jnp.int32)
        sel = sel.at[i].set(nxt)
        d = jnp.sum((pos_b - pos_b[nxt]) ** 2, axis=-1)
        return jnp.minimum(dists, d), sel

    _, sel = jax.lax.fori_loop(1, n_samples, body, (d0, sel0))
    return sel


def radius_neighbors_per_batch(pos_b, center_idx, r, K):
    # First <=K points (in index order, matching torch_cluster.radius) within r.
    # Invalid (past-the-end) slots are padded with the first valid neighbour
    # (the centre itself is always within r of itself), which is a no-op under
    # the max-aggregation in the conv kernel, so no mask stream is needed.
    npb = pos_b.shape[0]
    cpos = pos_b[center_idx]                                        # (C, 3)
    d2 = jnp.sum((cpos[:, None, :] - pos_b[None, :, :]) ** 2, axis=-1)
    within = d2 <= r * r
    key = jnp.where(within, jnp.arange(npb, dtype=jnp.int32)[None, :], npb)
    first_k = jnp.sort(key, axis=1)[:, :K]                          # K <= npb (caller)
    valid = first_k < npb
    return jnp.where(valid, first_k, first_k[:, :1]).astype(jnp.int32)


def sa_module(xb, posb, params, ratio, r, K_max=32):
    # xb: [B, npb, Fx], posb: [B, npb, 3]
    B, npb, _ = xb.shape
    C = int(math.ceil(npb * ratio))
    K = min(K_max, npb)                                             # fix: K can't exceed npb
    idx = jax.vmap(functools.partial(fps_per_batch, n_samples=C))(posb)           # (B, C)
    nbr = jax.vmap(lambda p, i: radius_neighbors_per_batch(p, i, r, K))(posb, idx)  # (B, C, K)
    cpos = jnp.take_along_axis(posb, idx[..., None], axis=1)                        # (B, C, 3)

    E = C * K
    nbr_flat = nbr.reshape(B, 1, E)
    ctr_flat = jnp.repeat(idx, K, axis=-1).reshape(B, 1, E)
    out = sa_conv(xb, posb, nbr_flat, ctr_flat, params, C=C, K=K)   # (B, C, Fout_pad)
    return out, cpos


def feature_model_forward(x, pos, batch, params, *, in_channels, num_batches,
                          num_sa_modules=2):
    # Assumes equal-sized, contiguous batches (the PyG flat layout reshaped).
    del batch  # batch structure is encoded by `num_batches` (contiguous equal batches)
    scaler_mean = jnp.zeros((1, in_channels), jnp.float32)          # registered buffers
    scaler_std = jnp.ones((1, in_channels), jnp.float32)
    x = (x - scaler_mean) / scaler_std

    B = num_batches
    npb = x.shape[0] // B
    xb = x.reshape(B, npb, in_channels).astype(jnp.float32)
    posb = pos.reshape(B, npb, 3).astype(jnp.float32)

    r = 1.0
    for i in range(num_sa_modules):
        xb, posb = sa_module(xb, posb, params[f"sa{i}"], ratio=0.25, r=r)
        r *= 2.0
    return global_sa(xb, posb, params["global"])                    # [B, 2*hidden_final]


# ------------------------------ parameters ---------------------------------- #

def xavier_uniform(key, fan_in, fan_out):
    bound = math.sqrt(6.0 / (fan_in + fan_out))
    return jax.random.uniform(key, (fan_in, fan_out), jnp.float32, -bound, bound)


def make_mlp_params(key, dims, x_pad, out_pad):
    # dims = [x_true + 3, h1, h2, fout]; first layer is split into x / pos parts
    # (so the pos - centre subtraction can be folded after projection) and the
    # last layer's output columns are zero-padded to `out_pad` for lane-dense
    # stores.  Weights are stored as bf16 (MXU-native); biases stay f32.
    x_true, h1, h2, fout = dims[0] - 3, dims[1], dims[2], dims[3]
    k1, k2, k3 = jax.random.split(key, 3)
    w1l = xavier_uniform(k1, dims[0], h1)                 # matches torch xavier init
    w2l = xavier_uniform(k2, h1, h2)
    w3l = xavier_uniform(k3, h2, fout)
    w1x = jnp.zeros((x_pad, h1), jnp.float32).at[:x_true].set(w1l[:x_true])
    w1p = w1l[x_true:]                                    # (3, h1)
    w3 = jnp.zeros((h2, out_pad), jnp.float32).at[:, :fout].set(w3l)
    return dict(
        w1x=w1x.astype(jnp.bfloat16), w1p=w1p.astype(jnp.bfloat16),
        b1=jnp.zeros((1, h1), jnp.float32),
        w2=w2l.astype(jnp.bfloat16), b2=jnp.zeros((1, h2), jnp.float32),
        w3=w3.astype(jnp.bfloat16), b3=jnp.zeros((1, out_pad), jnp.float32),
    )


def init_params(key, in_channels, num_sa_modules=2):
    params = {}
    hidden = 16
    ic_true = in_channels
    ic_pad = in_channels
    keys = jax.random.split(key, num_sa_modules + 1)
    for i in range(num_sa_modules):
        fout = 2 * hidden
        params[f"sa{i}"] = make_mlp_params(
            keys[i], [ic_true + 3, hidden, hidden, fout],
            x_pad=ic_pad, out_pad=_round_up(fout, 128))
        hidden = fout
        ic_true = fout
        ic_pad = _round_up(fout, 128)
    fout = 2 * hidden
    params["global"] = make_mlp_params(
        keys[-1], [ic_true + 3, hidden, hidden, fout],
        x_pad=ic_pad, out_pad=fout)          # global output feeds the softmax: no padding
    return params


# --------------------------------- main ------------------------------------- #

if __name__ == "__main__":
    key = jax.random.PRNGKey(0)
    kx, kp, kw = jax.random.split(key, 3)

    B, Npb, in_channels = 2, 64, 4          # 2 batches of 64 points, 4 input features
    N = B * Npb
    x = jax.random.normal(kx, (N, in_channels), jnp.float32)
    pos = jax.random.normal(kp, (N, 3), jnp.float32)
    batch = jnp.repeat(jnp.arange(B, dtype=jnp.int32), Npb)

    params = init_params(kw, in_channels, num_sa_modules=2)

    fwd = jax.jit(functools.partial(feature_model_forward,
                                    in_channels=in_channels, num_batches=B))
    out = jax.block_until_ready(fwd(x, pos, batch, params))

    assert out.shape == (B, 128), out.shape
    assert bool(jnp.all(jnp.isfinite(out)))
    # softmax rows sum to 1
    assert bool(jnp.allclose(jnp.sum(out, axis=-1), 1.0, atol=1e-4))
    print("KERNEL_OK")
</pallas_src>

<mosaic_0001>
module attributes {stable_mosaic.version = 11 : i64} {
  func.func @global_sa_kernel(%arg0: memref<2x4x128xf32, #tpu.memory_space<vmem>>, %arg1: memref<2x4x3xf32, #tpu.memory_space<vmem>>, %arg2: memref<128x64xbf16, #tpu.memory_space<vmem>>, %arg3: memref<3x64xbf16, #tpu.memory_space<vmem>>, %arg4: memref<1x64xf32, #tpu.memory_space<vmem>>, %arg5: memref<64x64xbf16, #tpu.memory_space<vmem>>, %arg6: memref<1x64xf32, #tpu.memory_space<vmem>>, %arg7: memref<64x128xbf16, #tpu.memory_space<vmem>>, %arg8: memref<1x128xf32, #tpu.memory_space<vmem>>, %arg9: memref<2x128xf32, #tpu.memory_space<vmem>>) attributes {dimension_semantics = [], scalar_prefetch = 0 : i64, scratch_operands = 0 : i64, tpu.core_type = #tpu.core_type<tc>} {
    %c0 = arith.constant 0 : index
    %c0_0 = arith.constant 0 : index
    %c0_1 = arith.constant 0 : index
    %0 = vector.load %arg0[%c0, %c0_0, %c0_1] : memref<2x4x128xf32, #tpu.memory_space<vmem>>, vector<2x4x128xf32>
    %1 = vector.shape_cast %0 : vector<2x4x128xf32> to vector<8x128xf32>
    %c0_2 = arith.constant 0 : index
    %c0_3 = arith.constant 0 : index
    %c0_4 = arith.constant 0 : index
    %2 = vector.load %arg1[%c0_2, %c0_3, %c0_4] : memref<2x4x3xf32, #tpu.memory_space<vmem>>, vector<2x4x3xf32>
    %3 = vector.shape_cast %2 : vector<2x4x3xf32> to vector<8x3xf32>
    %4 = arith.truncf %1 : vector<8x128xf32> to vector<8x128xbf16>
    %c0_5 = arith.constant 0 : index
    %c0_6 = arith.constant 0 : index
    %5 = vector.load %arg2[%c0_5, %c0_6] : memref<128x64xbf16, #tpu.memory_space<vmem>>, vector<128x64xbf16>
    %cst = arith.constant dense<0.000000e+00> : vector<8x64xf32>
    %6 = tpu.matmul %4, %5, %cst {dimension_numbers = #tpu.dot_dimension_numbers<[1], [0], [0], [1], [0, 0, 1, 1], [], []>} : vector<8x128xbf16>, vector<128x64xbf16>, vector<8x64xf32> -> vector<8x64xf32>
    %7 = arith.truncf %3 : vector<8x3xf32> to vector<8x3xbf16>
    %c0_7 = arith.constant 0 : index
    %c0_8 = arith.constant 0 : index
    %8 = vector.load %arg3[%c0_7, %c0_8] : memref<3x64xbf16, #tpu.memory_space<vmem>>, vector<3x64xbf16>
    %cst_9 = arith.constant dense<0.000000e+00> : vector<8x64xf32>
    %9 = tpu.matmul %7, %8, %cst_9 {dimension_numbers = #tpu.dot_dimension_numbers<[1], [0], [0], [1], [0, 0, 1, 1], [], []>} : vector<8x3xbf16>, vector<3x64xbf16>, vector<8x64xf32> -> vector<8x64xf32>
    %10 = arith.addf %6, %9 : vector<8x64xf32>
    %c0_10 = arith.constant 0 : index
    %c0_11 = arith.constant 0 : index
    %11 = vector.load %arg4[%c0_10, %c0_11] : memref<1x64xf32, #tpu.memory_space<vmem>>, vector<1x64xf32>
    %12 = vector.broadcast %11 : vector<1x64xf32> to vector<8x64xf32>
    %13 = arith.addf %10, %12 : vector<8x64xf32>
    %cst_12 = arith.constant 0.999994993 : f32
    %14 = vector.broadcast %cst_12 : f32 to vector<8x64xf32>
    %15 = arith.mulf %13, %14 : vector<8x64xf32>
    %cst_13 = arith.constant 0.000000e+00 : f32
    %16 = vector.broadcast %cst_13 : f32 to vector<8x64xf32>
    %17 = arith.subf %16, %15 : vector<8x64xf32>
    %18 = math.exp %17 : vector<8x64xf32>
    %cst_14 = arith.constant 1.000000e+00 : f32
    %19 = vector.broadcast %cst_14 : f32 to vector<8x64xf32>
    %20 = arith.addf %19, %18 : vector<8x64xf32>
    %cst_15 = arith.constant 1.000000e+00 : f32
    %21 = vector.broadcast %cst_15 : f32 to vector<8x64xf32>
    %22 = arith.divf %21, %20 : vector<8x64xf32>
    %23 = arith.truncf %22 : vector<8x64xf32> to vector<8x64xbf16>
    %c0_16 = arith.constant 0 : index
    %c0_17 = arith.constant 0 : index
    %24 = vector.load %arg5[%c0_16, %c0_17] : memref<64x64xbf16, #tpu.memory_space<vmem>>, vector<64x64xbf16>
    %cst_18 = arith.constant dense<0.000000e+00> : vector<8x64xf32>
    %25 = tpu.matmul %23, %24, %cst_18 {dimension_numbers = #tpu.dot_dimension_numbers<[1], [0], [0], [1], [0, 0, 1, 1], [], []>} : vector<8x64xbf16>, vector<64x64xbf16>, vector<8x64xf32> -> vector<8x64xf32>
    %c0_19 = arith.constant 0 : index
    %c0_20 = arith.constant 0 : index
    %26 = vector.load %arg6[%c0_19, %c0_20] : memref<1x64xf32, #tpu.memory_space<vmem>>, vector<1x64xf32>
    %27 = vector.broadcast %26 : vector<1x64xf32> to vector<8x64xf32>
    %28 = arith.addf %25, %27 : vector<8x64xf32>
    %cst_21 = arith.constant 0.999994993 : f32
    %29 = vector.broadcast %cst_21 : f32 to vector<8x64xf32>
    %30 = arith.mulf %28, %29 : vector<8x64xf32>
    %cst_22 = arith.constant 0.000000e+00 : f32
    %31 = vector.broadcast %cst_22 : f32 to vector<8x64xf32>
    %32 = arith.subf %31, %30 : vector<8x64xf32>
    %33 = math.exp %32 : vector<8x64xf32>
    %cst_23 = arith.constant 1.000000e+00 : f32
    %34 = vector.broadcast %cst_23 : f32 to vector<8x64xf32>
    %35 = arith.addf %34, %33 : vector<8x64xf32>
    %cst_24 = arith.constant 1.000000e+00 : f32
    %36 = vector.broadcast %cst_24 : f32 to vector<8x64xf32>
    %37 = arith.divf %36, %35 : vector<8x64xf32>
    %38 = arith.truncf %37 : vector<8x64xf32> to vector<8x64xbf16>
    %c0_25 = arith.constant 0 : index
    %c0_26 = arith.constant 0 : index
    %39 = vector.load %arg7[%c0_25, %c0_26] : memref<64x128xbf16, #tpu.memory_space<vmem>>, vector<64x128xbf16>
    %cst_27 = arith.constant dense<0.000000e+00> : vector<8x128xf32>
    %40 = tpu.matmul %38, %39, %cst_27 {dimension_numbers = #tpu.dot_dimension_numbers<[1], [0], [0], [1], [0, 0, 1, 1], [], []>} : vector<8x64xbf16>, vector<64x128xbf16>, vector<8x128xf32> -> vector<8x128xf32>
    %c0_28 = arith.constant 0 : index
    %c0_29 = arith.constant 0 : index
    %41 = vector.load %arg8[%c0_28, %c0_29] : memref<1x128xf32, #tpu.memory_space<vmem>>, vector<1x128xf32>
    %42 = vector.broadcast %41 : vector<1x128xf32> to vector<8x128xf32>
    %43 = arith.addf %40, %42 : vector<8x128xf32>
    %cst_30 = arith.constant 0.000000e+00 : f32
    %44 = vector.broadcast %cst_30 : f32 to vector<8x128xf32>
    %45 = arith.maximumf %43, %44 : vector<8x128xf32>
    %46 = vector.shape_cast %45 : vector<8x128xf32> to vector<2x4x128xf32>
    %cst_31 = arith.constant dense<0xFF800000> : vector<2x128xf32>
    %47 = vector.multi_reduction <maximumf>, %46, %cst_31 [1] : vector<2x4x128xf32> to vector<2x128xf32>
    %cst_32 = arith.constant dense<0xFF800000> : vector<2xf32>
    %48 = vector.multi_reduction <maximumf>, %47, %cst_32 [1] : vector<2x128xf32> to vector<2xf32>
    %49 = vector.shape_cast %48 : vector<2xf32> to vector<2x1xf32>
    %50 = vector.broadcast %49 : vector<2x1xf32> to vector<2x128xf32>
    %51 = arith.subf %47, %50 : vector<2x128xf32>
    %52 = math.exp %51 : vector<2x128xf32>
    %cst_33 = arith.constant dense<0.000000e+00> : vector<2xf32>
    %53 = vector.multi_reduction <add>, %52, %cst_33 [1] : vector<2x128xf32> to vector<2xf32>
    %54 = vector.shape_cast %53 : vector<2xf32> to vector<2x1xf32>
    %55 = vector.broadcast %54 : vector<2x1xf32> to vector<2x128xf32>
    %56 = arith.divf %52, %55 : vector<2x128xf32>
    %c0_34 = arith.constant 0 : index
    %c0_35 = arith.constant 0 : index
    %57 = vector.load %arg9[%c0_34, %c0_35] : memref<2x128xf32, #tpu.memory_space<vmem>>, vector<2x128xf32>
    tpu.vector_store %arg9[%c0_34, %c0_35], %56 {strides = array<i32>} : memref<2x128xf32, #tpu.memory_space<vmem>>, vector<2x128xf32>,
    return
  }
}

module attributes {stable_mosaic.version = 11 : i64} {
  func.func @sa_conv_kernel(%arg0: i32, %arg1: memref<1x16x128xf32, #tpu.memory_space<vmem>>, %arg2: memref<1x16x3xf32, #tpu.memory_space<vmem>>, %arg3: memref<1x1x64xi32, #tpu.memory_space<vmem>>, %arg4: memref<1x1x64xi32, #tpu.memory_space<vmem>>, %arg5: memref<128x32xbf16, #tpu.memory_space<vmem>>, %arg6: memref<3x32xbf16, #tpu.memory_space<vmem>>, %arg7: memref<1x32xf32, #tpu.memory_space<vmem>>, %arg8: memref<32x32xbf16, #tpu.memory_space<vmem>>, %arg9: memref<1x32xf32, #tpu.memory_space<vmem>>, %arg10: memref<32x128xbf16, #tpu.memory_space<vmem>>, %arg11: memref<1x128xf32, #tpu.memory_space<vmem>>, %arg12: memref<1x4x128xf32, #tpu.memory_space<vmem>>) attributes {dimension_semantics = [#tpu.dimension_semantics<parallel>], iteration_bounds = array<i64: 2>, scalar_prefetch = 0 : i64, scratch_operands = 0 : i64, tpu.core_type = #tpu.core_type<tc>, window_params = [{transform_indices = @transform_0, window_bounds = array<i64: 1, 16, 128>}, {transform_indices = @transform_1, window_bounds = array<i64: 1, 16, 3>}, {transform_indices = @transform_2, window_bounds = array<i64: 1, 1, 64>}, {transform_indices = @transform_3, window_bounds = array<i64: 1, 1, 64>}, {pipeline_mode = #tpu.pipeline_mode<synchronous>, transform_indices = @transform_4, window_bounds = array<i64: 128, 32>}, {pipeline_mode = #tpu.pipeline_mode<synchronous>, transform_indices = @transform_5, window_bounds = array<i64: 3, 32>}, {pipeline_mode = #tpu.pipeline_mode<synchronous>, transform_indices = @transform_6, window_bounds = array<i64: 1, 32>}, {pipeline_mode = #tpu.pipeline_mode<synchronous>, transform_indices = @transform_7, window_bounds = array<i64: 32, 32>}, {pipeline_mode = #tpu.pipeline_mode<synchronous>, transform_indices = @transform_8, window_bounds = array<i64: 1, 32>}, {pipeline_mode = #tpu.pipeline_mode<synchronous>, transform_indices = @transform_9, window_bounds = array<i64: 32, 128>}, {pipeline_mode = #tpu.pipeline_mode<synchronous>, transform_indices = @transform_10, window_bounds = array<i64: 1, 128>}, {transform_indices = @transform_11, window_bounds = array<i64: 1, 4, 128>}]} {
    %c0 = arith.constant 0 : index
    %c0_0 = arith.constant 0 : index
    %c0_1 = arith.constant 0 : index
    %0 = vector.load %arg1[%c0, %c0_0, %c0_1] : memref<1x16x128xf32, #tpu.memory_space<vmem>>, vector<1x16x128xf32>
    %1 = vector.shape_cast %0 : vector<1x16x128xf32> to vector<16x128xf32>
    %c0_2 = arith.constant 0 : index
    %c0_3 = arith.constant 0 : index
    %c0_4 = arith.constant 0 : index
    %2 = vector.load %arg2[%c0_2, %c0_3, %c0_4] : memref<1x16x3xf32, #tpu.memory_space<vmem>>, vector<1x16x3xf32>
    %3 = vector.shape_cast %2 : vector<1x16x3xf32> to vector<16x3xf32>
    %c0_5 = arith.constant 0 : index
    %c0_6 = arith.constant 0 : index
    %c0_7 = arith.constant 0 : index
    %4 = vector.load %arg3[%c0_5, %c0_6, %c0_7] : memref<1x1x64xi32, #tpu.memory_space<vmem>>, vector<1x1x64xi32>
    %5 = vector.shape_cast %4 : vector<1x1x64xi32> to vector<1x64xi32>
    %c0_8 = arith.constant 0 : index
    %c0_9 = arith.constant 0 : index
    %c0_10 = arith.constant 0 : index
    %6 = vector.load %arg4[%c0_8, %c0_9, %c0_10] : memref<1x1x64xi32, #tpu.memory_space<vmem>>, vector<1x1x64xi32>
    %7 = vector.shape_cast %6 : vector<1x1x64xi32> to vector<1x64xi32>
    %8 = arith.truncf %1 : vector<16x128xf32> to vector<16x128xbf16>
    %c0_11 = arith.constant 0 : index
    %c0_12 = arith.constant 0 : index
    %9 = vector.load %arg5[%c0_11, %c0_12] : memref<128x32xbf16, #tpu.memory_space<vmem>>, vector<128x32xbf16>
    %cst = arith.constant dense<0.000000e+00> : vector<16x32xf32>
    %10 = tpu.matmul %8, %9, %cst {dimension_numbers = #tpu.dot_dimension_numbers<[1], [0], [0], [1], [0, 0, 1, 1], [], []>} : vector<16x128xbf16>, vector<128x32xbf16>, vector<16x32xf32> -> vector<16x32xf32>
    %11 = arith.truncf %3 : vector<16x3xf32> to vector<16x3xbf16>
    %c0_13 = arith.constant 0 : index
    %c0_14 = arith.constant 0 : index
    %12 = vector.load %arg6[%c0_13, %c0_14] : memref<3x32xbf16, #tpu.memory_space<vmem>>, vector<3x32xbf16>
    %cst_15 = arith.constant dense<0.000000e+00> : vector<16x32xf32>
    %13 = tpu.matmul %11, %12, %cst_15 {dimension_numbers = #tpu.dot_dimension_numbers<[1], [0], [0], [1], [0, 0, 1, 1], [], []>} : vector<16x3xbf16>, vector<3x32xbf16>, vector<16x32xf32> -> vector<16x32xf32>
    %14 = tpu.iota {dimensions = array<i32: 0>} : vector<16x64xi32>
    %15 = vector.broadcast %5 : vector<1x64xi32> to vector<16x64xi32>
    %16 = arith.cmpi eq, %14, %15 : vector<16x64xi32>
    %17 = arith.extui %16 : vector<16x64xi1> to vector<16x64xi32>
    %18 = arith.sitofp %17 : vector<16x64xi32> to vector<16x64xf32>
    %19 = vector.broadcast %7 : vector<1x64xi32> to vector<16x64xi32>
    %20 = arith.cmpi eq, %14, %19 : vector<16x64xi32>
    %21 = arith.extui %20 : vector<16x64xi1> to vector<16x64xi32>
    %22 = arith.sitofp %21 : vector<16x64xi32> to vector<16x64xf32>
    %23 = arith.addf %10, %13 : vector<16x32xf32>
    %cst_16 = arith.constant dense<0.000000e+00> : vector<64x32xf32>
    %24 = tpu.matmul %18, %23, %cst_16 {dimension_numbers = #tpu.dot_dimension_numbers<[0], [0], [1], [1], [0, 1, 1, 1], [], []>} : vector<16x64xf32>, vector<16x32xf32>, vector<64x32xf32> -> vector<64x32xf32>
    %cst_17 = arith.constant dense<0.000000e+00> : vector<64x32xf32>
    %25 = tpu.matmul %22, %13, %cst_17 {dimension_numbers = #tpu.dot_dimension_numbers<[0], [0], [1], [1], [0, 1, 1, 1], [], []>} : vector<16x64xf32>, vector<16x32xf32>, vector<64x32xf32> -> vector<64x32xf32>
    %26 = arith.subf %24, %25 : vector<64x32xf32>
    %c0_18 = arith.constant 0 : index
    %c0_19 = arith.constant 0 : index
    %27 = vector.load %arg7[%c0_18, %c0_19] : memref<1x32xf32, #tpu.memory_space<vmem>>, vector<1x32xf32>
    %28 = vector.broadcast %27 : vector<1x32xf32> to vector<64x32xf32>
    %29 = arith.addf %26, %28 : vector<64x32xf32>
    %cst_20 = arith.constant 0.999994993 : f32
    %30 = vector.broadcast %cst_20 : f32 to vector<64x32xf32>
    %31 = arith.mulf %29, %30 : vector<64x32xf32>
    %cst_21 = arith.constant 0.000000e+00 : f32
    %32 = vector.broadcast %cst_21 : f32 to vector<64x32xf32>
    %33 = arith.subf %32, %31 : vector<64x32xf32>
    %34 = math.exp %33 : vector<64x32xf32>
    %cst_22 = arith.constant 1.000000e+00 : f32
    %35 = vector.broadcast %cst_22 : f32 to vector<64x32xf32>
    %36 = arith.addf %35, %34 : vector<64x32xf32>
    %cst_23 = arith.constant 1.000000e+00 : f32
    %37 = vector.broadcast %cst_23 : f32 to vector<64x32xf32>
    %38 = arith.divf %37, %36 : vector<64x32xf32>
    %39 = arith.truncf %38 : vector<64x32xf32> to vector<64x32xbf16>
    %c0_24 = arith.constant 0 : index
    %c0_25 = arith.constant 0 : index
    %40 = vector.load %arg8[%c0_24, %c0_25] : memref<32x32xbf16, #tpu.memory_space<vmem>>, vector<32x32xbf16>
    %cst_26 = arith.constant dense<0.000000e+00> : vector<64x32xf32>
    %41 = tpu.matmul %39, %40, %cst_26 {dimension_numbers = #tpu.dot_dimension_numbers<[1], [0], [0], [1], [0, 0, 1, 1], [], []>} : vector<64x32xbf16>, vector<32x32xbf16>, vector<64x32xf32> -> vector<64x32xf32>
    %c0_27 = arith.constant 0 : index
    %c0_28 = arith.constant 0 : index
    %42 = vector.load %arg9[%c0_27, %c0_28] : memref<1x32xf32, #tpu.memory_space<vmem>>, vector<1x32xf32>
    %43 = vector.broadcast %42 : vector<1x32xf32> to vector<64x32xf32>
    %44 = arith.addf %41, %43 : vector<64x32xf32>
    %cst_29 = arith.constant 0.999994993 : f32
    %45 = vector.broadcast %cst_29 : f32 to vector<64x32xf32>
    %46 = arith.mulf %44, %45 : vector<64x32xf32>
    %cst_30 = arith.constant 0.000000e+00 : f32
    %47 = vector.broadcast %cst_30 : f32 to vector<64x32xf32>
    %48 = arith.subf %47, %46 : vector<64x32xf32>
    %49 = math.exp %48 : vector<64x32xf32>
    %cst_31 = arith.constant 1.000000e+00 : f32
    %50 = vector.broadcast %cst_31 : f32 to vector<64x32xf32>
    %51 = arith.addf %50, %49 : vector<64x32xf32>
    %cst_32 = arith.constant 1.000000e+00 : f32
    %52 = vector.broadcast %cst_32 : f32 to vector<64x32xf32>
    %53 = arith.divf %52, %51 : vector<64x32xf32>
    %54 = arith.truncf %53 : vector<64x32xf32> to vector<64x32xbf16>
    %c0_33 = arith.constant 0 : index
    %c0_34 = arith.constant 0 : index
    %55 = vector.load %arg10[%c0_33, %c0_34] : memref<32x128xbf16, #tpu.memory_space<vmem>>, vector<32x128xbf16>
    %cst_35 = arith.constant dense<0.000000e+00> : vector<64x128xf32>
    %56 = tpu.matmul %54, %55, %cst_35 {dimension_numbers = #tpu.dot_dimension_numbers<[1], [0], [0], [1], [0, 0, 1, 1], [], []>} : vector<64x32xbf16>, vector<32x128xbf16>, vector<64x128xf32> -> vector<64x128xf32>
    %c0_36 = arith.constant 0 : index
    %c0_37 = arith.constant 0 : index
    %57 = vector.load %arg11[%c0_36, %c0_37] : memref<1x128xf32, #tpu.memory_space<vmem>>, vector<1x128xf32>
    %58 = vector.broadcast %57 : vector<1x128xf32> to vector<64x128xf32>
    %59 = arith.addf %56, %58 : vector<64x128xf32>
    %60 = vector.shape_cast %59 : vector<64x128xf32> to vector<4x16x128xf32>
    %cst_38 = arith.constant dense<0xFF800000> : vector<4x128xf32>
    %61 = vector.multi_reduction <maximumf>, %60, %cst_38 [1] : vector<4x16x128xf32> to vector<4x128xf32>
    %cst_39 = arith.constant 0.000000e+00 : f32
    %62 = vector.broadcast %cst_39 : f32 to vector<4x128xf32>
    %63 = arith.maximumf %61, %62 : vector<4x128xf32>
    %c0_40 = arith.constant 0 : index
    %c0_41 = arith.constant 0 : index
    %c0_42 = arith.constant 0 : index
    %64 = vector.load %arg12[%c0_40, %c0_41, %c0_42] : memref<1x4x128xf32, #tpu.memory_space<vmem>>, vector<1x4x128xf32>
    %65 = vector.shape_cast %64 : vector<1x4x128xf32> to vector<4x128xf32>
    %66 = vector.shape_cast %63 : vector<4x128xf32> to vector<1x4x128xf32>
    tpu.vector_store %arg12[%c0_40, %c0_41, %c0_42], %66 {strides = array<i32>} : memref<1x4x128xf32, #tpu.memory_space<vmem>>, vector<1x4x128xf32>,
    return
  }
  func.func @transform_0(%arg0: i32) -> (i32, i32, i32) {
    %c0_i32 = arith.constant 0 : i32
    %c0_i32_0 = arith.constant 0 : i32
    %c0_i32_1 = arith.constant 0 : i32
    return %arg0, %c0_i32, %c0_i32_0 : i32, i32, i32
  }
  func.func @transform_1(%arg0: i32) -> (i32, i32, i32) {
    %c0_i32 = arith.constant 0 : i32
    %c0_i32_0 = arith.constant 0 : i32
    %c0_i32_1 = arith.constant 0 : i32
    return %arg0, %c0_i32, %c0_i32_0 : i32, i32, i32
  }
  func.func @transform_2(%arg0: i32) -> (i32, i32, i32) {
    %c0_i32 = arith.constant 0 : i32
    %c0_i32_0 = arith.constant 0 : i32
    %c0_i32_1 = arith.constant 0 : i32
    return %arg0, %c0_i32, %c0_i32_0 : i32, i32, i32
  }
  func.func @transform_3(%arg0: i32) -> (i32, i32, i32) {
    %c0_i32 = arith.constant 0 : i32
    %c0_i32_0 = arith.constant 0 : i32
    %c0_i32_1 = arith.constant 0 : i32
    return %arg0, %c0_i32, %c0_i32_0 : i32, i32, i32
  }
  func.func @transform_4(%arg0: i32) -> (i32, i32) {
    %c0_i32 = arith.constant 0 : i32
    %c0_i32_0 = arith.constant 0 : i32
    %c0_i32_1 = arith.constant 0 : i32
    return %c0_i32, %c0_i32_0 : i32, i32
  }
  func.func @transform_5(%arg0: i32) -> (i32, i32) {
    %c0_i32 = arith.constant 0 : i32
    %c0_i32_0 = arith.constant 0 : i32
    %c0_i32_1 = arith.constant 0 : i32
    return %c0_i32, %c0_i32_0 : i32, i32
  }
  func.func @transform_6(%arg0: i32) -> (i32, i32) {
    %c0_i32 = arith.constant 0 : i32
    %c0_i32_0 = arith.constant 0 : i32
    %c0_i32_1 = arith.constant 0 : i32
    return %c0_i32, %c0_i32_0 : i32, i32
  }
  func.func @transform_7(%arg0: i32) -> (i32, i32) {
    %c0_i32 = arith.constant 0 : i32
    %c0_i32_0 = arith.constant 0 : i32
    %c0_i32_1 = arith.constant 0 : i32
    return %c0_i32, %c0_i32_0 : i32, i32
  }
  func.func @transform_8(%arg0: i32) -> (i32, i32) {
    %c0_i32 = arith.constant 0 : i32
    %c0_i32_0 = arith.constant 0 : i32
    %c0_i32_1 = arith.constant 0 : i32
    return %c0_i32, %c0_i32_0 : i32, i32
  }
  func.func @transform_9(%arg0: i32) -> (i32, i32) {
    %c0_i32 = arith.constant 0 : i32
    %c0_i32_0 = arith.constant 0 : i32
    %c0_i32_1 = arith.constant 0 : i32
    return %c0_i32, %c0_i32_0 : i32, i32
  }
  func.func @transform_10(%arg0: i32) -> (i32, i32) {
    %c0_i32 = arith.constant 0 : i32
    %c0_i32_0 = arith.constant 0 : i32
    %c0_i32_1 = arith.constant 0 : i32
    return %c0_i32, %c0_i32_0 : i32, i32
  }
  func.func @transform_11(%arg0: i32) -> (i32, i32, i32) {
    %c0_i32 = arith.constant 0 : i32
    %c0_i32_0 = arith.constant 0 : i32
    %c0_i32_1 = arith.constant 0 : i32
    return %arg0, %c0_i32, %c0_i32_0 : i32, i32, i32
  }
}

module attributes {stable_mosaic.version = 11 : i64} {
  func.func @sa_conv_kernel(%arg0: i32, %arg1: memref<1x64x4xf32, #tpu.memory_space<vmem>>, %arg2: memref<1x64x3xf32, #tpu.memory_space<vmem>>, %arg3: memref<1x1x512xi32, #tpu.memory_space<vmem>>, %arg4: memref<1x1x512xi32, #tpu.memory_space<vmem>>, %arg5: memref<4x16xbf16, #tpu.memory_space<vmem>>, %arg6: memref<3x16xbf16, #tpu.memory_space<vmem>>, %arg7: memref<1x16xf32, #tpu.memory_space<vmem>>, %arg8: memref<16x16xbf16, #tpu.memory_space<vmem>>, %arg9: memref<1x16xf32, #tpu.memory_space<vmem>>, %arg10: memref<16x128xbf16, #tpu.memory_space<vmem>>, %arg11: memref<1x128xf32, #tpu.memory_space<vmem>>, %arg12: memref<1x16x128xf32, #tpu.memory_space<vmem>>) attributes {dimension_semantics = [#tpu.dimension_semantics<parallel>], iteration_bounds = array<i64: 2>, scalar_prefetch = 0 : i64, scratch_operands = 0 : i64, tpu.core_type = #tpu.core_type<tc>, window_params = [{transform_indices = @transform_0, window_bounds = array<i64: 1, 64, 4>}, {transform_indices = @transform_1, window_bounds = array<i64: 1, 64, 3>}, {transform_indices = @transform_2, window_bounds = array<i64: 1, 1, 512>}, {transform_indices = @transform_3, window_bounds = array<i64: 1, 1, 512>}, {pipeline_mode = #tpu.pipeline_mode<synchronous>, transform_indices = @transform_4, window_bounds = array<i64: 4, 16>}, {pipeline_mode = #tpu.pipeline_mode<synchronous>, transform_indices = @transform_5, window_bounds = array<i64: 3, 16>}, {pipeline_mode = #tpu.pipeline_mode<synchronous>, transform_indices = @transform_6, window_bounds = array<i64: 1, 16>}, {pipeline_mode = #tpu.pipeline_mode<synchronous>, transform_indices = @transform_7, window_bounds = array<i64: 16, 16>}, {pipeline_mode = #tpu.pipeline_mode<synchronous>, transform_indices = @transform_8, window_bounds = array<i64: 1, 16>}, {pipeline_mode = #tpu.pipeline_mode<synchronous>, transform_indices = @transform_9, window_bounds = array<i64: 16, 128>}, {pipeline_mode = #tpu.pipeline_mode<synchronous>, transform_indices = @transform_10, window_bounds = array<i64: 1, 128>}, {transform_indices = @transform_11, window_bounds = array<i64: 1, 16, 128>}]} {
    %c0 = arith.constant 0 : index
    %c0_0 = arith.constant 0 : index
    %c0_1 = arith.constant 0 : index
    %0 = vector.load %arg1[%c0, %c0_0, %c0_1] : memref<1x64x4xf32, #tpu.memory_space<vmem>>, vector<1x64x4xf32>
    %1 = vector.shape_cast %0 : vector<1x64x4xf32> to vector<64x4xf32>
    %c0_2 = arith.constant 0 : index
    %c0_3 = arith.constant 0 : index
    %c0_4 = arith.constant 0 : index
    %2 = vector.load %arg2[%c0_2, %c0_3, %c0_4] : memref<1x64x3xf32, #tpu.memory_space<vmem>>, vector<1x64x3xf32>
    %3 = vector.shape_cast %2 : vector<1x64x3xf32> to vector<64x3xf32>
    %c0_5 = arith.constant 0 : index
    %c0_6 = arith.constant 0 : index
    %c0_7 = arith.constant 0 : index
    %4 = vector.load %arg3[%c0_5, %c0_6, %c0_7] : memref<1x1x512xi32, #tpu.memory_space<vmem>>, vector<1x1x512xi32>
    %5 = vector.shape_cast %4 : vector<1x1x512xi32> to vector<1x512xi32>
    %c0_8 = arith.constant 0 : index
    %c0_9 = arith.constant 0 : index
    %c0_10 = arith.constant 0 : index
    %6 = vector.load %arg4[%c0_8, %c0_9, %c0_10] : memref<1x1x512xi32, #tpu.memory_space<vmem>>, vector<1x1x512xi32>
    %7 = vector.shape_cast %6 : vector<1x1x512xi32> to vector<1x512xi32>
    %8 = arith.truncf %1 : vector<64x4xf32> to vector<64x4xbf16>
    %c0_11 = arith.constant 0 : index
    %c0_12 = arith.constant 0 : index
    %9 = vector.load %arg5[%c0_11, %c0_12] : memref<4x16xbf16, #tpu.memory_space<vmem>>, vector<4x16xbf16>
    %cst = arith.constant dense<0.000000e+00> : vector<64x16xf32>
    %10 = tpu.matmul %8, %9, %cst {dimension_numbers = #tpu.dot_dimension_numbers<[1], [0], [0], [1], [0, 0, 1, 1], [], []>} : vector<64x4xbf16>, vector<4x16xbf16>, vector<64x16xf32> -> vector<64x16xf32>
    %11 = arith.truncf %3 : vector<64x3xf32> to vector<64x3xbf16>
    %c0_13 = arith.constant 0 : index
    %c0_14 = arith.constant 0 : index
    %12 = vector.load %arg6[%c0_13, %c0_14] : memref<3x16xbf16, #tpu.memory_space<vmem>>, vector<3x16xbf16>
    %cst_15 = arith.constant dense<0.000000e+00> : vector<64x16xf32>
    %13 = tpu.matmul %11, %12, %cst_15 {dimension_numbers = #tpu.dot_dimension_numbers<[1], [0], [0], [1], [0, 0, 1, 1], [], []>} : vector<64x3xbf16>, vector<3x16xbf16>, vector<64x16xf32> -> vector<64x16xf32>
    %14 = tpu.iota {dimensions = array<i32: 0>} : vector<64x512xi32>
    %15 = vector.broadcast %5 : vector<1x512xi32> to vector<64x512xi32>
    %16 = arith.cmpi eq, %14, %15 : vector<64x512xi32>
    %17 = arith.extui %16 : vector<64x512xi1> to vector<64x512xi32>
    %18 = arith.sitofp %17 : vector<64x512xi32> to vector<64x512xf32>
    %19 = vector.broadcast %7 : vector<1x512xi32> to vector<64x512xi32>
    %20 = arith.cmpi eq, %14, %19 : vector<64x512xi32>
    %21 = arith.extui %20 : vector<64x512xi1> to vector<64x512xi32>
    %22 = arith.sitofp %21 : vector<64x512xi32> to vector<64x512xf32>
    %23 = arith.addf %10, %13 : vector<64x16xf32>
    %cst_16 = arith.constant dense<0.000000e+00> : vector<512x16xf32>
    %24 = tpu.matmul %18, %23, %cst_16 {dimension_numbers = #tpu.dot_dimension_numbers<[0], [0], [1], [1], [0, 1, 1, 1], [], []>} : vector<64x512xf32>, vector<64x16xf32>, vector<512x16xf32> -> vector<512x16xf32>
    %cst_17 = arith.constant dense<0.000000e+00> : vector<512x16xf32>
    %25 = tpu.matmul %22, %13, %cst_17 {dimension_numbers = #tpu.dot_dimension_numbers<[0], [0], [1], [1], [0, 1, 1, 1], [], []>} : vector<64x512xf32>, vector<64x16xf32>, vector<512x16xf32> -> vector<512x16xf32>
    %26 = arith.subf %24, %25 : vector<512x16xf32>
    %c0_18 = arith.constant 0 : index
    %c0_19 = arith.constant 0 : index
    %27 = vector.load %arg7[%c0_18, %c0_19] : memref<1x16xf32, #tpu.memory_space<vmem>>, vector<1x16xf32>
    %28 = vector.broadcast %27 : vector<1x16xf32> to vector<512x16xf32>
    %29 = arith.addf %26, %28 : vector<512x16xf32>
    %cst_20 = arith.constant 0.999994993 : f32
    %30 = vector.broadcast %cst_20 : f32 to vector<512x16xf32>
    %31 = arith.mulf %29, %30 : vector<512x16xf32>
    %cst_21 = arith.constant 0.000000e+00 : f32
    %32 = vector.broadcast %cst_21 : f32 to vector<512x16xf32>
    %33 = arith.subf %32, %31 : vector<512x16xf32>
    %34 = math.exp %33 : vector<512x16xf32>
    %cst_22 = arith.constant 1.000000e+00 : f32
    %35 = vector.broadcast %cst_22 : f32 to vector<512x16xf32>
    %36 = arith.addf %35, %34 : vector<512x16xf32>
    %cst_23 = arith.constant 1.000000e+00 : f32
    %37 = vector.broadcast %cst_23 : f32 to vector<512x16xf32>
    %38 = arith.divf %37, %36 : vector<512x16xf32>
    %39 = arith.truncf %38 : vector<512x16xf32> to vector<512x16xbf16>
    %c0_24 = arith.constant 0 : index
    %c0_25 = arith.constant 0 : index
    %40 = vector.load %arg8[%c0_24, %c0_25] : memref<16x16xbf16, #tpu.memory_space<vmem>>, vector<16x16xbf16>
    %cst_26 = arith.constant dense<0.000000e+00> : vector<512x16xf32>
    %41 = tpu.matmul %39, %40, %cst_26 {dimension_numbers = #tpu.dot_dimension_numbers<[1], [0], [0], [1], [0, 0, 1, 1], [], []>} : vector<512x16xbf16>, vector<16x16xbf16>, vector<512x16xf32> -> vector<512x16xf32>
    %c0_27 = arith.constant 0 : index
    %c0_28 = arith.constant 0 : index
    %42 = vector.load %arg9[%c0_27, %c0_28] : memref<1x16xf32, #tpu.memory_space<vmem>>, vector<1x16xf32>
    %43 = vector.broadcast %42 : vector<1x16xf32> to vector<512x16xf32>
    %44 = arith.addf %41, %43 : vector<512x16xf32>
    %cst_29 = arith.constant 0.999994993 : f32
    %45 = vector.broadcast %cst_29 : f32 to vector<512x16xf32>
    %46 = arith.mulf %44, %45 : vector<512x16xf32>
    %cst_30 = arith.constant 0.000000e+00 : f32
    %47 = vector.broadcast %cst_30 : f32 to vector<512x16xf32>
    %48 = arith.subf %47, %46 : vector<512x16xf32>
    %49 = math.exp %48 : vector<512x16xf32>
    %cst_31 = arith.constant 1.000000e+00 : f32
    %50 = vector.broadcast %cst_31 : f32 to vector<512x16xf32>
    %51 = arith.addf %50, %49 : vector<512x16xf32>
    %cst_32 = arith.constant 1.000000e+00 : f32
    %52 = vector.broadcast %cst_32 : f32 to vector<512x16xf32>
    %53 = arith.divf %52, %51 : vector<512x16xf32>
    %54 = arith.truncf %53 : vector<512x16xf32> to vector<512x16xbf16>
    %c0_33 = arith.constant 0 : index
    %c0_34 = arith.constant 0 : index
    %55 = vector.load %arg10[%c0_33, %c0_34] : memref<16x128xbf16, #tpu.memory_space<vmem>>, vector<16x128xbf16>
    %cst_35 = arith.constant dense<0.000000e+00> : vector<512x128xf32>
    %56 = tpu.matmul %54, %55, %cst_35 {dimension_numbers = #tpu.dot_dimension_numbers<[1], [0], [0], [1], [0, 0, 1, 1], [], []>} : vector<512x16xbf16>, vector<16x128xbf16>, vector<512x128xf32> -> vector<512x128xf32>
    %c0_36 = arith.constant 0 : index
    %c0_37 = arith.constant 0 : index
    %57 = vector.load %arg11[%c0_36, %c0_37] : memref<1x128xf32, #tpu.memory_space<vmem>>, vector<1x128xf32>
    %58 = vector.broadcast %57 : vector<1x128xf32> to vector<512x128xf32>
    %59 = arith.addf %56, %58 : vector<512x128xf32>
    %60 = vector.shape_cast %59 : vector<512x128xf32> to vector<16x32x128xf32>
    %cst_38 = arith.constant dense<0xFF800000> : vector<16x128xf32>
    %61 = vector.multi_reduction <maximumf>, %60, %cst_38 [1] : vector<16x32x128xf32> to vector<16x128xf32>
    %cst_39 = arith.constant 0.000000e+00 : f32
    %62 = vector.broadcast %cst_39 : f32 to vector<16x128xf32>
    %63 = arith.maximumf %61, %62 : vector<16x128xf32>
    %c0_40 = arith.constant 0 : index
    %c0_41 = arith.constant 0 : index
    %c0_42 = arith.constant 0 : index
    %64 = vector.load %arg12[%c0_40, %c0_41, %c0_42] : memref<1x16x128xf32, #tpu.memory_space<vmem>>, vector<1x16x128xf32>
    %65 = vector.shape_cast %64 : vector<1x16x128xf32> to vector<16x128xf32>
    %66 = vector.shape_cast %63 : vector<16x128xf32> to vector<1x16x128xf32>
    tpu.vector_store %arg12[%c0_40, %c0_41, %c0_42], %66 {strides = array<i32>} : memref<1x16x128xf32, #tpu.memory_space<vmem>>, vector<1x16x128xf32>,
    return
  }
  func.func @transform_0(%arg0: i32) -> (i32, i32, i32) {
    %c0_i32 = arith.constant 0 : i32
    %c0_i32_0 = arith.constant 0 : i32
    %c0_i32_1 = arith.constant 0 : i32
    return %arg0, %c0_i32, %c0_i32_0 : i32, i32, i32
  }
  func.func @transform_1(%arg0: i32) -> (i32, i32, i32) {
    %c0_i32 = arith.constant 0 : i32
    %c0_i32_0 = arith.constant 0 : i32
    %c0_i32_1 = arith.constant 0 : i32
    return %arg0, %c0_i32, %c0_i32_0 : i32, i32, i32
  }
  func.func @transform_2(%arg0: i32) -> (i32, i32, i32) {
    %c0_i32 = arith.constant 0 : i32
    %c0_i32_0 = arith.constant 0 : i32
    %c0_i32_1 = arith.constant 0 : i32
    return %arg0, %c0_i32, %c0_i32_0 : i32, i32, i32
  }
  func.func @transform_3(%arg0: i32) -> (i32, i32, i32) {
    %c0_i32 = arith.constant 0 : i32
    %c0_i32_0 = arith.constant 0 : i32
    %c0_i32_1 = arith.constant 0 : i32
    return %arg0, %c0_i32, %c0_i32_0 : i32, i32, i32
  }
  func.func @transform_4(%arg0: i32) -> (i32, i32) {
    %c0_i32 = arith.constant 0 : i32
    %c0_i32_0 = arith.constant 0 : i32
    %c0_i32_1 = arith.constant 0 : i32
    return %c0_i32, %c0_i32_0 : i32, i32
  }
  func.func @transform_5(%arg0: i32) -> (i32, i32) {
    %c0_i32 = arith.constant 0 : i32
    %c0_i32_0 = arith.constant 0 : i32
    %c0_i32_1 = arith.constant 0 : i32
    return %c0_i32, %c0_i32_0 : i32, i32
  }
  func.func @transform_6(%arg0: i32) -> (i32, i32) {
    %c0_i32 = arith.constant 0 : i32
    %c0_i32_0 = arith.constant 0 : i32
    %c0_i32_1 = arith.constant 0 : i32
    return %c0_i32, %c0_i32_0 : i32, i32
  }
  func.func @transform_7(%arg0: i32) -> (i32, i32) {
    %c0_i32 = arith.constant 0 : i32
    %c0_i32_0 = arith.constant 0 : i32
    %c0_i32_1 = arith.constant 0 : i32
    return %c0_i32, %c0_i32_0 : i32, i32
  }
  func.func @transform_8(%arg0: i32) -> (i32, i32) {
    %c0_i32 = arith.constant 0 : i32
    %c0_i32_0 = arith.constant 0 : i32
    %c0_i32_1 = arith.constant 0 : i32
    return %c0_i32, %c0_i32_0 : i32, i32
  }
  func.func @transform_9(%arg0: i32) -> (i32, i32) {
    %c0_i32 = arith.constant 0 : i32
    %c0_i32_0 = arith.constant 0 : i32
    %c0_i32_1 = arith.constant 0 : i32
    return %c0_i32, %c0_i32_0 : i32, i32
  }
  func.func @transform_10(%arg0: i32) -> (i32, i32) {
    %c0_i32 = arith.constant 0 : i32
    %c0_i32_0 = arith.constant 0 : i32
    %c0_i32_1 = arith.constant 0 : i32
    return %c0_i32, %c0_i32_0 : i32, i32
  }
  func.func @transform_11(%arg0: i32) -> (i32, i32, i32) {
    %c0_i32 = arith.constant 0 : i32
    %c0_i32_0 = arith.constant 0 : i32
    %c0_i32_1 = arith.constant 0 : i32
    return %arg0, %c0_i32, %c0_i32_0 : i32, i32, i32
  }
}

</mosaic_0001>

<llo_original>
// kernel: feature_model_forward.5
$region0: #{feature_model_forward.5}
  #allocation0 [shape = 'u32[]', space=smem, size = 0x4, offset = 0x4, fixed_abs, tag = 'smem constant byte address 0x4 - core index']
  #allocation1 [shape = 'u32[72,128]{1,0:T(1,128)}', space=vmem, size = 0x9000, scoped, tag = 'internal scratch']
  %s0 = inlined_call_operand.vmem [shape: f32[2,4,128], index: 0, kind: input, shape index: {}]
  %s1 = inlined_call_operand.vmem [shape: f32[2,4,3], index: 1, kind: input, shape index: {}]
  %s2 = inlined_call_operand.vmem [shape: bf16[128,64], index: 2, kind: input, shape index: {}]
  %s3 = inlined_call_operand.vmem [shape: bf16[3,64], index: 3, kind: input, shape index: {}]
  %s4 = inlined_call_operand.vmem [shape: f32[1,64], index: 4, kind: input, shape index: {}]
  %s5 = inlined_call_operand.vmem [shape: bf16[64,64], index: 5, kind: input, shape index: {}]
  %s6 = inlined_call_operand.vmem [shape: f32[1,64], index: 6, kind: input, shape index: {}]
  %s7 = inlined_call_operand.vmem [shape: bf16[64,128], index: 7, kind: input, shape index: {}]
  %s8 = inlined_call_operand.vmem [shape: f32[1,128], index: 8, kind: input, shape index: {}]
  %s9 = inlined_call_operand.hbm [shape: f32[2,128], index: 9, kind: output, shape index: {}]
  %s10 = sld [smem:[#allocation0]]
  $region46: #{feature_model_forward.5} parent=0
    _
  %s12 = ssub.s32 1, %s10
  %s13 = scalar_select 0, %s12, %s10
  $region1: #{feature_model_forward.5} parent=0
    #allocation2 [shape = 'u8[1024]{0}', space=vmem, size = 0x400, scoped, tag = 'output window, operand 0, single buffered']
    #allocation3 [shape = 's32[1]{0}', space=sflag, size = 0x4, scoped, tag = 'scoped memory for feature_model_forward.5']
    %14 = vsyncpa [#allocation3], 0
    // Predicated region
    $region2: #{feature_model_forward.5} parent=1 // pred_check
      _
    $region3: #{feature_model_forward.5} parent=1 // pred_check_branch
      %16 = sbr.rel (0) target = $region5
    $region4: #{feature_model_forward.5} parent=1 // pred_region
      _
    $region5: #{feature_model_forward.5} parent=1 // pred_fallthru
      _
    // Predicated region
    $region6: #{feature_model_forward.5} parent=1 // pred_check
      _
    $region7: #{feature_model_forward.5} parent=1 // pred_check_branch
      %18 = sbr.rel (0) target = $region9
    $region8: #{feature_model_forward.5} parent=1 // pred_region
      _
    $region9: #{feature_model_forward.5} parent=1 // pred_fallthru
      _
    // Predicated region
    $region10: #{feature_model_forward.5} parent=1 // pred_check
      _
    $region11: #{feature_model_forward.5} parent=1 // pred_check_branch
      %20 = sbr.rel (0) target = $region13
    $region12: #{feature_model_forward.5} parent=1 // pred_region
      _
    $region13: #{feature_model_forward.5} parent=1 // pred_fallthru
      _
    // Predicated region
    $region14: #{feature_model_forward.5} parent=1 // pred_check
      _
    $region15: #{feature_model_forward.5} parent=1 // pred_check_branch
      %22 = sbr.rel (0) target = $region17
    $region16: #{feature_model_forward.5} parent=1 // pred_region
      _
    $region17: #{feature_model_forward.5} parent=1 // pred_fallthru
      _
    // Predicated region
    $region18: #{feature_model_forward.5} parent=1 // pred_check
      _
    $region19: #{feature_model_forward.5} parent=1 // pred_check_branch
      %24 = sbr.rel (0) target = $region21
    $region20: #{feature_model_forward.5} parent=1 // pred_region
      _
    $region21: #{feature_model_forward.5} parent=1 // pred_fallthru
      _
    // Predicated region
    $region22: #{feature_model_forward.5} parent=1 // pred_check
      _
    $region23: #{feature_model_forward.5} parent=1 // pred_check_branch
      %26 = sbr.rel (0) target = $region25
    $region24: #{feature_model_forward.5} parent=1 // pred_region
      _
    $region25: #{feature_model_forward.5} parent=1 // pred_fallthru
      _
    // Predicated region
    $region26: #{feature_model_forward.5} parent=1 // pred_check
      _
    $region27: #{feature_model_forward.5} parent=1 // pred_check_branch
      %28 = sbr.rel (0) target = $region29
    $region28: #{feature_model_forward.5} parent=1 // pred_region
      _
    $region29: #{feature_model_forward.5} parent=1 // pred_fallthru
      _
    // Predicated region
    $region30: #{feature_model_forward.5} parent=1 // pred_check
      _
    $region31: #{feature_model_forward.5} parent=1 // pred_check_branch
      %30 = sbr.rel (0) target = $region33
    $region32: #{feature_model_forward.5} parent=1 // pred_region
      _
    $region33: #{feature_model_forward.5} parent=1 // pred_fallthru
      _
    // Predicated region
    $region34: #{feature_model_forward.5} parent=1 // pred_check
      _
    $region35: #{feature_model_forward.5} parent=1 // pred_check_branch
      %32 = sbr.rel (0) target = $region37
    $region36: #{feature_model_forward.5} parent=1 // pred_region
      _
    $region37: #{feature_model_forward.5} parent=1 // pred_fallthru
      _
    %v34 = vld [vmem:[%s0] sm:$0xf]
    %v35 = vld [vmem:[%s0 + $0x4] sm:$0xf]
    %v36 = vld [vmem:[%s1] sm:$0xf]
    %v37 = vld [vmem:[%s1 + $0x4] sm:$0xf]
    %40 = vst [vmem:[#allocation1] ss:$2 sm:$0xff] %v34
    %s41 = scalar_lea.vmem [#allocation1], 1
    %42 = vst [vmem:[%s41] ss:$2 sm:$0xff] %v35
    %v43 = vld.sshfl [vmem:[#allocation1] sm:$0xff pattern:$0x75316420]
    %v45 = vpack.c.bf16 %v43, %v43
    %v46 = vld [vmem:[%s2] sm:$0xf]
    %v47 = vld [vmem:[%s2 + $0x4] sm:$0xf]
    %v48 = vld [vmem:[%s2 + $0x8] sm:$0xf]
    %v49 = vld [vmem:[%s2 + $0xc] sm:$0xf]
    %v50 = vld [vmem:[%s2 + $0x10] sm:$0xf]
    %v51 = vld [vmem:[%s2 + $0x14] sm:$0xf]
    %v52 = vld [vmem:[%s2 + $0x18] sm:$0xf]
    %v53 = vld [vmem:[%s2 + $0x1c] sm:$0xf]
    %v54 = vld [vmem:[%s2 + $0x20] sm:$0xf]
    %v55 = vld [vmem:[%s2 + $0x24] sm:$0xf]
    %v56 = vld [vmem:[%s2 + $0x28] sm:$0xf]
    %v57 = vld [vmem:[%s2 + $0x2c] sm:$0xf]
    %v58 = vld [vmem:[%s2 + $0x30] sm:$0xf]
    %v59 = vld [vmem:[%s2 + $0x34] sm:$0xf]
    %v60 = vld [vmem:[%s2 + $0x38] sm:$0xf]
    %v61 = vld [vmem:[%s2 + $0x3c] sm:$0xf]
    %64 = vst [vmem:[#allocation1] ss:$2 sm:$0xff] %v36
    %s65 = scalar_lea.vmem [#allocation1], 1
    %66 = vst [vmem:[%s65] ss:$2 sm:$0xff] %v37
    %v67 = vld.sshfl [vmem:[#allocation1] sm:$0xff pattern:$0x75316420]
    %v69 = vpack.c.bf16 %v67, %v67
    %v70 = vld [vmem:[%s3] sm:$0x3]
    %vm71 = vcmask 23552
    %v73 = vsel %vm71, %v69, 0
    %vm75 = vcmask 1040384
    %vm76 = vcmask 1041408
    %v77 = vsel %vm75, 4294967295, 65535
    %v78 = vsel %vm76, %v77, 0
    %v80 = vand.u32 %v70, %v78
    %82 = vmatpush.bf16.msra.mxu0 0
    %83 = vmatpush.bf16.msra.mxu0 0
    %84 = vmatpush.bf16.msra.mxu0 0
    %85 = vmatpush.bf16.msra.mxu0 0
    %86 = vmatpush.bf16.msra.mxu0 0
    %87 = vmatpush.bf16.msra.mxu0 0
    %88 = vmatpush.bf16.msra.mxu0 0
    %89 = vmatpush.bf16.msra.mxu0 %v80
    %90 = vmatmul.bf16.gmra.mxu0 %v73
    %v91 = vpop.f32.mrf.mxu0
    %v92 = vadd.f32 0.0, %v91
    %v93 = vpop.f32.mrf.mxu0
    %94 = vdwg.mxu0
    %v111 = vunpack.c.l.b16 %v46
    %v112 = vunpack.c.l.b16 %v47
    %v113 = vunpack.c.l.b16 %v48
    %v114 = vunpack.c.l.b16 %v49
    %v115 = vunpack.c.l.b16 %v50
    %v116 = vunpack.c.l.b16 %v51
    %v117 = vunpack.c.l.b16 %v52
    %v118 = vunpack.c.l.b16 %v53
    %v119 = vunpack.c.l.b16 %v54
    %v120 = vunpack.c.l.b16 %v55
    %v121 = vunpack.c.l.b16 %v56
    %v122 = vunpack.c.l.b16 %v57
    %v123 = vunpack.c.l.b16 %v58
    %v124 = vunpack.c.l.b16 %v59
    %v125 = vunpack.c.l.b16 %v60
    %v126 = vunpack.c.l.b16 %v61
    %v127 = vpack.c.b16 %v112, %v111
    %v128 = vpack.c.b16 %v114, %v113
    %v129 = vpack.c.b16 %v116, %v115
    %v130 = vpack.c.b16 %v118, %v117
    %v131 = vpack.c.b16 %v120, %v119
    %v132 = vpack.c.b16 %v122, %v121
    %v133 = vpack.c.b16 %v124, %v123
    %v134 = vpack.c.b16 %v126, %v125
    %143 = vmatpush.bf16.msra.mxu0 %v134
    %144 = vmatpush.bf16.msra.mxu0 %v133
    %145 = vmatpush.bf16.msra.mxu0 %v132
    %146 = vmatpush.bf16.msra.mxu0 %v131
    %147 = vmatpush.bf16.msra.mxu0 %v130
    %148 = vmatpush.bf16.msra.mxu0 %v129
    %149 = vmatpush.bf16.msra.mxu0 %v128
    %150 = vmatpush.bf16.msra.mxu0 %v127
    %151 = vmatmul.bf16.gmra.mxu0 %v45
    %v152 = vpop.f32.mrf.mxu0
    %v153 = vadd.f32 %v92, %v152
    %v154 = vpop.f32.mrf.mxu0
    %155 = vdwg.mxu0
    %v156 = vld [vmem:[%s4] sm:$0x1]
    %v158 = vperm.slane %v156, 0
    %v160 = vadd.f32 %v153, %v158
    %v161 = vmul.f32 %v160, 0.999995
    %v162 = vsub.f32 0.0, %v161
    %v163 = vmul.f32 %v162, 1.442695
    %v164 = vpow.pop %v163
    %v165 = vadd.f32 %v164, 1.0
    %v166 = vrcp.pop %v165
    %v167 = vmul.f32 %v165, %v166
    %v168 = vsub.f32 1.0, %v167
    %v169 = vmul.f32 %v166, %v168
    %v170 = vadd.f32 %v166, %v169
    %vm171 = vweird.f32 %v165
    %vm172 = vweird.f32 %v166
    %vm173 = vmor %vm171, %vm172
    %v174 = vsel %vm173, %v166, %v170
    %v175 = vand.u32 2147483647, %v165
    %vm176 = vcmp.eq.f32.partialorder %v175, 8.507059e+37
    %v177 = vand.u32 %v165, 2147483648
    %v178 = vor.u32 1.1754944e-38, %v177
    %v179 = vsel %vm176, %v178, %v174
    %v180 = vmul.f32 1.0, %v179
    %v181 = vpack.c.bf16 %v180, %v180
    %v182 = vld [vmem:[%s5] sm:$0xf]
    %v183 = vld [vmem:[%s5 + $0x4] sm:$0xf]
    %v184 = vld [vmem:[%s5 + $0x8] sm:$0xf]
    %v185 = vld [vmem:[%s5 + $0xc] sm:$0xf]
    %v186 = vld [vmem:[%s5 + $0x10] sm:$0xf]
    %v187 = vld [vmem:[%s5 + $0x14] sm:$0xf]
    %v188 = vld [vmem:[%s5 + $0x18] sm:$0xf]
    %v189 = vld [vmem:[%s5 + $0x1c] sm:$0xf]
    %v190 = vld [vmem:[%s6] sm:$0x1]
    %v192 = vperm.slane %v190, 0
    %v202 = vunpack.c.l.b16 %v182
    %v203 = vunpack.c.l.b16 %v183
    %v204 = vunpack.c.l.b16 %v184
    %v205 = vunpack.c.l.b16 %v185
    %v206 = vunpack.c.l.b16 %v186
    %v207 = vunpack.c.l.b16 %v187
    %v208 = vunpack.c.l.b16 %v188
    %v209 = vunpack.c.l.b16 %v189
    %v210 = vpack.c.b16 %v203, %v202
    %v211 = vpack.c.b16 %v205, %v204
    %v212 = vpack.c.b16 %v207, %v206
    %v213 = vpack.c.b16 %v209, %v208
    %vm218 = vcmask 523264
    %v220 = vsel %vm218, %v181, 0
    %222 = vmatpush.bf16.msra.mxu0 0
    %223 = vmatpush.bf16.msra.mxu0 0
    %224 = vmatpush.bf16.msra.mxu0 0
    %225 = vmatpush.bf16.msra.mxu0 0
    %226 = vmatpush.bf16.msra.mxu0 %v213
    %227 = vmatpush.bf16.msra.mxu0 %v212
    %228 = vmatpush.bf16.msra.mxu0 %v211
    %229 = vmatpush.bf16.msra.mxu0 %v210
    %230 = vmatmul.bf16.gmra.mxu0 %v220
    %v231 = vpop.f32.mrf.mxu0
    %v232 = vadd.f32 %v192, %v231
    %v233 = vpop.f32.mrf.mxu0
    %234 = vdwg.mxu0
    %v235 = vmul.f32 %v232, 0.999995
    %v236 = vsub.f32 0.0, %v235
    %v237 = vmul.f32 %v236, 1.442695
    %v238 = vpow.pop %v237
    %v239 = vadd.f32 %v238, 1.0
    %v240 = vrcp.pop %v239
    %v241 = vmul.f32 %v239, %v240
    %v242 = vsub.f32 1.0, %v241
    %v243 = vmul.f32 %v240, %v242
    %v244 = vadd.f32 %v240, %v243
    %vm245 = vweird.f32 %v239
    %vm246 = vweird.f32 %v240
    %vm247 = vmor %vm245, %vm246
    %v248 = vsel %vm247, %v240, %v244
    %v249 = vand.u32 2147483647, %v239
    %vm250 = vcmp.eq.f32.partialorder %v249, 8.507059e+37
    %v251 = vand.u32 %v239, 2147483648
    %v252 = vor.u32 1.1754944e-38, %v251
    %v253 = vsel %vm250, %v252, %v248
    %v254 = vmul.f32 1.0, %v253
    %v255 = vpack.c.bf16 %v254, %v254
    %v256 = vld [vmem:[%s7] sm:$0xf]
    %v257 = vld [vmem:[%s7 + $0x4] sm:$0xf]
    %v258 = vld [vmem:[%s7 + $0x8] sm:$0xf]
    %v259 = vld [vmem:[%s7 + $0xc] sm:$0xf]
    %v260 = vld [vmem:[%s7 + $0x10] sm:$0xf]
    %v261 = vld [vmem:[%s7 + $0x14] sm:$0xf]
    %v262 = vld [vmem:[%s7 + $0x18] sm:$0xf]
    %v263 = vld [vmem:[%s7 + $0x1c] sm:$0xf]
    %v264 = vld [vmem:[%s8] sm:$0x1]
    %v266 = vperm.slane %v264, 0
    %v276 = vunpack.c.l.b16 %v256
    %v277 = vunpack.c.l.b16 %v257
    %v278 = vunpack.c.l.b16 %v258
    %v279 = vunpack.c.l.b16 %v259
    %v280 = vunpack.c.l.b16 %v260
    %v281 = vunpack.c.l.b16 %v261
    %v282 = vunpack.c.l.b16 %v262
    %v283 = vunpack.c.l.b16 %v263
    %v284 = vpack.c.b16 %v277, %v276
    %v285 = vpack.c.b16 %v279, %v278
    %v286 = vpack.c.b16 %v281, %v280
    %v287 = vpack.c.b16 %v283, %v282
    %v293 = vsel %vm218, %v255, 0
    %295 = vmatpush.bf16.msra.mxu0 0
    %296 = vmatpush.bf16.msra.mxu0 0
    %297 = vmatpush.bf16.msra.mxu0 0
    %298 = vmatpush.bf16.msra.mxu0 0
    %299 = vmatpush.bf16.msra.mxu0 %v287
    %300 = vmatpush.bf16.msra.mxu0 %v286
    %301 = vmatpush.bf16.msra.mxu0 %v285
    %302 = vmatpush.bf16.msra.mxu0 %v284
    %303 = vmatmul.bf16.gmra.mxu0 %v293
    %v304 = vpop.f32.mrf.mxu0
    %v305 = vadd.f32 %v266, %v304
    %v306 = vpop.f32.mrf.mxu0
    %307 = vdwg.mxu0
    %v308 = vmax.f32 %v305, 0.0
    %v310 = vrot.slane %v308, 4
    %vm312 = vcmask 1043456
    %v313 = vsel %vm312, %v308, -inf
    %v314 = vrot.slane %v313, 4
    %v315 = vmax.f32 %v313, %v314
    %v316 = vrot.slane %v315, 2
    %v317 = vmax.f32 %v315, %v316
    %v318 = vrot.slane %v317, 1
    %v319 = vmax.f32 %v317, %v318
    %v320 = vsel %vm312, %v310, -inf
    %v321 = vrot.slane %v320, 4
    %v322 = vmax.f32 %v320, %v321
    %v323 = vrot.slane %v322, 2
    %v324 = vmax.f32 %v322, %v323
    %v325 = vrot.slane %v324, 1
    %v326 = vmax.f32 %v324, %v325
    %vm329 = vcmask 1041409
    %v330 = vsel %vm329, %v326, %v319
    %v332 = vsel %vm76, %v330, -inf
    %333 = vmax.xlane.f32.xlu0 %v332
    %v334 = vpop.xlane.xlu0 %333
    %v336 = vrot.slane %v334, 1
    %v339 = vsub.f32 %v319, %v334
    %v340 = vsub.f32 %v326, %v336
    %v341 = vmul.f32 %v339, 1.442695
    %v342 = vpow.pop %v341
    %v343 = vmul.f32 %v340, 1.442695
    %v344 = vpow.pop %v343
    %v347 = vrot.slane %v344, 7
    %v348 = vsel %vm329, %v347, %v342
    %v350 = vsel %vm76, %v348, 0.0
    %351 = vadd.xlane.f32.xlu0 %v350
    %v352 = vpop.xlane.xlu0 %351
    %v354 = vrot.slane %v352, 1
    %v357 = vrcp.pop %v352
    %v358 = vmul.f32 %v352, %v357
    %v359 = vsub.f32 1.0, %v358
    %v360 = vmul.f32 %v357, %v359
    %v361 = vadd.f32 %v357, %v360
    %vm362 = vweird.f32 %v352
    %vm363 = vweird.f32 %v357
    %vm364 = vmor %vm362, %vm363
    %v365 = vsel %vm364, %v357, %v361
    %v366 = vand.u32 2147483647, %v352
    %vm367 = vcmp.eq.f32.partialorder %v366, 8.507059e+37
    %v368 = vand.u32 %v352, 2147483648
    %v369 = vor.u32 1.1754944e-38, %v368
    %v370 = vsel %vm367, %v369, %v365
    %v371 = vmul.f32 %v342, %v370
    %v372 = vrcp.pop %v354
    %v373 = vmul.f32 %v354, %v372
    %v374 = vsub.f32 1.0, %v373
    %v375 = vmul.f32 %v372, %v374
    %v376 = vadd.f32 %v372, %v375
    %vm377 = vweird.f32 %v354
    %vm378 = vweird.f32 %v372
    %vm379 = vmor %vm377, %vm378
    %v380 = vsel %vm379, %v372, %v376
    %v381 = vand.u32 2147483647, %v354
    %vm382 = vcmp.eq.f32.partialorder %v381, 8.507059e+37
    %v383 = vand.u32 %v354, 2147483648
    %v384 = vor.u32 1.1754944e-38, %v383
    %v385 = vsel %vm382, %v384, %v380
    %v386 = vmul.f32 %v344, %v385
    %v389 = vrot.slane %v386, 7
    %v390 = vsel %vm329, %v389, %v371
    %392 = vst [vmem:[#allocation2] sm:$0x3] %v390
    // Predicated region
    $region38: #{feature_model_forward.5} parent=1 // pred_check
      _
    $region39: #{feature_model_forward.5} parent=1 // pred_check_branch
      %394 = sbr.rel (0) target = $region41
    $region40: #{feature_model_forward.5} parent=1 // pred_region
      %396 = vsyncadd [#allocation3], 0
      %s398 = sshll.u32 [#allocation2], 4
      %s399 = int_to_ptr.vmem [resolvable:$true] %s398
      %s400 = sshll.u32 %s9, 4
      %s401 = int_to_ptr.hbm [resolvable:$true] %s400
      %403 = dma.vmem_to_hbm [thread:$0]  %s399, 32, %s401, [#allocation3]
    $region41: #{feature_model_forward.5} parent=1 // pred_fallthru
      _
    // Predicated region
    $region42: #{feature_model_forward.5} parent=1 // pred_check
      _
    $region43: #{feature_model_forward.5} parent=1 // pred_check_branch
      %405 = sbr.rel (0) target = $region45
    $region44: #{feature_model_forward.5} parent=1 // pred_region
      %407 = dma.done [#allocation3], 32
    $region45: #{feature_model_forward.5} parent=1 // pred_fallthru
      _
    %408 = vsyncpa [#allocation3], 1

// kernel: feature_model_forward.4
$region0: #{feature_model_forward.4}
  #allocation0 [shape = 'u32[]', space=smem, size = 0x4, offset = 0x4, fixed_abs, tag = 'smem constant byte address 0x4 - core index']
  #allocation1 [shape = 'u32[72,128]{1,0:T(1,128)}', space=vmem, size = 0x9000, scoped, tag = 'internal scratch']
  %s0 = inlined_call_operand.vmem [shape: f32[2,16,128], index: 0, kind: input, shape index: {}]
  %s1 = inlined_call_operand.vmem [shape: f32[2,16,3], index: 1, kind: input, shape index: {}]
  %s2 = inlined_call_operand.vmem [shape: s32[2,1,64], index: 2, kind: input, shape index: {}]
  %s3 = inlined_call_operand.vmem [shape: s32[2,1,64], index: 3, kind: input, shape index: {}]
  %s4 = inlined_call_operand.vmem [shape: bf16[128,32], index: 4, kind: input, shape index: {}]
  %s5 = inlined_call_operand.vmem [shape: bf16[3,32], index: 5, kind: input, shape index: {}]
  %s6 = inlined_call_operand.vmem [shape: f32[1,32], index: 6, kind: input, shape index: {}]
  %s7 = inlined_call_operand.vmem [shape: bf16[32,32], index: 7, kind: input, shape index: {}]
  %s8 = inlined_call_operand.vmem [shape: f32[1,32], index: 8, kind: input, shape index: {}]
  %s9 = inlined_call_operand.vmem [shape: bf16[32,128], index: 9, kind: input, shape index: {}]
  %s10 = inlined_call_operand.vmem [shape: f32[1,128], index: 10, kind: input, shape index: {}]
  %s11 = inlined_call_operand.vmem [shape: f32[2,4,128], index: 11, kind: output, shape index: {}]
  %s12 = sld [smem:[#allocation0]]
  $region77: #{feature_model_forward.4} parent=0
    _
  %s14 = ssub.s32 1, %s12
  %s15 = scalar_select 0, %s14, %s12
  loop: start=0, step=1, limit=4
  $region2: #{feature_model_forward.4} parent=0 // loop_pre_header
    _
  $region3: #{feature_model_forward.4} parent=0 // loop_header
    %s17 = sphi 0, %s21
    %p18 = scmp.ge.s32.totalorder %s17, 4
    %s27 = sphi 0, %s29
    %s30 = sphi 0, %s27
    %s31 = sphi 0, %s30
    %s47 = sphi 0, %s31
    %s53 = sphi 0, %s55
    %s56 = sphi 0, %s53
    %s57 = sphi 0, %s56
    %s73 = sphi 0, %s57
    %s79 = sphi 0, %s81
    %s82 = sphi 0, %s79
    %s83 = sphi 0, %s82
    %s99 = sphi 0, %s83
    %s105 = sphi 0, %s107
    %s108 = sphi 0, %s105
    %s109 = sphi 0, %s108
    %s125 = sphi 0, %s109
    %s129 = sphi 0, %s129
    %s131 = sphi 0, %s129
    %s132 = sphi 0, %s131
    %s146 = sphi 0, %s132
    %s150 = sphi 0, %s150
    %s152 = sphi 0, %s150
    %s153 = sphi 0, %s152
    %s167 = sphi 0, %s153
    %s171 = sphi 0, %s171
    %s173 = sphi 0, %s171
    %s174 = sphi 0, %s173
    %s188 = sphi 0, %s174
    %s192 = sphi 0, %s192
    %s194 = sphi 0, %s192
    %s195 = sphi 0, %s194
    %s209 = sphi 0, %s195
    %s213 = sphi 0, %s213
    %s215 = sphi 0, %s213
    %s216 = sphi 0, %s215
    %s230 = sphi 0, %s216
    %s234 = sphi 0, %s234
    %s236 = sphi 0, %s234
    %s237 = sphi 0, %s236
    %s251 = sphi 0, %s237
    %s255 = sphi 0, %s255
    %s257 = sphi 0, %s255
    %s258 = sphi 0, %s257
    %s272 = sphi 0, %s258
    %s278 = sphi 0, %s280
    %s281 = sphi 0, %s278
    %s282 = sphi 0, %s281
    %s298 = sphi 0, %s282
  $region4: #{feature_model_forward.4} parent=0 // loop_header_branch
    %20 = sbr.rel (%p18) target = $region8
  $region5: #{feature_model_forward.4} parent=0 // loop_body
    %s22 = ssub.s32 %s17, 1
    %s23 = ssub.s32 %s17, 2
    %s24 = sadd.s32 %s17, 1
    %s25 = ssub.s32 %s17, %s24
    %p26 = scmp.eq.s32.totalorder %s25, 0
    %s28 = sadd.s32 %s27, 1
    %s29 = scalar_select %p26, %s27, %s28
    %p32 = pneg %p26
    %p33 = scmp.eq.s32.totalorder %s17, 1
    %p34 = por %p32, %p33
    %p35 = scmp.ne.s32.totalorder %s27, %s30
    %p36 = scmp.eq.s32.totalorder %s17, 0
    %p37 = por %p35, %p36
    %p38 = scmp.ne.s32.totalorder %s27, %s30
    %p39 = scmp.eq.s32.totalorder %s22, 1
    %p40 = por %p38, %p39
    %p41 = scmp.ne.s32.totalorder %s30, %s31
    %p42 = scmp.eq.s32.totalorder %s22, 0
    %p43 = por %p41, %p42
    %p44 = scmp.ne.s32.totalorder %s30, %s31
    %p45 = scmp.eq.s32.totalorder %s23, 1
    %p46 = por %p44, %p45
    %p48 = scmp.ne.s32.totalorder %s31, %s47
    %p49 = scmp.eq.s32.totalorder %s23, 0
    %p50 = por %p48, %p49
    %s51 = ssub.s32 %s17, %s24
    %p52 = scmp.eq.s32.totalorder %s51, 0
    %s54 = sadd.s32 %s53, 1
    %s55 = scalar_select %p52, %s53, %s54
    %p58 = pneg %p52
    %p59 = scmp.eq.s32.totalorder %s17, 1
    %p60 = por %p58, %p59
    %p61 = scmp.ne.s32.totalorder %s53, %s56
    %p62 = scmp.eq.s32.totalorder %s17, 0
    %p63 = por %p61, %p62
    %p64 = scmp.ne.s32.totalorder %s53, %s56
    %p65 = scmp.eq.s32.totalorder %s22, 1
    %p66 = por %p64, %p65
    %p67 = scmp.ne.s32.totalorder %s56, %s57
    %p68 = scmp.eq.s32.totalorder %s22, 0
    %p69 = por %p67, %p68
    %p70 = scmp.ne.s32.totalorder %s56, %s57
    %p71 = scmp.eq.s32.totalorder %s23, 1
    %p72 = por %p70, %p71
    %p74 = scmp.ne.s32.totalorder %s57, %s73
    %p75 = scmp.eq.s32.totalorder %s23, 0
    %p76 = por %p74, %p75
    %s77 = ssub.s32 %s17, %s24
    %p78 = scmp.eq.s32.totalorder %s77, 0
    %s80 = sadd.s32 %s79, 1
    %s81 = scalar_select %p78, %s79, %s80
    %p84 = pneg %p78
    %p85 = scmp.eq.s32.totalorder %s17, 1
    %p86 = por %p84, %p85
    %p87 = scmp.ne.s32.totalorder %s79, %s82
    %p88 = scmp.eq.s32.totalorder %s17, 0
    %p89 = por %p87, %p88
    %p90 = scmp.ne.s32.totalorder %s79, %s82
    %p91 = scmp.eq.s32.totalorder %s22, 1
    %p92 = por %p90, %p91
    %p93 = scmp.ne.s32.totalorder %s82, %s83
    %p94 = scmp.eq.s32.totalorder %s22, 0
    %p95 = por %p93, %p94
    %p96 = scmp.ne.s32.totalorder %s82, %s83
    %p97 = scmp.eq.s32.totalorder %s23, 1
    %p98 = por %p96, %p97
    %p100 = scmp.ne.s32.totalorder %s83, %s99
    %p101 = scmp.eq.s32.totalorder %s23, 0
    %p102 = por %p100, %p101
    %s103 = ssub.s32 %s17, %s24
    %p104 = scmp.eq.s32.totalorder %s103, 0
    %s106 = sadd.s32 %s105, 1
    %s107 = scalar_select %p104, %s105, %s106
    %p110 = pneg %p104
    %p111 = scmp.eq.s32.totalorder %s17, 1
    %p112 = por %p110, %p111
    %p113 = scmp.ne.s32.totalorder %s105, %s108
    %p114 = scmp.eq.s32.totalorder %s17, 0
    %p115 = por %p113, %p114
    %p116 = scmp.ne.s32.totalorder %s105, %s108
    %p117 = scmp.eq.s32.totalorder %s22, 1
    %p118 = por %p116, %p117
    %p119 = scmp.ne.s32.totalorder %s108, %s109
    %p120 = scmp.eq.s32.totalorder %s22, 0
    %p121 = por %p119, %p120
    %p122 = scmp.ne.s32.totalorder %s108, %s109
    %p123 = scmp.eq.s32.totalorder %s23, 1
    %p124 = por %p122, %p123
    %p126 = scmp.ne.s32.totalorder %s109, %s125
    %p127 = scmp.eq.s32.totalorder %s23, 0
    %p128 = por %p126, %p127
    %s130 = sadd.s32 %s129, 1
    %p133 = scmp.eq.s32.totalorder %s17, 1
    %p134 = scmp.ne.s32.totalorder %s129, %s131
    %p135 = scmp.eq.s32.totalorder %s17, 0
    %p136 = por %p134, %p135
    %p137 = scmp.ne.s32.totalorder %s129, %s131
    %p138 = scmp.eq.s32.totalorder %s22, 1
    %p139 = por %p137, %p138
    %p140 = scmp.ne.s32.totalorder %s131, %s132
    %p141 = scmp.eq.s32.totalorder %s22, 0
    %p142 = por %p140, %p141
    %p143 = scmp.ne.s32.totalorder %s131, %s132
    %p144 = scmp.eq.s32.totalorder %s23, 1
    %p145 = por %p143, %p144
    %p147 = scmp.ne.s32.totalorder %s132, %s146
    %p148 = scmp.eq.s32.totalorder %s23, 0
    %p149 = por %p147, %p148
    %s151 = sadd.s32 %s150, 1
    %p154 = scmp.eq.s32.totalorder %s17, 1
    %p155 = scmp.ne.s32.totalorder %s150, %s152
    %p156 = scmp.eq.s32.totalorder %s17, 0
    %p157 = por %p155, %p156
    %p158 = scmp.ne.s32.totalorder %s150, %s152
    %p159 = scmp.eq.s32.totalorder %s22, 1
    %p160 = por %p158, %p159
    %p161 = scmp.ne.s32.totalorder %s152, %s153
    %p162 = scmp.eq.s32.totalorder %s22, 0
    %p163 = por %p161, %p162
    %p164 = scmp.ne.s32.totalorder %s152, %s153
    %p165 = scmp.eq.s32.totalorder %s23, 1
    %p166 = por %p164, %p165
    %p168 = scmp.ne.s32.totalorder %s153, %s167
    %p169 = scmp.eq.s32.totalorder %s23, 0
    %p170 = por %p168, %p169
    %s172 = sadd.s32 %s171, 1
    %p175 = scmp.eq.s32.totalorder %s17, 1
    %p176 = scmp.ne.s32.totalorder %s171, %s173
    %p177 = scmp.eq.s32.totalorder %s17, 0
    %p178 = por %p176, %p177
    %p179 = scmp.ne.s32.totalorder %s171, %s173
    %p180 = scmp.eq.s32.totalorder %s22, 1
    %p181 = por %p179, %p180
    %p182 = scmp.ne.s32.totalorder %s173, %s174
    %p183 = scmp.eq.s32.totalorder %s22, 0
    %p184 = por %p182, %p183
    %p185 = scmp.ne.s32.totalorder %s173, %s174
    %p186 = scmp.eq.s32.totalorder %s23, 1
    %p187 = por %p185, %p186
    %p189 = scmp.ne.s32.totalorder %s174, %s188
    %p190 = scmp.eq.s32.totalorder %s23, 0
    %p191 = por %p189, %p190
    %s193 = sadd.s32 %s192, 1
    %p196 = scmp.eq.s32.totalorder %s17, 1
    %p197 = scmp.ne.s32.totalorder %s192, %s194
    %p198 = scmp.eq.s32.totalorder %s17, 0
    %p199 = por %p197, %p198
    %p200 = scmp.ne.s32.totalorder %s192, %s194
    %p201 = scmp.eq.s32.totalorder %s22, 1
    %p202 = por %p200, %p201
    %p203 = scmp.ne.s32.totalorder %s194, %s195
    %p204 = scmp.eq.s32.totalorder %s22, 0
    %p205 = por %p203, %p204
    %p206 = scmp.ne.s32.totalorder %s194, %s195
    %p207 = scmp.eq.s32.totalorder %s23, 1
    %p208 = por %p206, %p207
    %p210 = scmp.ne.s32.totalorder %s195, %s209
    %p211 = scmp.eq.s32.totalorder %s23, 0
    %p212 = por %p210, %p211
    %s214 = sadd.s32 %s213, 1
    %p217 = scmp.eq.s32.totalorder %s17, 1
    %p218 = scmp.ne.s32.totalorder %s213, %s215
    %p219 = scmp.eq.s32.totalorder %s17, 0
    %p220 = por %p218, %p219
    %p221 = scmp.ne.s32.totalorder %s213, %s215
    %p222 = scmp.eq.s32.totalorder %s22, 1
    %p223 = por %p221, %p222
    %p224 = scmp.ne.s32.totalorder %s215, %s216
    %p225 = scmp.eq.s32.totalorder %s22, 0
    %p226 = por %p224, %p225
    %p227 = scmp.ne.s32.totalorder %s215, %s216
    %p228 = scmp.eq.s32.totalorder %s23, 1
    %p229 = por %p227, %p228
    %p231 = scmp.ne.s32.totalorder %s216, %s230
    %p232 = scmp.eq.s32.totalorder %s23, 0
    %p233 = por %p231, %p232
    %s235 = sadd.s32 %s234, 1
    %p238 = scmp.eq.s32.totalorder %s17, 1
    %p239 = scmp.ne.s32.totalorder %s234, %s236
    %p240 = scmp.eq.s32.totalorder %s17, 0
    %p241 = por %p239, %p240
    %p242 = scmp.ne.s32.totalorder %s234, %s236
    %p243 = scmp.eq.s32.totalorder %s22, 1
    %p244 = por %p242, %p243
    %p245 = scmp.ne.s32.totalorder %s236, %s237
    %p246 = scmp.eq.s32.totalorder %s22, 0
    %p247 = por %p245, %p246
    %p248 = scmp.ne.s32.totalorder %s236, %s237
    %p249 = scmp.eq.s32.totalorder %s23, 1
    %p250 = por %p248, %p249
    %p252 = scmp.ne.s32.totalorder %s237, %s251
    %p253 = scmp.eq.s32.totalorder %s23, 0
    %p254 = por %p252, %p253
    %s256 = sadd.s32 %s255, 1
    %p259 = scmp.eq.s32.totalorder %s17, 1
    %p260 = scmp.ne.s32.totalorder %s255, %s257
    %p261 = scmp.eq.s32.totalorder %s17, 0
    %p262 = por %p260, %p261
    %p263 = scmp.ne.s32.totalorder %s255, %s257
    %p264 = scmp.eq.s32.totalorder %s22, 1
    %p265 = por %p263, %p264
    %p266 = scmp.ne.s32.totalorder %s257, %s258
    %p267 = scmp.eq.s32.totalorder %s22, 0
    %p268 = por %p266, %p267
    %p269 = scmp.ne.s32.totalorder %s257, %s258
    %p270 = scmp.eq.s32.totalorder %s23, 1
    %p271 = por %p269, %p270
    %p273 = scmp.ne.s32.totalorder %s258, %s272
    %p274 = scmp.eq.s32.totalorder %s23, 0
    %p275 = por %p273, %p274
    %s276 = ssub.s32 %s17, %s24
    %p277 = scmp.eq.s32.totalorder %s276, 0
    %s279 = sadd.s32 %s278, 1
    %s280 = scalar_select %p277, %s278, %s279
    %p283 = pneg %p277
    %p284 = scmp.eq.s32.totalorder %s17, 1
    %p285 = por %p283, %p284
    %p286 = scmp.ne.s32.totalorder %s278, %s281
    %p287 = scmp.eq.s32.totalorder %s17, 0
    %p288 = por %p286, %p287
    %p289 = scmp.ne.s32.totalorder %s278, %s281
    %p290 = scmp.eq.s32.totalorder %s22, 1
    %p291 = por %p289, %p290
    %p292 = scmp.ne.s32.totalorder %s281, %s282
    %p293 = scmp.eq.s32.totalorder %s22, 0
    %p294 = por %p292, %p293
    %p295 = scmp.ne.s32.totalorder %s281, %s282
    %p296 = scmp.eq.s32.totalorder %s23, 1
    %p297 = por %p295, %p296
    %p299 = scmp.ne.s32.totalorder %s282, %s298
    %p300 = scmp.eq.s32.totalorder %s23, 0
    %p301 = por %p299, %p300
    %p302 = scmp.le.s32.totalorder 1, %s17
    %p303 = scmp.lt.s32.totalorder %s17, 3
    %p304 = pnand %p302, %p303
    %p305 = pneg %p304
    // Predicated region
    $region9: #{feature_model_forward.4} parent=5 // pred_check
      _
    $region10: #{feature_model_forward.4} parent=5 // pred_check_branch
      %307 = sbr.rel (%p304) target = $region12
    $region11: #{feature_model_forward.4} parent=5 // pred_region
      %s308 = ssub.s32 %s17, 1
      // Predicated region
      $region13: #{feature_model_forward.4} parent=11 // pred_check
        %p309 = pneg %p142
      $region14: #{feature_model_forward.4} parent=11 // pred_check_branch
        %311 = sbr.rel (%p309) target = $region16
      $region15: #{feature_model_forward.4} parent=11 // pred_region
        _
      $region16: #{feature_model_forward.4} parent=11 // pred_fallthru
        _
      // Predicated region
      $region17: #{feature_model_forward.4} parent=11 // pred_check
        %p312 = pneg %p163
      $region18: #{feature_model_forward.4} parent=11 // pred_check_branch
        %314 = sbr.rel (%p312) target = $region20
      $region19: #{feature_model_forward.4} parent=11 // pred_region
        _
      $region20: #{feature_model_forward.4} parent=11 // pred_fallthru
        _
      // Predicated region
      $region21: #{feature_model_forward.4} parent=11 // pred_check
        %p315 = pneg %p184
      $region22: #{feature_model_forward.4} parent=11 // pred_check_branch
        %317 = sbr.rel (%p315) target = $region24
      $region23: #{feature_model_forward.4} parent=11 // pred_region
        _
      $region24: #{feature_model_forward.4} parent=11 // pred_fallthru
        _
      // Predicated region
      $region25: #{feature_model_forward.4} parent=11 // pred_check
        %p318 = pneg %p205
      $region26: #{feature_model_forward.4} parent=11 // pred_check_branch
        %320 = sbr.rel (%p318) target = $region28
      $region27: #{feature_model_forward.4} parent=11 // pred_region
        _
      $region28: #{feature_model_forward.4} parent=11 // pred_fallthru
        _
      // Predicated region
      $region29: #{feature_model_forward.4} parent=11 // pred_check
        %p321 = pneg %p226
      $region30: #{feature_model_forward.4} parent=11 // pred_check_branch
        %323 = sbr.rel (%p321) target = $region32
      $region31: #{feature_model_forward.4} parent=11 // pred_region
        _
      $region32: #{feature_model_forward.4} parent=11 // pred_fallthru
        _
      // Predicated region
      $region33: #{feature_model_forward.4} parent=11 // pred_check
        %p324 = pneg %p247
      $region34: #{feature_model_forward.4} parent=11 // pred_check_branch
        %326 = sbr.rel (%p324) target = $region36
      $region35: #{feature_model_forward.4} parent=11 // pred_region
        _
      $region36: #{feature_model_forward.4} parent=11 // pred_fallthru
        _
      // Predicated region
      $region37: #{feature_model_forward.4} parent=11 // pred_check
        %p327 = pneg %p268
      $region38: #{feature_model_forward.4} parent=11 // pred_check_branch
        %329 = sbr.rel (%p327) target = $region40
      $region39: #{feature_model_forward.4} parent=11 // pred_region
        _
      $region40: #{feature_model_forward.4} parent=11 // pred_fallthru
        _
    $region12: #{feature_model_forward.4} parent=5 // pred_fallthru
      _
    %p330 = scmp.lt.s32.totalorder %s17, 2
    // Predicated region
    $region41: #{feature_model_forward.4} parent=5 // pred_check
      %p331 = pneg %p330
    $region42: #{feature_model_forward.4} parent=5 // pred_check_branch
      %333 = sbr.rel (%p331) target = $region44
    $region43: #{feature_model_forward.4} parent=5 // pred_region
      // Predicated region
      $region45: #{feature_model_forward.4} parent=43 // pred_check
        %p334 = pneg %p37
      $region46: #{feature_model_forward.4} parent=43 // pred_check_branch
        %336 = sbr.rel (%p334) target = $region48
      $region47: #{feature_model_forward.4} parent=43 // pred_region
        %p337 = scmp.lt.s32.totalorder %s17, 1
        %s338 = scalar_select %p337, %s17, 1
        %s339 = smul.addr %s338, 2
        %s340 = smul.addr %s339, 8
        %s341 = scalar_lea.vmem %s0, %s340
      $region48: #{feature_model_forward.4} parent=43 // pred_fallthru
        _
      // Predicated region
      $region49: #{feature_model_forward.4} parent=43 // pred_check
        %p342 = pneg %p63
      $region50: #{feature_model_forward.4} parent=43 // pred_check_branch
        %344 = sbr.rel (%p342) target = $region52
      $region51: #{feature_model_forward.4} parent=43 // pred_region
        %p345 = scmp.lt.s32.totalorder %s17, 1
        %s346 = scalar_select %p345, %s17, 1
        %s347 = smul.addr %s346, 2
        %s348 = smul.addr %s347, 8
        %s349 = scalar_lea.vmem %s1, %s348
      $region52: #{feature_model_forward.4} parent=43 // pred_fallthru
        _
      // Predicated region
      $region53: #{feature_model_forward.4} parent=43 // pred_check
        %p350 = pneg %p89
      $region54: #{feature_model_forward.4} parent=43 // pred_check_branch
        %352 = sbr.rel (%p350) target = $region56
      $region55: #{feature_model_forward.4} parent=43 // pred_region
        %p353 = scmp.lt.s32.totalorder %s17, 1
        %s354 = scalar_select %p353, %s17, 1
        %s355 = scalar_lea.vmem %s2, %s354
      $region56: #{feature_model_forward.4} parent=43 // pred_fallthru
        _
      // Predicated region
      $region57: #{feature_model_forward.4} parent=43 // pred_check
        %p356 = pneg %p115
      $region58: #{feature_model_forward.4} parent=43 // pred_check_branch
        %358 = sbr.rel (%p356) target = $region60
      $region59: #{feature_model_forward.4} parent=43 // pred_region
        %p359 = scmp.lt.s32.totalorder %s17, 1
        %s360 = scalar_select %p359, %s17, 1
        %s361 = scalar_lea.vmem %s3, %s360
      $region60: #{feature_model_forward.4} parent=43 // pred_fallthru
        _
    $region44: #{feature_model_forward.4} parent=5 // pred_fallthru
      _
    %p362 = scmp.le.s32.totalorder 1, %s17
    %p363 = scmp.lt.s32.totalorder %s17, 3
    %p364 = pnand %p362, %p363
    %p365 = pneg %p364
    // Predicated region
    $region61: #{feature_model_forward.4} parent=5 // pred_check
      _
    $region62: #{feature_model_forward.4} parent=5 // pred_check_branch
      %367 = sbr.rel (%p364) target = $region64
    $region63: #{feature_model_forward.4} parent=5 // pred_region
      %s368 = ssub.s32 %s17, 1
      %p369 = scmp.lt.s32.totalorder %s22, 1
      %s370 = scalar_select %p369, %s22, 1
      %s371 = smul.addr %s370, 2
      %s372 = smul.addr %s371, 8
      %s373 = scalar_lea.vmem %s0, %s372
      %p374 = pneg %p43
      %p375 = pneg %p40
      %p376 = scmp.lt.s32.totalorder %s22, 1
      %s377 = scalar_select %p376, %s22, 1
      %s378 = smul.addr %s377, 2
      %s379 = smul.addr %s378, 8
      %s380 = scalar_lea.vmem %s1, %s379
      %p381 = pneg %p69
      %p382 = pneg %p66
      %p383 = scmp.lt.s32.totalorder %s22, 1
      %s384 = scalar_select %p383, %s22, 1
      %s385 = scalar_lea.vmem %s2, %s384
      %p386 = pneg %p95
      %p387 = pneg %p92
      %p388 = scmp.lt.s32.totalorder %s22, 1
      %s389 = scalar_select %p388, %s22, 1
      %s390 = scalar_lea.vmem %s3, %s389
      %p391 = pneg %p121
      %p392 = pneg %p118
      %p393 = pneg %p142
      %p394 = pneg %p139
      %p395 = pneg %p163
      %p396 = pneg %p160
      %p397 = pneg %p184
      %p398 = pneg %p181
      %p399 = pneg %p205
      %p400 = pneg %p202
      %p401 = pneg %p226
      %p402 = pneg %p223
      %p403 = pneg %p247
      %p404 = pneg %p244
      %p405 = pneg %p268
      %p406 = pneg %p265
      %p407 = pneg %p294
      %p408 = pneg %p291
      %p409 = scmp.lt.s32.totalorder %s22, 1
      %s410 = scalar_select %p409, %s22, 1
      %s411 = smul.addr %s410, 4
      %s412 = scalar_lea.vmem %s11, %s411
      %p413 = scmp.lt.s32.totalorder %s22, 1
      %s414 = scalar_select %p413, %s22, 1
      %s415 = smul.addr %s414, 2
      %s416 = smul.addr %s415, 8
      %s417 = scalar_lea.vmem %s0, %s416
      %p418 = scmp.lt.s32.totalorder %s22, 1
      %s419 = scalar_select %p418, %s22, 1
      %s420 = smul.addr %s419, 2
      %s421 = smul.addr %s420, 8
      %s422 = scalar_lea.vmem %s1, %s421
      %p423 = scmp.lt.s32.totalorder %s22, 1
      %s424 = scalar_select %p423, %s22, 1
      %s425 = scalar_lea.vmem %s2, %s424
      %p426 = scmp.lt.s32.totalorder %s22, 1
      %s427 = scalar_select %p426, %s22, 1
      %s428 = scalar_lea.vmem %s3, %s427
      %p429 = scmp.lt.s32.totalorder %s22, 1
      %s430 = scalar_select %p429, %s22, 1
      %s431 = smul.addr %s430, 4
      %s432 = scalar_lea.vmem %s11, %s431
      %v434 = vld [vmem:[%s417] sm:$0xff]
      %v435 = vld [vmem:[%s417 + $0x8] sm:$0xff]
      %v436 = vld [vmem:[%s422] sm:$0xff]
      %v437 = vld [vmem:[%s422 + $0x8] sm:$0xff]
      %v438 = vld [vmem:[%s425] sm:$0x1]
      %v439 = vld [vmem:[%s428] sm:$0x1]
      %v440 = vpack.c.bf16 %v435, %v434
      %v441 = vld [vmem:[%s4] sm:$0xf]
      %v442 = vld [vmem:[%s4 + $0x4] sm:$0xf]
      %v443 = vld [vmem:[%s4 + $0x8] sm:$0xf]
      %v444 = vld [vmem:[%s4 + $0xc] sm:$0xf]
      %v445 = vld [vmem:[%s4 + $0x10] sm:$0xf]
      %v446 = vld [vmem:[%s4 + $0x14] sm:$0xf]
      %v447 = vld [vmem:[%s4 + $0x18] sm:$0xf]
      %v448 = vld [vmem:[%s4 + $0x1c] sm:$0xf]
      %v449 = vld [vmem:[%s4 + $0x20] sm:$0xf]
      %v450 = vld [vmem:[%s4 + $0x24] sm:$0xf]
      %v451 = vld [vmem:[%s4 + $0x28] sm:$0xf]
      %v452 = vld [vmem:[%s4 + $0x2c] sm:$0xf]
      %v453 = vld [vmem:[%s4 + $0x30] sm:$0xf]
      %v454 = vld [vmem:[%s4 + $0x34] sm:$0xf]
      %v455 = vld [vmem:[%s4 + $0x38] sm:$0xf]
      %v456 = vld [vmem:[%s4 + $0x3c] sm:$0xf]
      %v457 = vpack.c.bf16 %v437, %v436
      %v458 = vld [vmem:[%s5] sm:$0x3]
      %vm459 = vcmask 23552
      %v461 = vsel %vm459, %v457, 0
      %vm463 = vcmask 1040384
      %vm464 = vcmask 1041408
      %v465 = vsel %vm463, 4294967295, 65535
      %v466 = vsel %vm464, %v465, 0
      %v468 = vand.u32 %v458, %v466
      %470 = vmatpush.bf16.msra.mxu0 0
      %471 = vmatpush.bf16.msra.mxu0 0
      %472 = vmatpush.bf16.msra.mxu0 0
      %473 = vmatpush.bf16.msra.mxu0 0
      %474 = vmatpush.bf16.msra.mxu0 0
      %475 = vmatpush.bf16.msra.mxu0 0
      %476 = vmatpush.bf16.msra.mxu0 0
      %477 = vmatpush.bf16.msra.mxu0 %v468
      %478 = vmatmul.bf16.gmra.mxu0 %v461
      %v479 = vpop.f32.mrf.mxu0
      %v480 = vadd.f32 0.0, %v479
      %v481 = vpop.f32.mrf.mxu0
      %v482 = vadd.f32 0.0, %v481
      %483 = vdwg.mxu0
      %v484 = vlaneseq
      %v485 = vshrl.u32 %v484, 7
      %v486 = vadd.s32 %v485, 8
      %v487 = vperm.slane %v438, 0
      %vm488 = vcmp.eq.s32.totalorder %v485, %v487
      %vm489 = vcmp.eq.s32.totalorder %v486, %v487
      %v490 = vsel %vm488, 1, 0
      %v491 = vsel %vm489, 1, 0
      %v492 = vcvt.s32.f32 %v490
      %v493 = vcvt.s32.f32 %v491
      %v494 = vperm.slane %v439, 0
      %vm495 = vcmp.eq.s32.totalorder %v485, %v494
      %vm496 = vcmp.eq.s32.totalorder %v486, %v494
      %v497 = vsel %vm495, 1, 0
      %v498 = vsel %vm496, 1, 0
      %v499 = vcvt.s32.f32 %v497
      %v500 = vcvt.s32.f32 %v498
      %v517 = vunpack.c.l.b16 %v441
      %v518 = vunpack.c.l.b16 %v442
      %v519 = vunpack.c.l.b16 %v443
      %v520 = vunpack.c.l.b16 %v444
      %v521 = vunpack.c.l.b16 %v445
      %v522 = vunpack.c.l.b16 %v446
      %v523 = vunpack.c.l.b16 %v447
      %v524 = vunpack.c.l.b16 %v448
      %v525 = vunpack.c.l.b16 %v449
      %v526 = vunpack.c.l.b16 %v450
      %v527 = vunpack.c.l.b16 %v451
      %v528 = vunpack.c.l.b16 %v452
      %v529 = vunpack.c.l.b16 %v453
      %v530 = vunpack.c.l.b16 %v454
      %v531 = vunpack.c.l.b16 %v455
      %v532 = vunpack.c.l.b16 %v456
      %v533 = vpack.c.b16 %v518, %v517
      %v534 = vpack.c.b16 %v520, %v519
      %v535 = vpack.c.b16 %v522, %v521
      %v536 = vpack.c.b16 %v524, %v523
      %v537 = vpack.c.b16 %v526, %v525
      %v538 = vpack.c.b16 %v528, %v527
      %v539 = vpack.c.b16 %v530, %v529
      %v540 = vpack.c.b16 %v532, %v531
      %549 = vmatpush.bf16.msra.mxu0 %v540
      %550 = vmatpush.bf16.msra.mxu0 %v539
      %551 = vmatpush.bf16.msra.mxu0 %v538
      %552 = vmatpush.bf16.msra.mxu0 %v537
      %553 = vmatpush.bf16.msra.mxu0 %v536
      %554 = vmatpush.bf16.msra.mxu0 %v535
      %555 = vmatpush.bf16.msra.mxu0 %v534
      %556 = vmatpush.bf16.msra.mxu0 %v533
      %557 = vmatmul.bf16.gmra.mxu0 %v440
      %v558 = vpop.f32.mrf.mxu0
      %v559 = vadd.f32 %v480, %v558
      %v560 = vpop.f32.mrf.mxu0
      %v561 = vadd.f32 %v482, %v560
      %562 = vdwg.mxu0
      %563 = vxpose.xlu0.b32.start [1/16] %v492, 128
      %564 = vxpose.xlu0.b32.cont [2/16] %v493, 128
      %565 = vxpose.xlu0.b32.cont [3/16] 0.0, 128
      %566 = vxpose.xlu0.b32.cont [4/16] 0.0, 128
      %567 = vxpose.xlu0.b32.cont [5/16] 0.0, 128
      %568 = vxpose.xlu0.b32.cont [6/16] 0.0, 128
      %569 = vxpose.xlu0.b32.cont [7/16] 0.0, 128
      %570 = vxpose.xlu0.b32.cont [8/16] 0.0, 128
      %571 = vxpose.xlu0.b32.cont [9/16] 0.0, 128
      %572 = vxpose.xlu0.b32.cont [10/16] 0.0, 128
      %573 = vxpose.xlu0.b32.cont [11/16] 0.0, 128
      %574 = vxpose.xlu0.b32.cont [12/16] 0.0, 128
      %575 = vxpose.xlu0.b32.cont [13/16] 0.0, 128
      %576 = vxpose.xlu0.b32.cont [14/16] 0.0, 128
      %577 = vxpose.xlu0.b32.cont [15/16] 0.0, 128
      %578 = vxpose.xlu0.b32.end [16/16] 0.0, 128
      %v579 = vpop.trf.xlu0
      %v580 = vpop.trf.xlu0
      %v581 = vpop.trf.xlu0
      %v582 = vpop.trf.xlu0
      %v583 = vpop.trf.xlu0
      %v584 = vpop.trf.xlu0
      %v585 = vpop.trf.xlu0
      %v586 = vpop.trf.xlu0
      %v587 = vpop.trf.xlu0
      %v588 = vpop.trf.xlu0
      %v589 = vpop.trf.xlu0
      %v590 = vpop.trf.xlu0
      %v591 = vpop.trf.xlu0
      %v592 = vpop.trf.xlu0
      %v593 = vpop.trf.xlu0
      %v594 = vpop.trf.xlu0
      %vm595 = vcmask 130048
      %v597 = vsel %vm595, %v579, 0
      %v600 = vsel %vm595, %v580, 0
      %v603 = vsel %vm595, %v581, 0
      %v606 = vsel %vm595, %v582, 0
      %v609 = vsel %vm595, %v583, 0
      %v612 = vsel %vm595, %v584, 0
      %v615 = vsel %vm595, %v585, 0
      %v618 = vsel %vm595, %v586, 0
      %620 = vmatpush.msra.mxu0 0.0
      %621 = vmatpush.msra.mxu0 0.0
      %622 = vmatpush.msra.mxu0 0.0
      %623 = vmatpush.msra.mxu0 0.0
      %624 = vmatpush.msra.mxu0 0.0
      %625 = vmatpush.msra.mxu0 0.0
      %626 = vmatpush.msra.mxu0 0.0
      %627 = vmatpush.msra.mxu0 0.0
      %628 = vmatpush.msra.mxu0 0.0
      %629 = vmatpush.msra.mxu0 0.0
      %630 = vmatpush.msra.mxu0 0.0
      %631 = vmatpush.msra.mxu0 0.0
      %632 = vmatpush.msra.mxu0 0.0
      %633 = vmatpush.msra.mxu0 0.0
      %634 = vmatpush.msra.mxu0 %v561
      %635 = vmatpush.msra.mxu0 %v559
      %636 = vmatmul.f32.gmra.mxu0 %v597
      %v637 = vpop.f32.mrf.mxu0
      %v638 = vadd.f32 0.0, %v637
      %639 = vmatmul.f32.gmra.mxu0 %v600
      %v640 = vpop.f32.mrf.mxu0
      %v641 = vadd.f32 0.0, %v640
      %642 = vmatmul.f32.gmra.mxu0 %v603
      %v643 = vpop.f32.mrf.mxu0
      %v644 = vadd.f32 0.0, %v643
      %645 = vmatmul.f32.gmra.mxu0 %v606
      %v646 = vpop.f32.mrf.mxu0
      %v647 = vadd.f32 0.0, %v646
      %648 = vmatmul.f32.gmra.mxu0 %v609
      %v649 = vpop.f32.mrf.mxu0
      %v650 = vadd.f32 0.0, %v649
      %651 = vmatmul.f32.gmra.mxu0 %v612
      %v652 = vpop.f32.mrf.mxu0
      %v653 = vadd.f32 0.0, %v652
      %654 = vmatmul.f32.gmra.mxu0 %v615
      %v655 = vpop.f32.mrf.mxu0
      %v656 = vadd.f32 0.0, %v655
      %657 = vmatmul.f32.gmra.mxu0 %v618
      %v658 = vpop.f32.mrf.mxu0
      %v659 = vadd.f32 0.0, %v658
      %660 = vdwg.mxu0
      %661 = vxpose.xlu0.b32.start [1/16] %v499, 128
      %662 = vxpose.xlu0.b32.cont [2/16] %v500, 128
      %663 = vxpose.xlu0.b32.cont [3/16] 0.0, 128
      %664 = vxpose.xlu0.b32.cont [4/16] 0.0, 128
      %665 = vxpose.xlu0.b32.cont [5/16] 0.0, 128
      %666 = vxpose.xlu0.b32.cont [6/16] 0.0, 128
      %667 = vxpose.xlu0.b32.cont [7/16] 0.0, 128
      %668 = vxpose.xlu0.b32.cont [8/16] 0.0, 128
      %669 = vxpose.xlu0.b32.cont [9/16] 0.0, 128
      %670 = vxpose.xlu0.b32.cont [10/16] 0.0, 128
      %671 = vxpose.xlu0.b32.cont [11/16] 0.0, 128
      %672 = vxpose.xlu0.b32.cont [12/16] 0.0, 128
      %673 = vxpose.xlu0.b32.cont [13/16] 0.0, 128
      %674 = vxpose.xlu0.b32.cont [14/16] 0.0, 128
      %675 = vxpose.xlu0.b32.cont [15/16] 0.0, 128
      %676 = vxpose.xlu0.b32.end [16/16] 0.0, 128
      %v677 = vpop.trf.xlu0
      %v678 = vpop.trf.xlu0
      %v679 = vpop.trf.xlu0
      %v680 = vpop.trf.xlu0
      %v681 = vpop.trf.xlu0
      %v682 = vpop.trf.xlu0
      %v683 = vpop.trf.xlu0
      %v684 = vpop.trf.xlu0
      %v685 = vpop.trf.xlu0
      %v686 = vpop.trf.xlu0
      %v687 = vpop.trf.xlu0
      %v688 = vpop.trf.xlu0
      %v689 = vpop.trf.xlu0
      %v690 = vpop.trf.xlu0
      %v691 = vpop.trf.xlu0
      %v692 = vpop.trf.xlu0
      %v694 = vsel %vm595, %v677, 0
      %v697 = vsel %vm595, %v678, 0
      %v700 = vsel %vm595, %v679, 0
      %v703 = vsel %vm595, %v680, 0
      %v706 = vsel %vm595, %v681, 0
      %v709 = vsel %vm595, %v682, 0
      %v712 = vsel %vm595, %v683, 0
      %v715 = vsel %vm595, %v684, 0
      %717 = vmatpush.msra.mxu0 0.0
      %718 = vmatpush.msra.mxu0 0.0
      %719 = vmatpush.msra.mxu0 0.0
      %720 = vmatpush.msra.mxu0 0.0
      %721 = vmatpush.msra.mxu0 0.0
      %722 = vmatpush.msra.mxu0 0.0
      %723 = vmatpush.msra.mxu0 0.0
      %724 = vmatpush.msra.mxu0 0.0
      %725 = vmatpush.msra.mxu0 0.0
      %726 = vmatpush.msra.mxu0 0.0
      %727 = vmatpush.msra.mxu0 0.0
      %728 = vmatpush.msra.mxu0 0.0
      %729 = vmatpush.msra.mxu0 0.0
      %730 = vmatpush.msra.mxu0 0.0
      %731 = vmatpush.msra.mxu0 %v482
      %732 = vmatpush.msra.mxu0 %v480
      %733 = vmatmul.f32.gmra.mxu0 %v694
      %v734 = vpop.f32.mrf.mxu0
      %v735 = vadd.f32 0.0, %v734
      %736 = vmatmul.f32.gmra.mxu0 %v697
      %v737 = vpop.f32.mrf.mxu0
      %v738 = vadd.f32 0.0, %v737
      %739 = vmatmul.f32.gmra.mxu0 %v700
      %v740 = vpop.f32.mrf.mxu0
      %v741 = vadd.f32 0.0, %v740
      %742 = vmatmul.f32.gmra.mxu0 %v703
      %v743 = vpop.f32.mrf.mxu0
      %v744 = vadd.f32 0.0, %v743
      %745 = vmatmul.f32.gmra.mxu0 %v706
      %v746 = vpop.f32.mrf.mxu0
      %v747 = vadd.f32 0.0, %v746
      %748 = vmatmul.f32.gmra.mxu0 %v709
      %v749 = vpop.f32.mrf.mxu0
      %v750 = vadd.f32 0.0, %v749
      %751 = vmatmul.f32.gmra.mxu0 %v712
      %v752 = vpop.f32.mrf.mxu0
      %v753 = vadd.f32 0.0, %v752
      %754 = vmatmul.f32.gmra.mxu0 %v715
      %v755 = vpop.f32.mrf.mxu0
      %v756 = vadd.f32 0.0, %v755
      %757 = vdwg.mxu0
      %v758 = vsub.f32 %v638, %v735
      %v759 = vsub.f32 %v641, %v738
      %v760 = vsub.f32 %v644, %v741
      %v761 = vsub.f32 %v647, %v744
      %v762 = vsub.f32 %v650, %v747
      %v763 = vsub.f32 %v653, %v750
      %v764 = vsub.f32 %v656, %v753
      %v765 = vsub.f32 %v659, %v756
      %v766 = vld [vmem:[%s6] sm:$0x1]
      %v768 = vperm.slane %v766, 0
      %v770 = vadd.f32 %v758, %v768
      %v771 = vadd.f32 %v759, %v768
      %v772 = vadd.f32 %v760, %v768
      %v773 = vadd.f32 %v761, %v768
      %v774 = vadd.f32 %v762, %v768
      %v775 = vadd.f32 %v763, %v768
      %v776 = vadd.f32 %v764, %v768
      %v777 = vadd.f32 %v765, %v768
      %v778 = vmul.f32 %v770, 0.999995
      %v779 = vmul.f32 %v771, 0.999995
      %v780 = vmul.f32 %v772, 0.999995
      %v781 = vmul.f32 %v773, 0.999995
      %v782 = vmul.f32 %v774, 0.999995
      %v783 = vmul.f32 %v775, 0.999995
      %v784 = vmul.f32 %v776, 0.999995
      %v785 = vmul.f32 %v777, 0.999995
      %v786 = vsub.f32 0.0, %v778
      %v787 = vsub.f32 0.0, %v779
      %v788 = vsub.f32 0.0, %v780
      %v789 = vsub.f32 0.0, %v781
      %v790 = vsub.f32 0.0, %v782
      %v791 = vsub.f32 0.0, %v783
      %v792 = vsub.f32 0.0, %v784
      %v793 = vsub.f32 0.0, %v785
      %v794 = vmul.f32 %v786, 1.442695
      %v795 = vpow.pop %v794
      %v796 = vmul.f32 %v787, 1.442695
      %v797 = vpow.pop %v796
      %v798 = vmul.f32 %v788, 1.442695
      %v799 = vpow.pop %v798
      %v800 = vmul.f32 %v789, 1.442695
      %v801 = vpow.pop %v800
      %v802 = vmul.f32 %v790, 1.442695
      %v803 = vpow.pop %v802
      %v804 = vmul.f32 %v791, 1.442695
      %v805 = vpow.pop %v804
      %v806 = vmul.f32 %v792, 1.442695
      %v807 = vpow.pop %v806
      %v808 = vmul.f32 %v793, 1.442695
      %v809 = vpow.pop %v808
      %v810 = vadd.f32 %v795, 1.0
      %v811 = vadd.f32 %v797, 1.0
      %v812 = vadd.f32 %v799, 1.0
      %v813 = vadd.f32 %v801, 1.0
      %v814 = vadd.f32 %v803, 1.0
      %v815 = vadd.f32 %v805, 1.0
      %v816 = vadd.f32 %v807, 1.0
      %v817 = vadd.f32 %v809, 1.0
      %v818 = vrcp.pop %v810
      %v819 = vmul.f32 %v810, %v818
      %v820 = vsub.f32 1.0, %v819
      %v821 = vmul.f32 %v818, %v820
      %v822 = vadd.f32 %v818, %v821
      %vm823 = vweird.f32 %v810
      %vm824 = vweird.f32 %v818
      %vm825 = vmor %vm823, %vm824
      %v826 = vsel %vm825, %v818, %v822
      %v827 = vand.u32 2147483647, %v810
      %vm828 = vcmp.eq.f32.partialorder %v827, 8.507059e+37
      %v829 = vand.u32 %v810, 2147483648
      %v830 = vor.u32 1.1754944e-38, %v829
      %v831 = vsel %vm828, %v830, %v826
      %v832 = vmul.f32 1.0, %v831
      %v833 = vrcp.pop %v811
      %v834 = vmul.f32 %v811, %v833
      %v835 = vsub.f32 1.0, %v834
      %v836 = vmul.f32 %v833, %v835
      %v837 = vadd.f32 %v833, %v836
      %vm838 = vweird.f32 %v811
      %vm839 = vweird.f32 %v833
      %vm840 = vmor %vm838, %vm839
      %v841 = vsel %vm840, %v833, %v837
      %v842 = vand.u32 2147483647, %v811
      %vm843 = vcmp.eq.f32.partialorder %v842, 8.507059e+37
      %v844 = vand.u32 %v811, 2147483648
      %v845 = vor.u32 1.1754944e-38, %v844
      %v846 = vsel %vm843, %v845, %v841
      %v847 = vmul.f32 1.0, %v846
      %v848 = vrcp.pop %v812
      %v849 = vmul.f32 %v812, %v848
      %v850 = vsub.f32 1.0, %v849
      %v851 = vmul.f32 %v848, %v850
      %v852 = vadd.f32 %v848, %v851
      %vm853 = vweird.f32 %v812
      %vm854 = vweird.f32 %v848
      %vm855 = vmor %vm853, %vm854
      %v856 = vsel %vm855, %v848, %v852
      %v857 = vand.u32 2147483647, %v812
      %vm858 = vcmp.eq.f32.partialorder %v857, 8.507059e+37
      %v859 = vand.u32 %v812, 2147483648
      %v860 = vor.u32 1.1754944e-38, %v859
      %v861 = vsel %vm858, %v860, %v856
      %v862 = vmul.f32 1.0, %v861
      %v863 = vrcp.pop %v813
      %v864 = vmul.f32 %v813, %v863
      %v865 = vsub.f32 1.0, %v864
      %v866 = vmul.f32 %v863, %v865
      %v867 = vadd.f32 %v863, %v866
      %vm868 = vweird.f32 %v813
      %vm869 = vweird.f32 %v863
      %vm870 = vmor %vm868, %vm869
      %v871 = vsel %vm870, %v863, %v867
      %v872 = vand.u32 2147483647, %v813
      %vm873 = vcmp.eq.f32.partialorder %v872, 8.507059e+37
      %v874 = vand.u32 %v813, 2147483648
      %v875 = vor.u32 1.1754944e-38, %v874
      %v876 = vsel %vm873, %v875, %v871
      %v877 = vmul.f32 1.0, %v876
      %v878 = vrcp.pop %v814
      %v879 = vmul.f32 %v814, %v878
      %v880 = vsub.f32 1.0, %v879
      %v881 = vmul.f32 %v878, %v880
      %v882 = vadd.f32 %v878, %v881
      %vm883 = vweird.f32 %v814
      %vm884 = vweird.f32 %v878
      %vm885 = vmor %vm883, %vm884
      %v886 = vsel %vm885, %v878, %v882
      %v887 = vand.u32 2147483647, %v814
      %vm888 = vcmp.eq.f32.partialorder %v887, 8.507059e+37
      %v889 = vand.u32 %v814, 2147483648
      %v890 = vor.u32 1.1754944e-38, %v889
      %v891 = vsel %vm888, %v890, %v886
      %v892 = vmul.f32 1.0, %v891
      %v893 = vrcp.pop %v815
      %v894 = vmul.f32 %v815, %v893
      %v895 = vsub.f32 1.0, %v894
      %v896 = vmul.f32 %v893, %v895
      %v897 = vadd.f32 %v893, %v896
      %vm898 = vweird.f32 %v815
      %vm899 = vweird.f32 %v893
      %vm900 = vmor %vm898, %vm899
      %v901 = vsel %vm900, %v893, %v897
      %v902 = vand.u32 2147483647, %v815
      %vm903 = vcmp.eq.f32.partialorder %v902, 8.507059e+37
      %v904 = vand.u32 %v815, 2147483648
      %v905 = vor.u32 1.1754944e-38, %v904
      %v906 = vsel %vm903, %v905, %v901
      %v907 = vmul.f32 1.0, %v906
      %v908 = vrcp.pop %v816
      %v909 = vmul.f32 %v816, %v908
      %v910 = vsub.f32 1.0, %v909
      %v911 = vmul.f32 %v908, %v910
      %v912 = vadd.f32 %v908, %v911
      %vm913 = vweird.f32 %v816
      %vm914 = vweird.f32 %v908
      %vm915 = vmor %vm913, %vm914
      %v916 = vsel %vm915, %v908, %v912
      %v917 = vand.u32 2147483647, %v816
      %vm918 = vcmp.eq.f32.partialorder %v917, 8.507059e+37
      %v919 = vand.u32 %v816, 2147483648
      %v920 = vor.u32 1.1754944e-38, %v919
      %v921 = vsel %vm918, %v920, %v916
      %v922 = vmul.f32 1.0, %v921
      %v923 = vrcp.pop %v817
      %v924 = vmul.f32 %v817, %v923
      %v925 = vsub.f32 1.0, %v924
      %v926 = vmul.f32 %v923, %v925
      %v927 = vadd.f32 %v923, %v926
      %vm928 = vweird.f32 %v817
      %vm929 = vweird.f32 %v923
      %vm930 = vmor %vm928, %vm929
      %v931 = vsel %vm930, %v923, %v927
      %v932 = vand.u32 2147483647, %v817
      %vm933 = vcmp.eq.f32.partialorder %v932, 8.507059e+37
      %v934 = vand.u32 %v817, 2147483648
      %v935 = vor.u32 1.1754944e-38, %v934
      %v936 = vsel %vm933, %v935, %v931
      %v937 = vmul.f32 1.0, %v936
      %v938 = vpack.c.bf16 %v847, %v832
      %v939 = vpack.c.bf16 %v877, %v862
      %v940 = vpack.c.bf16 %v907, %v892
      %v941 = vpack.c.bf16 %v937, %v922
      %v942 = vld [vmem:[%s7] sm:$0xf]
      %v943 = vld [vmem:[%s7 + $0x4] sm:$0xf]
      %v944 = vld [vmem:[%s7 + $0x8] sm:$0xf]
      %v945 = vld [vmem:[%s7 + $0xc] sm:$0xf]
      %v946 = vld [vmem:[%s8] sm:$0x1]
      %v948 = vperm.slane %v946, 0
      %v954 = vunpack.c.l.b16 %v942
      %v955 = vunpack.c.l.b16 %v943
      %v956 = vunpack.c.l.b16 %v944
      %v957 = vunpack.c.l.b16 %v945
      %v958 = vpack.c.b16 %v955, %v954
      %v959 = vpack.c.b16 %v957, %v956
      %vm962 = vcmask 261120
      %v964 = vsel %vm962, %v938, 0
      %v967 = vsel %vm962, %v939, 0
      %v970 = vsel %vm962, %v940, 0
      %v973 = vsel %vm962, %v941, 0
      %975 = vmatpush.bf16.msra.mxu0 0
      %976 = vmatpush.bf16.msra.mxu0 0
      %977 = vmatpush.bf16.msra.mxu0 0
      %978 = vmatpush.bf16.msra.mxu0 0
      %979 = vmatpush.bf16.msra.mxu0 0
      %980 = vmatpush.bf16.msra.mxu0 0
      %981 = vmatpush.bf16.msra.mxu0 %v959
      %982 = vmatpush.bf16.msra.mxu0 %v958
      %983 = vmatmul.bf16.gmra.mxu0 %v964
      %v984 = vpop.f32.mrf.mxu0
      %v985 = vadd.f32 %v948, %v984
      %v986 = vpop.f32.mrf.mxu0
      %v987 = vadd.f32 %v948, %v986
      %988 = vmatmul.bf16.gmra.mxu0 %v967
      %v989 = vpop.f32.mrf.mxu0
      %v990 = vadd.f32 %v948, %v989
      %v991 = vpop.f32.mrf.mxu0
      %v992 = vadd.f32 %v948, %v991
      %993 = vmatmul.bf16.gmra.mxu0 %v970
      %v994 = vpop.f32.mrf.mxu0
      %v995 = vadd.f32 %v948, %v994
      %v996 = vpop.f32.mrf.mxu0
      %v997 = vadd.f32 %v948, %v996
      %998 = vmatmul.bf16.gmra.mxu0 %v973
      %v999 = vpop.f32.mrf.mxu0
      %v1000 = vadd.f32 %v948, %v999
      %v1001 = vpop.f32.mrf.mxu0
      %v1002 = vadd.f32 %v948, %v1001
      %1003 = vdwg.mxu0
      %v1004 = vmul.f32 %v985, 0.999995
      %v1005 = vmul.f32 %v987, 0.999995
      %v1006 = vmul.f32 %v990, 0.999995
      %v1007 = vmul.f32 %v992, 0.999995
      %v1008 = vmul.f32 %v995, 0.999995
      %v1009 = vmul.f32 %v997, 0.999995
      %v1010 = vmul.f32 %v1000, 0.999995
      %v1011 = vmul.f32 %v1002, 0.999995
      %v1012 = vsub.f32 0.0, %v1004
      %v1013 = vsub.f32 0.0, %v1005
      %v1014 = vsub.f32 0.0, %v1006
      %v1015 = vsub.f32 0.0, %v1007
      %v1016 = vsub.f32 0.0, %v1008
      %v1017 = vsub.f32 0.0, %v1009
      %v1018 = vsub.f32 0.0, %v1010
      %v1019 = vsub.f32 0.0, %v1011
      %v1020 = vmul.f32 %v1012, 1.442695
      %v1021 = vpow.pop %v1020
      %v1022 = vmul.f32 %v1013, 1.442695
      %v1023 = vpow.pop %v1022
      %v1024 = vmul.f32 %v1014, 1.442695
      %v1025 = vpow.pop %v1024
      %v1026 = vmul.f32 %v1015, 1.442695
      %v1027 = vpow.pop %v1026
      %v1028 = vmul.f32 %v1016, 1.442695
      %v1029 = vpow.pop %v1028
      %v1030 = vmul.f32 %v1017, 1.442695
      %v1031 = vpow.pop %v1030
      %v1032 = vmul.f32 %v1018, 1.442695
      %v1033 = vpow.pop %v1032
      %v1034 = vmul.f32 %v1019, 1.442695
      %v1035 = vpow.pop %v1034
      %v1036 = vadd.f32 %v1021, 1.0
      %v1037 = vadd.f32 %v1023, 1.0
      %v1038 = vadd.f32 %v1025, 1.0
      %v1039 = vadd.f32 %v1027, 1.0
      %v1040 = vadd.f32 %v1029, 1.0
      %v1041 = vadd.f32 %v1031, 1.0
      %v1042 = vadd.f32 %v1033, 1.0
      %v1043 = vadd.f32 %v1035, 1.0
      %v1044 = vrcp.pop %v1036
      %v1045 = vmul.f32 %v1036, %v1044
      %v1046 = vsub.f32 1.0, %v1045
      %v1047 = vmul.f32 %v1044, %v1046
      %v1048 = vadd.f32 %v1044, %v1047
      %vm1049 = vweird.f32 %v1036
      %vm1050 = vweird.f32 %v1044
      %vm1051 = vmor %vm1049, %vm1050
      %v1052 = vsel %vm1051, %v1044, %v1048
      %v1053 = vand.u32 2147483647, %v1036
      %vm1054 = vcmp.eq.f32.partialorder %v1053, 8.507059e+37
      %v1055 = vand.u32 %v1036, 2147483648
      %v1056 = vor.u32 1.1754944e-38, %v1055
      %v1057 = vsel %vm1054, %v1056, %v1052
      %v1058 = vmul.f32 1.0, %v1057
      %v1059 = vrcp.pop %v1037
      %v1060 = vmul.f32 %v1037, %v1059
      %v1061 = vsub.f32 1.0, %v1060
      %v1062 = vmul.f32 %v1059, %v1061
      %v1063 = vadd.f32 %v1059, %v1062
      %vm1064 = vweird.f32 %v1037
      %vm1065 = vweird.f32 %v1059
      %vm1066 = vmor %vm1064, %vm1065
      %v1067 = vsel %vm1066, %v1059, %v1063
      %v1068 = vand.u32 2147483647, %v1037
      %vm1069 = vcmp.eq.f32.partialorder %v1068, 8.507059e+37
      %v1070 = vand.u32 %v1037, 2147483648
      %v1071 = vor.u32 1.1754944e-38, %v1070
      %v1072 = vsel %vm1069, %v1071, %v1067
      %v1073 = vmul.f32 1.0, %v1072
      %v1074 = vrcp.pop %v1038
      %v1075 = vmul.f32 %v1038, %v1074
      %v1076 = vsub.f32 1.0, %v1075
      %v1077 = vmul.f32 %v1074, %v1076
      %v1078 = vadd.f32 %v1074, %v1077
      %vm1079 = vweird.f32 %v1038
      %vm1080 = vweird.f32 %v1074
      %vm1081 = vmor %vm1079, %vm1080
      %v1082 = vsel %vm1081, %v1074, %v1078
      %v1083 = vand.u32 2147483647, %v1038
      %vm1084 = vcmp.eq.f32.partialorder %v1083, 8.507059e+37
      %v1085 = vand.u32 %v1038, 2147483648
      %v1086 = vor.u32 1.1754944e-38, %v1085
      %v1087 = vsel %vm1084, %v1086, %v1082
      %v1088 = vmul.f32 1.0, %v1087
      %v1089 = vrcp.pop %v1039
      %v1090 = vmul.f32 %v1039, %v1089
      %v1091 = vsub.f32 1.0, %v1090
      %v1092 = vmul.f32 %v1089, %v1091
      %v1093 = vadd.f32 %v1089, %v1092
      %vm1094 = vweird.f32 %v1039
      %vm1095 = vweird.f32 %v1089
      %vm1096 = vmor %vm1094, %vm1095
      %v1097 = vsel %vm1096, %v1089, %v1093
      %v1098 = vand.u32 2147483647, %v1039
      %vm1099 = vcmp.eq.f32.partialorder %v1098, 8.507059e+37
      %v1100 = vand.u32 %v1039, 2147483648
      %v1101 = vor.u32 1.1754944e-38, %v1100
      %v1102 = vsel %vm1099, %v1101, %v1097
      %v1103 = vmul.f32 1.0, %v1102
      %v1104 = vrcp.pop %v1040
      %v1105 = vmul.f32 %v1040, %v1104
      %v1106 = vsub.f32 1.0, %v1105
      %v1107 = vmul.f32 %v1104, %v1106
      %v1108 = vadd.f32 %v1104, %v1107
      %vm1109 = vweird.f32 %v1040
      %vm1110 = vweird.f32 %v1104
      %vm1111 = vmor %vm1109, %vm1110
      %v1112 = vsel %vm1111, %v1104, %v1108
      %v1113 = vand.u32 2147483647, %v1040
      %vm1114 = vcmp.eq.f32.partialorder %v1113, 8.507059e+37
      %v1115 = vand.u32 %v1040, 2147483648
      %v1116 = vor.u32 1.1754944e-38, %v1115
      %v1117 = vsel %vm1114, %v1116, %v1112
      %v1118 = vmul.f32 1.0, %v1117
      %v1119 = vrcp.pop %v1041
      %v1120 = vmul.f32 %v1041, %v1119
      %v1121 = vsub.f32 1.0, %v1120
      %v1122 = vmul.f32 %v1119, %v1121
      %v1123 = vadd.f32 %v1119, %v1122
      %vm1124 = vweird.f32 %v1041
      %vm1125 = vweird.f32 %v1119
      %vm1126 = vmor %vm1124, %vm1125
      %v1127 = vsel %vm1126, %v1119, %v1123
      %v1128 = vand.u32 2147483647, %v1041
      %vm1129 = vcmp.eq.f32.partialorder %v1128, 8.507059e+37
      %v1130 = vand.u32 %v1041, 2147483648
      %v1131 = vor.u32 1.1754944e-38, %v1130
      %v1132 = vsel %vm1129, %v1131, %v1127
      %v1133 = vmul.f32 1.0, %v1132
      %v1134 = vrcp.pop %v1042
      %v1135 = vmul.f32 %v1042, %v1134
      %v1136 = vsub.f32 1.0, %v1135
      %v1137 = vmul.f32 %v1134, %v1136
      %v1138 = vadd.f32 %v1134, %v1137
      %vm1139 = vweird.f32 %v1042
      %vm1140 = vweird.f32 %v1134
      %vm1141 = vmor %vm1139, %vm1140
      %v1142 = vsel %vm1141, %v1134, %v1138
      %v1143 = vand.u32 2147483647, %v1042
      %vm1144 = vcmp.eq.f32.partialorder %v1143, 8.507059e+37
      %v1145 = vand.u32 %v1042, 2147483648
      %v1146 = vor.u32 1.1754944e-38, %v1145
      %v1147 = vsel %vm1144, %v1146, %v1142
      %v1148 = vmul.f32 1.0, %v1147
      %v1149 = vrcp.pop %v1043
      %v1150 = vmul.f32 %v1043, %v1149
      %v1151 = vsub.f32 1.0, %v1150
      %v1152 = vmul.f32 %v1149, %v1151
      %v1153 = vadd.f32 %v1149, %v1152
      %vm1154 = vweird.f32 %v1043
      %vm1155 = vweird.f32 %v1149
      %vm1156 = vmor %vm1154, %vm1155
      %v1157 = vsel %vm1156, %v1149, %v1153
      %v1158 = vand.u32 2147483647, %v1043
      %vm1159 = vcmp.eq.f32.partialorder %v1158, 8.507059e+37
      %v1160 = vand.u32 %v1043, 2147483648
      %v1161 = vor.u32 1.1754944e-38, %v1160
      %v1162 = vsel %vm1159, %v1161, %v1157
      %v1163 = vmul.f32 1.0, %v1162
      %v1164 = vpack.c.bf16 %v1073, %v1058
      %v1165 = vpack.c.bf16 %v1103, %v1088
      %v1166 = vpack.c.bf16 %v1133, %v1118
      %v1167 = vpack.c.bf16 %v1163, %v1148
      %v1168 = vld [vmem:[%s9] sm:$0xf]
      %v1169 = vld [vmem:[%s9 + $0x4] sm:$0xf]
      %v1170 = vld [vmem:[%s9 + $0x8] sm:$0xf]
      %v1171 = vld [vmem:[%s9 + $0xc] sm:$0xf]
      %v1172 = vld [vmem:[%s10] sm:$0x1]
      %v1174 = vperm.slane %v1172, 0
      %v1180 = vunpack.c.l.b16 %v1168
      %v1181 = vunpack.c.l.b16 %v1169
      %v1182 = vunpack.c.l.b16 %v1170
      %v1183 = vunpack.c.l.b16 %v1171
      %v1184 = vpack.c.b16 %v1181, %v1180
      %v1185 = vpack.c.b16 %v1183, %v1182
      %v1189 = vsel %vm962, %v1164, 0
      %v1192 = vsel %vm962, %v1165, 0
      %v1195 = vsel %vm962, %v1166, 0
      %v1198 = vsel %vm962, %v1167, 0
      %1200 = vmatpush.bf16.msra.mxu0 0
      %1201 = vmatpush.bf16.msra.mxu0 0
      %1202 = vmatpush.bf16.msra.mxu0 0
      %1203 = vmatpush.bf16.msra.mxu0 0
      %1204 = vmatpush.bf16.msra.mxu0 0
      %1205 = vmatpush.bf16.msra.mxu0 0
      %1206 = vmatpush.bf16.msra.mxu0 %v1185
      %1207 = vmatpush.bf16.msra.mxu0 %v1184
      %1208 = vmatmul.bf16.gmra.mxu0 %v1189
      %v1209 = vpop.f32.mrf.mxu0
      %v1210 = vadd.f32 %v1174, %v1209
      %v1211 = vpop.f32.mrf.mxu0
      %v1212 = vadd.f32 %v1174, %v1211
      %1213 = vmatmul.bf16.gmra.mxu0 %v1192
      %v1214 = vpop.f32.mrf.mxu0
      %v1215 = vadd.f32 %v1174, %v1214
      %v1216 = vpop.f32.mrf.mxu0
      %v1217 = vadd.f32 %v1174, %v1216
      %1218 = vmatmul.bf16.gmra.mxu0 %v1195
      %v1219 = vpop.f32.mrf.mxu0
      %v1220 = vadd.f32 %v1174, %v1219
      %v1221 = vpop.f32.mrf.mxu0
      %v1222 = vadd.f32 %v1174, %v1221
      %1223 = vmatmul.bf16.gmra.mxu0 %v1198
      %v1224 = vpop.f32.mrf.mxu0
      %v1225 = vadd.f32 %v1174, %v1224
      %v1226 = vpop.f32.mrf.mxu0
      %v1227 = vadd.f32 %v1174, %v1226
      %1228 = vdwg.mxu0
      %v1229 = vmax.f32 %v1210, %v1212
      %v1230 = vrot.slane %v1229, 4
      %v1231 = vmax.f32 %v1229, %v1230
      %v1232 = vrot.slane %v1231, 2
      %v1233 = vmax.f32 %v1231, %v1232
      %v1234 = vrot.slane %v1233, 1
      %v1235 = vmax.f32 %v1233, %v1234
      %v1236 = vmax.f32 %v1215, %v1217
      %v1237 = vrot.slane %v1236, 4
      %v1238 = vmax.f32 %v1236, %v1237
      %v1239 = vrot.slane %v1238, 2
      %v1240 = vmax.f32 %v1238, %v1239
      %v1241 = vrot.slane %v1240, 1
      %v1242 = vmax.f32 %v1240, %v1241
      %v1243 = vmax.f32 %v1220, %v1222
      %v1244 = vrot.slane %v1243, 4
      %v1245 = vmax.f32 %v1243, %v1244
      %v1246 = vrot.slane %v1245, 2
      %v1247 = vmax.f32 %v1245, %v1246
      %v1248 = vrot.slane %v1247, 1
      %v1249 = vmax.f32 %v1247, %v1248
      %v1250 = vmax.f32 %v1225, %v1227
      %v1251 = vrot.slane %v1250, 4
      %v1252 = vmax.f32 %v1250, %v1251
      %v1253 = vrot.slane %v1252, 2
      %v1254 = vmax.f32 %v1252, %v1253
      %v1255 = vrot.slane %v1254, 1
      %v1256 = vmax.f32 %v1254, %v1255
      %v1257 = vmax.f32 %v1235, 0.0
      %v1258 = vmax.f32 %v1242, 0.0
      %v1259 = vmax.f32 %v1249, 0.0
      %v1260 = vmax.f32 %v1256, 0.0
      %vm1265 = vcmask 1041409
      %v1266 = vsel %vm1265, %v1258, %v1257
      %vm1267 = vcmask 1042434
      %v1268 = vsel %vm1267, %v1259, %v1266
      %vm1269 = vcmask 1043459
      %v1270 = vsel %vm1269, %v1260, %v1268
      %1272 = vst [vmem:[%s432] sm:$0xf] %v1270
      %p1273 = scmp.lt.s32.totalorder %s22, 1
      %s1274 = scalar_select %p1273, %s22, 1
      %s1275 = smul.addr %s1274, 4
      %s1276 = scalar_lea.vmem %s11, %s1275
      // Predicated region
      $region65: #{feature_model_forward.4} parent=63 // pred_check
        %p1277 = pneg %p291
      $region66: #{feature_model_forward.4} parent=63 // pred_check_branch
        %1279 = sbr.rel (%p1277) target = $region68
      $region67: #{feature_model_forward.4} parent=63 // pred_region
        _
      $region68: #{feature_model_forward.4} parent=63 // pred_fallthru
        _
    $region64: #{feature_model_forward.4} parent=5 // pred_fallthru
      _
    %p1280 = scmp.le.s32.totalorder 2, %s17
    // Predicated region
    $region69: #{feature_model_forward.4} parent=5 // pred_check
      %p1281 = pneg %p1280
    $region70: #{feature_model_forward.4} parent=5 // pred_check_branch
      %1283 = sbr.rel (%p1281) target = $region72
    $region71: #{feature_model_forward.4} parent=5 // pred_region
      %s1284 = ssub.s32 %s17, 2
      // Predicated region
      $region73: #{feature_model_forward.4} parent=71 // pred_check
        %p1285 = pneg %p297
      $region74: #{feature_model_forward.4} parent=71 // pred_check_branch
        %1287 = sbr.rel (%p1285) target = $region76
      $region75: #{feature_model_forward.4} parent=71 // pred_region
        %p1288 = scmp.lt.s32.totalorder %s23, 1
        %s1289 = scalar_select %p1288, %s23, 1
        %s1290 = smul.addr %s1289, 4
        %s1291 = scalar_lea.vmem %s11, %s1290
      $region76: #{feature_model_forward.4} parent=71 // pred_fallthru
        _
    $region72: #{feature_model_forward.4} parent=5 // pred_fallthru
      _
  $region6: #{feature_model_forward.4} parent=0 // loop_footer
    %s21 = sadd.s32 1, %s17
  $region7: #{feature_model_forward.4} parent=0 // loop_footer_branch
    %16 = sbr.rel target = $region3
  $region8: #{feature_model_forward.4} parent=0 // loop_exit
    _

// kernel: feature_model_forward.3
$region0: #{feature_model_forward.3}
  #allocation0 [shape = 'u32[]', space=smem, size = 0x4, offset = 0x4, fixed_abs, tag = 'smem constant byte address 0x4 - core index']
  #allocation1 [shape = 'u32[72,128]{1,0:T(1,128)}', space=vmem, size = 0x9000, scoped, tag = 'internal scratch']
  %s0 = inlined_call_operand.vmem [shape: f32[2,64,4], index: 0, kind: input, shape index: {}]
  %s1 = inlined_call_operand.vmem [shape: f32[2,64,3], index: 1, kind: input, shape index: {}]
  %s2 = inlined_call_operand.vmem [shape: s32[2,1,512], index: 2, kind: input, shape index: {}]
  %s3 = inlined_call_operand.vmem [shape: s32[2,1,512], index: 3, kind: input, shape index: {}]
  %s4 = inlined_call_operand.vmem [shape: bf16[4,16], index: 4, kind: input, shape index: {}]
  %s5 = inlined_call_operand.vmem [shape: bf16[3,16], index: 5, kind: input, shape index: {}]
  %s6 = inlined_call_operand.vmem [shape: f32[1,16], index: 6, kind: input, shape index: {}]
  %s7 = inlined_call_operand.vmem [shape: bf16[16,16], index: 7, kind: input, shape index: {}]
  %s8 = inlined_call_operand.vmem [shape: f32[1,16], index: 8, kind: input, shape index: {}]
  %s9 = inlined_call_operand.vmem [shape: bf16[16,128], index: 9, kind: input, shape index: {}]
  %s10 = inlined_call_operand.vmem [shape: f32[1,128], index: 10, kind: input, shape index: {}]
  %s11 = inlined_call_operand.vmem [shape: f32[2,16,128], index: 11, kind: output, shape index: {}]
  %s12 = sld [smem:[#allocation0]]
  $region77: #{feature_model_forward.3} parent=0
    _
  %s14 = ssub.s32 1, %s12
  %s15 = scalar_select 0, %s14, %s12
  loop: start=0, step=1, limit=4
  $region2: #{feature_model_forward.3} parent=0 // loop_pre_header
    _
  $region3: #{feature_model_forward.3} parent=0 // loop_header
    %s17 = sphi 0, %s21
    %p18 = scmp.ge.s32.totalorder %s17, 4
    %s27 = sphi 0, %s29
    %s30 = sphi 0, %s27
    %s31 = sphi 0, %s30
    %s47 = sphi 0, %s31
    %s53 = sphi 0, %s55
    %s56 = sphi 0, %s53
    %s57 = sphi 0, %s56
    %s73 = sphi 0, %s57
    %s79 = sphi 0, %s81
    %s82 = sphi 0, %s79
    %s83 = sphi 0, %s82
    %s99 = sphi 0, %s83
    %s105 = sphi 0, %s107
    %s108 = sphi 0, %s105
    %s109 = sphi 0, %s108
    %s125 = sphi 0, %s109
    %s129 = sphi 0, %s129
    %s131 = sphi 0, %s129
    %s132 = sphi 0, %s131
    %s146 = sphi 0, %s132
    %s150 = sphi 0, %s150
    %s152 = sphi 0, %s150
    %s153 = sphi 0, %s152
    %s167 = sphi 0, %s153
    %s171 = sphi 0, %s171
    %s173 = sphi 0, %s171
    %s174 = sphi 0, %s173
    %s188 = sphi 0, %s174
    %s192 = sphi 0, %s192
    %s194 = sphi 0, %s192
    %s195 = sphi 0, %s194
    %s209 = sphi 0, %s195
    %s213 = sphi 0, %s213
    %s215 = sphi 0, %s213
    %s216 = sphi 0, %s215
    %s230 = sphi 0, %s216
    %s234 = sphi 0, %s234
    %s236 = sphi 0, %s234
    %s237 = sphi 0, %s236
    %s251 = sphi 0, %s237
    %s255 = sphi 0, %s255
    %s257 = sphi 0, %s255
    %s258 = sphi 0, %s257
    %s272 = sphi 0, %s258
    %s278 = sphi 0, %s280
    %s281 = sphi 0, %s278
    %s282 = sphi 0, %s281
    %s298 = sphi 0, %s282
  $region4: #{feature_model_forward.3} parent=0 // loop_header_branch
    %20 = sbr.rel (%p18) target = $region8
  $region5: #{feature_model_forward.3} parent=0 // loop_body
    %s22 = ssub.s32 %s17, 1
    %s23 = ssub.s32 %s17, 2
    %s24 = sadd.s32 %s17, 1
    %s25 = ssub.s32 %s17, %s24
    %p26 = scmp.eq.s32.totalorder %s25, 0
    %s28 = sadd.s32 %s27, 1
    %s29 = scalar_select %p26, %s27, %s28
    %p32 = pneg %p26
    %p33 = scmp.eq.s32.totalorder %s17, 1
    %p34 = por %p32, %p33
    %p35 = scmp.ne.s32.totalorder %s27, %s30
    %p36 = scmp.eq.s32.totalorder %s17, 0
    %p37 = por %p35, %p36
    %p38 = scmp.ne.s32.totalorder %s27, %s30
    %p39 = scmp.eq.s32.totalorder %s22, 1
    %p40 = por %p38, %p39
    %p41 = scmp.ne.s32.totalorder %s30, %s31
    %p42 = scmp.eq.s32.totalorder %s22, 0
    %p43 = por %p41, %p42
    %p44 = scmp.ne.s32.totalorder %s30, %s31
    %p45 = scmp.eq.s32.totalorder %s23, 1
    %p46 = por %p44, %p45
    %p48 = scmp.ne.s32.totalorder %s31, %s47
    %p49 = scmp.eq.s32.totalorder %s23, 0
    %p50 = por %p48, %p49
    %s51 = ssub.s32 %s17, %s24
    %p52 = scmp.eq.s32.totalorder %s51, 0
    %s54 = sadd.s32 %s53, 1
    %s55 = scalar_select %p52, %s53, %s54
    %p58 = pneg %p52
    %p59 = scmp.eq.s32.totalorder %s17, 1
    %p60 = por %p58, %p59
    %p61 = scmp.ne.s32.totalorder %s53, %s56
    %p62 = scmp.eq.s32.totalorder %s17, 0
    %p63 = por %p61, %p62
    %p64 = scmp.ne.s32.totalorder %s53, %s56
    %p65 = scmp.eq.s32.totalorder %s22, 1
    %p66 = por %p64, %p65
    %p67 = scmp.ne.s32.totalorder %s56, %s57
    %p68 = scmp.eq.s32.totalorder %s22, 0
    %p69 = por %p67, %p68
    %p70 = scmp.ne.s32.totalorder %s56, %s57
    %p71 = scmp.eq.s32.totalorder %s23, 1
    %p72 = por %p70, %p71
    %p74 = scmp.ne.s32.totalorder %s57, %s73
    %p75 = scmp.eq.s32.totalorder %s23, 0
    %p76 = por %p74, %p75
    %s77 = ssub.s32 %s17, %s24
    %p78 = scmp.eq.s32.totalorder %s77, 0
    %s80 = sadd.s32 %s79, 1
    %s81 = scalar_select %p78, %s79, %s80
    %p84 = pneg %p78
    %p85 = scmp.eq.s32.totalorder %s17, 1
    %p86 = por %p84, %p85
    %p87 = scmp.ne.s32.totalorder %s79, %s82
    %p88 = scmp.eq.s32.totalorder %s17, 0
    %p89 = por %p87, %p88
    %p90 = scmp.ne.s32.totalorder %s79, %s82
    %p91 = scmp.eq.s32.totalorder %s22, 1
    %p92 = por %p90, %p91
    %p93 = scmp.ne.s32.totalorder %s82, %s83
    %p94 = scmp.eq.s32.totalorder %s22, 0
    %p95 = por %p93, %p94
    %p96 = scmp.ne.s32.totalorder %s82, %s83
    %p97 = scmp.eq.s32.totalorder %s23, 1
    %p98 = por %p96, %p97
    %p100 = scmp.ne.s32.totalorder %s83, %s99
    %p101 = scmp.eq.s32.totalorder %s23, 0
    %p102 = por %p100, %p101
    %s103 = ssub.s32 %s17, %s24
    %p104 = scmp.eq.s32.totalorder %s103, 0
    %s106 = sadd.s32 %s105, 1
    %s107 = scalar_select %p104, %s105, %s106
    %p110 = pneg %p104
    %p111 = scmp.eq.s32.totalorder %s17, 1
    %p112 = por %p110, %p111
    %p113 = scmp.ne.s32.totalorder %s105, %s108
    %p114 = scmp.eq.s32.totalorder %s17, 0
    %p115 = por %p113, %p114
    %p116 = scmp.ne.s32.totalorder %s105, %s108
    %p117 = scmp.eq.s32.totalorder %s22, 1
    %p118 = por %p116, %p117
    %p119 = scmp.ne.s32.totalorder %s108, %s109
    %p120 = scmp.eq.s32.totalorder %s22, 0
    %p121 = por %p119, %p120
    %p122 = scmp.ne.s32.totalorder %s108, %s109
    %p123 = scmp.eq.s32.totalorder %s23, 1
    %p124 = por %p122, %p123
    %p126 = scmp.ne.s32.totalorder %s109, %s125
    %p127 = scmp.eq.s32.totalorder %s23, 0
    %p128 = por %p126, %p127
    %s130 = sadd.s32 %s129, 1
    %p133 = scmp.eq.s32.totalorder %s17, 1
    %p134 = scmp.ne.s32.totalorder %s129, %s131
    %p135 = scmp.eq.s32.totalorder %s17, 0
    %p136 = por %p134, %p135
    %p137 = scmp.ne.s32.totalorder %s129, %s131
    %p138 = scmp.eq.s32.totalorder %s22, 1
    %p139 = por %p137, %p138
    %p140 = scmp.ne.s32.totalorder %s131, %s132
    %p141 = scmp.eq.s32.totalorder %s22, 0
    %p142 = por %p140, %p141
    %p143 = scmp.ne.s32.totalorder %s131, %s132
    %p144 = scmp.eq.s32.totalorder %s23, 1
    %p145 = por %p143, %p144
    %p147 = scmp.ne.s32.totalorder %s132, %s146
    %p148 = scmp.eq.s32.totalorder %s23, 0
    %p149 = por %p147, %p148
    %s151 = sadd.s32 %s150, 1
    %p154 = scmp.eq.s32.totalorder %s17, 1
    %p155 = scmp.ne.s32.totalorder %s150, %s152
    %p156 = scmp.eq.s32.totalorder %s17, 0
    %p157 = por %p155, %p156
    %p158 = scmp.ne.s32.totalorder %s150, %s152
    %p159 = scmp.eq.s32.totalorder %s22, 1
    %p160 = por %p158, %p159
    %p161 = scmp.ne.s32.totalorder %s152, %s153
    %p162 = scmp.eq.s32.totalorder %s22, 0
    %p163 = por %p161, %p162
    %p164 = scmp.ne.s32.totalorder %s152, %s153
    %p165 = scmp.eq.s32.totalorder %s23, 1
    %p166 = por %p164, %p165
    %p168 = scmp.ne.s32.totalorder %s153, %s167
    %p169 = scmp.eq.s32.totalorder %s23, 0
    %p170 = por %p168, %p169
    %s172 = sadd.s32 %s171, 1
    %p175 = scmp.eq.s32.totalorder %s17, 1
    %p176 = scmp.ne.s32.totalorder %s171, %s173
    %p177 = scmp.eq.s32.totalorder %s17, 0
    %p178 = por %p176, %p177
    %p179 = scmp.ne.s32.totalorder %s171, %s173
    %p180 = scmp.eq.s32.totalorder %s22, 1
    %p181 = por %p179, %p180
    %p182 = scmp.ne.s32.totalorder %s173, %s174
    %p183 = scmp.eq.s32.totalorder %s22, 0
    %p184 = por %p182, %p183
    %p185 = scmp.ne.s32.totalorder %s173, %s174
    %p186 = scmp.eq.s32.totalorder %s23, 1
    %p187 = por %p185, %p186
    %p189 = scmp.ne.s32.totalorder %s174, %s188
    %p190 = scmp.eq.s32.totalorder %s23, 0
    %p191 = por %p189, %p190
    %s193 = sadd.s32 %s192, 1
    %p196 = scmp.eq.s32.totalorder %s17, 1
    %p197 = scmp.ne.s32.totalorder %s192, %s194
    %p198 = scmp.eq.s32.totalorder %s17, 0
    %p199 = por %p197, %p198
    %p200 = scmp.ne.s32.totalorder %s192, %s194
    %p201 = scmp.eq.s32.totalorder %s22, 1
    %p202 = por %p200, %p201
    %p203 = scmp.ne.s32.totalorder %s194, %s195
    %p204 = scmp.eq.s32.totalorder %s22, 0
    %p205 = por %p203, %p204
    %p206 = scmp.ne.s32.totalorder %s194, %s195
    %p207 = scmp.eq.s32.totalorder %s23, 1
    %p208 = por %p206, %p207
    %p210 = scmp.ne.s32.totalorder %s195, %s209
    %p211 = scmp.eq.s32.totalorder %s23, 0
    %p212 = por %p210, %p211
    %s214 = sadd.s32 %s213, 1
    %p217 = scmp.eq.s32.totalorder %s17, 1
    %p218 = scmp.ne.s32.totalorder %s213, %s215
    %p219 = scmp.eq.s32.totalorder %s17, 0
    %p220 = por %p218, %p219
    %p221 = scmp.ne.s32.totalorder %s213, %s215
    %p222 = scmp.eq.s32.totalorder %s22, 1
    %p223 = por %p221, %p222
    %p224 = scmp.ne.s32.totalorder %s215, %s216
    %p225 = scmp.eq.s32.totalorder %s22, 0
    %p226 = por %p224, %p225
    %p227 = scmp.ne.s32.totalorder %s215, %s216
    %p228 = scmp.eq.s32.totalorder %s23, 1
    %p229 = por %p227, %p228
    %p231 = scmp.ne.s32.totalorder %s216, %s230
    %p232 = scmp.eq.s32.totalorder %s23, 0
    %p233 = por %p231, %p232
    %s235 = sadd.s32 %s234, 1
    %p238 = scmp.eq.s32.totalorder %s17, 1
    %p239 = scmp.ne.s32.totalorder %s234, %s236
    %p240 = scmp.eq.s32.totalorder %s17, 0
    %p241 = por %p239, %p240
    %p242 = scmp.ne.s32.totalorder %s234, %s236
    %p243 = scmp.eq.s32.totalorder %s22, 1
    %p244 = por %p242, %p243
    %p245 = scmp.ne.s32.totalorder %s236, %s237
    %p246 = scmp.eq.s32.totalorder %s22, 0
    %p247 = por %p245, %p246
    %p248 = scmp.ne.s32.totalorder %s236, %s237
    %p249 = scmp.eq.s32.totalorder %s23, 1
    %p250 = por %p248, %p249
    %p252 = scmp.ne.s32.totalorder %s237, %s251
    %p253 = scmp.eq.s32.totalorder %s23, 0
    %p254 = por %p252, %p253
    %s256 = sadd.s32 %s255, 1
    %p259 = scmp.eq.s32.totalorder %s17, 1
    %p260 = scmp.ne.s32.totalorder %s255, %s257
    %p261 = scmp.eq.s32.totalorder %s17, 0
    %p262 = por %p260, %p261
    %p263 = scmp.ne.s32.totalorder %s255, %s257
    %p264 = scmp.eq.s32.totalorder %s22, 1
    %p265 = por %p263, %p264
    %p266 = scmp.ne.s32.totalorder %s257, %s258
    %p267 = scmp.eq.s32.totalorder %s22, 0
    %p268 = por %p266, %p267
    %p269 = scmp.ne.s32.totalorder %s257, %s258
    %p270 = scmp.eq.s32.totalorder %s23, 1
    %p271 = por %p269, %p270
    %p273 = scmp.ne.s32.totalorder %s258, %s272
    %p274 = scmp.eq.s32.totalorder %s23, 0
    %p275 = por %p273, %p274
    %s276 = ssub.s32 %s17, %s24
    %p277 = scmp.eq.s32.totalorder %s276, 0
    %s279 = sadd.s32 %s278, 1
    %s280 = scalar_select %p277, %s278, %s279
    %p283 = pneg %p277
    %p284 = scmp.eq.s32.totalorder %s17, 1
    %p285 = por %p283, %p284
    %p286 = scmp.ne.s32.totalorder %s278, %s281
    %p287 = scmp.eq.s32.totalorder %s17, 0
    %p288 = por %p286, %p287
    %p289 = scmp.ne.s32.totalorder %s278, %s281
    %p290 = scmp.eq.s32.totalorder %s22, 1
    %p291 = por %p289, %p290
    %p292 = scmp.ne.s32.totalorder %s281, %s282
    %p293 = scmp.eq.s32.totalorder %s22, 0
    %p294 = por %p292, %p293
    %p295 = scmp.ne.s32.totalorder %s281, %s282
    %p296 = scmp.eq.s32.totalorder %s23, 1
    %p297 = por %p295, %p296
    %p299 = scmp.ne.s32.totalorder %s282, %s298
    %p300 = scmp.eq.s32.totalorder %s23, 0
    %p301 = por %p299, %p300
    %p302 = scmp.le.s32.totalorder 1, %s17
    %p303 = scmp.lt.s32.totalorder %s17, 3
    %p304 = pnand %p302, %p303
    %p305 = pneg %p304
    // Predicated region
    $region9: #{feature_model_forward.3} parent=5 // pred_check
      _
    $region10: #{feature_model_forward.3} parent=5 // pred_check_branch
      %307 = sbr.rel (%p304) target = $region12
    $region11: #{feature_model_forward.3} parent=5 // pred_region
      %s308 = ssub.s32 %s17, 1
      // Predicated region
      $region13: #{feature_model_forward.3} parent=11 // pred_check
        %p309 = pneg %p142
      $region14: #{feature_model_forward.3} parent=11 // pred_check_branch
        %311 = sbr.rel (%p309) target = $region16
      $region15: #{feature_model_forward.3} parent=11 // pred_region
        _
      $region16: #{feature_model_forward.3} parent=11 // pred_fallthru
        _
      // Predicated region
      $region17: #{feature_model_forward.3} parent=11 // pred_check
        %p312 = pneg %p163
      $region18: #{feature_model_forward.3} parent=11 // pred_check_branch
        %314 = sbr.rel (%p312) target = $region20
      $region19: #{feature_model_forward.3} parent=11 // pred_region
        _
      $region20: #{feature_model_forward.3} parent=11 // pred_fallthru
        _
      // Predicated region
      $region21: #{feature_model_forward.3} parent=11 // pred_check
        %p315 = pneg %p184
      $region22: #{feature_model_forward.3} parent=11 // pred_check_branch
        %317 = sbr.rel (%p315) target = $region24
      $region23: #{feature_model_forward.3} parent=11 // pred_region
        _
      $region24: #{feature_model_forward.3} parent=11 // pred_fallthru
        _
      // Predicated region
      $region25: #{feature_model_forward.3} parent=11 // pred_check
        %p318 = pneg %p205
      $region26: #{feature_model_forward.3} parent=11 // pred_check_branch
        %320 = sbr.rel (%p318) target = $region28
      $region27: #{feature_model_forward.3} parent=11 // pred_region
        _
      $region28: #{feature_model_forward.3} parent=11 // pred_fallthru
        _
      // Predicated region
      $region29: #{feature_model_forward.3} parent=11 // pred_check
        %p321 = pneg %p226
      $region30: #{feature_model_forward.3} parent=11 // pred_check_branch
        %323 = sbr.rel (%p321) target = $region32
      $region31: #{feature_model_forward.3} parent=11 // pred_region
        _
      $region32: #{feature_model_forward.3} parent=11 // pred_fallthru
        _
      // Predicated region
      $region33: #{feature_model_forward.3} parent=11 // pred_check
        %p324 = pneg %p247
      $region34: #{feature_model_forward.3} parent=11 // pred_check_branch
        %326 = sbr.rel (%p324) target = $region36
      $region35: #{feature_model_forward.3} parent=11 // pred_region
        _
      $region36: #{feature_model_forward.3} parent=11 // pred_fallthru
        _
      // Predicated region
      $region37: #{feature_model_forward.3} parent=11 // pred_check
        %p327 = pneg %p268
      $region38: #{feature_model_forward.3} parent=11 // pred_check_branch
        %329 = sbr.rel (%p327) target = $region40
      $region39: #{feature_model_forward.3} parent=11 // pred_region
        _
      $region40: #{feature_model_forward.3} parent=11 // pred_fallthru
        _
    $region12: #{feature_model_forward.3} parent=5 // pred_fallthru
      _
    %p330 = scmp.lt.s32.totalorder %s17, 2
    // Predicated region
    $region41: #{feature_model_forward.3} parent=5 // pred_check
      %p331 = pneg %p330
    $region42: #{feature_model_forward.3} parent=5 // pred_check_branch
      %333 = sbr.rel (%p331) target = $region44
    $region43: #{feature_model_forward.3} parent=5 // pred_region
      // Predicated region
      $region45: #{feature_model_forward.3} parent=43 // pred_check
        %p334 = pneg %p37
      $region46: #{feature_model_forward.3} parent=43 // pred_check_branch
        %336 = sbr.rel (%p334) target = $region48
      $region47: #{feature_model_forward.3} parent=43 // pred_region
        %p337 = scmp.lt.s32.totalorder %s17, 1
        %s338 = scalar_select %p337, %s17, 1
        %s339 = smul.addr %s338, 8
        %s340 = smul.addr %s339, 8
        %s341 = scalar_lea.vmem %s0, %s340
      $region48: #{feature_model_forward.3} parent=43 // pred_fallthru
        _
      // Predicated region
      $region49: #{feature_model_forward.3} parent=43 // pred_check
        %p342 = pneg %p63
      $region50: #{feature_model_forward.3} parent=43 // pred_check_branch
        %344 = sbr.rel (%p342) target = $region52
      $region51: #{feature_model_forward.3} parent=43 // pred_region
        %p345 = scmp.lt.s32.totalorder %s17, 1
        %s346 = scalar_select %p345, %s17, 1
        %s347 = smul.addr %s346, 8
        %s348 = smul.addr %s347, 8
        %s349 = scalar_lea.vmem %s1, %s348
      $region52: #{feature_model_forward.3} parent=43 // pred_fallthru
        _
      // Predicated region
      $region53: #{feature_model_forward.3} parent=43 // pred_check
        %p350 = pneg %p89
      $region54: #{feature_model_forward.3} parent=43 // pred_check_branch
        %352 = sbr.rel (%p350) target = $region56
      $region55: #{feature_model_forward.3} parent=43 // pred_region
        %p353 = scmp.lt.s32.totalorder %s17, 1
        %s354 = scalar_select %p353, %s17, 1
        %s355 = smul.addr %s354, 4
        %s356 = scalar_lea.vmem %s2, %s355
      $region56: #{feature_model_forward.3} parent=43 // pred_fallthru
        _
      // Predicated region
      $region57: #{feature_model_forward.3} parent=43 // pred_check
        %p357 = pneg %p115
      $region58: #{feature_model_forward.3} parent=43 // pred_check_branch
        %359 = sbr.rel (%p357) target = $region60
      $region59: #{feature_model_forward.3} parent=43 // pred_region
        %p360 = scmp.lt.s32.totalorder %s17, 1
        %s361 = scalar_select %p360, %s17, 1
        %s362 = smul.addr %s361, 4
        %s363 = scalar_lea.vmem %s3, %s362
      $region60: #{feature_model_forward.3} parent=43 // pred_fallthru
        _
    $region44: #{feature_model_forward.3} parent=5 // pred_fallthru
      _
    %p364 = scmp.le.s32.totalorder 1, %s17
    %p365 = scmp.lt.s32.totalorder %s17, 3
    %p366 = pnand %p364, %p365
    %p367 = pneg %p366
    // Predicated region
    $region61: #{feature_model_forward.3} parent=5 // pred_check
      _
    $region62: #{feature_model_forward.3} parent=5 // pred_check_branch
      %369 = sbr.rel (%p366) target = $region64
    $region63: #{feature_model_forward.3} parent=5 // pred_region
      %s370 = ssub.s32 %s17, 1
      %p371 = scmp.lt.s32.totalorder %s22, 1
      %s372 = scalar_select %p371, %s22, 1
      %s373 = smul.addr %s372, 8
      %s374 = smul.addr %s373, 8
      %s375 = scalar_lea.vmem %s0, %s374
      %p376 = pneg %p43
      %p377 = pneg %p40
      %p378 = scmp.lt.s32.totalorder %s22, 1
      %s379 = scalar_select %p378, %s22, 1
      %s380 = smul.addr %s379, 8
      %s381 = smul.addr %s380, 8
      %s382 = scalar_lea.vmem %s1, %s381
      %p383 = pneg %p69
      %p384 = pneg %p66
      %p385 = scmp.lt.s32.totalorder %s22, 1
      %s386 = scalar_select %p385, %s22, 1
      %s387 = smul.addr %s386, 4
      %s388 = scalar_lea.vmem %s2, %s387
      %p389 = pneg %p95
      %p390 = pneg %p92
      %p391 = scmp.lt.s32.totalorder %s22, 1
      %s392 = scalar_select %p391, %s22, 1
      %s393 = smul.addr %s392, 4
      %s394 = scalar_lea.vmem %s3, %s393
      %p395 = pneg %p121
      %p396 = pneg %p118
      %p397 = pneg %p142
      %p398 = pneg %p139
      %p399 = pneg %p163
      %p400 = pneg %p160
      %p401 = pneg %p184
      %p402 = pneg %p181
      %p403 = pneg %p205
      %p404 = pneg %p202
      %p405 = pneg %p226
      %p406 = pneg %p223
      %p407 = pneg %p247
      %p408 = pneg %p244
      %p409 = pneg %p268
      %p410 = pneg %p265
      %p411 = pneg %p294
      %p412 = pneg %p291
      %p413 = scmp.lt.s32.totalorder %s22, 1
      %s414 = scalar_select %p413, %s22, 1
      %s415 = smul.addr %s414, 2
      %s416 = smul.addr %s415, 8
      %s417 = scalar_lea.vmem %s11, %s416
      %p418 = scmp.lt.s32.totalorder %s22, 1
      %s419 = scalar_select %p418, %s22, 1
      %s420 = smul.addr %s419, 8
      %s421 = smul.addr %s420, 8
      %s422 = scalar_lea.vmem %s0, %s421
      %p423 = scmp.lt.s32.totalorder %s22, 1
      %s424 = scalar_select %p423, %s22, 1
      %s425 = smul.addr %s424, 8
      %s426 = smul.addr %s425, 8
      %s427 = scalar_lea.vmem %s1, %s426
      %p428 = scmp.lt.s32.totalorder %s22, 1
      %s429 = scalar_select %p428, %s22, 1
      %s430 = smul.addr %s429, 4
      %s431 = scalar_lea.vmem %s2, %s430
      %p432 = scmp.lt.s32.totalorder %s22, 1
      %s433 = scalar_select %p432, %s22, 1
      %s434 = smul.addr %s433, 4
      %s435 = scalar_lea.vmem %s3, %s434
      %p436 = scmp.lt.s32.totalorder %s22, 1
      %s437 = scalar_select %p436, %s22, 1
      %s438 = smul.addr %s437, 2
      %s439 = smul.addr %s438, 8
      %s440 = scalar_lea.vmem %s11, %s439
      %v442 = vld [vmem:[%s422] sm:$0xff]
      %v443 = vld [vmem:[%s422 + $0x8] sm:$0xff]
      %v444 = vld [vmem:[%s422 + $0x10] sm:$0xff]
      %v445 = vld [vmem:[%s422 + $0x18] sm:$0xff]
      %v446 = vld [vmem:[%s422 + $0x20] sm:$0xff]
      %v447 = vld [vmem:[%s422 + $0x28] sm:$0xff]
      %v448 = vld [vmem:[%s422 + $0x30] sm:$0xff]
      %v449 = vld [vmem:[%s422 + $0x38] sm:$0xff]
      %v450 = vld [vmem:[%s427] sm:$0xff]
      %v451 = vld [vmem:[%s427 + $0x8] sm:$0xff]
      %v452 = vld [vmem:[%s427 + $0x10] sm:$0xff]
      %v453 = vld [vmem:[%s427 + $0x18] sm:$0xff]
      %v454 = vld [vmem:[%s427 + $0x20] sm:$0xff]
      %v455 = vld [vmem:[%s427 + $0x28] sm:$0xff]
      %v456 = vld [vmem:[%s427 + $0x30] sm:$0xff]
      %v457 = vld [vmem:[%s427 + $0x38] sm:$0xff]
      %v458 = vld [vmem:[%s431] sm:$0xf]
      %v459 = vld [vmem:[%s435] sm:$0xf]
      %v460 = vpack.c.bf16 %v443, %v442
      %v461 = vpack.c.bf16 %v445, %v444
      %v462 = vpack.c.bf16 %v447, %v446
      %v463 = vpack.c.bf16 %v449, %v448
      %v464 = vld [vmem:[%s4] sm:$0x3]
      %v465 = vpack.c.bf16 %v451, %v450
      %v466 = vpack.c.bf16 %v453, %v452
      %v467 = vpack.c.bf16 %v455, %v454
      %v468 = vpack.c.bf16 %v457, %v456
      %v469 = vld [vmem:[%s5] sm:$0x3]
      %vm470 = vcmask 23552
      %v472 = vsel %vm470, %v465, 0
      %v475 = vsel %vm470, %v466, 0
      %v478 = vsel %vm470, %v467, 0
      %v481 = vsel %vm470, %v468, 0
      %vm483 = vcmask 1040384
      %vm484 = vcmask 1041408
      %v485 = vsel %vm483, 4294967295, 65535
      %v486 = vsel %vm484, %v485, 0
      %v488 = vand.u32 %v469, %v486
      %490 = vmatpush.bf16.msra.mxu0 0
      %491 = vmatpush.bf16.msra.mxu0 0
      %492 = vmatpush.bf16.msra.mxu0 0
      %493 = vmatpush.bf16.msra.mxu0 0
      %494 = vmatpush.bf16.msra.mxu0 0
      %495 = vmatpush.bf16.msra.mxu0 0
      %496 = vmatpush.bf16.msra.mxu0 0
      %497 = vmatpush.bf16.msra.mxu0 %v488
      %498 = vmatmul.bf16.gmra.mxu0 %v472
      %v499 = vpop.f32.mrf.mxu0
      %v500 = vadd.f32 0.0, %v499
      %v501 = vpop.f32.mrf.mxu0
      %v502 = vadd.f32 0.0, %v501
      %503 = vmatmul.bf16.gmra.mxu0 %v475
      %v504 = vpop.f32.mrf.mxu0
      %v505 = vadd.f32 0.0, %v504
      %v506 = vpop.f32.mrf.mxu0
      %v507 = vadd.f32 0.0, %v506
      %508 = vmatmul.bf16.gmra.mxu0 %v478
      %v509 = vpop.f32.mrf.mxu0
      %v510 = vadd.f32 0.0, %v509
      %v511 = vpop.f32.mrf.mxu0
      %v512 = vadd.f32 0.0, %v511
      %513 = vmatmul.bf16.gmra.mxu0 %v481
      %v514 = vpop.f32.mrf.mxu0
      %v515 = vadd.f32 0.0, %v514
      %v516 = vpop.f32.mrf.mxu0
      %v517 = vadd.f32 0.0, %v516
      %518 = vdwg.mxu0
      %v519 = vlaneseq
      %v520 = vshrl.u32 %v519, 7
      %v521 = vadd.s32 %v520, 8
      %v522 = vadd.s32 %v520, 16
      %v523 = vadd.s32 %v520, 24
      %v524 = vadd.s32 %v520, 32
      %v525 = vadd.s32 %v520, 40
      %v526 = vadd.s32 %v520, 48
      %v527 = vadd.s32 %v520, 56
      %v528 = vperm.slane %v458, 0
      %v529 = vperm.slane %v458, 1
      %v530 = vperm.slane %v458, 2
      %v531 = vperm.slane %v458, 3
      %vm532 = vcmp.eq.s32.totalorder %v520, %v528
      %vm533 = vcmp.eq.s32.totalorder %v520, %v529
      %vm534 = vcmp.eq.s32.totalorder %v520, %v530
      %vm535 = vcmp.eq.s32.totalorder %v520, %v531
      %vm536 = vcmp.eq.s32.totalorder %v521, %v528
      %vm537 = vcmp.eq.s32.totalorder %v521, %v529
      %vm538 = vcmp.eq.s32.totalorder %v521, %v530
      %vm539 = vcmp.eq.s32.totalorder %v521, %v531
      %vm540 = vcmp.eq.s32.totalorder %v522, %v528
      %vm541 = vcmp.eq.s32.totalorder %v522, %v529
      %vm542 = vcmp.eq.s32.totalorder %v522, %v530
      %vm543 = vcmp.eq.s32.totalorder %v522, %v531
      %vm544 = vcmp.eq.s32.totalorder %v523, %v528
      %vm545 = vcmp.eq.s32.totalorder %v523, %v529
      %vm546 = vcmp.eq.s32.totalorder %v523, %v530
      %vm547 = vcmp.eq.s32.totalorder %v523, %v531
      %vm548 = vcmp.eq.s32.totalorder %v524, %v528
      %vm549 = vcmp.eq.s32.totalorder %v524, %v529
      %vm550 = vcmp.eq.s32.totalorder %v524, %v530
      %vm551 = vcmp.eq.s32.totalorder %v524, %v531
      %vm552 = vcmp.eq.s32.totalorder %v525, %v528
      %vm553 = vcmp.eq.s32.totalorder %v525, %v529
      %vm554 = vcmp.eq.s32.totalorder %v525, %v530
      %vm555 = vcmp.eq.s32.totalorder %v525, %v531
      %vm556 = vcmp.eq.s32.totalorder %v526, %v528
      %vm557 = vcmp.eq.s32.totalorder %v526, %v529
      %vm558 = vcmp.eq.s32.totalorder %v526, %v530
      %vm559 = vcmp.eq.s32.totalorder %v526, %v531
      %vm560 = vcmp.eq.s32.totalorder %v527, %v528
      %vm561 = vcmp.eq.s32.totalorder %v527, %v529
      %vm562 = vcmp.eq.s32.totalorder %v527, %v530
      %vm563 = vcmp.eq.s32.totalorder %v527, %v531
      %v564 = vsel %vm532, 1, 0
      %v565 = vsel %vm533, 1, 0
      %v566 = vsel %vm534, 1, 0
      %v567 = vsel %vm535, 1, 0
      %v568 = vsel %vm536, 1, 0
      %v569 = vsel %vm537, 1, 0
      %v570 = vsel %vm538, 1, 0
      %v571 = vsel %vm539, 1, 0
      %v572 = vsel %vm540, 1, 0
      %v573 = vsel %vm541, 1, 0
      %v574 = vsel %vm542, 1, 0
      %v575 = vsel %vm543, 1, 0
      %v576 = vsel %vm544, 1, 0
      %v577 = vsel %vm545, 1, 0
      %v578 = vsel %vm546, 1, 0
      %v579 = vsel %vm547, 1, 0
      %v580 = vsel %vm548, 1, 0
      %v581 = vsel %vm549, 1, 0
      %v582 = vsel %vm550, 1, 0
      %v583 = vsel %vm551, 1, 0
      %v584 = vsel %vm552, 1, 0
      %v585 = vsel %vm553, 1, 0
      %v586 = vsel %vm554, 1, 0
      %v587 = vsel %vm555, 1, 0
      %v588 = vsel %vm556, 1, 0
      %v589 = vsel %vm557, 1, 0
      %v590 = vsel %vm558, 1, 0
      %v591 = vsel %vm559, 1, 0
      %v592 = vsel %vm560, 1, 0
      %v593 = vsel %vm561, 1, 0
      %v594 = vsel %vm562, 1, 0
      %v595 = vsel %vm563, 1, 0
      %v596 = vcvt.s32.f32 %v564
      %v597 = vcvt.s32.f32 %v565
      %v598 = vcvt.s32.f32 %v566
      %v599 = vcvt.s32.f32 %v567
      %v600 = vcvt.s32.f32 %v568
      %v601 = vcvt.s32.f32 %v569
      %v602 = vcvt.s32.f32 %v570
      %v603 = vcvt.s32.f32 %v571
      %v604 = vcvt.s32.f32 %v572
      %v605 = vcvt.s32.f32 %v573
      %v606 = vcvt.s32.f32 %v574
      %v607 = vcvt.s32.f32 %v575
      %v608 = vcvt.s32.f32 %v576
      %v609 = vcvt.s32.f32 %v577
      %v610 = vcvt.s32.f32 %v578
      %v611 = vcvt.s32.f32 %v579
      %v612 = vcvt.s32.f32 %v580
      %v613 = vcvt.s32.f32 %v581
      %v614 = vcvt.s32.f32 %v582
      %v615 = vcvt.s32.f32 %v583
      %v616 = vcvt.s32.f32 %v584
      %v617 = vcvt.s32.f32 %v585
      %v618 = vcvt.s32.f32 %v586
      %v619 = vcvt.s32.f32 %v587
      %v620 = vcvt.s32.f32 %v588
      %v621 = vcvt.s32.f32 %v589
      %v622 = vcvt.s32.f32 %v590
      %v623 = vcvt.s32.f32 %v591
      %v624 = vcvt.s32.f32 %v592
      %v625 = vcvt.s32.f32 %v593
      %v626 = vcvt.s32.f32 %v594
      %v627 = vcvt.s32.f32 %v595
      %v628 = vperm.slane %v459, 0
      %v629 = vperm.slane %v459, 1
      %v630 = vperm.slane %v459, 2
      %v631 = vperm.slane %v459, 3
      %vm632 = vcmp.eq.s32.totalorder %v520, %v628
      %vm633 = vcmp.eq.s32.totalorder %v520, %v629
      %vm634 = vcmp.eq.s32.totalorder %v520, %v630
      %vm635 = vcmp.eq.s32.totalorder %v520, %v631
      %vm636 = vcmp.eq.s32.totalorder %v521, %v628
      %vm637 = vcmp.eq.s32.totalorder %v521, %v629
      %vm638 = vcmp.eq.s32.totalorder %v521, %v630
      %vm639 = vcmp.eq.s32.totalorder %v521, %v631
      %vm640 = vcmp.eq.s32.totalorder %v522, %v628
      %vm641 = vcmp.eq.s32.totalorder %v522, %v629
      %vm642 = vcmp.eq.s32.totalorder %v522, %v630
      %vm643 = vcmp.eq.s32.totalorder %v522, %v631
      %vm644 = vcmp.eq.s32.totalorder %v523, %v628
      %vm645 = vcmp.eq.s32.totalorder %v523, %v629
      %vm646 = vcmp.eq.s32.totalorder %v523, %v630
      %vm647 = vcmp.eq.s32.totalorder %v523, %v631
      %vm648 = vcmp.eq.s32.totalorder %v524, %v628
      %vm649 = vcmp.eq.s32.totalorder %v524, %v629
      %vm650 = vcmp.eq.s32.totalorder %v524, %v630
      %vm651 = vcmp.eq.s32.totalorder %v524, %v631
      %vm652 = vcmp.eq.s32.totalorder %v525, %v628
      %vm653 = vcmp.eq.s32.totalorder %v525, %v629
      %vm654 = vcmp.eq.s32.totalorder %v525, %v630
      %vm655 = vcmp.eq.s32.totalorder %v525, %v631
      %vm656 = vcmp.eq.s32.totalorder %v526, %v628
      %vm657 = vcmp.eq.s32.totalorder %v526, %v629
      %vm658 = vcmp.eq.s32.totalorder %v526, %v630
      %vm659 = vcmp.eq.s32.totalorder %v526, %v631
      %vm660 = vcmp.eq.s32.totalorder %v527, %v628
      %vm661 = vcmp.eq.s32.totalorder %v527, %v629
      %vm662 = vcmp.eq.s32.totalorder %v527, %v630
      %vm663 = vcmp.eq.s32.totalorder %v527, %v631
      %v664 = vsel %vm632, 1, 0
      %v665 = vsel %vm633, 1, 0
      %v666 = vsel %vm634, 1, 0
      %v667 = vsel %vm635, 1, 0
      %v668 = vsel %vm636, 1, 0
      %v669 = vsel %vm637, 1, 0
      %v670 = vsel %vm638, 1, 0
      %v671 = vsel %vm639, 1, 0
      %v672 = vsel %vm640, 1, 0
      %v673 = vsel %vm641, 1, 0
      %v674 = vsel %vm642, 1, 0
      %v675 = vsel %vm643, 1, 0
      %v676 = vsel %vm644, 1, 0
      %v677 = vsel %vm645, 1, 0
      %v678 = vsel %vm646, 1, 0
      %v679 = vsel %vm647, 1, 0
      %v680 = vsel %vm648, 1, 0
      %v681 = vsel %vm649, 1, 0
      %v682 = vsel %vm650, 1, 0
      %v683 = vsel %vm651, 1, 0
      %v684 = vsel %vm652, 1, 0
      %v685 = vsel %vm653, 1, 0
      %v686 = vsel %vm654, 1, 0
      %v687 = vsel %vm655, 1, 0
      %v688 = vsel %vm656, 1, 0
      %v689 = vsel %vm657, 1, 0
      %v690 = vsel %vm658, 1, 0
      %v691 = vsel %vm659, 1, 0
      %v692 = vsel %vm660, 1, 0
      %v693 = vsel %vm661, 1, 0
      %v694 = vsel %vm662, 1, 0
      %v695 = vsel %vm663, 1, 0
      %v696 = vcvt.s32.f32 %v664
      %v697 = vcvt.s32.f32 %v665
      %v698 = vcvt.s32.f32 %v666
      %v699 = vcvt.s32.f32 %v667
      %v700 = vcvt.s32.f32 %v668
      %v701 = vcvt.s32.f32 %v669
      %v702 = vcvt.s32.f32 %v670
      %v703 = vcvt.s32.f32 %v671
      %v704 = vcvt.s32.f32 %v672
      %v705 = vcvt.s32.f32 %v673
      %v706 = vcvt.s32.f32 %v674
      %v707 = vcvt.s32.f32 %v675
      %v708 = vcvt.s32.f32 %v676
      %v709 = vcvt.s32.f32 %v677
      %v710 = vcvt.s32.f32 %v678
      %v711 = vcvt.s32.f32 %v679
      %v712 = vcvt.s32.f32 %v680
      %v713 = vcvt.s32.f32 %v681
      %v714 = vcvt.s32.f32 %v682
      %v715 = vcvt.s32.f32 %v683
      %v716 = vcvt.s32.f32 %v684
      %v717 = vcvt.s32.f32 %v685
      %v718 = vcvt.s32.f32 %v686
      %v719 = vcvt.s32.f32 %v687
      %v720 = vcvt.s32.f32 %v688
      %v721 = vcvt.s32.f32 %v689
      %v722 = vcvt.s32.f32 %v690
      %v723 = vcvt.s32.f32 %v691
      %v724 = vcvt.s32.f32 %v692
      %v725 = vcvt.s32.f32 %v693
      %v726 = vcvt.s32.f32 %v694
      %v727 = vcvt.s32.f32 %v695
      %vm728 = vcmask 31744
      %v730 = vsel %vm728, %v460, 0
      %v733 = vsel %vm728, %v461, 0
      %v736 = vsel %vm728, %v462, 0
      %v739 = vsel %vm728, %v463, 0
      %v742 = vsel %vm484, %v464, 0
      %744 = vmatpush.bf16.msra.mxu0 0
      %745 = vmatpush.bf16.msra.mxu0 0
      %746 = vmatpush.bf16.msra.mxu0 0
      %747 = vmatpush.bf16.msra.mxu0 0
      %748 = vmatpush.bf16.msra.mxu0 0
      %749 = vmatpush.bf16.msra.mxu0 0
      %750 = vmatpush.bf16.msra.mxu0 0
      %751 = vmatpush.bf16.msra.mxu0 %v742
      %752 = vmatmul.bf16.gmra.mxu0 %v730
      %v753 = vpop.f32.mrf.mxu0
      %v754 = vadd.f32 %v500, %v753
      %v755 = vpop.f32.mrf.mxu0
      %v756 = vadd.f32 %v502, %v755
      %757 = vmatmul.bf16.gmra.mxu0 %v733
      %v758 = vpop.f32.mrf.mxu0
      %v759 = vadd.f32 %v505, %v758
      %v760 = vpop.f32.mrf.mxu0
      %v761 = vadd.f32 %v507, %v760
      %762 = vmatmul.bf16.gmra.mxu0 %v736
      %v763 = vpop.f32.mrf.mxu0
      %v764 = vadd.f32 %v510, %v763
      %v765 = vpop.f32.mrf.mxu0
      %v766 = vadd.f32 %v512, %v765
      %767 = vmatmul.bf16.gmra.mxu0 %v739
      %v768 = vpop.f32.mrf.mxu0
      %v769 = vadd.f32 %v515, %v768
      %v770 = vpop.f32.mrf.mxu0
      %v771 = vadd.f32 %v517, %v770
      %772 = vdwg.mxu0
      %773 = vxpose.xlu0.b32.start [1/16] %v596, 128
      %774 = vxpose.xlu0.b32.cont [2/16] %v600, 128
      %775 = vxpose.xlu0.b32.cont [3/16] %v604, 128
      %776 = vxpose.xlu0.b32.cont [4/16] %v608, 128
      %777 = vxpose.xlu0.b32.cont [5/16] %v612, 128
      %778 = vxpose.xlu0.b32.cont [6/16] %v616, 128
      %779 = vxpose.xlu0.b32.cont [7/16] %v620, 128
      %780 = vxpose.xlu0.b32.cont [8/16] %v624, 128
      %781 = vxpose.xlu0.b32.cont [9/16] 0.0, 128
      %782 = vxpose.xlu0.b32.cont [10/16] 0.0, 128
      %783 = vxpose.xlu0.b32.cont [11/16] 0.0, 128
      %784 = vxpose.xlu0.b32.cont [12/16] 0.0, 128
      %785 = vxpose.xlu0.b32.cont [13/16] 0.0, 128
      %786 = vxpose.xlu0.b32.cont [14/16] 0.0, 128
      %787 = vxpose.xlu0.b32.cont [15/16] 0.0, 128
      %788 = vxpose.xlu0.b32.end [16/16] 0.0, 128
      %v789 = vpop.trf.xlu0
      %v790 = vpop.trf.xlu0
      %v791 = vpop.trf.xlu0
      %v792 = vpop.trf.xlu0
      %v793 = vpop.trf.xlu0
      %v794 = vpop.trf.xlu0
      %v795 = vpop.trf.xlu0
      %v796 = vpop.trf.xlu0
      %v797 = vpop.trf.xlu0
      %v798 = vpop.trf.xlu0
      %v799 = vpop.trf.xlu0
      %v800 = vpop.trf.xlu0
      %v801 = vpop.trf.xlu0
      %v802 = vpop.trf.xlu0
      %v803 = vpop.trf.xlu0
      %v804 = vpop.trf.xlu0
      %805 = vxpose.xlu0.b32.start [1/16] %v597, 128
      %806 = vxpose.xlu0.b32.cont [2/16] %v601, 128
      %807 = vxpose.xlu0.b32.cont [3/16] %v605, 128
      %808 = vxpose.xlu0.b32.cont [4/16] %v609, 128
      %809 = vxpose.xlu0.b32.cont [5/16] %v613, 128
      %810 = vxpose.xlu0.b32.cont [6/16] %v617, 128
      %811 = vxpose.xlu0.b32.cont [7/16] %v621, 128
      %812 = vxpose.xlu0.b32.cont [8/16] %v625, 128
      %813 = vxpose.xlu0.b32.cont [9/16] 0.0, 128
      %814 = vxpose.xlu0.b32.cont [10/16] 0.0, 128
      %815 = vxpose.xlu0.b32.cont [11/16] 0.0, 128
      %816 = vxpose.xlu0.b32.cont [12/16] 0.0, 128
      %817 = vxpose.xlu0.b32.cont [13/16] 0.0, 128
      %818 = vxpose.xlu0.b32.cont [14/16] 0.0, 128
      %819 = vxpose.xlu0.b32.cont [15/16] 0.0, 128
      %820 = vxpose.xlu0.b32.end [16/16] 0.0, 128
      %v821 = vpop.trf.xlu0
      %v822 = vpop.trf.xlu0
      %v823 = vpop.trf.xlu0
      %v824 = vpop.trf.xlu0
      %v825 = vpop.trf.xlu0
      %v826 = vpop.trf.xlu0
      %v827 = vpop.trf.xlu0
      %v828 = vpop.trf.xlu0
      %v829 = vpop.trf.xlu0
      %v830 = vpop.trf.xlu0
      %v831 = vpop.trf.xlu0
      %v832 = vpop.trf.xlu0
      %v833 = vpop.trf.xlu0
      %v834 = vpop.trf.xlu0
      %v835 = vpop.trf.xlu0
      %v836 = vpop.trf.xlu0
      %837 = vxpose.xlu0.b32.start [1/16] %v598, 128
      %838 = vxpose.xlu0.b32.cont [2/16] %v602, 128
      %839 = vxpose.xlu0.b32.cont [3/16] %v606, 128
      %840 = vxpose.xlu0.b32.cont [4/16] %v610, 128
      %841 = vxpose.xlu0.b32.cont [5/16] %v614, 128
      %842 = vxpose.xlu0.b32.cont [6/16] %v618, 128
      %843 = vxpose.xlu0.b32.cont [7/16] %v622, 128
      %844 = vxpose.xlu0.b32.cont [8/16] %v626, 128
      %845 = vxpose.xlu0.b32.cont [9/16] 0.0, 128
      %846 = vxpose.xlu0.b32.cont [10/16] 0.0, 128
      %847 = vxpose.xlu0.b32.cont [11/16] 0.0, 128
      %848 = vxpose.xlu0.b32.cont [12/16] 0.0, 128
      %849 = vxpose.xlu0.b32.cont [13/16] 0.0, 128
      %850 = vxpose.xlu0.b32.cont [14/16] 0.0, 128
      %851 = vxpose.xlu0.b32.cont [15/16] 0.0, 128
      %852 = vxpose.xlu0.b32.end [16/16] 0.0, 128
      %v853 = vpop.trf.xlu0
      %v854 = vpop.trf.xlu0
      %v855 = vpop.trf.xlu0
      %v856 = vpop.trf.xlu0
      %v857 = vpop.trf.xlu0
      %v858 = vpop.trf.xlu0
      %v859 = vpop.trf.xlu0
      %v860 = vpop.trf.xlu0
      %v861 = vpop.trf.xlu0
      %v862 = vpop.trf.xlu0
      %v863 = vpop.trf.xlu0
      %v864 = vpop.trf.xlu0
      %v865 = vpop.trf.xlu0
      %v866 = vpop.trf.xlu0
      %v867 = vpop.trf.xlu0
      %v868 = vpop.trf.xlu0
      %869 = vxpose.xlu0.b32.start [1/16] %v599, 128
      %870 = vxpose.xlu0.b32.cont [2/16] %v603, 128
      %871 = vxpose.xlu0.b32.cont [3/16] %v607, 128
      %872 = vxpose.xlu0.b32.cont [4/16] %v611, 128
      %873 = vxpose.xlu0.b32.cont [5/16] %v615, 128
      %874 = vxpose.xlu0.b32.cont [6/16] %v619, 128
      %875 = vxpose.xlu0.b32.cont [7/16] %v623, 128
      %876 = vxpose.xlu0.b32.cont [8/16] %v627, 128
      %877 = vxpose.xlu0.b32.cont [9/16] 0.0, 128
      %878 = vxpose.xlu0.b32.cont [10/16] 0.0, 128
      %879 = vxpose.xlu0.b32.cont [11/16] 0.0, 128
      %880 = vxpose.xlu0.b32.cont [12/16] 0.0, 128
      %881 = vxpose.xlu0.b32.cont [13/16] 0.0, 128
      %882 = vxpose.xlu0.b32.cont [14/16] 0.0, 128
      %883 = vxpose.xlu0.b32.cont [15/16] 0.0, 128
      %884 = vxpose.xlu0.b32.end [16/16] 0.0, 128
      %v885 = vpop.trf.xlu0
      %v886 = vpop.trf.xlu0
      %v887 = vpop.trf.xlu0
      %v888 = vpop.trf.xlu0
      %v889 = vpop.trf.xlu0
      %v890 = vpop.trf.xlu0
      %v891 = vpop.trf.xlu0
      %v892 = vpop.trf.xlu0
      %v893 = vpop.trf.xlu0
      %v894 = vpop.trf.xlu0
      %v895 = vpop.trf.xlu0
      %v896 = vpop.trf.xlu0
      %v897 = vpop.trf.xlu0
      %v898 = vpop.trf.xlu0
      %v899 = vpop.trf.xlu0
      %v900 = vpop.trf.xlu0
      %vm901 = vcmask 523264
      %v903 = vsel %vm901, %v789, 0
      %v906 = vsel %vm901, %v790, 0
      %v909 = vsel %vm901, %v791, 0
      %v912 = vsel %vm901, %v792, 0
      %v915 = vsel %vm901, %v793, 0
      %v918 = vsel %vm901, %v794, 0
      %v921 = vsel %vm901, %v795, 0
      %v924 = vsel %vm901, %v796, 0
      %v927 = vsel %vm901, %v797, 0
      %v930 = vsel %vm901, %v798, 0
      %v933 = vsel %vm901, %v799, 0
      %v936 = vsel %vm901, %v800, 0
      %v939 = vsel %vm901, %v801, 0
      %v942 = vsel %vm901, %v802, 0
      %v945 = vsel %vm901, %v803, 0
      %v948 = vsel %vm901, %v804, 0
      %v951 = vsel %vm901, %v821, 0
      %v954 = vsel %vm901, %v822, 0
      %v957 = vsel %vm901, %v823, 0
      %v960 = vsel %vm901, %v824, 0
      %v963 = vsel %vm901, %v825, 0
      %v966 = vsel %vm901, %v826, 0
      %v969 = vsel %vm901, %v827, 0
      %v972 = vsel %vm901, %v828, 0
      %v975 = vsel %vm901, %v829, 0
      %v978 = vsel %vm901, %v830, 0
      %v981 = vsel %vm901, %v831, 0
      %v984 = vsel %vm901, %v832, 0
      %v987 = vsel %vm901, %v833, 0
      %v990 = vsel %vm901, %v834, 0
      %v993 = vsel %vm901, %v835, 0
      %v996 = vsel %vm901, %v836, 0
      %v999 = vsel %vm901, %v853, 0
      %v1002 = vsel %vm901, %v854, 0
      %v1005 = vsel %vm901, %v855, 0
      %v1008 = vsel %vm901, %v856, 0
      %v1011 = vsel %vm901, %v857, 0
      %v1014 = vsel %vm901, %v858, 0
      %v1017 = vsel %vm901, %v859, 0
      %v1020 = vsel %vm901, %v860, 0
      %v1023 = vsel %vm901, %v861, 0
      %v1026 = vsel %vm901, %v862, 0
      %v1029 = vsel %vm901, %v863, 0
      %v1032 = vsel %vm901, %v864, 0
      %v1035 = vsel %vm901, %v865, 0
      %v1038 = vsel %vm901, %v866, 0
      %v1041 = vsel %vm901, %v867, 0
      %v1044 = vsel %vm901, %v868, 0
      %v1047 = vsel %vm901, %v885, 0
      %v1050 = vsel %vm901, %v886, 0
      %v1053 = vsel %vm901, %v887, 0
      %v1056 = vsel %vm901, %v888, 0
      %v1059 = vsel %vm901, %v889, 0
      %v1062 = vsel %vm901, %v890, 0
      %v1065 = vsel %vm901, %v891, 0
      %v1068 = vsel %vm901, %v892, 0
      %v1071 = vsel %vm901, %v893, 0
      %v1074 = vsel %vm901, %v894, 0
      %v1077 = vsel %vm901, %v895, 0
      %v1080 = vsel %vm901, %v896, 0
      %v1083 = vsel %vm901, %v897, 0
      %v1086 = vsel %vm901, %v898, 0
      %v1089 = vsel %vm901, %v899, 0
      %v1092 = vsel %vm901, %v900, 0
      %1094 = vmatpush.msra.mxu0 0.0
      %1095 = vmatpush.msra.mxu0 0.0
      %1096 = vmatpush.msra.mxu0 0.0
      %1097 = vmatpush.msra.mxu0 0.0
      %1098 = vmatpush.msra.mxu0 0.0
      %1099 = vmatpush.msra.mxu0 0.0
      %1100 = vmatpush.msra.mxu0 0.0
      %1101 = vmatpush.msra.mxu0 0.0
      %1102 = vmatpush.msra.mxu0 %v771
      %1103 = vmatpush.msra.mxu0 %v769
      %1104 = vmatpush.msra.mxu0 %v766
      %1105 = vmatpush.msra.mxu0 %v764
      %1106 = vmatpush.msra.mxu0 %v761
      %1107 = vmatpush.msra.mxu0 %v759
      %1108 = vmatpush.msra.mxu0 %v756
      %1109 = vmatpush.msra.mxu0 %v754
      %1110 = vmatmul.f32.gmra.mxu0 %v903
      %v1111 = vpop.f32.mrf.mxu0
      %v1112 = vadd.f32 0.0, %v1111
      %1113 = vmatmul.f32.gmra.mxu0 %v906
      %v1114 = vpop.f32.mrf.mxu0
      %v1115 = vadd.f32 0.0, %v1114
      %1116 = vmatmul.f32.gmra.mxu0 %v909
      %v1117 = vpop.f32.mrf.mxu0
      %v1118 = vadd.f32 0.0, %v1117
      %1119 = vmatmul.f32.gmra.mxu0 %v912
      %v1120 = vpop.f32.mrf.mxu0
      %v1121 = vadd.f32 0.0, %v1120
      %1122 = vmatmul.f32.gmra.mxu0 %v915
      %v1123 = vpop.f32.mrf.mxu0
      %v1124 = vadd.f32 0.0, %v1123
      %1125 = vmatmul.f32.gmra.mxu0 %v918
      %v1126 = vpop.f32.mrf.mxu0
      %v1127 = vadd.f32 0.0, %v1126
      %1128 = vmatmul.f32.gmra.mxu0 %v921
      %v1129 = vpop.f32.mrf.mxu0
      %v1130 = vadd.f32 0.0, %v1129
      %1131 = vmatmul.f32.gmra.mxu0 %v924
      %v1132 = vpop.f32.mrf.mxu0
      %v1133 = vadd.f32 0.0, %v1132
      %1134 = vmatmul.f32.gmra.mxu0 %v927
      %v1135 = vpop.f32.mrf.mxu0
      %v1136 = vadd.f32 0.0, %v1135
      %1137 = vmatmul.f32.gmra.mxu0 %v930
      %v1138 = vpop.f32.mrf.mxu0
      %v1139 = vadd.f32 0.0, %v1138
      %1140 = vmatmul.f32.gmra.mxu0 %v933
      %v1141 = vpop.f32.mrf.mxu0
      %v1142 = vadd.f32 0.0, %v1141
      %1143 = vmatmul.f32.gmra.mxu0 %v936
      %v1144 = vpop.f32.mrf.mxu0
      %v1145 = vadd.f32 0.0, %v1144
      %1146 = vmatmul.f32.gmra.mxu0 %v939
      %v1147 = vpop.f32.mrf.mxu0
      %v1148 = vadd.f32 0.0, %v1147
      %1149 = vmatmul.f32.gmra.mxu0 %v942
      %v1150 = vpop.f32.mrf.mxu0
      %v1151 = vadd.f32 0.0, %v1150
      %1152 = vmatmul.f32.gmra.mxu0 %v945
      %v1153 = vpop.f32.mrf.mxu0
      %v1154 = vadd.f32 0.0, %v1153
      %1155 = vmatmul.f32.gmra.mxu0 %v948
      %v1156 = vpop.f32.mrf.mxu0
      %v1157 = vadd.f32 0.0, %v1156
      %1158 = vmatmul.f32.gmra.mxu0 %v951
      %v1159 = vpop.f32.mrf.mxu0
      %v1160 = vadd.f32 0.0, %v1159
      %1161 = vmatmul.f32.gmra.mxu0 %v954
      %v1162 = vpop.f32.mrf.mxu0
      %v1163 = vadd.f32 0.0, %v1162
      %1164 = vmatmul.f32.gmra.mxu0 %v957
      %v1165 = vpop.f32.mrf.mxu0
      %v1166 = vadd.f32 0.0, %v1165
      %1167 = vmatmul.f32.gmra.mxu0 %v960
      %v1168 = vpop.f32.mrf.mxu0
      %v1169 = vadd.f32 0.0, %v1168
      %1170 = vmatmul.f32.gmra.mxu0 %v963
      %v1171 = vpop.f32.mrf.mxu0
      %v1172 = vadd.f32 0.0, %v1171
      %1173 = vmatmul.f32.gmra.mxu0 %v966
      %v1174 = vpop.f32.mrf.mxu0
      %v1175 = vadd.f32 0.0, %v1174
      %1176 = vmatmul.f32.gmra.mxu0 %v969
      %v1177 = vpop.f32.mrf.mxu0
      %v1178 = vadd.f32 0.0, %v1177
      %1179 = vmatmul.f32.gmra.mxu0 %v972
      %v1180 = vpop.f32.mrf.mxu0
      %v1181 = vadd.f32 0.0, %v1180
      %1182 = vmatmul.f32.gmra.mxu0 %v975
      %v1183 = vpop.f32.mrf.mxu0
      %v1184 = vadd.f32 0.0, %v1183
      %1185 = vmatmul.f32.gmra.mxu0 %v978
      %v1186 = vpop.f32.mrf.mxu0
      %v1187 = vadd.f32 0.0, %v1186
      %1188 = vmatmul.f32.gmra.mxu0 %v981
      %v1189 = vpop.f32.mrf.mxu0
      %v1190 = vadd.f32 0.0, %v1189
      %1191 = vmatmul.f32.gmra.mxu0 %v984
      %v1192 = vpop.f32.mrf.mxu0
      %v1193 = vadd.f32 0.0, %v1192
      %1194 = vmatmul.f32.gmra.mxu0 %v987
      %v1195 = vpop.f32.mrf.mxu0
      %v1196 = vadd.f32 0.0, %v1195
      %1197 = vmatmul.f32.gmra.mxu0 %v990
      %v1198 = vpop.f32.mrf.mxu0
      %v1199 = vadd.f32 0.0, %v1198
      %1200 = vmatmul.f32.gmra.mxu0 %v993
      %v1201 = vpop.f32.mrf.mxu0
      %v1202 = vadd.f32 0.0, %v1201
      %1203 = vmatmul.f32.gmra.mxu0 %v996
      %v1204 = vpop.f32.mrf.mxu0
      %v1205 = vadd.f32 0.0, %v1204
      %1206 = vmatmul.f32.gmra.mxu0 %v999
      %v1207 = vpop.f32.mrf.mxu0
      %v1208 = vadd.f32 0.0, %v1207
      %1209 = vmatmul.f32.gmra.mxu0 %v1002
      %v1210 = vpop.f32.mrf.mxu0
      %v1211 = vadd.f32 0.0, %v1210
      %1212 = vmatmul.f32.gmra.mxu0 %v1005
      %v1213 = vpop.f32.mrf.mxu0
      %v1214 = vadd.f32 0.0, %v1213
      %1215 = vmatmul.f32.gmra.mxu0 %v1008
      %v1216 = vpop.f32.mrf.mxu0
      %v1217 = vadd.f32 0.0, %v1216
      %1218 = vmatmul.f32.gmra.mxu0 %v1011
      %v1219 = vpop.f32.mrf.mxu0
      %v1220 = vadd.f32 0.0, %v1219
      %1221 = vmatmul.f32.gmra.mxu0 %v1014
      %v1222 = vpop.f32.mrf.mxu0
      %v1223 = vadd.f32 0.0, %v1222
      %1224 = vmatmul.f32.gmra.mxu0 %v1017
      %v1225 = vpop.f32.mrf.mxu0
      %v1226 = vadd.f32 0.0, %v1225
      %1227 = vmatmul.f32.gmra.mxu0 %v1020
      %v1228 = vpop.f32.mrf.mxu0
      %v1229 = vadd.f32 0.0, %v1228
      %1230 = vmatmul.f32.gmra.mxu0 %v1023
      %v1231 = vpop.f32.mrf.mxu0
      %v1232 = vadd.f32 0.0, %v1231
      %1233 = vmatmul.f32.gmra.mxu0 %v1026
      %v1234 = vpop.f32.mrf.mxu0
      %v1235 = vadd.f32 0.0, %v1234
      %1236 = vmatmul.f32.gmra.mxu0 %v1029
      %v1237 = vpop.f32.mrf.mxu0
      %v1238 = vadd.f32 0.0, %v1237
      %1239 = vmatmul.f32.gmra.mxu0 %v1032
      %v1240 = vpop.f32.mrf.mxu0
      %v1241 = vadd.f32 0.0, %v1240
      %1242 = vmatmul.f32.gmra.mxu0 %v1035
      %v1243 = vpop.f32.mrf.mxu0
      %v1244 = vadd.f32 0.0, %v1243
      %1245 = vmatmul.f32.gmra.mxu0 %v1038
      %v1246 = vpop.f32.mrf.mxu0
      %v1247 = vadd.f32 0.0, %v1246
      %1248 = vmatmul.f32.gmra.mxu0 %v1041
      %v1249 = vpop.f32.mrf.mxu0
      %v1250 = vadd.f32 0.0, %v1249
      %1251 = vmatmul.f32.gmra.mxu0 %v1044
      %v1252 = vpop.f32.mrf.mxu0
      %v1253 = vadd.f32 0.0, %v1252
      %1254 = vmatmul.f32.gmra.mxu0 %v1047
      %v1255 = vpop.f32.mrf.mxu0
      %v1256 = vadd.f32 0.0, %v1255
      %1257 = vmatmul.f32.gmra.mxu0 %v1050
      %v1258 = vpop.f32.mrf.mxu0
      %v1259 = vadd.f32 0.0, %v1258
      %1260 = vmatmul.f32.gmra.mxu0 %v1053
      %v1261 = vpop.f32.mrf.mxu0
      %v1262 = vadd.f32 0.0, %v1261
      %1263 = vmatmul.f32.gmra.mxu0 %v1056
      %v1264 = vpop.f32.mrf.mxu0
      %v1265 = vadd.f32 0.0, %v1264
      %1266 = vmatmul.f32.gmra.mxu0 %v1059
      %v1267 = vpop.f32.mrf.mxu0
      %v1268 = vadd.f32 0.0, %v1267
      %1269 = vmatmul.f32.gmra.mxu0 %v1062
      %v1270 = vpop.f32.mrf.mxu0
      %v1271 = vadd.f32 0.0, %v1270
      %1272 = vmatmul.f32.gmra.mxu0 %v1065
      %v1273 = vpop.f32.mrf.mxu0
      %v1274 = vadd.f32 0.0, %v1273
      %1275 = vmatmul.f32.gmra.mxu0 %v1068
      %v1276 = vpop.f32.mrf.mxu0
      %v1277 = vadd.f32 0.0, %v1276
      %1278 = vmatmul.f32.gmra.mxu0 %v1071
      %v1279 = vpop.f32.mrf.mxu0
      %v1280 = vadd.f32 0.0, %v1279
      %1281 = vmatmul.f32.gmra.mxu0 %v1074
      %v1282 = vpop.f32.mrf.mxu0
      %v1283 = vadd.f32 0.0, %v1282
      %1284 = vmatmul.f32.gmra.mxu0 %v1077
      %v1285 = vpop.f32.mrf.mxu0
      %v1286 = vadd.f32 0.0, %v1285
      %1287 = vmatmul.f32.gmra.mxu0 %v1080
      %v1288 = vpop.f32.mrf.mxu0
      %v1289 = vadd.f32 0.0, %v1288
      %1290 = vmatmul.f32.gmra.mxu0 %v1083
      %v1291 = vpop.f32.mrf.mxu0
      %v1292 = vadd.f32 0.0, %v1291
      %1293 = vmatmul.f32.gmra.mxu0 %v1086
      %v1294 = vpop.f32.mrf.mxu0
      %v1295 = vadd.f32 0.0, %v1294
      %1296 = vmatmul.f32.gmra.mxu0 %v1089
      %v1297 = vpop.f32.mrf.mxu0
      %v1298 = vadd.f32 0.0, %v1297
      %1299 = vmatmul.f32.gmra.mxu0 %v1092
      %v1300 = vpop.f32.mrf.mxu0
      %v1301 = vadd.f32 0.0, %v1300
      %1302 = vdwg.mxu0
      %1303 = vxpose.xlu0.b32.start [1/16] %v696, 128
      %1304 = vxpose.xlu0.b32.cont [2/16] %v700, 128
      %1305 = vxpose.xlu0.b32.cont [3/16] %v704, 128
      %1306 = vxpose.xlu0.b32.cont [4/16] %v708, 128
      %1307 = vxpose.xlu0.b32.cont [5/16] %v712, 128
      %1308 = vxpose.xlu0.b32.cont [6/16] %v716, 128
      %1309 = vxpose.xlu0.b32.cont [7/16] %v720, 128
      %1310 = vxpose.xlu0.b32.cont [8/16] %v724, 128
      %1311 = vxpose.xlu0.b32.cont [9/16] 0.0, 128
      %1312 = vxpose.xlu0.b32.cont [10/16] 0.0, 128
      %1313 = vxpose.xlu0.b32.cont [11/16] 0.0, 128
      %1314 = vxpose.xlu0.b32.cont [12/16] 0.0, 128
      %1315 = vxpose.xlu0.b32.cont [13/16] 0.0, 128
      %1316 = vxpose.xlu0.b32.cont [14/16] 0.0, 128
      %1317 = vxpose.xlu0.b32.cont [15/16] 0.0, 128
      %1318 = vxpose.xlu0.b32.end [16/16] 0.0, 128
      %v1319 = vpop.trf.xlu0
      %v1320 = vpop.trf.xlu0
      %v1321 = vpop.trf.xlu0
      %v1322 = vpop.trf.xlu0
      %v1323 = vpop.trf.xlu0
      %v1324 = vpop.trf.xlu0
      %v1325 = vpop.trf.xlu0
      %v1326 = vpop.trf.xlu0
      %v1327 = vpop.trf.xlu0
      %v1328 = vpop.trf.xlu0
      %v1329 = vpop.trf.xlu0
      %v1330 = vpop.trf.xlu0
      %v1331 = vpop.trf.xlu0
      %v1332 = vpop.trf.xlu0
      %v1333 = vpop.trf.xlu0
      %v1334 = vpop.trf.xlu0
      %1335 = vxpose.xlu0.b32.start [1/16] %v697, 128
      %1336 = vxpose.xlu0.b32.cont [2/16] %v701, 128
      %1337 = vxpose.xlu0.b32.cont [3/16] %v705, 128
      %1338 = vxpose.xlu0.b32.cont [4/16] %v709, 128
      %1339 = vxpose.xlu0.b32.cont [5/16] %v713, 128
      %1340 = vxpose.xlu0.b32.cont [6/16] %v717, 128
      %1341 = vxpose.xlu0.b32.cont [7/16] %v721, 128
      %1342 = vxpose.xlu0.b32.cont [8/16] %v725, 128
      %1343 = vxpose.xlu0.b32.cont [9/16] 0.0, 128
      %1344 = vxpose.xlu0.b32.cont [10/16] 0.0, 128
      %1345 = vxpose.xlu0.b32.cont [11/16] 0.0, 128
      %1346 = vxpose.xlu0.b32.cont [12/16] 0.0, 128
      %1347 = vxpose.xlu0.b32.cont [13/16] 0.0, 128
      %1348 = vxpose.xlu0.b32.cont [14/16] 0.0, 128
      %1349 = vxpose.xlu0.b32.cont [15/16] 0.0, 128
      %1350 = vxpose.xlu0.b32.end [16/16] 0.0, 128
      %v1351 = vpop.trf.xlu0
      %v1352 = vpop.trf.xlu0
      %v1353 = vpop.trf.xlu0
      %v1354 = vpop.trf.xlu0
      %v1355 = vpop.trf.xlu0
      %v1356 = vpop.trf.xlu0
      %v1357 = vpop.trf.xlu0
      %v1358 = vpop.trf.xlu0
      %v1359 = vpop.trf.xlu0
      %v1360 = vpop.trf.xlu0
      %v1361 = vpop.trf.xlu0
      %v1362 = vpop.trf.xlu0
      %v1363 = vpop.trf.xlu0
      %v1364 = vpop.trf.xlu0
      %v1365 = vpop.trf.xlu0
      %v1366 = vpop.trf.xlu0
      %1367 = vxpose.xlu0.b32.start [1/16] %v698, 128
      %1368 = vxpose.xlu0.b32.cont [2/16] %v702, 128
      %1369 = vxpose.xlu0.b32.cont [3/16] %v706, 128
      %1370 = vxpose.xlu0.b32.cont [4/16] %v710, 128
      %1371 = vxpose.xlu0.b32.cont [5/16] %v714, 128
      %1372 = vxpose.xlu0.b32.cont [6/16] %v718, 128
      %1373 = vxpose.xlu0.b32.cont [7/16] %v722, 128
      %1374 = vxpose.xlu0.b32.cont [8/16] %v726, 128
      %1375 = vxpose.xlu0.b32.cont [9/16] 0.0, 128
      %1376 = vxpose.xlu0.b32.cont [10/16] 0.0, 128
      %1377 = vxpose.xlu0.b32.cont [11/16] 0.0, 128
      %1378 = vxpose.xlu0.b32.cont [12/16] 0.0, 128
      %1379 = vxpose.xlu0.b32.cont [13/16] 0.0, 128
      %1380 = vxpose.xlu0.b32.cont [14/16] 0.0, 128
      %1381 = vxpose.xlu0.b32.cont [15/16] 0.0, 128
      %1382 = vxpose.xlu0.b32.end [16/16] 0.0, 128
      %v1383 = vpop.trf.xlu0
      %v1384 = vpop.trf.xlu0
      %v1385 = vpop.trf.xlu0
      %v1386 = vpop.trf.xlu0
      %v1387 = vpop.trf.xlu0
      %v1388 = vpop.trf.xlu0
      %v1389 = vpop.trf.xlu0
      %v1390 = vpop.trf.xlu0
      %v1391 = vpop.trf.xlu0
      %v1392 = vpop.trf.xlu0
      %v1393 = vpop.trf.xlu0
      %v1394 = vpop.trf.xlu0
      %v1395 = vpop.trf.xlu0
      %v1396 = vpop.trf.xlu0
      %v1397 = vpop.trf.xlu0
      %v1398 = vpop.trf.xlu0
      %1399 = vxpose.xlu0.b32.start [1/16] %v699, 128
      %1400 = vxpose.xlu0.b32.cont [2/16] %v703, 128
      %1401 = vxpose.xlu0.b32.cont [3/16] %v707, 128
      %1402 = vxpose.xlu0.b32.cont [4/16] %v711, 128
      %1403 = vxpose.xlu0.b32.cont [5/16] %v715, 128
      %1404 = vxpose.xlu0.b32.cont [6/16] %v719, 128
      %1405 = vxpose.xlu0.b32.cont [7/16] %v723, 128
      %1406 = vxpose.xlu0.b32.cont [8/16] %v727, 128
      %1407 = vxpose.xlu0.b32.cont [9/16] 0.0, 128
      %1408 = vxpose.xlu0.b32.cont [10/16] 0.0, 128
      %1409 = vxpose.xlu0.b32.cont [11/16] 0.0, 128
      %1410 = vxpose.xlu0.b32.cont [12/16] 0.0, 128
      %1411 = vxpose.xlu0.b32.cont [13/16] 0.0, 128
      %1412 = vxpose.xlu0.b32.cont [14/16] 0.0, 128
      %1413 = vxpose.xlu0.b32.cont [15/16] 0.0, 128
      %1414 = vxpose.xlu0.b32.end [16/16] 0.0, 128
      %v1415 = vpop.trf.xlu0
      %v1416 = vpop.trf.xlu0
      %v1417 = vpop.trf.xlu0
      %v1418 = vpop.trf.xlu0
      %v1419 = vpop.trf.xlu0
      %v1420 = vpop.trf.xlu0
      %v1421 = vpop.trf.xlu0
      %v1422 = vpop.trf.xlu0
      %v1423 = vpop.trf.xlu0
      %v1424 = vpop.trf.xlu0
      %v1425 = vpop.trf.xlu0
      %v1426 = vpop.trf.xlu0
      %v1427 = vpop.trf.xlu0
      %v1428 = vpop.trf.xlu0
      %v1429 = vpop.trf.xlu0
      %v1430 = vpop.trf.xlu0
      %v1432 = vsel %vm901, %v1319, 0
      %v1435 = vsel %vm901, %v1320, 0
      %v1438 = vsel %vm901, %v1321, 0
      %v1441 = vsel %vm901, %v1322, 0
      %v1444 = vsel %vm901, %v1323, 0
      %v1447 = vsel %vm901, %v1324, 0
      %v1450 = vsel %vm901, %v1325, 0
      %v1453 = vsel %vm901, %v1326, 0
      %v1456 = vsel %vm901, %v1327, 0
      %v1459 = vsel %vm901, %v1328, 0
      %v1462 = vsel %vm901, %v1329, 0
      %v1465 = vsel %vm901, %v1330, 0
      %v1468 = vsel %vm901, %v1331, 0
      %v1471 = vsel %vm901, %v1332, 0
      %v1474 = vsel %vm901, %v1333, 0
      %v1477 = vsel %vm901, %v1334, 0
      %v1480 = vsel %vm901, %v1351, 0
      %v1483 = vsel %vm901, %v1352, 0
      %v1486 = vsel %vm901, %v1353, 0
      %v1489 = vsel %vm901, %v1354, 0
      %v1492 = vsel %vm901, %v1355, 0
      %v1495 = vsel %vm901, %v1356, 0
      %v1498 = vsel %vm901, %v1357, 0
      %v1501 = vsel %vm901, %v1358, 0
      %v1504 = vsel %vm901, %v1359, 0
      %v1507 = vsel %vm901, %v1360, 0
      %v1510 = vsel %vm901, %v1361, 0
      %v1513 = vsel %vm901, %v1362, 0
      %v1516 = vsel %vm901, %v1363, 0
      %v1519 = vsel %vm901, %v1364, 0
      %v1522 = vsel %vm901, %v1365, 0
      %v1525 = vsel %vm901, %v1366, 0
      %v1528 = vsel %vm901, %v1383, 0
      %v1531 = vsel %vm901, %v1384, 0
      %v1534 = vsel %vm901, %v1385, 0
      %v1537 = vsel %vm901, %v1386, 0
      %v1540 = vsel %vm901, %v1387, 0
      %v1543 = vsel %vm901, %v1388, 0
      %v1546 = vsel %vm901, %v1389, 0
      %v1549 = vsel %vm901, %v1390, 0
      %v1552 = vsel %vm901, %v1391, 0
      %v1555 = vsel %vm901, %v1392, 0
      %v1558 = vsel %vm901, %v1393, 0
      %v1561 = vsel %vm901, %v1394, 0
      %v1564 = vsel %vm901, %v1395, 0
      %v1567 = vsel %vm901, %v1396, 0
      %v1570 = vsel %vm901, %v1397, 0
      %v1573 = vsel %vm901, %v1398, 0
      %v1576 = vsel %vm901, %v1415, 0
      %v1579 = vsel %vm901, %v1416, 0
      %v1582 = vsel %vm901, %v1417, 0
      %v1585 = vsel %vm901, %v1418, 0
      %v1588 = vsel %vm901, %v1419, 0
      %v1591 = vsel %vm901, %v1420, 0
      %v1594 = vsel %vm901, %v1421, 0
      %v1597 = vsel %vm901, %v1422, 0
      %v1600 = vsel %vm901, %v1423, 0
      %v1603 = vsel %vm901, %v1424, 0
      %v1606 = vsel %vm901, %v1425, 0
      %v1609 = vsel %vm901, %v1426, 0
      %v1612 = vsel %vm901, %v1427, 0
      %v1615 = vsel %vm901, %v1428, 0
      %v1618 = vsel %vm901, %v1429, 0
      %v1621 = vsel %vm901, %v1430, 0
      %1623 = vmatpush.msra.mxu0 0.0
      %1624 = vmatpush.msra.mxu0 0.0
      %1625 = vmatpush.msra.mxu0 0.0
      %1626 = vmatpush.msra.mxu0 0.0
      %1627 = vmatpush.msra.mxu0 0.0
      %1628 = vmatpush.msra.mxu0 0.0
      %1629 = vmatpush.msra.mxu0 0.0
      %1630 = vmatpush.msra.mxu0 0.0
      %1631 = vmatpush.msra.mxu0 %v517
      %1632 = vmatpush.msra.mxu0 %v515
      %1633 = vmatpush.msra.mxu0 %v512
      %1634 = vmatpush.msra.mxu0 %v510
      %1635 = vmatpush.msra.mxu0 %v507
      %1636 = vmatpush.msra.mxu0 %v505
      %1637 = vmatpush.msra.mxu0 %v502
      %1638 = vmatpush.msra.mxu0 %v500
      %1639 = vmatmul.f32.gmra.mxu0 %v1432
      %v1640 = vpop.f32.mrf.mxu0
      %v1641 = vadd.f32 0.0, %v1640
      %1642 = vmatmul.f32.gmra.mxu0 %v1435
      %v1643 = vpop.f32.mrf.mxu0
      %v1644 = vadd.f32 0.0, %v1643
      %1645 = vmatmul.f32.gmra.mxu0 %v1438
      %v1646 = vpop.f32.mrf.mxu0
      %v1647 = vadd.f32 0.0, %v1646
      %1648 = vmatmul.f32.gmra.mxu0 %v1441
      %v1649 = vpop.f32.mrf.mxu0
      %v1650 = vadd.f32 0.0, %v1649
      %1651 = vmatmul.f32.gmra.mxu0 %v1444
      %v1652 = vpop.f32.mrf.mxu0
      %v1653 = vadd.f32 0.0, %v1652
      %1654 = vmatmul.f32.gmra.mxu0 %v1447
      %v1655 = vpop.f32.mrf.mxu0
      %v1656 = vadd.f32 0.0, %v1655
      %1657 = vmatmul.f32.gmra.mxu0 %v1450
      %v1658 = vpop.f32.mrf.mxu0
      %v1659 = vadd.f32 0.0, %v1658
      %1660 = vmatmul.f32.gmra.mxu0 %v1453
      %v1661 = vpop.f32.mrf.mxu0
      %v1662 = vadd.f32 0.0, %v1661
      %1663 = vmatmul.f32.gmra.mxu0 %v1456
      %v1664 = vpop.f32.mrf.mxu0
      %v1665 = vadd.f32 0.0, %v1664
      %1666 = vmatmul.f32.gmra.mxu0 %v1459
      %v1667 = vpop.f32.mrf.mxu0
      %v1668 = vadd.f32 0.0, %v1667
      %1669 = vmatmul.f32.gmra.mxu0 %v1462
      %v1670 = vpop.f32.mrf.mxu0
      %v1671 = vadd.f32 0.0, %v1670
      %1672 = vmatmul.f32.gmra.mxu0 %v1465
      %v1673 = vpop.f32.mrf.mxu0
      %v1674 = vadd.f32 0.0, %v1673
      %1675 = vmatmul.f32.gmra.mxu0 %v1468
      %v1676 = vpop.f32.mrf.mxu0
      %v1677 = vadd.f32 0.0, %v1676
      %1678 = vmatmul.f32.gmra.mxu0 %v1471
      %v1679 = vpop.f32.mrf.mxu0
      %v1680 = vadd.f32 0.0, %v1679
      %1681 = vmatmul.f32.gmra.mxu0 %v1474
      %v1682 = vpop.f32.mrf.mxu0
      %v1683 = vadd.f32 0.0, %v1682
      %1684 = vmatmul.f32.gmra.mxu0 %v1477
      %v1685 = vpop.f32.mrf.mxu0
      %v1686 = vadd.f32 0.0, %v1685
      %1687 = vmatmul.f32.gmra.mxu0 %v1480
      %v1688 = vpop.f32.mrf.mxu0
      %v1689 = vadd.f32 0.0, %v1688
      %1690 = vmatmul.f32.gmra.mxu0 %v1483
      %v1691 = vpop.f32.mrf.mxu0
      %v1692 = vadd.f32 0.0, %v1691
      %1693 = vmatmul.f32.gmra.mxu0 %v1486
      %v1694 = vpop.f32.mrf.mxu0
      %v1695 = vadd.f32 0.0, %v1694
      %1696 = vmatmul.f32.gmra.mxu0 %v1489
      %v1697 = vpop.f32.mrf.mxu0
      %v1698 = vadd.f32 0.0, %v1697
      %1699 = vmatmul.f32.gmra.mxu0 %v1492
      %v1700 = vpop.f32.mrf.mxu0
      %v1701 = vadd.f32 0.0, %v1700
      %1702 = vmatmul.f32.gmra.mxu0 %v1495
      %v1703 = vpop.f32.mrf.mxu0
      %v1704 = vadd.f32 0.0, %v1703
      %1705 = vmatmul.f32.gmra.mxu0 %v1498
      %v1706 = vpop.f32.mrf.mxu0
      %v1707 = vadd.f32 0.0, %v1706
      %1708 = vmatmul.f32.gmra.mxu0 %v1501
      %v1709 = vpop.f32.mrf.mxu0
      %v1710 = vadd.f32 0.0, %v1709
      %1711 = vmatmul.f32.gmra.mxu0 %v1504
      %v1712 = vpop.f32.mrf.mxu0
      %v1713 = vadd.f32 0.0, %v1712
      %1714 = vmatmul.f32.gmra.mxu0 %v1507
      %v1715 = vpop.f32.mrf.mxu0
      %v1716 = vadd.f32 0.0, %v1715
      %1717 = vmatmul.f32.gmra.mxu0 %v1510
      %v1718 = vpop.f32.mrf.mxu0
      %v1719 = vadd.f32 0.0, %v1718
      %1720 = vmatmul.f32.gmra.mxu0 %v1513
      %v1721 = vpop.f32.mrf.mxu0
      %v1722 = vadd.f32 0.0, %v1721
      %1723 = vmatmul.f32.gmra.mxu0 %v1516
      %v1724 = vpop.f32.mrf.mxu0
      %v1725 = vadd.f32 0.0, %v1724
      %1726 = vmatmul.f32.gmra.mxu0 %v1519
      %v1727 = vpop.f32.mrf.mxu0
      %v1728 = vadd.f32 0.0, %v1727
      %1729 = vmatmul.f32.gmra.mxu0 %v1522
      %v1730 = vpop.f32.mrf.mxu0
      %v1731 = vadd.f32 0.0, %v1730
      %1732 = vmatmul.f32.gmra.mxu0 %v1525
      %v1733 = vpop.f32.mrf.mxu0
      %v1734 = vadd.f32 0.0, %v1733
      %1735 = vmatmul.f32.gmra.mxu0 %v1528
      %v1736 = vpop.f32.mrf.mxu0
      %v1737 = vadd.f32 0.0, %v1736
      %1738 = vmatmul.f32.gmra.mxu0 %v1531
      %v1739 = vpop.f32.mrf.mxu0
      %v1740 = vadd.f32 0.0, %v1739
      %1741 = vmatmul.f32.gmra.mxu0 %v1534
      %v1742 = vpop.f32.mrf.mxu0
      %v1743 = vadd.f32 0.0, %v1742
      %1744 = vmatmul.f32.gmra.mxu0 %v1537
      %v1745 = vpop.f32.mrf.mxu0
      %v1746 = vadd.f32 0.0, %v1745
      %1747 = vmatmul.f32.gmra.mxu0 %v1540
      %v1748 = vpop.f32.mrf.mxu0
      %v1749 = vadd.f32 0.0, %v1748
      %1750 = vmatmul.f32.gmra.mxu0 %v1543
      %v1751 = vpop.f32.mrf.mxu0
      %v1752 = vadd.f32 0.0, %v1751
      %1753 = vmatmul.f32.gmra.mxu0 %v1546
      %v1754 = vpop.f32.mrf.mxu0
      %v1755 = vadd.f32 0.0, %v1754
      %1756 = vmatmul.f32.gmra.mxu0 %v1549
      %v1757 = vpop.f32.mrf.mxu0
      %v1758 = vadd.f32 0.0, %v1757
      %1759 = vmatmul.f32.gmra.mxu0 %v1552
      %v1760 = vpop.f32.mrf.mxu0
      %v1761 = vadd.f32 0.0, %v1760
      %1762 = vmatmul.f32.gmra.mxu0 %v1555
      %v1763 = vpop.f32.mrf.mxu0
      %v1764 = vadd.f32 0.0, %v1763
      %1765 = vmatmul.f32.gmra.mxu0 %v1558
      %v1766 = vpop.f32.mrf.mxu0
      %v1767 = vadd.f32 0.0, %v1766
      %1768 = vmatmul.f32.gmra.mxu0 %v1561
      %v1769 = vpop.f32.mrf.mxu0
      %v1770 = vadd.f32 0.0, %v1769
      %1771 = vmatmul.f32.gmra.mxu0 %v1564
      %v1772 = vpop.f32.mrf.mxu0
      %v1773 = vadd.f32 0.0, %v1772
      %1774 = vmatmul.f32.gmra.mxu0 %v1567
      %v1775 = vpop.f32.mrf.mxu0
      %v1776 = vadd.f32 0.0, %v1775
      %1777 = vmatmul.f32.gmra.mxu0 %v1570
      %v1778 = vpop.f32.mrf.mxu0
      %v1779 = vadd.f32 0.0, %v1778
      %1780 = vmatmul.f32.gmra.mxu0 %v1573
      %v1781 = vpop.f32.mrf.mxu0
      %v1782 = vadd.f32 0.0, %v1781
      %1783 = vmatmul.f32.gmra.mxu0 %v1576
      %v1784 = vpop.f32.mrf.mxu0
      %v1785 = vadd.f32 0.0, %v1784
      %1786 = vmatmul.f32.gmra.mxu0 %v1579
      %v1787 = vpop.f32.mrf.mxu0
      %v1788 = vadd.f32 0.0, %v1787
      %1789 = vmatmul.f32.gmra.mxu0 %v1582
      %v1790 = vpop.f32.mrf.mxu0
      %v1791 = vadd.f32 0.0, %v1790
      %1792 = vmatmul.f32.gmra.mxu0 %v1585
      %v1793 = vpop.f32.mrf.mxu0
      %v1794 = vadd.f32 0.0, %v1793
      %1795 = vmatmul.f32.gmra.mxu0 %v1588
      %v1796 = vpop.f32.mrf.mxu0
      %v1797 = vadd.f32 0.0, %v1796
      %1798 = vmatmul.f32.gmra.mxu0 %v1591
      %v1799 = vpop.f32.mrf.mxu0
      %v1800 = vadd.f32 0.0, %v1799
      %1801 = vmatmul.f32.gmra.mxu0 %v1594
      %v1802 = vpop.f32.mrf.mxu0
      %v1803 = vadd.f32 0.0, %v1802
      %1804 = vmatmul.f32.gmra.mxu0 %v1597
      %v1805 = vpop.f32.mrf.mxu0
      %v1806 = vadd.f32 0.0, %v1805
      %1807 = vmatmul.f32.gmra.mxu0 %v1600
      %v1808 = vpop.f32.mrf.mxu0
      %v1809 = vadd.f32 0.0, %v1808
      %1810 = vmatmul.f32.gmra.mxu0 %v1603
      %v1811 = vpop.f32.mrf.mxu0
      %v1812 = vadd.f32 0.0, %v1811
      %1813 = vmatmul.f32.gmra.mxu0 %v1606
      %v1814 = vpop.f32.mrf.mxu0
      %v1815 = vadd.f32 0.0, %v1814
      %1816 = vmatmul.f32.gmra.mxu0 %v1609
      %v1817 = vpop.f32.mrf.mxu0
      %v1818 = vadd.f32 0.0, %v1817
      %1819 = vmatmul.f32.gmra.mxu0 %v1612
      %v1820 = vpop.f32.mrf.mxu0
      %v1821 = vadd.f32 0.0, %v1820
      %1822 = vmatmul.f32.gmra.mxu0 %v1615
      %v1823 = vpop.f32.mrf.mxu0
      %v1824 = vadd.f32 0.0, %v1823
      %1825 = vmatmul.f32.gmra.mxu0 %v1618
      %v1826 = vpop.f32.mrf.mxu0
      %v1827 = vadd.f32 0.0, %v1826
      %1828 = vmatmul.f32.gmra.mxu0 %v1621
      %v1829 = vpop.f32.mrf.mxu0
      %v1830 = vadd.f32 0.0, %v1829
      %1831 = vdwg.mxu0
      %v1832 = vsub.f32 %v1112, %v1641
      %v1833 = vsub.f32 %v1115, %v1644
      %v1834 = vsub.f32 %v1118, %v1647
      %v1835 = vsub.f32 %v1121, %v1650
      %v1836 = vsub.f32 %v1124, %v1653
      %v1837 = vsub.f32 %v1127, %v1656
      %v1838 = vsub.f32 %v1130, %v1659
      %v1839 = vsub.f32 %v1133, %v1662
      %v1840 = vsub.f32 %v1136, %v1665
      %v1841 = vsub.f32 %v1139, %v1668
      %v1842 = vsub.f32 %v1142, %v1671
      %v1843 = vsub.f32 %v1145, %v1674
      %v1844 = vsub.f32 %v1148, %v1677
      %v1845 = vsub.f32 %v1151, %v1680
      %v1846 = vsub.f32 %v1154, %v1683
      %v1847 = vsub.f32 %v1157, %v1686
      %v1848 = vsub.f32 %v1160, %v1689
      %v1849 = vsub.f32 %v1163, %v1692
      %v1850 = vsub.f32 %v1166, %v1695
      %v1851 = vsub.f32 %v1169, %v1698
      %v1852 = vsub.f32 %v1172, %v1701
      %v1853 = vsub.f32 %v1175, %v1704
      %v1854 = vsub.f32 %v1178, %v1707
      %v1855 = vsub.f32 %v1181, %v1710
      %v1856 = vsub.f32 %v1184, %v1713
      %v1857 = vsub.f32 %v1187, %v1716
      %v1858 = vsub.f32 %v1190, %v1719
      %v1859 = vsub.f32 %v1193, %v1722
      %v1860 = vsub.f32 %v1196, %v1725
      %v1861 = vsub.f32 %v1199, %v1728
      %v1862 = vsub.f32 %v1202, %v1731
      %v1863 = vsub.f32 %v1205, %v1734
      %v1864 = vsub.f32 %v1208, %v1737
      %v1865 = vsub.f32 %v1211, %v1740
      %v1866 = vsub.f32 %v1214, %v1743
      %v1867 = vsub.f32 %v1217, %v1746
      %v1868 = vsub.f32 %v1220, %v1749
      %v1869 = vsub.f32 %v1223, %v1752
      %v1870 = vsub.f32 %v1226, %v1755
      %v1871 = vsub.f32 %v1229, %v1758
      %v1872 = vsub.f32 %v1232, %v1761
      %v1873 = vsub.f32 %v1235, %v1764
      %v1874 = vsub.f32 %v1238, %v1767
      %v1875 = vsub.f32 %v1241, %v1770
      %v1876 = vsub.f32 %v1244, %v1773
      %v1877 = vsub.f32 %v1247, %v1776
      %v1878 = vsub.f32 %v1250, %v1779
      %v1879 = vsub.f32 %v1253, %v1782
      %v1880 = vsub.f32 %v1256, %v1785
      %v1881 = vsub.f32 %v1259, %v1788
      %v1882 = vsub.f32 %v1262, %v1791
      %v1883 = vsub.f32 %v1265, %v1794
      %v1884 = vsub.f32 %v1268, %v1797
      %v1885 = vsub.f32 %v1271, %v1800
      %v1886 = vsub.f32 %v1274, %v1803
      %v1887 = vsub.f32 %v1277, %v1806
      %v1888 = vsub.f32 %v1280, %v1809
      %v1889 = vsub.f32 %v1283, %v1812
      %v1890 = vsub.f32 %v1286, %v1815
      %v1891 = vsub.f32 %v1289, %v1818
      %v1892 = vsub.f32 %v1292, %v1821
      %v1893 = vsub.f32 %v1295, %v1824
      %v1894 = vsub.f32 %v1298, %v1827
      %v1895 = vsub.f32 %v1301, %v1830
      %v1896 = vld [vmem:[%s6] sm:$0x1]
      %v1898 = vperm.slane %v1896, 0
      %v1900 = vadd.f32 %v1832, %v1898
      %v1901 = vadd.f32 %v1833, %v1898
      %v1902 = vadd.f32 %v1834, %v1898
      %v1903 = vadd.f32 %v1835, %v1898
      %v1904 = vadd.f32 %v1836, %v1898
      %v1905 = vadd.f32 %v1837, %v1898
      %v1906 = vadd.f32 %v1838, %v1898
      %v1907 = vadd.f32 %v1839, %v1898
      %v1908 = vadd.f32 %v1840, %v1898
      %v1909 = vadd.f32 %v1841, %v1898
      %v1910 = vadd.f32 %v1842, %v1898
      %v1911 = vadd.f32 %v1843, %v1898
      %v1912 = vadd.f32 %v1844, %v1898
      %v1913 = vadd.f32 %v1845, %v1898
      %v1914 = vadd.f32 %v1846, %v1898
      %v1915 = vadd.f32 %v1847, %v1898
      %v1916 = vadd.f32 %v1848, %v1898
      %v1917 = vadd.f32 %v1849, %v1898
      %v1918 = vadd.f32 %v1850, %v1898
      %v1919 = vadd.f32 %v1851, %v1898
      %v1920 = vadd.f32 %v1852, %v1898
      %v1921 = vadd.f32 %v1853, %v1898
      %v1922 = vadd.f32 %v1854, %v1898
      %v1923 = vadd.f32 %v1855, %v1898
      %v1924 = vadd.f32 %v1856, %v1898
      %v1925 = vadd.f32 %v1857, %v1898
      %v1926 = vadd.f32 %v1858, %v1898
      %v1927 = vadd.f32 %v1859, %v1898
      %v1928 = vadd.f32 %v1860, %v1898
      %v1929 = vadd.f32 %v1861, %v1898
      %v1930 = vadd.f32 %v1862, %v1898
      %v1931 = vadd.f32 %v1863, %v1898
      %v1932 = vadd.f32 %v1864, %v1898
      %v1933 = vadd.f32 %v1865, %v1898
      %v1934 = vadd.f32 %v1866, %v1898
      %v1935 = vadd.f32 %v1867, %v1898
      %v1936 = vadd.f32 %v1868, %v1898
      %v1937 = vadd.f32 %v1869, %v1898
      %v1938 = vadd.f32 %v1870, %v1898
      %v1939 = vadd.f32 %v1871, %v1898
      %v1940 = vadd.f32 %v1872, %v1898
      %v1941 = vadd.f32 %v1873, %v1898
      %v1942 = vadd.f32 %v1874, %v1898
      %v1943 = vadd.f32 %v1875, %v1898
      %v1944 = vadd.f32 %v1876, %v1898
      %v1945 = vadd.f32 %v1877, %v1898
      %v1946 = vadd.f32 %v1878, %v1898
      %v1947 = vadd.f32 %v1879, %v1898
      %v1948 = vadd.f32 %v1880, %v1898
      %v1949 = vadd.f32 %v1881, %v1898
      %v1950 = vadd.f32 %v1882, %v1898
      %v1951 = vadd.f32 %v1883, %v1898
      %v1952 = vadd.f32 %v1884, %v1898
      %v1953 = vadd.f32 %v1885, %v1898
      %v1954 = vadd.f32 %v1886, %v1898
      %v1955 = vadd.f32 %v1887, %v1898
      %v1956 = vadd.f32 %v1888, %v1898
      %v1957 = vadd.f32 %v1889, %v1898
      %v1958 = vadd.f32 %v1890, %v1898
      %v1959 = vadd.f32 %v1891, %v1898
      %v1960 = vadd.f32 %v1892, %v1898
      %v1961 = vadd.f32 %v1893, %v1898
      %v1962 = vadd.f32 %v1894, %v1898
      %v1963 = vadd.f32 %v1895, %v1898
      %v1964 = vmul.f32 %v1900, 0.999995
      %v1965 = vmul.f32 %v1901, 0.999995
      %v1966 = vmul.f32 %v1902, 0.999995
      %v1967 = vmul.f32 %v1903, 0.999995
      %v1968 = vmul.f32 %v1904, 0.999995
      %v1969 = vmul.f32 %v1905, 0.999995
      %v1970 = vmul.f32 %v1906, 0.999995
      %v1971 = vmul.f32 %v1907, 0.999995
      %v1972 = vmul.f32 %v1908, 0.999995
      %v1973 = vmul.f32 %v1909, 0.999995
      %v1974 = vmul.f32 %v1910, 0.999995
      %v1975 = vmul.f32 %v1911, 0.999995
      %v1976 = vmul.f32 %v1912, 0.999995
      %v1977 = vmul.f32 %v1913, 0.999995
      %v1978 = vmul.f32 %v1914, 0.999995
      %v1979 = vmul.f32 %v1915, 0.999995
      %v1980 = vmul.f32 %v1916, 0.999995
      %v1981 = vmul.f32 %v1917, 0.999995
      %v1982 = vmul.f32 %v1918, 0.999995
      %v1983 = vmul.f32 %v1919, 0.999995
      %v1984 = vmul.f32 %v1920, 0.999995
      %v1985 = vmul.f32 %v1921, 0.999995
      %v1986 = vmul.f32 %v1922, 0.999995
      %v1987 = vmul.f32 %v1923, 0.999995
      %v1988 = vmul.f32 %v1924, 0.999995
      %v1989 = vmul.f32 %v1925, 0.999995
      %v1990 = vmul.f32 %v1926, 0.999995
      %v1991 = vmul.f32 %v1927, 0.999995
      %v1992 = vmul.f32 %v1928, 0.999995
      %v1993 = vmul.f32 %v1929, 0.999995
      %v1994 = vmul.f32 %v1930, 0.999995
      %v1995 = vmul.f32 %v1931, 0.999995
      %v1996 = vmul.f32 %v1932, 0.999995
      %v1997 = vmul.f32 %v1933, 0.999995
      %v1998 = vmul.f32 %v1934, 0.999995
      %v1999 = vmul.f32 %v1935, 0.999995
      %v2000 = vmul.f32 %v1936, 0.999995
      %v2001 = vmul.f32 %v1937, 0.999995
      %v2002 = vmul.f32 %v1938, 0.999995
      %v2003 = vmul.f32 %v1939, 0.999995
      %v2004 = vmul.f32 %v1940, 0.999995
      %v2005 = vmul.f32 %v1941, 0.999995
      %v2006 = vmul.f32 %v1942, 0.999995
      %v2007 = vmul.f32 %v1943, 0.999995
      %v2008 = vmul.f32 %v1944, 0.999995
      %v2009 = vmul.f32 %v1945, 0.999995
      %v2010 = vmul.f32 %v1946, 0.999995
      %v2011 = vmul.f32 %v1947, 0.999995
      %v2012 = vmul.f32 %v1948, 0.999995
      %v2013 = vmul.f32 %v1949, 0.999995
      %v2014 = vmul.f32 %v1950, 0.999995
      %v2015 = vmul.f32 %v1951, 0.999995
      %v2016 = vmul.f32 %v1952, 0.999995
      %v2017 = vmul.f32 %v1953, 0.999995
      %v2018 = vmul.f32 %v1954, 0.999995
      %v2019 = vmul.f32 %v1955, 0.999995
      %v2020 = vmul.f32 %v1956, 0.999995
      %v2021 = vmul.f32 %v1957, 0.999995
      %v2022 = vmul.f32 %v1958, 0.999995
      %v2023 = vmul.f32 %v1959, 0.999995
      %v2024 = vmul.f32 %v1960, 0.999995
      %v2025 = vmul.f32 %v1961, 0.999995
      %v2026 = vmul.f32 %v1962, 0.999995
      %v2027 = vmul.f32 %v1963, 0.999995
      %v2028 = vsub.f32 0.0, %v1964
      %v2029 = vsub.f32 0.0, %v1965
      %v2030 = vsub.f32 0.0, %v1966
      %v2031 = vsub.f32 0.0, %v1967
      %v2032 = vsub.f32 0.0, %v1968
      %v2033 = vsub.f32 0.0, %v1969
      %v2034 = vsub.f32 0.0, %v1970
      %v2035 = vsub.f32 0.0, %v1971
      %v2036 = vsub.f32 0.0, %v1972
      %v2037 = vsub.f32 0.0, %v1973
      %v2038 = vsub.f32 0.0, %v1974
      %v2039 = vsub.f32 0.0, %v1975
      %v2040 = vsub.f32 0.0, %v1976
      %v2041 = vsub.f32 0.0, %v1977
      %v2042 = vsub.f32 0.0, %v1978
      %v2043 = vsub.f32 0.0, %v1979
      %v2044 = vsub.f32 0.0, %v1980
      %v2045 = vsub.f32 0.0, %v1981
      %v2046 = vsub.f32 0.0, %v1982
      %v2047 = vsub.f32 0.0, %v1983
      %v2048 = vsub.f32 0.0, %v1984
      %v2049 = vsub.f32 0.0, %v1985
      %v2050 = vsub.f32 0.0, %v1986
      %v2051 = vsub.f32 0.0, %v1987
      %v2052 = vsub.f32 0.0, %v1988
      %v2053 = vsub.f32 0.0, %v1989
      %v2054 = vsub.f32 0.0, %v1990
      %v2055 = vsub.f32 0.0, %v1991
      %v2056 = vsub.f32 0.0, %v1992
      %v2057 = vsub.f32 0.0, %v1993
      %v2058 = vsub.f32 0.0, %v1994
      %v2059 = vsub.f32 0.0, %v1995
      %v2060 = vsub.f32 0.0, %v1996
      %v2061 = vsub.f32 0.0, %v1997
      %v2062 = vsub.f32 0.0, %v1998
      %v2063 = vsub.f32 0.0, %v1999
      %v2064 = vsub.f32 0.0, %v2000
      %v2065 = vsub.f32 0.0, %v2001
      %v2066 = vsub.f32 0.0, %v2002
      %v2067 = vsub.f32 0.0, %v2003
      %v2068 = vsub.f32 0.0, %v2004
      %v2069 = vsub.f32 0.0, %v2005
      %v2070 = vsub.f32 0.0, %v2006
      %v2071 = vsub.f32 0.0, %v2007
      %v2072 = vsub.f32 0.0, %v2008
      %v2073 = vsub.f32 0.0, %v2009
      %v2074 = vsub.f32 0.0, %v2010
      %v2075 = vsub.f32 0.0, %v2011
      %v2076 = vsub.f32 0.0, %v2012
      %v2077 = vsub.f32 0.0, %v2013
      %v2078 = vsub.f32 0.0, %v2014
      %v2079 = vsub.f32 0.0, %v2015
      %v2080 = vsub.f32 0.0, %v2016
      %v2081 = vsub.f32 0.0, %v2017
      %v2082 = vsub.f32 0.0, %v2018
      %v2083 = vsub.f32 0.0, %v2019
      %v2084 = vsub.f32 0.0, %v2020
      %v2085 = vsub.f32 0.0, %v2021
      %v2086 = vsub.f32 0.0, %v2022
      %v2087 = vsub.f32 0.0, %v2023
      %v2088 = vsub.f32 0.0, %v2024
      %v2089 = vsub.f32 0.0, %v2025
      %v2090 = vsub.f32 0.0, %v2026
      %v2091 = vsub.f32 0.0, %v2027
      %v2092 = vmul.f32 %v2028, 1.442695
      %v2093 = vpow.pop %v2092
      %v2094 = vmul.f32 %v2029, 1.442695
      %v2095 = vpow.pop %v2094
      %v2096 = vmul.f32 %v2030, 1.442695
      %v2097 = vpow.pop %v2096
      %v2098 = vmul.f32 %v2031, 1.442695
      %v2099 = vpow.pop %v2098
      %v2100 = vmul.f32 %v2032, 1.442695
      %v2101 = vpow.pop %v2100
      %v2102 = vmul.f32 %v2033, 1.442695
      %v2103 = vpow.pop %v2102
      %v2104 = vmul.f32 %v2034, 1.442695
      %v2105 = vpow.pop %v2104
      %v2106 = vmul.f32 %v2035, 1.442695
      %v2107 = vpow.pop %v2106
      %v2108 = vmul.f32 %v2036, 1.442695
      %v2109 = vpow.pop %v2108
      %v2110 = vmul.f32 %v2037, 1.442695
      %v2111 = vpow.pop %v2110
      %v2112 = vmul.f32 %v2038, 1.442695
      %v2113 = vpow.pop %v2112
      %v2114 = vmul.f32 %v2039, 1.442695
      %v2115 = vpow.pop %v2114
      %v2116 = vmul.f32 %v2040, 1.442695
      %v2117 = vpow.pop %v2116
      %v2118 = vmul.f32 %v2041, 1.442695
      %v2119 = vpow.pop %v2118
      %v2120 = vmul.f32 %v2042, 1.442695
      %v2121 = vpow.pop %v2120
      %v2122 = vmul.f32 %v2043, 1.442695
      %v2123 = vpow.pop %v2122
      %v2124 = vmul.f32 %v2044, 1.442695
      %v2125 = vpow.pop %v2124
      %v2126 = vmul.f32 %v2045, 1.442695
      %v2127 = vpow.pop %v2126
      %v2128 = vmul.f32 %v2046, 1.442695
      %v2129 = vpow.pop %v2128
      %v2130 = vmul.f32 %v2047, 1.442695
      %v2131 = vpow.pop %v2130
      %v2132 = vmul.f32 %v2048, 1.442695
      %v2133 = vpow.pop %v2132
      %v2134 = vmul.f32 %v2049, 1.442695
      %v2135 = vpow.pop %v2134
      %v2136 = vmul.f32 %v2050, 1.442695
      %v2137 = vpow.pop %v2136
      %v2138 = vmul.f32 %v2051, 1.442695
      %v2139 = vpow.pop %v2138
      %v2140 = vmul.f32 %v2052, 1.442695
      %v2141 = vpow.pop %v2140
      %v2142 = vmul.f32 %v2053, 1.442695
      %v2143 = vpow.pop %v2142
      %v2144 = vmul.f32 %v2054, 1.442695
      %v2145 = vpow.pop %v2144
      %v2146 = vmul.f32 %v2055, 1.442695
      %v2147 = vpow.pop %v2146
      %v2148 = vmul.f32 %v2056, 1.442695
      %v2149 = vpow.pop %v2148
      %v2150 = vmul.f32 %v2057, 1.442695
      %v2151 = vpow.pop %v2150
      %v2152 = vmul.f32 %v2058, 1.442695
      %v2153 = vpow.pop %v2152
      %v2154 = vmul.f32 %v2059, 1.442695
      %v2155 = vpow.pop %v2154
      %v2156 = vmul.f32 %v2060, 1.442695
      %v2157 = vpow.pop %v2156
      %v2158 = vmul.f32 %v2061, 1.442695
      %v2159 = vpow.pop %v2158
      %v2160 = vmul.f32 %v2062, 1.442695
      %v2161 = vpow.pop %v2160
      %v2162 = vmul.f32 %v2063, 1.442695
      %v2163 = vpow.pop %v2162
      %v2164 = vmul.f32 %v2064, 1.442695
      %v2165 = vpow.pop %v2164
      %v2166 = vmul.f32 %v2065, 1.442695
      %v2167 = vpow.pop %v2166
      %v2168 = vmul.f32 %v2066, 1.442695
      %v2169 = vpow.pop %v2168
      %v2170 = vmul.f32 %v2067, 1.442695
      %v2171 = vpow.pop %v2170
      %v2172 = vmul.f32 %v2068, 1.442695
      %v2173 = vpow.pop %v2172
      %v2174 = vmul.f32 %v2069, 1.442695
      %v2175 = vpow.pop %v2174
      %v2176 = vmul.f32 %v2070, 1.442695
      %v2177 = vpow.pop %v2176
      %v2178 = vmul.f32 %v2071, 1.442695
      %v2179 = vpow.pop %v2178
      %v2180 = vmul.f32 %v2072, 1.442695
      %v2181 = vpow.pop %v2180
      %v2182 = vmul.f32 %v2073, 1.442695
      %v2183 = vpow.pop %v2182
      %v2184 = vmul.f32 %v2074, 1.442695
      %v2185 = vpow.pop %v2184
      %v2186 = vmul.f32 %v2075, 1.442695
      %v2187 = vpow.pop %v2186
      %v2188 = vmul.f32 %v2076, 1.442695
      %v2189 = vpow.pop %v2188
      %v2190 = vmul.f32 %v2077, 1.442695
      %v2191 = vpow.pop %v2190
      %v2192 = vmul.f32 %v2078, 1.442695
      %v2193 = vpow.pop %v2192
      %v2194 = vmul.f32 %v2079, 1.442695
      %v2195 = vpow.pop %v2194
      %v2196 = vmul.f32 %v2080, 1.442695
      %v2197 = vpow.pop %v2196
      %v2198 = vmul.f32 %v2081, 1.442695
      %v2199 = vpow.pop %v2198
      %v2200 = vmul.f32 %v2082, 1.442695
      %v2201 = vpow.pop %v2200
      %v2202 = vmul.f32 %v2083, 1.442695
      %v2203 = vpow.pop %v2202
      %v2204 = vmul.f32 %v2084, 1.442695
      %v2205 = vpow.pop %v2204
      %v2206 = vmul.f32 %v2085, 1.442695
      %v2207 = vpow.pop %v2206
      %v2208 = vmul.f32 %v2086, 1.442695
      %v2209 = vpow.pop %v2208
      %v2210 = vmul.f32 %v2087, 1.442695
      %v2211 = vpow.pop %v2210
      %v2212 = vmul.f32 %v2088, 1.442695
      %v2213 = vpow.pop %v2212
      %v2214 = vmul.f32 %v2089, 1.442695
      %v2215 = vpow.pop %v2214
      %v2216 = vmul.f32 %v2090, 1.442695
      %v2217 = vpow.pop %v2216
      %v2218 = vmul.f32 %v2091, 1.442695
      %v2219 = vpow.pop %v2218
      %v2220 = vadd.f32 %v2093, 1.0
      %v2221 = vadd.f32 %v2095, 1.0
      %v2222 = vadd.f32 %v2097, 1.0
      %v2223 = vadd.f32 %v2099, 1.0
      %v2224 = vadd.f32 %v2101, 1.0
      %v2225 = vadd.f32 %v2103, 1.0
      %v2226 = vadd.f32 %v2105, 1.0
      %v2227 = vadd.f32 %v2107, 1.0
      %v2228 = vadd.f32 %v2109, 1.0
      %v2229 = vadd.f32 %v2111, 1.0
      %v2230 = vadd.f32 %v2113, 1.0
      %v2231 = vadd.f32 %v2115, 1.0
      %v2232 = vadd.f32 %v2117, 1.0
      %v2233 = vadd.f32 %v2119, 1.0
      %v2234 = vadd.f32 %v2121, 1.0
      %v2235 = vadd.f32 %v2123, 1.0
      %v2236 = vadd.f32 %v2125, 1.0
      %v2237 = vadd.f32 %v2127, 1.0
      %v2238 = vadd.f32 %v2129, 1.0
      %v2239 = vadd.f32 %v2131, 1.0
      %v2240 = vadd.f32 %v2133, 1.0
      %v2241 = vadd.f32 %v2135, 1.0
      %v2242 = vadd.f32 %v2137, 1.0
      %v2243 = vadd.f32 %v2139, 1.0
      %v2244 = vadd.f32 %v2141, 1.0
      %v2245 = vadd.f32 %v2143, 1.0
      %v2246 = vadd.f32 %v2145, 1.0
      %v2247 = vadd.f32 %v2147, 1.0
      %v2248 = vadd.f32 %v2149, 1.0
      %v2249 = vadd.f32 %v2151, 1.0
      %v2250 = vadd.f32 %v2153, 1.0
      %v2251 = vadd.f32 %v2155, 1.0
      %v2252 = vadd.f32 %v2157, 1.0
      %v2253 = vadd.f32 %v2159, 1.0
      %v2254 = vadd.f32 %v2161, 1.0
      %v2255 = vadd.f32 %v2163, 1.0
      %v2256 = vadd.f32 %v2165, 1.0
      %v2257 = vadd.f32 %v2167, 1.0
      %v2258 = vadd.f32 %v2169, 1.0
      %v2259 = vadd.f32 %v2171, 1.0
      %v2260 = vadd.f32 %v2173, 1.0
      %v2261 = vadd.f32 %v2175, 1.0
      %v2262 = vadd.f32 %v2177, 1.0
      %v2263 = vadd.f32 %v2179, 1.0
      %v2264 = vadd.f32 %v2181, 1.0
      %v2265 = vadd.f32 %v2183, 1.0
      %v2266 = vadd.f32 %v2185, 1.0
      %v2267 = vadd.f32 %v2187, 1.0
      %v2268 = vadd.f32 %v2189, 1.0
      %v2269 = vadd.f32 %v2191, 1.0
      %v2270 = vadd.f32 %v2193, 1.0
      %v2271 = vadd.f32 %v2195, 1.0
      %v2272 = vadd.f32 %v2197, 1.0
      %v2273 = vadd.f32 %v2199, 1.0
      %v2274 = vadd.f32 %v2201, 1.0
      %v2275 = vadd.f32 %v2203, 1.0
      %v2276 = vadd.f32 %v2205, 1.0
      %v2277 = vadd.f32 %v2207, 1.0
      %v2278 = vadd.f32 %v2209, 1.0
      %v2279 = vadd.f32 %v2211, 1.0
      %v2280 = vadd.f32 %v2213, 1.0
      %v2281 = vadd.f32 %v2215, 1.0
      %v2282 = vadd.f32 %v2217, 1.0
      %v2283 = vadd.f32 %v2219, 1.0
      %v2284 = vrcp.pop %v2220
      %v2285 = vmul.f32 %v2220, %v2284
      %v2286 = vsub.f32 1.0, %v2285
      %v2287 = vmul.f32 %v2284, %v2286
      %v2288 = vadd.f32 %v2284, %v2287
      %vm2289 = vweird.f32 %v2220
      %vm2290 = vweird.f32 %v2284
      %vm2291 = vmor %vm2289, %vm2290
      %v2292 = vsel %vm2291, %v2284, %v2288
      %v2293 = vand.u32 2147483647, %v2220
      %vm2294 = vcmp.eq.f32.partialorder %v2293, 8.507059e+37
      %v2295 = vand.u32 %v2220, 2147483648
      %v2296 = vor.u32 1.1754944e-38, %v2295
      %v2297 = vsel %vm2294, %v2296, %v2292
      %v2298 = vmul.f32 1.0, %v2297
      %v2299 = vrcp.pop %v2221
      %v2300 = vmul.f32 %v2221, %v2299
      %v2301 = vsub.f32 1.0, %v2300
      %v2302 = vmul.f32 %v2299, %v2301
      %v2303 = vadd.f32 %v2299, %v2302
      %vm2304 = vweird.f32 %v2221
      %vm2305 = vweird.f32 %v2299
      %vm2306 = vmor %vm2304, %vm2305
      %v2307 = vsel %vm2306, %v2299, %v2303
      %v2308 = vand.u32 2147483647, %v2221
      %vm2309 = vcmp.eq.f32.partialorder %v2308, 8.507059e+37
      %v2310 = vand.u32 %v2221, 2147483648
      %v2311 = vor.u32 1.1754944e-38, %v2310
      %v2312 = vsel %vm2309, %v2311, %v2307
      %v2313 = vmul.f32 1.0, %v2312
      %v2314 = vrcp.pop %v2222
      %v2315 = vmul.f32 %v2222, %v2314
      %v2316 = vsub.f32 1.0, %v2315
      %v2317 = vmul.f32 %v2314, %v2316
      %v2318 = vadd.f32 %v2314, %v2317
      %vm2319 = vweird.f32 %v2222
      %vm2320 = vweird.f32 %v2314
      %vm2321 = vmor %vm2319, %vm2320
      %v2322 = vsel %vm2321, %v2314, %v2318
      %v2323 = vand.u32 2147483647, %v2222
      %vm2324 = vcmp.eq.f32.partialorder %v2323, 8.507059e+37
      %v2325 = vand.u32 %v2222, 2147483648
      %v2326 = vor.u32 1.1754944e-38, %v2325
      %v2327 = vsel %vm2324, %v2326, %v2322
      %v2328 = vmul.f32 1.0, %v2327
      %v2329 = vrcp.pop %v2223
      %v2330 = vmul.f32 %v2223, %v2329
      %v2331 = vsub.f32 1.0, %v2330
      %v2332 = vmul.f32 %v2329, %v2331
      %v2333 = vadd.f32 %v2329, %v2332
      %vm2334 = vweird.f32 %v2223
      %vm2335 = vweird.f32 %v2329
      %vm2336 = vmor %vm2334, %vm2335
      %v2337 = vsel %vm2336, %v2329, %v2333
      %v2338 = vand.u32 2147483647, %v2223
      %vm2339 = vcmp.eq.f32.partialorder %v2338, 8.507059e+37
      %v2340 = vand.u32 %v2223, 2147483648
      %v2341 = vor.u32 1.1754944e-38, %v2340
      %v2342 = vsel %vm2339, %v2341, %v2337
      %v2343 = vmul.f32 1.0, %v2342
      %v2344 = vrcp.pop %v2224
      %v2345 = vmul.f32 %v2224, %v2344
      %v2346 = vsub.f32 1.0, %v2345
      %v2347 = vmul.f32 %v2344, %v2346
      %v2348 = vadd.f32 %v2344, %v2347
      %vm2349 = vweird.f32 %v2224
      %vm2350 = vweird.f32 %v2344
      %vm2351 = vmor %vm2349, %vm2350
      %v2352 = vsel %vm2351, %v2344, %v2348
      %v2353 = vand.u32 2147483647, %v2224
      %vm2354 = vcmp.eq.f32.partialorder %v2353, 8.507059e+37
      %v2355 = vand.u32 %v2224, 2147483648
      %v2356 = vor.u32 1.1754944e-38, %v2355
      %v2357 = vsel %vm2354, %v2356, %v2352
      %v2358 = vmul.f32 1.0, %v2357
      %v2359 = vrcp.pop %v2225
      %v2360 = vmul.f32 %v2225, %v2359
      %v2361 = vsub.f32 1.0, %v2360
      %v2362 = vmul.f32 %v2359, %v2361
      %v2363 = vadd.f32 %v2359, %v2362
      %vm2364 = vweird.f32 %v2225
      %vm2365 = vweird.f32 %v2359
      %vm2366 = vmor %vm2364, %vm2365
      %v2367 = vsel %vm2366, %v2359, %v2363
      %v2368 = vand.u32 2147483647, %v2225
      %vm2369 = vcmp.eq.f32.partialorder %v2368, 8.507059e+37
      %v2370 = vand.u32 %v2225, 2147483648
      %v2371 = vor.u32 1.1754944e-38, %v2370
      %v2372 = vsel %vm2369, %v2371, %v2367
      %v2373 = vmul.f32 1.0, %v2372
      %v2374 = vrcp.pop %v2226
      %v2375 = vmul.f32 %v2226, %v2374
      %v2376 = vsub.f32 1.0, %v2375
      %v2377 = vmul.f32 %v2374, %v2376
      %v2378 = vadd.f32 %v2374, %v2377
      %vm2379 = vweird.f32 %v2226
      %vm2380 = vweird.f32 %v2374
      %vm2381 = vmor %vm2379, %vm2380
      %v2382 = vsel %vm2381, %v2374, %v2378
      %v2383 = vand.u32 2147483647, %v2226
      %vm2384 = vcmp.eq.f32.partialorder %v2383, 8.507059e+37
      %v2385 = vand.u32 %v2226, 2147483648
      %v2386 = vor.u32 1.1754944e-38, %v2385
      %v2387 = vsel %vm2384, %v2386, %v2382
      %v2388 = vmul.f32 1.0, %v2387
      %v2389 = vrcp.pop %v2227
      %v2390 = vmul.f32 %v2227, %v2389
      %v2391 = vsub.f32 1.0, %v2390
      %v2392 = vmul.f32 %v2389, %v2391
      %v2393 = vadd.f32 %v2389, %v2392
      %vm2394 = vweird.f32 %v2227
      %vm2395 = vweird.f32 %v2389
      %vm2396 = vmor %vm2394, %vm2395
      %v2397 = vsel %vm2396, %v2389, %v2393
      %v2398 = vand.u32 2147483647, %v2227
      %vm2399 = vcmp.eq.f32.partialorder %v2398, 8.507059e+37
      %v2400 = vand.u32 %v2227, 2147483648
      %v2401 = vor.u32 1.1754944e-38, %v2400
      %v2402 = vsel %vm2399, %v2401, %v2397
      %v2403 = vmul.f32 1.0, %v2402
      %v2404 = vrcp.pop %v2228
      %v2405 = vmul.f32 %v2228, %v2404
      %v2406 = vsub.f32 1.0, %v2405
      %v2407 = vmul.f32 %v2404, %v2406
      %v2408 = vadd.f32 %v2404, %v2407
      %vm2409 = vweird.f32 %v2228
      %vm2410 = vweird.f32 %v2404
      %vm2411 = vmor %vm2409, %vm2410
      %v2412 = vsel %vm2411, %v2404, %v2408
      %v2413 = vand.u32 2147483647, %v2228
      %vm2414 = vcmp.eq.f32.partialorder %v2413, 8.507059e+37
      %v2415 = vand.u32 %v2228, 2147483648
      %v2416 = vor.u32 1.1754944e-38, %v2415
      %v2417 = vsel %vm2414, %v2416, %v2412
      %v2418 = vmul.f32 1.0, %v2417
      %v2419 = vrcp.pop %v2229
      %v2420 = vmul.f32 %v2229, %v2419
      %v2421 = vsub.f32 1.0, %v2420
      %v2422 = vmul.f32 %v2419, %v2421
      %v2423 = vadd.f32 %v2419, %v2422
      %vm2424 = vweird.f32 %v2229
      %vm2425 = vweird.f32 %v2419
      %vm2426 = vmor %vm2424, %vm2425
      %v2427 = vsel %vm2426, %v2419, %v2423
      %v2428 = vand.u32 2147483647, %v2229
      %vm2429 = vcmp.eq.f32.partialorder %v2428, 8.507059e+37
      %v2430 = vand.u32 %v2229, 2147483648
      %v2431 = vor.u32 1.1754944e-38, %v2430
      %v2432 = vsel %vm2429, %v2431, %v2427
      %v2433 = vmul.f32 1.0, %v2432
      %v2434 = vrcp.pop %v2230
      %v2435 = vmul.f32 %v2230, %v2434
      %v2436 = vsub.f32 1.0, %v2435
      %v2437 = vmul.f32 %v2434, %v2436
      %v2438 = vadd.f32 %v2434, %v2437
      %vm2439 = vweird.f32 %v2230
      %vm2440 = vweird.f32 %v2434
      %vm2441 = vmor %vm2439, %vm2440
      %v2442 = vsel %vm2441, %v2434, %v2438
      %v2443 = vand.u32 2147483647, %v2230
      %vm2444 = vcmp.eq.f32.partialorder %v2443, 8.507059e+37
      %v2445 = vand.u32 %v2230, 2147483648
      %v2446 = vor.u32 1.1754944e-38, %v2445
      %v2447 = vsel %vm2444, %v2446, %v2442
      %v2448 = vmul.f32 1.0, %v2447
      %v2449 = vrcp.pop %v2231
      %v2450 = vmul.f32 %v2231, %v2449
      %v2451 = vsub.f32 1.0, %v2450
      %v2452 = vmul.f32 %v2449, %v2451
      %v2453 = vadd.f32 %v2449, %v2452
      %vm2454 = vweird.f32 %v2231
      %vm2455 = vweird.f32 %v2449
      %vm2456 = vmor %vm2454, %vm2455
      %v2457 = vsel %vm2456, %v2449, %v2453
      %v2458 = vand.u32 2147483647, %v2231
      %vm2459 = vcmp.eq.f32.partialorder %v2458, 8.507059e+37
      %v2460 = vand.u32 %v2231, 2147483648
      %v2461 = vor.u32 1.1754944e-38, %v2460
      %v2462 = vsel %vm2459, %v2461, %v2457
      %v2463 = vmul.f32 1.0, %v2462
      %v2464 = vrcp.pop %v2232
      %v2465 = vmul.f32 %v2232, %v2464
      %v2466 = vsub.f32 1.0, %v2465
      %v2467 = vmul.f32 %v2464, %v2466
      %v2468 = vadd.f32 %v2464, %v2467
      %vm2469 = vweird.f32 %v2232
      %vm2470 = vweird.f32 %v2464
      %vm2471 = vmor %vm2469, %vm2470
      %v2472 = vsel %vm2471, %v2464, %v2468
      %v2473 = vand.u32 2147483647, %v2232
      %vm2474 = vcmp.eq.f32.partialorder %v2473, 8.507059e+37
      %v2475 = vand.u32 %v2232, 2147483648
      %v2476 = vor.u32 1.1754944e-38, %v2475
      %v2477 = vsel %vm2474, %v2476, %v2472
      %v2478 = vmul.f32 1.0, %v2477
      %v2479 = vrcp.pop %v2233
      %v2480 = vmul.f32 %v2233, %v2479
      %v2481 = vsub.f32 1.0, %v2480
      %v2482 = vmul.f32 %v2479, %v2481
      %v2483 = vadd.f32 %v2479, %v2482
      %vm2484 = vweird.f32 %v2233
      %vm2485 = vweird.f32 %v2479
      %vm2486 = vmor %vm2484, %vm2485
      %v2487 = vsel %vm2486, %v2479, %v2483
      %v2488 = vand.u32 2147483647, %v2233
      %vm2489 = vcmp.eq.f32.partialorder %v2488, 8.507059e+37
      %v2490 = vand.u32 %v2233, 2147483648
      %v2491 = vor.u32 1.1754944e-38, %v2490
      %v2492 = vsel %vm2489, %v2491, %v2487
      %v2493 = vmul.f32 1.0, %v2492
      %v2494 = vrcp.pop %v2234
      %v2495 = vmul.f32 %v2234, %v2494
      %v2496 = vsub.f32 1.0, %v2495
      %v2497 = vmul.f32 %v2494, %v2496
      %v2498 = vadd.f32 %v2494, %v2497
      %vm2499 = vweird.f32 %v2234
      %vm2500 = vweird.f32 %v2494
      %vm2501 = vmor %vm2499, %vm2500
      %v2502 = vsel %vm2501, %v2494, %v2498
      %v2503 = vand.u32 2147483647, %v2234
      %vm2504 = vcmp.eq.f32.partialorder %v2503, 8.507059e+37
      %v2505 = vand.u32 %v2234, 2147483648
      %v2506 = vor.u32 1.1754944e-38, %v2505
      %v2507 = vsel %vm2504, %v2506, %v2502
      %v2508 = vmul.f32 1.0, %v2507
      %v2509 = vrcp.pop %v2235
      %v2510 = vmul.f32 %v2235, %v2509
      %v2511 = vsub.f32 1.0, %v2510
      %v2512 = vmul.f32 %v2509, %v2511
      %v2513 = vadd.f32 %v2509, %v2512
      %vm2514 = vweird.f32 %v2235
      %vm2515 = vweird.f32 %v2509
      %vm2516 = vmor %vm2514, %vm2515
      %v2517 = vsel %vm2516, %v2509, %v2513
      %v2518 = vand.u32 2147483647, %v2235
      %vm2519 = vcmp.eq.f32.partialorder %v2518, 8.507059e+37
      %v2520 = vand.u32 %v2235, 2147483648
      %v2521 = vor.u32 1.1754944e-38, %v2520
      %v2522 = vsel %vm2519, %v2521, %v2517
      %v2523 = vmul.f32 1.0, %v2522
      %v2524 = vrcp.pop %v2236
      %v2525 = vmul.f32 %v2236, %v2524
      %v2526 = vsub.f32 1.0, %v2525
      %v2527 = vmul.f32 %v2524, %v2526
      %v2528 = vadd.f32 %v2524, %v2527
      %vm2529 = vweird.f32 %v2236
      %vm2530 = vweird.f32 %v2524
      %vm2531 = vmor %vm2529, %vm2530
      %v2532 = vsel %vm2531, %v2524, %v2528
      %v2533 = vand.u32 2147483647, %v2236
      %vm2534 = vcmp.eq.f32.partialorder %v2533, 8.507059e+37
      %v2535 = vand.u32 %v2236, 2147483648
      %v2536 = vor.u32 1.1754944e-38, %v2535
      %v2537 = vsel %vm2534, %v2536, %v2532
      %v2538 = vmul.f32 1.0, %v2537
      %v2539 = vrcp.pop %v2237
      %v2540 = vmul.f32 %v2237, %v2539
      %v2541 = vsub.f32 1.0, %v2540
      %v2542 = vmul.f32 %v2539, %v2541
      %v2543 = vadd.f32 %v2539, %v2542
      %vm2544 = vweird.f32 %v2237
      %vm2545 = vweird.f32 %v2539
      %vm2546 = vmor %vm2544, %vm2545
      %v2547 = vsel %vm2546, %v2539, %v2543
      %v2548 = vand.u32 2147483647, %v2237
      %vm2549 = vcmp.eq.f32.partialorder %v2548, 8.507059e+37
      %v2550 = vand.u32 %v2237, 2147483648
      %v2551 = vor.u32 1.1754944e-38, %v2550
      %v2552 = vsel %vm2549, %v2551, %v2547
      %v2553 = vmul.f32 1.0, %v2552
      %v2554 = vrcp.pop %v2238
      %v2555 = vmul.f32 %v2238, %v2554
      %v2556 = vsub.f32 1.0, %v2555
      %v2557 = vmul.f32 %v2554, %v2556
      %v2558 = vadd.f32 %v2554, %v2557
      %vm2559 = vweird.f32 %v2238
      %vm2560 = vweird.f32 %v2554
      %vm2561 = vmor %vm2559, %vm2560
      %v2562 = vsel %vm2561, %v2554, %v2558
      %v2563 = vand.u32 2147483647, %v2238
      %vm2564 = vcmp.eq.f32.partialorder %v2563, 8.507059e+37
      %v2565 = vand.u32 %v2238, 2147483648
      %v2566 = vor.u32 1.1754944e-38, %v2565
      %v2567 = vsel %vm2564, %v2566, %v2562
      %v2568 = vmul.f32 1.0, %v2567
      %v2569 = vrcp.pop %v2239
      %v2570 = vmul.f32 %v2239, %v2569
      %v2571 = vsub.f32 1.0, %v2570
      %v2572 = vmul.f32 %v2569, %v2571
      %v2573 = vadd.f32 %v2569, %v2572
      %vm2574 = vweird.f32 %v2239
      %vm2575 = vweird.f32 %v2569
      %vm2576 = vmor %vm2574, %vm2575
      %v2577 = vsel %vm2576, %v2569, %v2573
      %v2578 = vand.u32 2147483647, %v2239
      %vm2579 = vcmp.eq.f32.partialorder %v2578, 8.507059e+37
      %v2580 = vand.u32 %v2239, 2147483648
      %v2581 = vor.u32 1.1754944e-38, %v2580
      %v2582 = vsel %vm2579, %v2581, %v2577
      %v2583 = vmul.f32 1.0, %v2582
      %v2584 = vrcp.pop %v2240
      %v2585 = vmul.f32 %v2240, %v2584
      %v2586 = vsub.f32 1.0, %v2585
      %v2587 = vmul.f32 %v2584, %v2586
      %v2588 = vadd.f32 %v2584, %v2587
      %vm2589 = vweird.f32 %v2240
      %vm2590 = vweird.f32 %v2584
      %vm2591 = vmor %vm2589, %vm2590
      %v2592 = vsel %vm2591, %v2584, %v2588
      %v2593 = vand.u32 2147483647, %v2240
      %vm2594 = vcmp.eq.f32.partialorder %v2593, 8.507059e+37
      %v2595 = vand.u32 %v2240, 2147483648
      %v2596 = vor.u32 1.1754944e-38, %v2595
      %v2597 = vsel %vm2594, %v2596, %v2592
      %v2598 = vmul.f32 1.0, %v2597
      %v2599 = vrcp.pop %v2241
      %v2600 = vmul.f32 %v2241, %v2599
      %v2601 = vsub.f32 1.0, %v2600
      %v2602 = vmul.f32 %v2599, %v2601
      %v2603 = vadd.f32 %v2599, %v2602
      %vm2604 = vweird.f32 %v2241
      %vm2605 = vweird.f32 %v2599
      %vm2606 = vmor %vm2604, %vm2605
      %v2607 = vsel %vm2606, %v2599, %v2603
      %v2608 = vand.u32 2147483647, %v2241
      %vm2609 = vcmp.eq.f32.partialorder %v2608, 8.507059e+37
      %v2610 = vand.u32 %v2241, 2147483648
      %v2611 = vor.u32 1.1754944e-38, %v2610
      %v2612 = vsel %vm2609, %v2611, %v2607
      %v2613 = vmul.f32 1.0, %v2612
      %v2614 = vrcp.pop %v2242
      %v2615 = vmul.f32 %v2242, %v2614
      %v2616 = vsub.f32 1.0, %v2615
      %v2617 = vmul.f32 %v2614, %v2616
      %v2618 = vadd.f32 %v2614, %v2617
      %vm2619 = vweird.f32 %v2242
      %vm2620 = vweird.f32 %v2614
      %vm2621 = vmor %vm2619, %vm2620
      %v2622 = vsel %vm2621, %v2614, %v2618
      %v2623 = vand.u32 2147483647, %v2242
      %vm2624 = vcmp.eq.f32.partialorder %v2623, 8.507059e+37
      %v2625 = vand.u32 %v2242, 2147483648
      %v2626 = vor.u32 1.1754944e-38, %v2625
      %v2627 = vsel %vm2624, %v2626, %v2622
      %v2628 = vmul.f32 1.0, %v2627
      %v2629 = vrcp.pop %v2243
      %v2630 = vmul.f32 %v2243, %v2629
      %v2631 = vsub.f32 1.0, %v2630
      %v2632 = vmul.f32 %v2629, %v2631
      %v2633 = vadd.f32 %v2629, %v2632
      %vm2634 = vweird.f32 %v2243
      %vm2635 = vweird.f32 %v2629
      %vm2636 = vmor %vm2634, %vm2635
      %v2637 = vsel %vm2636, %v2629, %v2633
      %v2638 = vand.u32 2147483647, %v2243
      %vm2639 = vcmp.eq.f32.partialorder %v2638, 8.507059e+37
      %v2640 = vand.u32 %v2243, 2147483648
      %v2641 = vor.u32 1.1754944e-38, %v2640
      %v2642 = vsel %vm2639, %v2641, %v2637
      %v2643 = vmul.f32 1.0, %v2642
      %v2644 = vrcp.pop %v2244
      %v2645 = vmul.f32 %v2244, %v2644
      %v2646 = vsub.f32 1.0, %v2645
      %v2647 = vmul.f32 %v2644, %v2646
      %v2648 = vadd.f32 %v2644, %v2647
      %vm2649 = vweird.f32 %v2244
      %vm2650 = vweird.f32 %v2644
      %vm2651 = vmor %vm2649, %vm2650
      %v2652 = vsel %vm2651, %v2644, %v2648
      %v2653 = vand.u32 2147483647, %v2244
      %vm2654 = vcmp.eq.f32.partialorder %v2653, 8.507059e+37
      %v2655 = vand.u32 %v2244, 2147483648
      %v2656 = vor.u32 1.1754944e-38, %v2655
      %v2657 = vsel %vm2654, %v2656, %v2652
      %v2658 = vmul.f32 1.0, %v2657
      %v2659 = vrcp.pop %v2245
      %v2660 = vmul.f32 %v2245, %v2659
      %v2661 = vsub.f32 1.0, %v2660
      %v2662 = vmul.f32 %v2659, %v2661
      %v2663 = vadd.f32 %v2659, %v2662
      %vm2664 = vweird.f32 %v2245
      %vm2665 = vweird.f32 %v2659
      %vm2666 = vmor %vm2664, %vm2665
      %v2667 = vsel %vm2666, %v2659, %v2663
      %v2668 = vand.u32 2147483647, %v2245
      %vm2669 = vcmp.eq.f32.partialorder %v2668, 8.507059e+37
      %v2670 = vand.u32 %v2245, 2147483648
      %v2671 = vor.u32 1.1754944e-38, %v2670
      %v2672 = vsel %vm2669, %v2671, %v2667
      %v2673 = vmul.f32 1.0, %v2672
      %v2674 = vrcp.pop %v2246
      %v2675 = vmul.f32 %v2246, %v2674
      %v2676 = vsub.f32 1.0, %v2675
      %v2677 = vmul.f32 %v2674, %v2676
      %v2678 = vadd.f32 %v2674, %v2677
      %vm2679 = vweird.f32 %v2246
      %vm2680 = vweird.f32 %v2674
      %vm2681 = vmor %vm2679, %vm2680
      %v2682 = vsel %vm2681, %v2674, %v2678
      %v2683 = vand.u32 2147483647, %v2246
      %vm2684 = vcmp.eq.f32.partialorder %v2683, 8.507059e+37
      %v2685 = vand.u32 %v2246, 2147483648
      %v2686 = vor.u32 1.1754944e-38, %v2685
      %v2687 = vsel %vm2684, %v2686, %v2682
      %v2688 = vmul.f32 1.0, %v2687
      %v2689 = vrcp.pop %v2247
      %v2690 = vmul.f32 %v2247, %v2689
      %v2691 = vsub.f32 1.0, %v2690
      %v2692 = vmul.f32 %v2689, %v2691
      %v2693 = vadd.f32 %v2689, %v2692
      %vm2694 = vweird.f32 %v2247
      %vm2695 = vweird.f32 %v2689
      %vm2696 = vmor %vm2694, %vm2695
      %v2697 = vsel %vm2696, %v2689, %v2693
      %v2698 = vand.u32 2147483647, %v2247
      %vm2699 = vcmp.eq.f32.partialorder %v2698, 8.507059e+37
      %v2700 = vand.u32 %v2247, 2147483648
      %v2701 = vor.u32 1.1754944e-38, %v2700
      %v2702 = vsel %vm2699, %v2701, %v2697
      %v2703 = vmul.f32 1.0, %v2702
      %v2704 = vrcp.pop %v2248
      %v2705 = vmul.f32 %v2248, %v2704
      %v2706 = vsub.f32 1.0, %v2705
      %v2707 = vmul.f32 %v2704, %v2706
      %v2708 = vadd.f32 %v2704, %v2707
      %vm2709 = vweird.f32 %v2248
      %vm2710 = vweird.f32 %v2704
      %vm2711 = vmor %vm2709, %vm2710
      %v2712 = vsel %vm2711, %v2704, %v2708
      %v2713 = vand.u32 2147483647, %v2248
      %vm2714 = vcmp.eq.f32.partialorder %v2713, 8.507059e+37
      %v2715 = vand.u32 %v2248, 2147483648
      %v2716 = vor.u32 1.1754944e-38, %v2715
      %v2717 = vsel %vm2714, %v2716, %v2712
      %v2718 = vmul.f32 1.0, %v2717
      %v2719 = vrcp.pop %v2249
      %v2720 = vmul.f32 %v2249, %v2719
      %v2721 = vsub.f32 1.0, %v2720
      %v2722 = vmul.f32 %v2719, %v2721
      %v2723 = vadd.f32 %v2719, %v2722
      %vm2724 = vweird.f32 %v2249
      %vm2725 = vweird.f32 %v2719
      %vm2726 = vmor %vm2724, %vm2725
      %v2727 = vsel %vm2726, %v2719, %v2723
      %v2728 = vand.u32 2147483647, %v2249
      %vm2729 = vcmp.eq.f32.partialorder %v2728, 8.507059e+37
      %v2730 = vand.u32 %v2249, 2147483648
      %v2731 = vor.u32 1.1754944e-38, %v2730
      %v2732 = vsel %vm2729, %v2731, %v2727
      %v2733 = vmul.f32 1.0, %v2732
      %v2734 = vrcp.pop %v2250
      %v2735 = vmul.f32 %v2250, %v2734
      %v2736 = vsub.f32 1.0, %v2735
      %v2737 = vmul.f32 %v2734, %v2736
      %v2738 = vadd.f32 %v2734, %v2737
      %vm2739 = vweird.f32 %v2250
      %vm2740 = vweird.f32 %v2734
      %vm2741 = vmor %vm2739, %vm2740
      %v2742 = vsel %vm2741, %v2734, %v2738
      %v2743 = vand.u32 2147483647, %v2250
      %vm2744 = vcmp.eq.f32.partialorder %v2743, 8.507059e+37
      %v2745 = vand.u32 %v2250, 2147483648
      %v2746 = vor.u32 1.1754944e-38, %v2745
      %v2747 = vsel %vm2744, %v2746, %v2742
      %v2748 = vmul.f32 1.0, %v2747
      %v2749 = vrcp.pop %v2251
      %v2750 = vmul.f32 %v2251, %v2749
      %v2751 = vsub.f32 1.0, %v2750
      %v2752 = vmul.f32 %v2749, %v2751
      %v2753 = vadd.f32 %v2749, %v2752
      %vm2754 = vweird.f32 %v2251
      %vm2755 = vweird.f32 %v2749
      %vm2756 = vmor %vm2754, %vm2755
      %v2757 = vsel %vm2756, %v2749, %v2753
      %v2758 = vand.u32 2147483647, %v2251
      %vm2759 = vcmp.eq.f32.partialorder %v2758, 8.507059e+37
      %v2760 = vand.u32 %v2251, 2147483648
      %v2761 = vor.u32 1.1754944e-38, %v2760
      %v2762 = vsel %vm2759, %v2761, %v2757
      %v2763 = vmul.f32 1.0, %v2762
      %v2764 = vrcp.pop %v2252
      %v2765 = vmul.f32 %v2252, %v2764
      %v2766 = vsub.f32 1.0, %v2765
      %v2767 = vmul.f32 %v2764, %v2766
      %v2768 = vadd.f32 %v2764, %v2767
      %vm2769 = vweird.f32 %v2252
      %vm2770 = vweird.f32 %v2764
      %vm2771 = vmor %vm2769, %vm2770
      %v2772 = vsel %vm2771, %v2764, %v2768
      %v2773 = vand.u32 2147483647, %v2252
      %vm2774 = vcmp.eq.f32.partialorder %v2773, 8.507059e+37
      %v2775 = vand.u32 %v2252, 2147483648
      %v2776 = vor.u32 1.1754944e-38, %v2775
      %v2777 = vsel %vm2774, %v2776, %v2772
      %v2778 = vmul.f32 1.0, %v2777
      %v2779 = vrcp.pop %v2253
      %v2780 = vmul.f32 %v2253, %v2779
      %v2781 = vsub.f32 1.0, %v2780
      %v2782 = vmul.f32 %v2779, %v2781
      %v2783 = vadd.f32 %v2779, %v2782
      %vm2784 = vweird.f32 %v2253
      %vm2785 = vweird.f32 %v2779
      %vm2786 = vmor %vm2784, %vm2785
      %v2787 = vsel %vm2786, %v2779, %v2783
      %v2788 = vand.u32 2147483647, %v2253
      %vm2789 = vcmp.eq.f32.partialorder %v2788, 8.507059e+37
      %v2790 = vand.u32 %v2253, 2147483648
      %v2791 = vor.u32 1.1754944e-38, %v2790
      %v2792 = vsel %vm2789, %v2791, %v2787
      %v2793 = vmul.f32 1.0, %v2792
      %v2794 = vrcp.pop %v2254
      %v2795 = vmul.f32 %v2254, %v2794
      %v2796 = vsub.f32 1.0, %v2795
      %v2797 = vmul.f32 %v2794, %v2796
      %v2798 = vadd.f32 %v2794, %v2797
      %vm2799 = vweird.f32 %v2254
      %vm2800 = vweird.f32 %v2794
      %vm2801 = vmor %vm2799, %vm2800
      %v2802 = vsel %vm2801, %v2794, %v2798
      %v2803 = vand.u32 2147483647, %v2254
      %vm2804 = vcmp.eq.f32.partialorder %v2803, 8.507059e+37
      %v2805 = vand.u32 %v2254, 2147483648
      %v2806 = vor.u32 1.1754944e-38, %v2805
      %v2807 = vsel %vm2804, %v2806, %v2802
      %v2808 = vmul.f32 1.0, %v2807
      %v2809 = vrcp.pop %v2255
      %v2810 = vmul.f32 %v2255, %v2809
      %v2811 = vsub.f32 1.0, %v2810
      %v2812 = vmul.f32 %v2809, %v2811
      %v2813 = vadd.f32 %v2809, %v2812
      %vm2814 = vweird.f32 %v2255
      %vm2815 = vweird.f32 %v2809
      %vm2816 = vmor %vm2814, %vm2815
      %v2817 = vsel %vm2816, %v2809, %v2813
      %v2818 = vand.u32 2147483647, %v2255
      %vm2819 = vcmp.eq.f32.partialorder %v2818, 8.507059e+37
      %v2820 = vand.u32 %v2255, 2147483648
      %v2821 = vor.u32 1.1754944e-38, %v2820
      %v2822 = vsel %vm2819, %v2821, %v2817
      %v2823 = vmul.f32 1.0, %v2822
      %v2824 = vrcp.pop %v2256
      %v2825 = vmul.f32 %v2256, %v2824
      %v2826 = vsub.f32 1.0, %v2825
      %v2827 = vmul.f32 %v2824, %v2826
      %v2828 = vadd.f32 %v2824, %v2827
      %vm2829 = vweird.f32 %v2256
      %vm2830 = vweird.f32 %v2824
      %vm2831 = vmor %vm2829, %vm2830
      %v2832 = vsel %vm2831, %v2824, %v2828
      %v2833 = vand.u32 2147483647, %v2256
      %vm2834 = vcmp.eq.f32.partialorder %v2833, 8.507059e+37
      %v2835 = vand.u32 %v2256, 2147483648
      %v2836 = vor.u32 1.1754944e-38, %v2835
      %v2837 = vsel %vm2834, %v2836, %v2832
      %v2838 = vmul.f32 1.0, %v2837
      %v2839 = vrcp.pop %v2257
      %v2840 = vmul.f32 %v2257, %v2839
      %v2841 = vsub.f32 1.0, %v2840
      %v2842 = vmul.f32 %v2839, %v2841
      %v2843 = vadd.f32 %v2839, %v2842
      %vm2844 = vweird.f32 %v2257
      %vm2845 = vweird.f32 %v2839
      %vm2846 = vmor %vm2844, %vm2845
      %v2847 = vsel %vm2846, %v2839, %v2843
      %v2848 = vand.u32 2147483647, %v2257
      %vm2849 = vcmp.eq.f32.partialorder %v2848, 8.507059e+37
      %v2850 = vand.u32 %v2257, 2147483648
      %v2851 = vor.u32 1.1754944e-38, %v2850
      %v2852 = vsel %vm2849, %v2851, %v2847
      %v2853 = vmul.f32 1.0, %v2852
      %v2854 = vrcp.pop %v2258
      %v2855 = vmul.f32 %v2258, %v2854
      %v2856 = vsub.f32 1.0, %v2855
      %v2857 = vmul.f32 %v2854, %v2856
      %v2858 = vadd.f32 %v2854, %v2857
      %vm2859 = vweird.f32 %v2258
      %vm2860 = vweird.f32 %v2854
      %vm2861 = vmor %vm2859, %vm2860
      %v2862 = vsel %vm2861, %v2854, %v2858
      %v2863 = vand.u32 2147483647, %v2258
      %vm2864 = vcmp.eq.f32.partialorder %v2863, 8.507059e+37
      %v2865 = vand.u32 %v2258, 2147483648
      %v2866 = vor.u32 1.1754944e-38, %v2865
      %v2867 = vsel %vm2864, %v2866, %v2862
      %v2868 = vmul.f32 1.0, %v2867
      %v2869 = vrcp.pop %v2259
      %v2870 = vmul.f32 %v2259, %v2869
      %v2871 = vsub.f32 1.0, %v2870
      %v2872 = vmul.f32 %v2869, %v2871
      %v2873 = vadd.f32 %v2869, %v2872
      %vm2874 = vweird.f32 %v2259
      %vm2875 = vweird.f32 %v2869
      %vm2876 = vmor %vm2874, %vm2875
      %v2877 = vsel %vm2876, %v2869, %v2873
      %v2878 = vand.u32 2147483647, %v2259
      %vm2879 = vcmp.eq.f32.partialorder %v2878, 8.507059e+37
      %v2880 = vand.u32 %v2259, 2147483648
      %v2881 = vor.u32 1.1754944e-38, %v2880
      %v2882 = vsel %vm2879, %v2881, %v2877
      %v2883 = vmul.f32 1.0, %v2882
      %v2884 = vrcp.pop %v2260
      %v2885 = vmul.f32 %v2260, %v2884
      %v2886 = vsub.f32 1.0, %v2885
      %v2887 = vmul.f32 %v2884, %v2886
      %v2888 = vadd.f32 %v2884, %v2887
      %vm2889 = vweird.f32 %v2260
      %vm2890 = vweird.f32 %v2884
      %vm2891 = vmor %vm2889, %vm2890
      %v2892 = vsel %vm2891, %v2884, %v2888
      %v2893 = vand.u32 2147483647, %v2260
      %vm2894 = vcmp.eq.f32.partialorder %v2893, 8.507059e+37
      %v2895 = vand.u32 %v2260, 2147483648
      %v2896 = vor.u32 1.1754944e-38, %v2895
      %v2897 = vsel %vm2894, %v2896, %v2892
      %v2898 = vmul.f32 1.0, %v2897
      %v2899 = vrcp.pop %v2261
      %v2900 = vmul.f32 %v2261, %v2899
      %v2901 = vsub.f32 1.0, %v2900
      %v2902 = vmul.f32 %v2899, %v2901
      %v2903 = vadd.f32 %v2899, %v2902
      %vm2904 = vweird.f32 %v2261
      %vm2905 = vweird.f32 %v2899
      %vm2906 = vmor %vm2904, %vm2905
      %v2907 = vsel %vm2906, %v2899, %v2903
      %v2908 = vand.u32 2147483647, %v2261
      %vm2909 = vcmp.eq.f32.partialorder %v2908, 8.507059e+37
      %v2910 = vand.u32 %v2261, 2147483648
      %v2911 = vor.u32 1.1754944e-38, %v2910
      %v2912 = vsel %vm2909, %v2911, %v2907
      %v2913 = vmul.f32 1.0, %v2912
      %v2914 = vrcp.pop %v2262
      %v2915 = vmul.f32 %v2262, %v2914
      %v2916 = vsub.f32 1.0, %v2915
      %v2917 = vmul.f32 %v2914, %v2916
      %v2918 = vadd.f32 %v2914, %v2917
      %vm2919 = vweird.f32 %v2262
      %vm2920 = vweird.f32 %v2914
      %vm2921 = vmor %vm2919, %vm2920
      %v2922 = vsel %vm2921, %v2914, %v2918
      %v2923 = vand.u32 2147483647, %v2262
      %vm2924 = vcmp.eq.f32.partialorder %v2923, 8.507059e+37
      %v2925 = vand.u32 %v2262, 2147483648
      %v2926 = vor.u32 1.1754944e-38, %v2925
      %v2927 = vsel %vm2924, %v2926, %v2922
      %v2928 = vmul.f32 1.0, %v2927
      %v2929 = vrcp.pop %v2263
      %v2930 = vmul.f32 %v2263, %v2929
      %v2931 = vsub.f32 1.0, %v2930
      %v2932 = vmul.f32 %v2929, %v2931
      %v2933 = vadd.f32 %v2929, %v2932
      %vm2934 = vweird.f32 %v2263
      %vm2935 = vweird.f32 %v2929
      %vm2936 = vmor %vm2934, %vm2935
      %v2937 = vsel %vm2936, %v2929, %v2933
      %v2938 = vand.u32 2147483647, %v2263
      %vm2939 = vcmp.eq.f32.partialorder %v2938, 8.507059e+37
      %v2940 = vand.u32 %v2263, 2147483648
      %v2941 = vor.u32 1.1754944e-38, %v2940
      %v2942 = vsel %vm2939, %v2941, %v2937
      %v2943 = vmul.f32 1.0, %v2942
      %v2944 = vrcp.pop %v2264
      %v2945 = vmul.f32 %v2264, %v2944
      %v2946 = vsub.f32 1.0, %v2945
      %v2947 = vmul.f32 %v2944, %v2946
      %v2948 = vadd.f32 %v2944, %v2947
      %vm2949 = vweird.f32 %v2264
      %vm2950 = vweird.f32 %v2944
      %vm2951 = vmor %vm2949, %vm2950
      %v2952 = vsel %vm2951, %v2944, %v2948
      %v2953 = vand.u32 2147483647, %v2264
      %vm2954 = vcmp.eq.f32.partialorder %v2953, 8.507059e+37
      %v2955 = vand.u32 %v2264, 2147483648
      %v2956 = vor.u32 1.1754944e-38, %v2955
      %v2957 = vsel %vm2954, %v2956, %v2952
      %v2958 = vmul.f32 1.0, %v2957
      %v2959 = vrcp.pop %v2265
      %v2960 = vmul.f32 %v2265, %v2959
      %v2961 = vsub.f32 1.0, %v2960
      %v2962 = vmul.f32 %v2959, %v2961
      %v2963 = vadd.f32 %v2959, %v2962
      %vm2964 = vweird.f32 %v2265
      %vm2965 = vweird.f32 %v2959
      %vm2966 = vmor %vm2964, %vm2965
      %v2967 = vsel %vm2966, %v2959, %v2963
      %v2968 = vand.u32 2147483647, %v2265
      %vm2969 = vcmp.eq.f32.partialorder %v2968, 8.507059e+37
      %v2970 = vand.u32 %v2265, 2147483648
      %v2971 = vor.u32 1.1754944e-38, %v2970
      %v2972 = vsel %vm2969, %v2971, %v2967
      %v2973 = vmul.f32 1.0, %v2972
      %v2974 = vrcp.pop %v2266
      %v2975 = vmul.f32 %v2266, %v2974
      %v2976 = vsub.f32 1.0, %v2975
      %v2977 = vmul.f32 %v2974, %v2976
      %v2978 = vadd.f32 %v2974, %v2977
      %vm2979 = vweird.f32 %v2266
      %vm2980 = vweird.f32 %v2974
      %vm2981 = vmor %vm2979, %vm2980
      %v2982 = vsel %vm2981, %v2974, %v2978
      %v2983 = vand.u32 2147483647, %v2266
      %vm2984 = vcmp.eq.f32.partialorder %v2983, 8.507059e+37
      %v2985 = vand.u32 %v2266, 2147483648
      %v2986 = vor.u32 1.1754944e-38, %v2985
      %v2987 = vsel %vm2984, %v2986, %v2982
      %v2988 = vmul.f32 1.0, %v2987
      %v2989 = vrcp.pop %v2267
      %v2990 = vmul.f32 %v2267, %v2989
      %v2991 = vsub.f32 1.0, %v2990
      %v2992 = vmul.f32 %v2989, %v2991
      %v2993 = vadd.f32 %v2989, %v2992
      %vm2994 = vweird.f32 %v2267
      %vm2995 = vweird.f32 %v2989
      %vm2996 = vmor %vm2994, %vm2995
      %v2997 = vsel %vm2996, %v2989, %v2993
      %v2998 = vand.u32 2147483647, %v2267
      %vm2999 = vcmp.eq.f32.partialorder %v2998, 8.507059e+37
      %v3000 = vand.u32 %v2267, 2147483648
      %v3001 = vor.u32 1.1754944e-38, %v3000
      %v3002 = vsel %vm2999, %v3001, %v2997
      %v3003 = vmul.f32 1.0, %v3002
      %v3004 = vrcp.pop %v2268
      %v3005 = vmul.f32 %v2268, %v3004
      %v3006 = vsub.f32 1.0, %v3005
      %v3007 = vmul.f32 %v3004, %v3006
      %v3008 = vadd.f32 %v3004, %v3007
      %vm3009 = vweird.f32 %v2268
      %vm3010 = vweird.f32 %v3004
      %vm3011 = vmor %vm3009, %vm3010
      %v3012 = vsel %vm3011, %v3004, %v3008
      %v3013 = vand.u32 2147483647, %v2268
      %vm3014 = vcmp.eq.f32.partialorder %v3013, 8.507059e+37
      %v3015 = vand.u32 %v2268, 2147483648
      %v3016 = vor.u32 1.1754944e-38, %v3015
      %v3017 = vsel %vm3014, %v3016, %v3012
      %v3018 = vmul.f32 1.0, %v3017
      %v3019 = vrcp.pop %v2269
      %v3020 = vmul.f32 %v2269, %v3019
      %v3021 = vsub.f32 1.0, %v3020
      %v3022 = vmul.f32 %v3019, %v3021
      %v3023 = vadd.f32 %v3019, %v3022
      %vm3024 = vweird.f32 %v2269
      %vm3025 = vweird.f32 %v3019
      %vm3026 = vmor %vm3024, %vm3025
      %v3027 = vsel %vm3026, %v3019, %v3023
      %v3028 = vand.u32 2147483647, %v2269
      %vm3029 = vcmp.eq.f32.partialorder %v3028, 8.507059e+37
      %v3030 = vand.u32 %v2269, 2147483648
      %v3031 = vor.u32 1.1754944e-38, %v3030
      %v3032 = vsel %vm3029, %v3031, %v3027
      %v3033 = vmul.f32 1.0, %v3032
      %v3034 = vrcp.pop %v2270
      %v3035 = vmul.f32 %v2270, %v3034
      %v3036 = vsub.f32 1.0, %v3035
      %v3037 = vmul.f32 %v3034, %v3036
      %v3038 = vadd.f32 %v3034, %v3037
      %vm3039 = vweird.f32 %v2270
      %vm3040 = vweird.f32 %v3034
      %vm3041 = vmor %vm3039, %vm3040
      %v3042 = vsel %vm3041, %v3034, %v3038
      %v3043 = vand.u32 2147483647, %v2270
      %vm3044 = vcmp.eq.f32.partialorder %v3043, 8.507059e+37
      %v3045 = vand.u32 %v2270, 2147483648
      %v3046 = vor.u32 1.1754944e-38, %v3045
      %v3047 = vsel %vm3044, %v3046, %v3042
      %v3048 = vmul.f32 1.0, %v3047
      %v3049 = vrcp.pop %v2271
      %v3050 = vmul.f32 %v2271, %v3049
      %v3051 = vsub.f32 1.0, %v3050
      %v3052 = vmul.f32 %v3049, %v3051
      %v3053 = vadd.f32 %v3049, %v3052
      %vm3054 = vweird.f32 %v2271
      %vm3055 = vweird.f32 %v3049
      %vm3056 = vmor %vm3054, %vm3055
      %v3057 = vsel %vm3056, %v3049, %v3053
      %v3058 = vand.u32 2147483647, %v2271
      %vm3059 = vcmp.eq.f32.partialorder %v3058, 8.507059e+37
      %v3060 = vand.u32 %v2271, 2147483648
      %v3061 = vor.u32 1.1754944e-38, %v3060
      %v3062 = vsel %vm3059, %v3061, %v3057
      %v3063 = vmul.f32 1.0, %v3062
      %v3064 = vrcp.pop %v2272
      %v3065 = vmul.f32 %v2272, %v3064
      %v3066 = vsub.f32 1.0, %v3065
      %v3067 = vmul.f32 %v3064, %v3066
      %v3068 = vadd.f32 %v3064, %v3067
      %vm3069 = vweird.f32 %v2272
      %vm3070 = vweird.f32 %v3064
      %vm3071 = vmor %vm3069, %vm3070
      %v3072 = vsel %vm3071, %v3064, %v3068
      %v3073 = vand.u32 2147483647, %v2272
      %vm3074 = vcmp.eq.f32.partialorder %v3073, 8.507059e+37
      %v3075 = vand.u32 %v2272, 2147483648
      %v3076 = vor.u32 1.1754944e-38, %v3075
      %v3077 = vsel %vm3074, %v3076, %v3072
      %v3078 = vmul.f32 1.0, %v3077
      %v3079 = vrcp.pop %v2273
      %v3080 = vmul.f32 %v2273, %v3079
      %v3081 = vsub.f32 1.0, %v3080
      %v3082 = vmul.f32 %v3079, %v3081
      %v3083 = vadd.f32 %v3079, %v3082
      %vm3084 = vweird.f32 %v2273
      %vm3085 = vweird.f32 %v3079
      %vm3086 = vmor %vm3084, %vm3085
      %v3087 = vsel %vm3086, %v3079, %v3083
      %v3088 = vand.u32 2147483647, %v2273
      %vm3089 = vcmp.eq.f32.partialorder %v3088, 8.507059e+37
      %v3090 = vand.u32 %v2273, 2147483648
      %v3091 = vor.u32 1.1754944e-38, %v3090
      %v3092 = vsel %vm3089, %v3091, %v3087
      %v3093 = vmul.f32 1.0, %v3092
      %v3094 = vrcp.pop %v2274
      %v3095 = vmul.f32 %v2274, %v3094
      %v3096 = vsub.f32 1.0, %v3095
      %v3097 = vmul.f32 %v3094, %v3096
      %v3098 = vadd.f32 %v3094, %v3097
      %vm3099 = vweird.f32 %v2274
      %vm3100 = vweird.f32 %v3094
      %vm3101 = vmor %vm3099, %vm3100
      %v3102 = vsel %vm3101, %v3094, %v3098
      %v3103 = vand.u32 2147483647, %v2274
      %vm3104 = vcmp.eq.f32.partialorder %v3103, 8.507059e+37
      %v3105 = vand.u32 %v2274, 2147483648
      %v3106 = vor.u32 1.1754944e-38, %v3105
      %v3107 = vsel %vm3104, %v3106, %v3102
      %v3108 = vmul.f32 1.0, %v3107
      %v3109 = vrcp.pop %v2275
      %v3110 = vmul.f32 %v2275, %v3109
      %v3111 = vsub.f32 1.0, %v3110
      %v3112 = vmul.f32 %v3109, %v3111
      %v3113 = vadd.f32 %v3109, %v3112
      %vm3114 = vweird.f32 %v2275
      %vm3115 = vweird.f32 %v3109
      %vm3116 = vmor %vm3114, %vm3115
      %v3117 = vsel %vm3116, %v3109, %v3113
      %v3118 = vand.u32 2147483647, %v2275
      %vm3119 = vcmp.eq.f32.partialorder %v3118, 8.507059e+37
      %v3120 = vand.u32 %v2275, 2147483648
      %v3121 = vor.u32 1.1754944e-38, %v3120
      %v3122 = vsel %vm3119, %v3121, %v3117
      %v3123 = vmul.f32 1.0, %v3122
      %v3124 = vrcp.pop %v2276
      %v3125 = vmul.f32 %v2276, %v3124
      %v3126 = vsub.f32 1.0, %v3125
      %v3127 = vmul.f32 %v3124, %v3126
      %v3128 = vadd.f32 %v3124, %v3127
      %vm3129 = vweird.f32 %v2276
      %vm3130 = vweird.f32 %v3124
      %vm3131 = vmor %vm3129, %vm3130
      %v3132 = vsel %vm3131, %v3124, %v3128
      %v3133 = vand.u32 2147483647, %v2276
      %vm3134 = vcmp.eq.f32.partialorder %v3133, 8.507059e+37
      %v3135 = vand.u32 %v2276, 2147483648
      %v3136 = vor.u32 1.1754944e-38, %v3135
      %v3137 = vsel %vm3134, %v3136, %v3132
      %v3138 = vmul.f32 1.0, %v3137
      %v3139 = vrcp.pop %v2277
      %v3140 = vmul.f32 %v2277, %v3139
      %v3141 = vsub.f32 1.0, %v3140
      %v3142 = vmul.f32 %v3139, %v3141
      %v3143 = vadd.f32 %v3139, %v3142
      %vm3144 = vweird.f32 %v2277
      %vm3145 = vweird.f32 %v3139
      %vm3146 = vmor %vm3144, %vm3145
      %v3147 = vsel %vm3146, %v3139, %v3143
      %v3148 = vand.u32 2147483647, %v2277
      %vm3149 = vcmp.eq.f32.partialorder %v3148, 8.507059e+37
      %v3150 = vand.u32 %v2277, 2147483648
      %v3151 = vor.u32 1.1754944e-38, %v3150
      %v3152 = vsel %vm3149, %v3151, %v3147
      %v3153 = vmul.f32 1.0, %v3152
      %v3154 = vrcp.pop %v2278
      %v3155 = vmul.f32 %v2278, %v3154
      %v3156 = vsub.f32 1.0, %v3155
      %v3157 = vmul.f32 %v3154, %v3156
      %v3158 = vadd.f32 %v3154, %v3157
      %vm3159 = vweird.f32 %v2278
      %vm3160 = vweird.f32 %v3154
      %vm3161 = vmor %vm3159, %vm3160
      %v3162 = vsel %vm3161, %v3154, %v3158
      %v3163 = vand.u32 2147483647, %v2278
      %vm3164 = vcmp.eq.f32.partialorder %v3163, 8.507059e+37
      %v3165 = vand.u32 %v2278, 2147483648
      %v3166 = vor.u32 1.1754944e-38, %v3165
      %v3167 = vsel %vm3164, %v3166, %v3162
      %v3168 = vmul.f32 1.0, %v3167
      %v3169 = vrcp.pop %v2279
      %v3170 = vmul.f32 %v2279, %v3169
      %v3171 = vsub.f32 1.0, %v3170
      %v3172 = vmul.f32 %v3169, %v3171
      %v3173 = vadd.f32 %v3169, %v3172
      %vm3174 = vweird.f32 %v2279
      %vm3175 = vweird.f32 %v3169
      %vm3176 = vmor %vm3174, %vm3175
      %v3177 = vsel %vm3176, %v3169, %v3173
      %v3178 = vand.u32 2147483647, %v2279
      %vm3179 = vcmp.eq.f32.partialorder %v3178, 8.507059e+37
      %v3180 = vand.u32 %v2279, 2147483648
      %v3181 = vor.u32 1.1754944e-38, %v3180
      %v3182 = vsel %vm3179, %v3181, %v3177
      %v3183 = vmul.f32 1.0, %v3182
      %v3184 = vrcp.pop %v2280
      %v3185 = vmul.f32 %v2280, %v3184
      %v3186 = vsub.f32 1.0, %v3185
      %v3187 = vmul.f32 %v3184, %v3186
      %v3188 = vadd.f32 %v3184, %v3187
      %vm3189 = vweird.f32 %v2280
      %vm3190 = vweird.f32 %v3184
      %vm3191 = vmor %vm3189, %vm3190
      %v3192 = vsel %vm3191, %v3184, %v3188
      %v3193 = vand.u32 2147483647, %v2280
      %vm3194 = vcmp.eq.f32.partialorder %v3193, 8.507059e+37
      %v3195 = vand.u32 %v2280, 2147483648
      %v3196 = vor.u32 1.1754944e-38, %v3195
      %v3197 = vsel %vm3194, %v3196, %v3192
      %v3198 = vmul.f32 1.0, %v3197
      %v3199 = vrcp.pop %v2281
      %v3200 = vmul.f32 %v2281, %v3199
      %v3201 = vsub.f32 1.0, %v3200
      %v3202 = vmul.f32 %v3199, %v3201
      %v3203 = vadd.f32 %v3199, %v3202
      %vm3204 = vweird.f32 %v2281
      %vm3205 = vweird.f32 %v3199
      %vm3206 = vmor %vm3204, %vm3205
      %v3207 = vsel %vm3206, %v3199, %v3203
      %v3208 = vand.u32 2147483647, %v2281
      %vm3209 = vcmp.eq.f32.partialorder %v3208, 8.507059e+37
      %v3210 = vand.u32 %v2281, 2147483648
      %v3211 = vor.u32 1.1754944e-38, %v3210
      %v3212 = vsel %vm3209, %v3211, %v3207
      %v3213 = vmul.f32 1.0, %v3212
      %v3214 = vrcp.pop %v2282
      %v3215 = vmul.f32 %v2282, %v3214
      %v3216 = vsub.f32 1.0, %v3215
      %v3217 = vmul.f32 %v3214, %v3216
      %v3218 = vadd.f32 %v3214, %v3217
      %vm3219 = vweird.f32 %v2282
      %vm3220 = vweird.f32 %v3214
      %vm3221 = vmor %vm3219, %vm3220
      %v3222 = vsel %vm3221, %v3214, %v3218
      %v3223 = vand.u32 2147483647, %v2282
      %vm3224 = vcmp.eq.f32.partialorder %v3223, 8.507059e+37
      %v3225 = vand.u32 %v2282, 2147483648
      %v3226 = vor.u32 1.1754944e-38, %v3225
      %v3227 = vsel %vm3224, %v3226, %v3222
      %v3228 = vmul.f32 1.0, %v3227
      %v3229 = vrcp.pop %v2283
      %v3230 = vmul.f32 %v2283, %v3229
      %v3231 = vsub.f32 1.0, %v3230
      %v3232 = vmul.f32 %v3229, %v3231
      %v3233 = vadd.f32 %v3229, %v3232
      %vm3234 = vweird.f32 %v2283
      %vm3235 = vweird.f32 %v3229
      %vm3236 = vmor %vm3234, %vm3235
      %v3237 = vsel %vm3236, %v3229, %v3233
      %v3238 = vand.u32 2147483647, %v2283
      %vm3239 = vcmp.eq.f32.partialorder %v3238, 8.507059e+37
      %v3240 = vand.u32 %v2283, 2147483648
      %v3241 = vor.u32 1.1754944e-38, %v3240
      %v3242 = vsel %vm3239, %v3241, %v3237
      %v3243 = vmul.f32 1.0, %v3242
      %v3244 = vpack.c.bf16 %v2313, %v2298
      %v3245 = vpack.c.bf16 %v2343, %v2328
      %v3246 = vpack.c.bf16 %v2373, %v2358
      %v3247 = vpack.c.bf16 %v2403, %v2388
      %v3248 = vpack.c.bf16 %v2433, %v2418
      %v3249 = vpack.c.bf16 %v2463, %v2448
      %v3250 = vpack.c.bf16 %v2493, %v2478
      %v3251 = vpack.c.bf16 %v2523, %v2508
      %v3252 = vpack.c.bf16 %v2553, %v2538
      %v3253 = vpack.c.bf16 %v2583, %v2568
      %v3254 = vpack.c.bf16 %v2613, %v2598
      %v3255 = vpack.c.bf16 %v2643, %v2628
      %v3256 = vpack.c.bf16 %v2673, %v2658
      %v3257 = vpack.c.bf16 %v2703, %v2688
      %v3258 = vpack.c.bf16 %v2733, %v2718
      %v3259 = vpack.c.bf16 %v2763, %v2748
      %v3260 = vpack.c.bf16 %v2793, %v2778
      %v3261 = vpack.c.bf16 %v2823, %v2808
      %v3262 = vpack.c.bf16 %v2853, %v2838
      %v3263 = vpack.c.bf16 %v2883, %v2868
      %v3264 = vpack.c.bf16 %v2913, %v2898
      %v3265 = vpack.c.bf16 %v2943, %v2928
      %v3266 = vpack.c.bf16 %v2973, %v2958
      %v3267 = vpack.c.bf16 %v3003, %v2988
      %v3268 = vpack.c.bf16 %v3033, %v3018
      %v3269 = vpack.c.bf16 %v3063, %v3048
      %v3270 = vpack.c.bf16 %v3093, %v3078
      %v3271 = vpack.c.bf16 %v3123, %v3108
      %v3272 = vpack.c.bf16 %v3153, %v3138
      %v3273 = vpack.c.bf16 %v3183, %v3168
      %v3274 = vpack.c.bf16 %v3213, %v3198
      %v3275 = vpack.c.bf16 %v3243, %v3228
      %v3276 = vld [vmem:[%s7] sm:$0xf]
      %v3277 = vld [vmem:[%s7 + $0x4] sm:$0xf]
      %v3278 = vld [vmem:[%s8] sm:$0x1]
      %v3280 = vperm.slane %v3278, 0
      %v3284 = vunpack.c.l.b16 %v3276
      %v3285 = vunpack.c.l.b16 %v3277
      %v3286 = vpack.c.b16 %v3285, %v3284
      %vm3288 = vcmask 130048
      %v3290 = vsel %vm3288, %v3244, 0
      %v3293 = vsel %vm3288, %v3245, 0
      %v3296 = vsel %vm3288, %v3246, 0
      %v3299 = vsel %vm3288, %v3247, 0
      %v3302 = vsel %vm3288, %v3248, 0
      %v3305 = vsel %vm3288, %v3249, 0
      %v3308 = vsel %vm3288, %v3250, 0
      %v3311 = vsel %vm3288, %v3251, 0
      %v3314 = vsel %vm3288, %v3252, 0
      %v3317 = vsel %vm3288, %v3253, 0
      %v3320 = vsel %vm3288, %v3254, 0
      %v3323 = vsel %vm3288, %v3255, 0
      %v3326 = vsel %vm3288, %v3256, 0
      %v3329 = vsel %vm3288, %v3257, 0
      %v3332 = vsel %vm3288, %v3258, 0
      %v3335 = vsel %vm3288, %v3259, 0
      %v3338 = vsel %vm3288, %v3260, 0
      %v3341 = vsel %vm3288, %v3261, 0
      %v3344 = vsel %vm3288, %v3262, 0
      %v3347 = vsel %vm3288, %v3263, 0
      %v3350 = vsel %vm3288, %v3264, 0
      %v3353 = vsel %vm3288, %v3265, 0
      %v3356 = vsel %vm3288, %v3266, 0
      %v3359 = vsel %vm3288, %v3267, 0
      %v3362 = vsel %vm3288, %v3268, 0
      %v3365 = vsel %vm3288, %v3269, 0
      %v3368 = vsel %vm3288, %v3270, 0
      %v3371 = vsel %vm3288, %v3271, 0
      %v3374 = vsel %vm3288, %v3272, 0
      %v3377 = vsel %vm3288, %v3273, 0
      %v3380 = vsel %vm3288, %v3274, 0
      %v3383 = vsel %vm3288, %v3275, 0
      %3385 = vmatpush.bf16.msra.mxu0 0
      %3386 = vmatpush.bf16.msra.mxu0 0
      %3387 = vmatpush.bf16.msra.mxu0 0
      %3388 = vmatpush.bf16.msra.mxu0 0
      %3389 = vmatpush.bf16.msra.mxu0 0
      %3390 = vmatpush.bf16.msra.mxu0 0
      %3391 = vmatpush.bf16.msra.mxu0 0
      %3392 = vmatpush.bf16.msra.mxu0 %v3286
      %3393 = vmatmul.bf16.gmra.mxu0 %v3290
      %v3394 = vpop.f32.mrf.mxu0
      %v3395 = vadd.f32 %v3280, %v3394
      %v3396 = vpop.f32.mrf.mxu0
      %v3397 = vadd.f32 %v3280, %v3396
      %3398 = vmatmul.bf16.gmra.mxu0 %v3293
      %v3399 = vpop.f32.mrf.mxu0
      %v3400 = vadd.f32 %v3280, %v3399
      %v3401 = vpop.f32.mrf.mxu0
      %v3402 = vadd.f32 %v3280, %v3401
      %3403 = vmatmul.bf16.gmra.mxu0 %v3296
      %v3404 = vpop.f32.mrf.mxu0
      %v3405 = vadd.f32 %v3280, %v3404
      %v3406 = vpop.f32.mrf.mxu0
      %v3407 = vadd.f32 %v3280, %v3406
      %3408 = vmatmul.bf16.gmra.mxu0 %v3299
      %v3409 = vpop.f32.mrf.mxu0
      %v3410 = vadd.f32 %v3280, %v3409
      %v3411 = vpop.f32.mrf.mxu0
      %v3412 = vadd.f32 %v3280, %v3411
      %3413 = vmatmul.bf16.gmra.mxu0 %v3302
      %v3414 = vpop.f32.mrf.mxu0
      %v3415 = vadd.f32 %v3280, %v3414
      %v3416 = vpop.f32.mrf.mxu0
      %v3417 = vadd.f32 %v3280, %v3416
      %3418 = vmatmul.bf16.gmra.mxu0 %v3305
      %v3419 = vpop.f32.mrf.mxu0
      %v3420 = vadd.f32 %v3280, %v3419
      %v3421 = vpop.f32.mrf.mxu0
      %v3422 = vadd.f32 %v3280, %v3421
      %3423 = vmatmul.bf16.gmra.mxu0 %v3308
      %v3424 = vpop.f32.mrf.mxu0
      %v3425 = vadd.f32 %v3280, %v3424
      %v3426 = vpop.f32.mrf.mxu0
      %v3427 = vadd.f32 %v3280, %v3426
      %3428 = vmatmul.bf16.gmra.mxu0 %v3311
      %v3429 = vpop.f32.mrf.mxu0
      %v3430 = vadd.f32 %v3280, %v3429
      %v3431 = vpop.f32.mrf.mxu0
      %v3432 = vadd.f32 %v3280, %v3431
      %3433 = vmatmul.bf16.gmra.mxu0 %v3314
      %v3434 = vpop.f32.mrf.mxu0
      %v3435 = vadd.f32 %v3280, %v3434
      %v3436 = vpop.f32.mrf.mxu0
      %v3437 = vadd.f32 %v3280, %v3436
      %3438 = vmatmul.bf16.gmra.mxu0 %v3317
      %v3439 = vpop.f32.mrf.mxu0
      %v3440 = vadd.f32 %v3280, %v3439
      %v3441 = vpop.f32.mrf.mxu0
      %v3442 = vadd.f32 %v3280, %v3441
      %3443 = vmatmul.bf16.gmra.mxu0 %v3320
      %v3444 = vpop.f32.mrf.mxu0
      %v3445 = vadd.f32 %v3280, %v3444
      %v3446 = vpop.f32.mrf.mxu0
      %v3447 = vadd.f32 %v3280, %v3446
      %3448 = vmatmul.bf16.gmra.mxu0 %v3323
      %v3449 = vpop.f32.mrf.mxu0
      %v3450 = vadd.f32 %v3280, %v3449
      %v3451 = vpop.f32.mrf.mxu0
      %v3452 = vadd.f32 %v3280, %v3451
      %3453 = vmatmul.bf16.gmra.mxu0 %v3326
      %v3454 = vpop.f32.mrf.mxu0
      %v3455 = vadd.f32 %v3280, %v3454
      %v3456 = vpop.f32.mrf.mxu0
      %v3457 = vadd.f32 %v3280, %v3456
      %3458 = vmatmul.bf16.gmra.mxu0 %v3329
      %v3459 = vpop.f32.mrf.mxu0
      %v3460 = vadd.f32 %v3280, %v3459
      %v3461 = vpop.f32.mrf.mxu0
      %v3462 = vadd.f32 %v3280, %v3461
      %3463 = vmatmul.bf16.gmra.mxu0 %v3332
      %v3464 = vpop.f32.mrf.mxu0
      %v3465 = vadd.f32 %v3280, %v3464
      %v3466 = vpop.f32.mrf.mxu0
      %v3467 = vadd.f32 %v3280, %v3466
      %3468 = vmatmul.bf16.gmra.mxu0 %v3335
      %v3469 = vpop.f32.mrf.mxu0
      %v3470 = vadd.f32 %v3280, %v3469
      %v3471 = vpop.f32.mrf.mxu0
      %v3472 = vadd.f32 %v3280, %v3471
      %3473 = vmatmul.bf16.gmra.mxu0 %v3338
      %v3474 = vpop.f32.mrf.mxu0
      %v3475 = vadd.f32 %v3280, %v3474
      %v3476 = vpop.f32.mrf.mxu0
      %v3477 = vadd.f32 %v3280, %v3476
      %3478 = vmatmul.bf16.gmra.mxu0 %v3341
      %v3479 = vpop.f32.mrf.mxu0
      %v3480 = vadd.f32 %v3280, %v3479
      %v3481 = vpop.f32.mrf.mxu0
      %v3482 = vadd.f32 %v3280, %v3481
      %3483 = vmatmul.bf16.gmra.mxu0 %v3344
      %v3484 = vpop.f32.mrf.mxu0
      %v3485 = vadd.f32 %v3280, %v3484
      %v3486 = vpop.f32.mrf.mxu0
      %v3487 = vadd.f32 %v3280, %v3486
      %3488 = vmatmul.bf16.gmra.mxu0 %v3347
      %v3489 = vpop.f32.mrf.mxu0
      %v3490 = vadd.f32 %v3280, %v3489
      %v3491 = vpop.f32.mrf.mxu0
      %v3492 = vadd.f32 %v3280, %v3491
      %3493 = vmatmul.bf16.gmra.mxu0 %v3350
      %v3494 = vpop.f32.mrf.mxu0
      %v3495 = vadd.f32 %v3280, %v3494
      %v3496 = vpop.f32.mrf.mxu0
      %v3497 = vadd.f32 %v3280, %v3496
      %3498 = vmatmul.bf16.gmra.mxu0 %v3353
      %v3499 = vpop.f32.mrf.mxu0
      %v3500 = vadd.f32 %v3280, %v3499
      %v3501 = vpop.f32.mrf.mxu0
      %v3502 = vadd.f32 %v3280, %v3501
      %3503 = vmatmul.bf16.gmra.mxu0 %v3356
      %v3504 = vpop.f32.mrf.mxu0
      %v3505 = vadd.f32 %v3280, %v3504
      %v3506 = vpop.f32.mrf.mxu0
      %v3507 = vadd.f32 %v3280, %v3506
      %3508 = vmatmul.bf16.gmra.mxu0 %v3359
      %v3509 = vpop.f32.mrf.mxu0
      %v3510 = vadd.f32 %v3280, %v3509
      %v3511 = vpop.f32.mrf.mxu0
      %v3512 = vadd.f32 %v3280, %v3511
      %3513 = vmatmul.bf16.gmra.mxu0 %v3362
      %v3514 = vpop.f32.mrf.mxu0
      %v3515 = vadd.f32 %v3280, %v3514
      %v3516 = vpop.f32.mrf.mxu0
      %v3517 = vadd.f32 %v3280, %v3516
      %3518 = vmatmul.bf16.gmra.mxu0 %v3365
      %v3519 = vpop.f32.mrf.mxu0
      %v3520 = vadd.f32 %v3280, %v3519
      %v3521 = vpop.f32.mrf.mxu0
      %v3522 = vadd.f32 %v3280, %v3521
      %3523 = vmatmul.bf16.gmra.mxu0 %v3368
      %v3524 = vpop.f32.mrf.mxu0
      %v3525 = vadd.f32 %v3280, %v3524
      %v3526 = vpop.f32.mrf.mxu0
      %v3527 = vadd.f32 %v3280, %v3526
      %3528 = vmatmul.bf16.gmra.mxu0 %v3371
      %v3529 = vpop.f32.mrf.mxu0
      %v3530 = vadd.f32 %v3280, %v3529
      %v3531 = vpop.f32.mrf.mxu0
      %v3532 = vadd.f32 %v3280, %v3531
      %3533 = vmatmul.bf16.gmra.mxu0 %v3374
      %v3534 = vpop.f32.mrf.mxu0
      %v3535 = vadd.f32 %v3280, %v3534
      %v3536 = vpop.f32.mrf.mxu0
      %v3537 = vadd.f32 %v3280, %v3536
      %3538 = vmatmul.bf16.gmra.mxu0 %v3377
      %v3539 = vpop.f32.mrf.mxu0
      %v3540 = vadd.f32 %v3280, %v3539
      %v3541 = vpop.f32.mrf.mxu0
      %v3542 = vadd.f32 %v3280, %v3541
      %3543 = vmatmul.bf16.gmra.mxu0 %v3380
      %v3544 = vpop.f32.mrf.mxu0
      %v3545 = vadd.f32 %v3280, %v3544
      %v3546 = vpop.f32.mrf.mxu0
      %v3547 = vadd.f32 %v3280, %v3546
      %3548 = vmatmul.bf16.gmra.mxu0 %v3383
      %v3549 = vpop.f32.mrf.mxu0
      %v3550 = vadd.f32 %v3280, %v3549
      %v3551 = vpop.f32.mrf.mxu0
      %v3552 = vadd.f32 %v3280, %v3551
      %3553 = vdwg.mxu0
      %v3554 = vmul.f32 %v3395, 0.999995
      %v3555 = vmul.f32 %v3397, 0.999995
      %v3556 = vmul.f32 %v3400, 0.999995
      %v3557 = vmul.f32 %v3402, 0.999995
      %v3558 = vmul.f32 %v3405, 0.999995
      %v3559 = vmul.f32 %v3407, 0.999995
      %v3560 = vmul.f32 %v3410, 0.999995
      %v3561 = vmul.f32 %v3412, 0.999995
      %v3562 = vmul.f32 %v3415, 0.999995
      %v3563 = vmul.f32 %v3417, 0.999995
      %v3564 = vmul.f32 %v3420, 0.999995
      %v3565 = vmul.f32 %v3422, 0.999995
      %v3566 = vmul.f32 %v3425, 0.999995
      %v3567 = vmul.f32 %v3427, 0.999995
      %v3568 = vmul.f32 %v3430, 0.999995
      %v3569 = vmul.f32 %v3432, 0.999995
      %v3570 = vmul.f32 %v3435, 0.999995
      %v3571 = vmul.f32 %v3437, 0.999995
      %v3572 = vmul.f32 %v3440, 0.999995
      %v3573 = vmul.f32 %v3442, 0.999995
      %v3574 = vmul.f32 %v3445, 0.999995
      %v3575 = vmul.f32 %v3447, 0.999995
      %v3576 = vmul.f32 %v3450, 0.999995
      %v3577 = vmul.f32 %v3452, 0.999995
      %v3578 = vmul.f32 %v3455, 0.999995
      %v3579 = vmul.f32 %v3457, 0.999995
      %v3580 = vmul.f32 %v3460, 0.999995
      %v3581 = vmul.f32 %v3462, 0.999995
      %v3582 = vmul.f32 %v3465, 0.999995
      %v3583 = vmul.f32 %v3467, 0.999995
      %v3584 = vmul.f32 %v3470, 0.999995
      %v3585 = vmul.f32 %v3472, 0.999995
      %v3586 = vmul.f32 %v3475, 0.999995
      %v3587 = vmul.f32 %v3477, 0.999995
      %v3588 = vmul.f32 %v3480, 0.999995
      %v3589 = vmul.f32 %v3482, 0.999995
      %v3590 = vmul.f32 %v3485, 0.999995
      %v3591 = vmul.f32 %v3487, 0.999995
      %v3592 = vmul.f32 %v3490, 0.999995
      %v3593 = vmul.f32 %v3492, 0.999995
      %v3594 = vmul.f32 %v3495, 0.999995
      %v3595 = vmul.f32 %v3497, 0.999995
      %v3596 = vmul.f32 %v3500, 0.999995
      %v3597 = vmul.f32 %v3502, 0.999995
      %v3598 = vmul.f32 %v3505, 0.999995
      %v3599 = vmul.f32 %v3507, 0.999995
      %v3600 = vmul.f32 %v3510, 0.999995
      %v3601 = vmul.f32 %v3512, 0.999995
      %v3602 = vmul.f32 %v3515, 0.999995
      %v3603 = vmul.f32 %v3517, 0.999995
      %v3604 = vmul.f32 %v3520, 0.999995
      %v3605 = vmul.f32 %v3522, 0.999995
      %v3606 = vmul.f32 %v3525, 0.999995
      %v3607 = vmul.f32 %v3527, 0.999995
      %v3608 = vmul.f32 %v3530, 0.999995
      %v3609 = vmul.f32 %v3532, 0.999995
      %v3610 = vmul.f32 %v3535, 0.999995
      %v3611 = vmul.f32 %v3537, 0.999995
      %v3612 = vmul.f32 %v3540, 0.999995
      %v3613 = vmul.f32 %v3542, 0.999995
      %v3614 = vmul.f32 %v3545, 0.999995
      %v3615 = vmul.f32 %v3547, 0.999995
      %v3616 = vmul.f32 %v3550, 0.999995
      %v3617 = vmul.f32 %v3552, 0.999995
      %v3618 = vsub.f32 0.0, %v3554
      %v3619 = vsub.f32 0.0, %v3555
      %v3620 = vsub.f32 0.0, %v3556
      %v3621 = vsub.f32 0.0, %v3557
      %v3622 = vsub.f32 0.0, %v3558
      %v3623 = vsub.f32 0.0, %v3559
      %v3624 = vsub.f32 0.0, %v3560
      %v3625 = vsub.f32 0.0, %v3561
      %v3626 = vsub.f32 0.0, %v3562
      %v3627 = vsub.f32 0.0, %v3563
      %v3628 = vsub.f32 0.0, %v3564
      %v3629 = vsub.f32 0.0, %v3565
      %v3630 = vsub.f32 0.0, %v3566
      %v3631 = vsub.f32 0.0, %v3567
      %v3632 = vsub.f32 0.0, %v3568
      %v3633 = vsub.f32 0.0, %v3569
      %v3634 = vsub.f32 0.0, %v3570
      %v3635 = vsub.f32 0.0, %v3571
      %v3636 = vsub.f32 0.0, %v3572
      %v3637 = vsub.f32 0.0, %v3573
      %v3638 = vsub.f32 0.0, %v3574
      %v3639 = vsub.f32 0.0, %v3575
      %v3640 = vsub.f32 0.0, %v3576
      %v3641 = vsub.f32 0.0, %v3577
      %v3642 = vsub.f32 0.0, %v3578
      %v3643 = vsub.f32 0.0, %v3579
      %v3644 = vsub.f32 0.0, %v3580
      %v3645 = vsub.f32 0.0, %v3581
      %v3646 = vsub.f32 0.0, %v3582
      %v3647 = vsub.f32 0.0, %v3583
      %v3648 = vsub.f32 0.0, %v3584
      %v3649 = vsub.f32 0.0, %v3585
      %v3650 = vsub.f32 0.0, %v3586
      %v3651 = vsub.f32 0.0, %v3587
      %v3652 = vsub.f32 0.0, %v3588
      %v3653 = vsub.f32 0.0, %v3589
      %v3654 = vsub.f32 0.0, %v3590
      %v3655 = vsub.f32 0.0, %v3591
      %v3656 = vsub.f32 0.0, %v3592
      %v3657 = vsub.f32 0.0, %v3593
      %v3658 = vsub.f32 0.0, %v3594
      %v3659 = vsub.f32 0.0, %v3595
      %v3660 = vsub.f32 0.0, %v3596
      %v3661 = vsub.f32 0.0, %v3597
      %v3662 = vsub.f32 0.0, %v3598
      %v3663 = vsub.f32 0.0, %v3599
      %v3664 = vsub.f32 0.0, %v3600
      %v3665 = vsub.f32 0.0, %v3601
      %v3666 = vsub.f32 0.0, %v3602
      %v3667 = vsub.f32 0.0, %v3603
      %v3668 = vsub.f32 0.0, %v3604
      %v3669 = vsub.f32 0.0, %v3605
      %v3670 = vsub.f32 0.0, %v3606
      %v3671 = vsub.f32 0.0, %v3607
      %v3672 = vsub.f32 0.0, %v3608
      %v3673 = vsub.f32 0.0, %v3609
      %v3674 = vsub.f32 0.0, %v3610
      %v3675 = vsub.f32 0.0, %v3611
      %v3676 = vsub.f32 0.0, %v3612
      %v3677 = vsub.f32 0.0, %v3613
      %v3678 = vsub.f32 0.0, %v3614
      %v3679 = vsub.f32 0.0, %v3615
      %v3680 = vsub.f32 0.0, %v3616
      %v3681 = vsub.f32 0.0, %v3617
      %v3682 = vmul.f32 %v3618, 1.442695
      %v3683 = vpow.pop %v3682
      %v3684 = vmul.f32 %v3619, 1.442695
      %v3685 = vpow.pop %v3684
      %v3686 = vmul.f32 %v3620, 1.442695
      %v3687 = vpow.pop %v3686
      %v3688 = vmul.f32 %v3621, 1.442695
      %v3689 = vpow.pop %v3688
      %v3690 = vmul.f32 %v3622, 1.442695
      %v3691 = vpow.pop %v3690
      %v3692 = vmul.f32 %v3623, 1.442695
      %v3693 = vpow.pop %v3692
      %v3694 = vmul.f32 %v3624, 1.442695
      %v3695 = vpow.pop %v3694
      %v3696 = vmul.f32 %v3625, 1.442695
      %v3697 = vpow.pop %v3696
      %v3698 = vmul.f32 %v3626, 1.442695
      %v3699 = vpow.pop %v3698
      %v3700 = vmul.f32 %v3627, 1.442695
      %v3701 = vpow.pop %v3700
      %v3702 = vmul.f32 %v3628, 1.442695
      %v3703 = vpow.pop %v3702
      %v3704 = vmul.f32 %v3629, 1.442695
      %v3705 = vpow.pop %v3704
      %v3706 = vmul.f32 %v3630, 1.442695
      %v3707 = vpow.pop %v3706
      %v3708 = vmul.f32 %v3631, 1.442695
      %v3709 = vpow.pop %v3708
      %v3710 = vmul.f32 %v3632, 1.442695
      %v3711 = vpow.pop %v3710
      %v3712 = vmul.f32 %v3633, 1.442695
      %v3713 = vpow.pop %v3712
      %v3714 = vmul.f32 %v3634, 1.442695
      %v3715 = vpow.pop %v3714
      %v3716 = vmul.f32 %v3635, 1.442695
      %v3717 = vpow.pop %v3716
      %v3718 = vmul.f32 %v3636, 1.442695
      %v3719 = vpow.pop %v3718
      %v3720 = vmul.f32 %v3637, 1.442695
      %v3721 = vpow.pop %v3720
      %v3722 = vmul.f32 %v3638, 1.442695
      %v3723 = vpow.pop %v3722
      %v3724 = vmul.f32 %v3639, 1.442695
      %v3725 = vpow.pop %v3724
      %v3726 = vmul.f32 %v3640, 1.442695
      %v3727 = vpow.pop %v3726
      %v3728 = vmul.f32 %v3641, 1.442695
      %v3729 = vpow.pop %v3728
      %v3730 = vmul.f32 %v3642, 1.442695
      %v3731 = vpow.pop %v3730
      %v3732 = vmul.f32 %v3643, 1.442695
      %v3733 = vpow.pop %v3732
      %v3734 = vmul.f32 %v3644, 1.442695
      %v3735 = vpow.pop %v3734
      %v3736 = vmul.f32 %v3645, 1.442695
      %v3737 = vpow.pop %v3736
      %v3738 = vmul.f32 %v3646, 1.442695
      %v3739 = vpow.pop %v3738
      %v3740 = vmul.f32 %v3647, 1.442695
      %v3741 = vpow.pop %v3740
      %v3742 = vmul.f32 %v3648, 1.442695
      %v3743 = vpow.pop %v3742
      %v3744 = vmul.f32 %v3649, 1.442695
      %v3745 = vpow.pop %v3744
      %v3746 = vmul.f32 %v3650, 1.442695
      %v3747 = vpow.pop %v3746
      %v3748 = vmul.f32 %v3651, 1.442695
      %v3749 = vpow.pop %v3748
      %v3750 = vmul.f32 %v3652, 1.442695
      %v3751 = vpow.pop %v3750
      %v3752 = vmul.f32 %v3653, 1.442695
      %v3753 = vpow.pop %v3752
      %v3754 = vmul.f32 %v3654, 1.442695
      %v3755 = vpow.pop %v3754
      %v3756 = vmul.f32 %v3655, 1.442695
      %v3757 = vpow.pop %v3756
      %v3758 = vmul.f32 %v3656, 1.442695
      %v3759 = vpow.pop %v3758
      %v3760 = vmul.f32 %v3657, 1.442695
      %v3761 = vpow.pop %v3760
      %v3762 = vmul.f32 %v3658, 1.442695
      %v3763 = vpow.pop %v3762
      %v3764 = vmul.f32 %v3659, 1.442695
      %v3765 = vpow.pop %v3764
      %v3766 = vmul.f32 %v3660, 1.442695
      %v3767 = vpow.pop %v3766
      %v3768 = vmul.f32 %v3661, 1.442695
      %v3769 = vpow.pop %v3768
      %v3770 = vmul.f32 %v3662, 1.442695
      %v3771 = vpow.pop %v3770
      %v3772 = vmul.f32 %v3663, 1.442695
      %v3773 = vpow.pop %v3772
      %v3774 = vmul.f32 %v3664, 1.442695
      %v3775 = vpow.pop %v3774
      %v3776 = vmul.f32 %v3665, 1.442695
      %v3777 = vpow.pop %v3776
      %v3778 = vmul.f32 %v3666, 1.442695
      %v3779 = vpow.pop %v3778
      %v3780 = vmul.f32 %v3667, 1.442695
      %v3781 = vpow.pop %v3780
      %v3782 = vmul.f32 %v3668, 1.442695
      %v3783 = vpow.pop %v3782
      %v3784 = vmul.f32 %v3669, 1.442695
      %v3785 = vpow.pop %v3784
      %v3786 = vmul.f32 %v3670, 1.442695
      %v3787 = vpow.pop %v3786
      %v3788 = vmul.f32 %v3671, 1.442695
      %v3789 = vpow.pop %v3788
      %v3790 = vmul.f32 %v3672, 1.442695
      %v3791 = vpow.pop %v3790
      %v3792 = vmul.f32 %v3673, 1.442695
      %v3793 = vpow.pop %v3792
      %v3794 = vmul.f32 %v3674, 1.442695
      %v3795 = vpow.pop %v3794
      %v3796 = vmul.f32 %v3675, 1.442695
      %v3797 = vpow.pop %v3796
      %v3798 = vmul.f32 %v3676, 1.442695
      %v3799 = vpow.pop %v3798
      %v3800 = vmul.f32 %v3677, 1.442695
      %v3801 = vpow.pop %v3800
      %v3802 = vmul.f32 %v3678, 1.442695
      %v3803 = vpow.pop %v3802
      %v3804 = vmul.f32 %v3679, 1.442695
      %v3805 = vpow.pop %v3804
      %v3806 = vmul.f32 %v3680, 1.442695
      %v3807 = vpow.pop %v3806
      %v3808 = vmul.f32 %v3681, 1.442695
      %v3809 = vpow.pop %v3808
      %v3810 = vadd.f32 %v3683, 1.0
      %v3811 = vadd.f32 %v3685, 1.0
      %v3812 = vadd.f32 %v3687, 1.0
      %v3813 = vadd.f32 %v3689, 1.0
      %v3814 = vadd.f32 %v3691, 1.0
      %v3815 = vadd.f32 %v3693, 1.0
      %v3816 = vadd.f32 %v3695, 1.0
      %v3817 = vadd.f32 %v3697, 1.0
      %v3818 = vadd.f32 %v3699, 1.0
      %v3819 = vadd.f32 %v3701, 1.0
      %v3820 = vadd.f32 %v3703, 1.0
      %v3821 = vadd.f32 %v3705, 1.0
      %v3822 = vadd.f32 %v3707, 1.0
      %v3823 = vadd.f32 %v3709, 1.0
      %v3824 = vadd.f32 %v3711, 1.0
      %v3825 = vadd.f32 %v3713, 1.0
      %v3826 = vadd.f32 %v3715, 1.0
      %v3827 = vadd.f32 %v3717, 1.0
      %v3828 = vadd.f32 %v3719, 1.0
      %v3829 = vadd.f32 %v3721, 1.0
      %v3830 = vadd.f32 %v3723, 1.0
      %v3831 = vadd.f32 %v3725, 1.0
      %v3832 = vadd.f32 %v3727, 1.0
      %v3833 = vadd.f32 %v3729, 1.0
      %v3834 = vadd.f32 %v3731, 1.0
      %v3835 = vadd.f32 %v3733, 1.0
      %v3836 = vadd.f32 %v3735, 1.0
      %v3837 = vadd.f32 %v3737, 1.0
      %v3838 = vadd.f32 %v3739, 1.0
      %v3839 = vadd.f32 %v3741, 1.0
      %v3840 = vadd.f32 %v3743, 1.0
      %v3841 = vadd.f32 %v3745, 1.0
      %v3842 = vadd.f32 %v3747, 1.0
      %v3843 = vadd.f32 %v3749, 1.0
      %v3844 = vadd.f32 %v3751, 1.0
      %v3845 = vadd.f32 %v3753, 1.0
      %v3846 = vadd.f32 %v3755, 1.0
      %v3847 = vadd.f32 %v3757, 1.0
      %v3848 = vadd.f32 %v3759, 1.0
      %v3849 = vadd.f32 %v3761, 1.0
      %v3850 = vadd.f32 %v3763, 1.0
      %v3851 = vadd.f32 %v3765, 1.0
      %v3852 = vadd.f32 %v3767, 1.0
      %v3853 = vadd.f32 %v3769, 1.0
      %v3854 = vadd.f32 %v3771, 1.0
      %v3855 = vadd.f32 %v3773, 1.0
      %v3856 = vadd.f32 %v3775, 1.0
      %v3857 = vadd.f32 %v3777, 1.0
      %v3858 = vadd.f32 %v3779, 1.0
      %v3859 = vadd.f32 %v3781, 1.0
      %v3860 = vadd.f32 %v3783, 1.0
      %v3861 = vadd.f32 %v3785, 1.0
      %v3862 = vadd.f32 %v3787, 1.0
      %v3863 = vadd.f32 %v3789, 1.0
      %v3864 = vadd.f32 %v3791, 1.0
      %v3865 = vadd.f32 %v3793, 1.0
      %v3866 = vadd.f32 %v3795, 1.0
      %v3867 = vadd.f32 %v3797, 1.0
      %v3868 = vadd.f32 %v3799, 1.0
      %v3869 = vadd.f32 %v3801, 1.0
      %v3870 = vadd.f32 %v3803, 1.0
      %v3871 = vadd.f32 %v3805, 1.0
      %v3872 = vadd.f32 %v3807, 1.0
      %v3873 = vadd.f32 %v3809, 1.0
      %v3874 = vrcp.pop %v3810
      %v3875 = vmul.f32 %v3810, %v3874
      %v3876 = vsub.f32 1.0, %v3875
      %v3877 = vmul.f32 %v3874, %v3876
      %v3878 = vadd.f32 %v3874, %v3877
      %vm3879 = vweird.f32 %v3810
      %vm3880 = vweird.f32 %v3874
      %vm3881 = vmor %vm3879, %vm3880
      %v3882 = vsel %vm3881, %v3874, %v3878
      %v3883 = vand.u32 2147483647, %v3810
      %vm3884 = vcmp.eq.f32.partialorder %v3883, 8.507059e+37
      %v3885 = vand.u32 %v3810, 2147483648
      %v3886 = vor.u32 1.1754944e-38, %v3885
      %v3887 = vsel %vm3884, %v3886, %v3882
      %v3888 = vmul.f32 1.0, %v3887
      %v3889 = vrcp.pop %v3811
      %v3890 = vmul.f32 %v3811, %v3889
      %v3891 = vsub.f32 1.0, %v3890
      %v3892 = vmul.f32 %v3889, %v3891
      %v3893 = vadd.f32 %v3889, %v3892
      %vm3894 = vweird.f32 %v3811
      %vm3895 = vweird.f32 %v3889
      %vm3896 = vmor %vm3894, %vm3895
      %v3897 = vsel %vm3896, %v3889, %v3893
      %v3898 = vand.u32 2147483647, %v3811
      %vm3899 = vcmp.eq.f32.partialorder %v3898, 8.507059e+37
      %v3900 = vand.u32 %v3811, 2147483648
      %v3901 = vor.u32 1.1754944e-38, %v3900
      %v3902 = vsel %vm3899, %v3901, %v3897
      %v3903 = vmul.f32 1.0, %v3902
      %v3904 = vrcp.pop %v3812
      %v3905 = vmul.f32 %v3812, %v3904
      %v3906 = vsub.f32 1.0, %v3905
      %v3907 = vmul.f32 %v3904, %v3906
      %v3908 = vadd.f32 %v3904, %v3907
      %vm3909 = vweird.f32 %v3812
      %vm3910 = vweird.f32 %v3904
      %vm3911 = vmor %vm3909, %vm3910
      %v3912 = vsel %vm3911, %v3904, %v3908
      %v3913 = vand.u32 2147483647, %v3812
      %vm3914 = vcmp.eq.f32.partialorder %v3913, 8.507059e+37
      %v3915 = vand.u32 %v3812, 2147483648
      %v3916 = vor.u32 1.1754944e-38, %v3915
      %v3917 = vsel %vm3914, %v3916, %v3912
      %v3918 = vmul.f32 1.0, %v3917
      %v3919 = vrcp.pop %v3813
      %v3920 = vmul.f32 %v3813, %v3919
      %v3921 = vsub.f32 1.0, %v3920
      %v3922 = vmul.f32 %v3919, %v3921
      %v3923 = vadd.f32 %v3919, %v3922
      %vm3924 = vweird.f32 %v3813
      %vm3925 = vweird.f32 %v3919
      %vm3926 = vmor %vm3924, %vm3925
      %v3927 = vsel %vm3926, %v3919, %v3923
      %v3928 = vand.u32 2147483647, %v3813
      %vm3929 = vcmp.eq.f32.partialorder %v3928, 8.507059e+37
      %v3930 = vand.u32 %v3813, 2147483648
      %v3931 = vor.u32 1.1754944e-38, %v3930
      %v3932 = vsel %vm3929, %v3931, %v3927
      %v3933 = vmul.f32 1.0, %v3932
      %v3934 = vrcp.pop %v3814
      %v3935 = vmul.f32 %v3814, %v3934
      %v3936 = vsub.f32 1.0, %v3935
      %v3937 = vmul.f32 %v3934, %v3936
      %v3938 = vadd.f32 %v3934, %v3937
      %vm3939 = vweird.f32 %v3814
      %vm3940 = vweird.f32 %v3934
      %vm3941 = vmor %vm3939, %vm3940
      %v3942 = vsel %vm3941, %v3934, %v3938
      %v3943 = vand.u32 2147483647, %v3814
      %vm3944 = vcmp.eq.f32.partialorder %v3943, 8.507059e+37
      %v3945 = vand.u32 %v3814, 2147483648
      %v3946 = vor.u32 1.1754944e-38, %v3945
      %v3947 = vsel %vm3944, %v3946, %v3942
      %v3948 = vmul.f32 1.0, %v3947
      %v3949 = vrcp.pop %v3815
      %v3950 = vmul.f32 %v3815, %v3949
      %v3951 = vsub.f32 1.0, %v3950
      %v3952 = vmul.f32 %v3949, %v3951
      %v3953 = vadd.f32 %v3949, %v3952
      %vm3954 = vweird.f32 %v3815
      %vm3955 = vweird.f32 %v3949
      %vm3956 = vmor %vm3954, %vm3955
      %v3957 = vsel %vm3956, %v3949, %v3953
      %v3958 = vand.u32 2147483647, %v3815
      %vm3959 = vcmp.eq.f32.partialorder %v3958, 8.507059e+37
      %v3960 = vand.u32 %v3815, 2147483648
      %v3961 = vor.u32 1.1754944e-38, %v3960
      %v3962 = vsel %vm3959, %v3961, %v3957
      %v3963 = vmul.f32 1.0, %v3962
      %v3964 = vrcp.pop %v3816
      %v3965 = vmul.f32 %v3816, %v3964
      %v3966 = vsub.f32 1.0, %v3965
      %v3967 = vmul.f32 %v3964, %v3966
      %v3968 = vadd.f32 %v3964, %v3967
      %vm3969 = vweird.f32 %v3816
      %vm3970 = vweird.f32 %v3964
      %vm3971 = vmor %vm3969, %vm3970
      %v3972 = vsel %vm3971, %v3964, %v3968
      %v3973 = vand.u32 2147483647, %v3816
      %vm3974 = vcmp.eq.f32.partialorder %v3973, 8.507059e+37
      %v3975 = vand.u32 %v3816, 2147483648
      %v3976 = vor.u32 1.1754944e-38, %v3975
      %v3977 = vsel %vm3974, %v3976, %v3972
      %v3978 = vmul.f32 1.0, %v3977
      %v3979 = vrcp.pop %v3817
      %v3980 = vmul.f32 %v3817, %v3979
      %v3981 = vsub.f32 1.0, %v3980
      %v3982 = vmul.f32 %v3979, %v3981
      %v3983 = vadd.f32 %v3979, %v3982
      %vm3984 = vweird.f32 %v3817
      %vm3985 = vweird.f32 %v3979
      %vm3986 = vmor %vm3984, %vm3985
      %v3987 = vsel %vm3986, %v3979, %v3983
      %v3988 = vand.u32 2147483647, %v3817
      %vm3989 = vcmp.eq.f32.partialorder %v3988, 8.507059e+37
      %v3990 = vand.u32 %v3817, 2147483648
      %v3991 = vor.u32 1.1754944e-38, %v3990
      %v3992 = vsel %vm3989, %v3991, %v3987
      %v3993 = vmul.f32 1.0, %v3992
      %v3994 = vrcp.pop %v3818
      %v3995 = vmul.f32 %v3818, %v3994
      %v3996 = vsub.f32 1.0, %v3995
      %v3997 = vmul.f32 %v3994, %v3996
      %v3998 = vadd.f32 %v3994, %v3997
      %vm3999 = vweird.f32 %v3818
      %vm4000 = vweird.f32 %v3994
      %vm4001 = vmor %vm3999, %vm4000
      %v4002 = vsel %vm4001, %v3994, %v3998
      %v4003 = vand.u32 2147483647, %v3818
      %vm4004 = vcmp.eq.f32.partialorder %v4003, 8.507059e+37
      %v4005 = vand.u32 %v3818, 2147483648
      %v4006 = vor.u32 1.1754944e-38, %v4005
      %v4007 = vsel %vm4004, %v4006, %v4002
      %v4008 = vmul.f32 1.0, %v4007
      %v4009 = vrcp.pop %v3819
      %v4010 = vmul.f32 %v3819, %v4009
      %v4011 = vsub.f32 1.0, %v4010
      %v4012 = vmul.f32 %v4009, %v4011
      %v4013 = vadd.f32 %v4009, %v4012
      %vm4014 = vweird.f32 %v3819
      %vm4015 = vweird.f32 %v4009
      %vm4016 = vmor %vm4014, %vm4015
      %v4017 = vsel %vm4016, %v4009, %v4013
      %v4018 = vand.u32 2147483647, %v3819
      %vm4019 = vcmp.eq.f32.partialorder %v4018, 8.507059e+37
      %v4020 = vand.u32 %v3819, 2147483648
      %v4021 = vor.u32 1.1754944e-38, %v4020
      %v4022 = vsel %vm4019, %v4021, %v4017
      %v4023 = vmul.f32 1.0, %v4022
      %v4024 = vrcp.pop %v3820
      %v4025 = vmul.f32 %v3820, %v4024
      %v4026 = vsub.f32 1.0, %v4025
      %v4027 = vmul.f32 %v4024, %v4026
      %v4028 = vadd.f32 %v4024, %v4027
      %vm4029 = vweird.f32 %v3820
      %vm4030 = vweird.f32 %v4024
      %vm4031 = vmor %vm4029, %vm4030
      %v4032 = vsel %vm4031, %v4024, %v4028
      %v4033 = vand.u32 2147483647, %v3820
      %vm4034 = vcmp.eq.f32.partialorder %v4033, 8.507059e+37
      %v4035 = vand.u32 %v3820, 2147483648
      %v4036 = vor.u32 1.1754944e-38, %v4035
      %v4037 = vsel %vm4034, %v4036, %v4032
      %v4038 = vmul.f32 1.0, %v4037
      %v4039 = vrcp.pop %v3821
      %v4040 = vmul.f32 %v3821, %v4039
      %v4041 = vsub.f32 1.0, %v4040
      %v4042 = vmul.f32 %v4039, %v4041
      %v4043 = vadd.f32 %v4039, %v4042
      %vm4044 = vweird.f32 %v3821
      %vm4045 = vweird.f32 %v4039
      %vm4046 = vmor %vm4044, %vm4045
      %v4047 = vsel %vm4046, %v4039, %v4043
      %v4048 = vand.u32 2147483647, %v3821
      %vm4049 = vcmp.eq.f32.partialorder %v4048, 8.507059e+37
      %v4050 = vand.u32 %v3821, 2147483648
      %v4051 = vor.u32 1.1754944e-38, %v4050
      %v4052 = vsel %vm4049, %v4051, %v4047
      %v4053 = vmul.f32 1.0, %v4052
      %v4054 = vrcp.pop %v3822
      %v4055 = vmul.f32 %v3822, %v4054
      %v4056 = vsub.f32 1.0, %v4055
      %v4057 = vmul.f32 %v4054, %v4056
      %v4058 = vadd.f32 %v4054, %v4057
      %vm4059 = vweird.f32 %v3822
      %vm4060 = vweird.f32 %v4054
      %vm4061 = vmor %vm4059, %vm4060
      %v4062 = vsel %vm4061, %v4054, %v4058
      %v4063 = vand.u32 2147483647, %v3822
      %vm4064 = vcmp.eq.f32.partialorder %v4063, 8.507059e+37
      %v4065 = vand.u32 %v3822, 2147483648
      %v4066 = vor.u32 1.1754944e-38, %v4065
      %v4067 = vsel %vm4064, %v4066, %v4062
      %v4068 = vmul.f32 1.0, %v4067
      %v4069 = vrcp.pop %v3823
      %v4070 = vmul.f32 %v3823, %v4069
      %v4071 = vsub.f32 1.0, %v4070
      %v4072 = vmul.f32 %v4069, %v4071
      %v4073 = vadd.f32 %v4069, %v4072
      %vm4074 = vweird.f32 %v3823
      %vm4075 = vweird.f32 %v4069
      %vm4076 = vmor %vm4074, %vm4075
      %v4077 = vsel %vm4076, %v4069, %v4073
      %v4078 = vand.u32 2147483647, %v3823
      %vm4079 = vcmp.eq.f32.partialorder %v4078, 8.507059e+37
      %v4080 = vand.u32 %v3823, 2147483648
      %v4081 = vor.u32 1.1754944e-38, %v4080
      %v4082 = vsel %vm4079, %v4081, %v4077
      %v4083 = vmul.f32 1.0, %v4082
      %v4084 = vrcp.pop %v3824
      %v4085 = vmul.f32 %v3824, %v4084
      %v4086 = vsub.f32 1.0, %v4085
      %v4087 = vmul.f32 %v4084, %v4086
      %v4088 = vadd.f32 %v4084, %v4087
      %vm4089 = vweird.f32 %v3824
      %vm4090 = vweird.f32 %v4084
      %vm4091 = vmor %vm4089, %vm4090
      %v4092 = vsel %vm4091, %v4084, %v4088
      %v4093 = vand.u32 2147483647, %v3824
      %vm4094 = vcmp.eq.f32.partialorder %v4093, 8.507059e+37
      %v4095 = vand.u32 %v3824, 2147483648
      %v4096 = vor.u32 1.1754944e-38, %v4095
      %v4097 = vsel %vm4094, %v4096, %v4092
      %v4098 = vmul.f32 1.0, %v4097
      %v4099 = vrcp.pop %v3825
      %v4100 = vmul.f32 %v3825, %v4099
      %v4101 = vsub.f32 1.0, %v4100
      %v4102 = vmul.f32 %v4099, %v4101
      %v4103 = vadd.f32 %v4099, %v4102
      %vm4104 = vweird.f32 %v3825
      %vm4105 = vweird.f32 %v4099
      %vm4106 = vmor %vm4104, %vm4105
      %v4107 = vsel %vm4106, %v4099, %v4103
      %v4108 = vand.u32 2147483647, %v3825
      %vm4109 = vcmp.eq.f32.partialorder %v4108, 8.507059e+37
      %v4110 = vand.u32 %v3825, 2147483648
      %v4111 = vor.u32 1.1754944e-38, %v4110
      %v4112 = vsel %vm4109, %v4111, %v4107
      %v4113 = vmul.f32 1.0, %v4112
      %v4114 = vrcp.pop %v3826
      %v4115 = vmul.f32 %v3826, %v4114
      %v4116 = vsub.f32 1.0, %v4115
      %v4117 = vmul.f32 %v4114, %v4116
      %v4118 = vadd.f32 %v4114, %v4117
      %vm4119 = vweird.f32 %v3826
      %vm4120 = vweird.f32 %v4114
      %vm4121 = vmor %vm4119, %vm4120
      %v4122 = vsel %vm4121, %v4114, %v4118
      %v4123 = vand.u32 2147483647, %v3826
      %vm4124 = vcmp.eq.f32.partialorder %v4123, 8.507059e+37
      %v4125 = vand.u32 %v3826, 2147483648
      %v4126 = vor.u32 1.1754944e-38, %v4125
      %v4127 = vsel %vm4124, %v4126, %v4122
      %v4128 = vmul.f32 1.0, %v4127
      %v4129 = vrcp.pop %v3827
      %v4130 = vmul.f32 %v3827, %v4129
      %v4131 = vsub.f32 1.0, %v4130
      %v4132 = vmul.f32 %v4129, %v4131
      %v4133 = vadd.f32 %v4129, %v4132
      %vm4134 = vweird.f32 %v3827
      %vm4135 = vweird.f32 %v4129
      %vm4136 = vmor %vm4134, %vm4135
      %v4137 = vsel %vm4136, %v4129, %v4133
      %v4138 = vand.u32 2147483647, %v3827
      %vm4139 = vcmp.eq.f32.partialorder %v4138, 8.507059e+37
      %v4140 = vand.u32 %v3827, 2147483648
      %v4141 = vor.u32 1.1754944e-38, %v4140
      %v4142 = vsel %vm4139, %v4141, %v4137
      %v4143 = vmul.f32 1.0, %v4142
      %v4144 = vrcp.pop %v3828
      %v4145 = vmul.f32 %v3828, %v4144
      %v4146 = vsub.f32 1.0, %v4145
      %v4147 = vmul.f32 %v4144, %v4146
      %v4148 = vadd.f32 %v4144, %v4147
      %vm4149 = vweird.f32 %v3828
      %vm4150 = vweird.f32 %v4144
      %vm4151 = vmor %vm4149, %vm4150
      %v4152 = vsel %vm4151, %v4144, %v4148
      %v4153 = vand.u32 2147483647, %v3828
      %vm4154 = vcmp.eq.f32.partialorder %v4153, 8.507059e+37
      %v4155 = vand.u32 %v3828, 2147483648
      %v4156 = vor.u32 1.1754944e-38, %v4155
      %v4157 = vsel %vm4154, %v4156, %v4152
      %v4158 = vmul.f32 1.0, %v4157
      %v4159 = vrcp.pop %v3829
      %v4160 = vmul.f32 %v3829, %v4159
      %v4161 = vsub.f32 1.0, %v4160
      %v4162 = vmul.f32 %v4159, %v4161
      %v4163 = vadd.f32 %v4159, %v4162
      %vm4164 = vweird.f32 %v3829
      %vm4165 = vweird.f32 %v4159
      %vm4166 = vmor %vm4164, %vm4165
      %v4167 = vsel %vm4166, %v4159, %v4163
      %v4168 = vand.u32 2147483647, %v3829
      %vm4169 = vcmp.eq.f32.partialorder %v4168, 8.507059e+37
      %v4170 = vand.u32 %v3829, 2147483648
      %v4171 = vor.u32 1.1754944e-38, %v4170
      %v4172 = vsel %vm4169, %v4171, %v4167
      %v4173 = vmul.f32 1.0, %v4172
      %v4174 = vrcp.pop %v3830
      %v4175 = vmul.f32 %v3830, %v4174
      %v4176 = vsub.f32 1.0, %v4175
      %v4177 = vmul.f32 %v4174, %v4176
      %v4178 = vadd.f32 %v4174, %v4177
      %vm4179 = vweird.f32 %v3830
      %vm4180 = vweird.f32 %v4174
      %vm4181 = vmor %vm4179, %vm4180
      %v4182 = vsel %vm4181, %v4174, %v4178
      %v4183 = vand.u32 2147483647, %v3830
      %vm4184 = vcmp.eq.f32.partialorder %v4183, 8.507059e+37
      %v4185 = vand.u32 %v3830, 2147483648
      %v4186 = vor.u32 1.1754944e-38, %v4185
      %v4187 = vsel %vm4184, %v4186, %v4182
      %v4188 = vmul.f32 1.0, %v4187
      %v4189 = vrcp.pop %v3831
      %v4190 = vmul.f32 %v3831, %v4189
      %v4191 = vsub.f32 1.0, %v4190
      %v4192 = vmul.f32 %v4189, %v4191
      %v4193 = vadd.f32 %v4189, %v4192
      %vm4194 = vweird.f32 %v3831
      %vm4195 = vweird.f32 %v4189
      %vm4196 = vmor %vm4194, %vm4195
      %v4197 = vsel %vm4196, %v4189, %v4193
      %v4198 = vand.u32 2147483647, %v3831
      %vm4199 = vcmp.eq.f32.partialorder %v4198, 8.507059e+37
      %v4200 = vand.u32 %v3831, 2147483648
      %v4201 = vor.u32 1.1754944e-38, %v4200
      %v4202 = vsel %vm4199, %v4201, %v4197
      %v4203 = vmul.f32 1.0, %v4202
      %v4204 = vrcp.pop %v3832
      %v4205 = vmul.f32 %v3832, %v4204
      %v4206 = vsub.f32 1.0, %v4205
      %v4207 = vmul.f32 %v4204, %v4206
      %v4208 = vadd.f32 %v4204, %v4207
      %vm4209 = vweird.f32 %v3832
      %vm4210 = vweird.f32 %v4204
      %vm4211 = vmor %vm4209, %vm4210
      %v4212 = vsel %vm4211, %v4204, %v4208
      %v4213 = vand.u32 2147483647, %v3832
      %vm4214 = vcmp.eq.f32.partialorder %v4213, 8.507059e+37
      %v4215 = vand.u32 %v3832, 2147483648
      %v4216 = vor.u32 1.1754944e-38, %v4215
      %v4217 = vsel %vm4214, %v4216, %v4212
      %v4218 = vmul.f32 1.0, %v4217
      %v4219 = vrcp.pop %v3833
      %v4220 = vmul.f32 %v3833, %v4219
      %v4221 = vsub.f32 1.0, %v4220
      %v4222 = vmul.f32 %v4219, %v4221
      %v4223 = vadd.f32 %v4219, %v4222
      %vm4224 = vweird.f32 %v3833
      %vm4225 = vweird.f32 %v4219
      %vm4226 = vmor %vm4224, %vm4225
      %v4227 = vsel %vm4226, %v4219, %v4223
      %v4228 = vand.u32 2147483647, %v3833
      %vm4229 = vcmp.eq.f32.partialorder %v4228, 8.507059e+37
      %v4230 = vand.u32 %v3833, 2147483648
      %v4231 = vor.u32 1.1754944e-38, %v4230
      %v4232 = vsel %vm4229, %v4231, %v4227
      %v4233 = vmul.f32 1.0, %v4232
      %v4234 = vrcp.pop %v3834
      %v4235 = vmul.f32 %v3834, %v4234
      %v4236 = vsub.f32 1.0, %v4235
      %v4237 = vmul.f32 %v4234, %v4236
      %v4238 = vadd.f32 %v4234, %v4237
      %vm4239 = vweird.f32 %v3834
      %vm4240 = vweird.f32 %v4234
      %vm4241 = vmor %vm4239, %vm4240
      %v4242 = vsel %vm4241, %v4234, %v4238
      %v4243 = vand.u32 2147483647, %v3834
      %vm4244 = vcmp.eq.f32.partialorder %v4243, 8.507059e+37
      %v4245 = vand.u32 %v3834, 2147483648
      %v4246 = vor.u32 1.1754944e-38, %v4245
      %v4247 = vsel %vm4244, %v4246, %v4242
      %v4248 = vmul.f32 1.0, %v4247
      %v4249 = vrcp.pop %v3835
      %v4250 = vmul.f32 %v3835, %v4249
      %v4251 = vsub.f32 1.0, %v4250
      %v4252 = vmul.f32 %v4249, %v4251
      %v4253 = vadd.f32 %v4249, %v4252
      %vm4254 = vweird.f32 %v3835
      %vm4255 = vweird.f32 %v4249
      %vm4256 = vmor %vm4254, %vm4255
      %v4257 = vsel %vm4256, %v4249, %v4253
      %v4258 = vand.u32 2147483647, %v3835
      %vm4259 = vcmp.eq.f32.partialorder %v4258, 8.507059e+37
      %v4260 = vand.u32 %v3835, 2147483648
      %v4261 = vor.u32 1.1754944e-38, %v4260
      %v4262 = vsel %vm4259, %v4261, %v4257
      %v4263 = vmul.f32 1.0, %v4262
      %v4264 = vrcp.pop %v3836
      %v4265 = vmul.f32 %v3836, %v4264
      %v4266 = vsub.f32 1.0, %v4265
      %v4267 = vmul.f32 %v4264, %v4266
      %v4268 = vadd.f32 %v4264, %v4267
      %vm4269 = vweird.f32 %v3836
      %vm4270 = vweird.f32 %v4264
      %vm4271 = vmor %vm4269, %vm4270
      %v4272 = vsel %vm4271, %v4264, %v4268
      %v4273 = vand.u32 2147483647, %v3836
      %vm4274 = vcmp.eq.f32.partialorder %v4273, 8.507059e+37
      %v4275 = vand.u32 %v3836, 2147483648
      %v4276 = vor.u32 1.1754944e-38, %v4275
      %v4277 = vsel %vm4274, %v4276, %v4272
      %v4278 = vmul.f32 1.0, %v4277
      %v4279 = vrcp.pop %v3837
      %v4280 = vmul.f32 %v3837, %v4279
      %v4281 = vsub.f32 1.0, %v4280
      %v4282 = vmul.f32 %v4279, %v4281
      %v4283 = vadd.f32 %v4279, %v4282
      %vm4284 = vweird.f32 %v3837
      %vm4285 = vweird.f32 %v4279
      %vm4286 = vmor %vm4284, %vm4285
      %v4287 = vsel %vm4286, %v4279, %v4283
      %v4288 = vand.u32 2147483647, %v3837
      %vm4289 = vcmp.eq.f32.partialorder %v4288, 8.507059e+37
      %v4290 = vand.u32 %v3837, 2147483648
      %v4291 = vor.u32 1.1754944e-38, %v4290
      %v4292 = vsel %vm4289, %v4291, %v4287
      %v4293 = vmul.f32 1.0, %v4292
      %v4294 = vrcp.pop %v3838
      %v4295 = vmul.f32 %v3838, %v4294
      %v4296 = vsub.f32 1.0, %v4295
      %v4297 = vmul.f32 %v4294, %v4296
      %v4298 = vadd.f32 %v4294, %v4297
      %vm4299 = vweird.f32 %v3838
      %vm4300 = vweird.f32 %v4294
      %vm4301 = vmor %vm4299, %vm4300
      %v4302 = vsel %vm4301, %v4294, %v4298
      %v4303 = vand.u32 2147483647, %v3838
      %vm4304 = vcmp.eq.f32.partialorder %v4303, 8.507059e+37
      %v4305 = vand.u32 %v3838, 2147483648
      %v4306 = vor.u32 1.1754944e-38, %v4305
      %v4307 = vsel %vm4304, %v4306, %v4302
      %v4308 = vmul.f32 1.0, %v4307
      %v4309 = vrcp.pop %v3839
      %v4310 = vmul.f32 %v3839, %v4309
      %v4311 = vsub.f32 1.0, %v4310
      %v4312 = vmul.f32 %v4309, %v4311
      %v4313 = vadd.f32 %v4309, %v4312
      %vm4314 = vweird.f32 %v3839
      %vm4315 = vweird.f32 %v4309
      %vm4316 = vmor %vm4314, %vm4315
      %v4317 = vsel %vm4316, %v4309, %v4313
      %v4318 = vand.u32 2147483647, %v3839
      %vm4319 = vcmp.eq.f32.partialorder %v4318, 8.507059e+37
      %v4320 = vand.u32 %v3839, 2147483648
      %v4321 = vor.u32 1.1754944e-38, %v4320
      %v4322 = vsel %vm4319, %v4321, %v4317
      %v4323 = vmul.f32 1.0, %v4322
      %v4324 = vrcp.pop %v3840
      %v4325 = vmul.f32 %v3840, %v4324
      %v4326 = vsub.f32 1.0, %v4325
      %v4327 = vmul.f32 %v4324, %v4326
      %v4328 = vadd.f32 %v4324, %v4327
      %vm4329 = vweird.f32 %v3840
      %vm4330 = vweird.f32 %v4324
      %vm4331 = vmor %vm4329, %vm4330
      %v4332 = vsel %vm4331, %v4324, %v4328
      %v4333 = vand.u32 2147483647, %v3840
      %vm4334 = vcmp.eq.f32.partialorder %v4333, 8.507059e+37
      %v4335 = vand.u32 %v3840, 2147483648
      %v4336 = vor.u32 1.1754944e-38, %v4335
      %v4337 = vsel %vm4334, %v4336, %v4332
      %v4338 = vmul.f32 1.0, %v4337
      %v4339 = vrcp.pop %v3841
      %v4340 = vmul.f32 %v3841, %v4339
      %v4341 = vsub.f32 1.0, %v4340
      %v4342 = vmul.f32 %v4339, %v4341
      %v4343 = vadd.f32 %v4339, %v4342
      %vm4344 = vweird.f32 %v3841
      %vm4345 = vweird.f32 %v4339
      %vm4346 = vmor %vm4344, %vm4345
      %v4347 = vsel %vm4346, %v4339, %v4343
      %v4348 = vand.u32 2147483647, %v3841
      %vm4349 = vcmp.eq.f32.partialorder %v4348, 8.507059e+37
      %v4350 = vand.u32 %v3841, 2147483648
      %v4351 = vor.u32 1.1754944e-38, %v4350
      %v4352 = vsel %vm4349, %v4351, %v4347
      %v4353 = vmul.f32 1.0, %v4352
      %v4354 = vrcp.pop %v3842
      %v4355 = vmul.f32 %v3842, %v4354
      %v4356 = vsub.f32 1.0, %v4355
      %v4357 = vmul.f32 %v4354, %v4356
      %v4358 = vadd.f32 %v4354, %v4357
      %vm4359 = vweird.f32 %v3842
      %vm4360 = vweird.f32 %v4354
      %vm4361 = vmor %vm4359, %vm4360
      %v4362 = vsel %vm4361, %v4354, %v4358
      %v4363 = vand.u32 2147483647, %v3842
      %vm4364 = vcmp.eq.f32.partialorder %v4363, 8.507059e+37
      %v4365 = vand.u32 %v3842, 2147483648
      %v4366 = vor.u32 1.1754944e-38, %v4365
      %v4367 = vsel %vm4364, %v4366, %v4362
      %v4368 = vmul.f32 1.0, %v4367
      %v4369 = vrcp.pop %v3843
      %v4370 = vmul.f32 %v3843, %v4369
      %v4371 = vsub.f32 1.0, %v4370
      %v4372 = vmul.f32 %v4369, %v4371
      %v4373 = vadd.f32 %v4369, %v4372
      %vm4374 = vweird.f32 %v3843
      %vm4375 = vweird.f32 %v4369
      %vm4376 = vmor %vm4374, %vm4375
      %v4377 = vsel %vm4376, %v4369, %v4373
      %v4378 = vand.u32 2147483647, %v3843
      %vm4379 = vcmp.eq.f32.partialorder %v4378, 8.507059e+37
      %v4380 = vand.u32 %v3843, 2147483648
      %v4381 = vor.u32 1.1754944e-38, %v4380
      %v4382 = vsel %vm4379, %v4381, %v4377
      %v4383 = vmul.f32 1.0, %v4382
      %v4384 = vrcp.pop %v3844
      %v4385 = vmul.f32 %v3844, %v4384
      %v4386 = vsub.f32 1.0, %v4385
      %v4387 = vmul.f32 %v4384, %v4386
      %v4388 = vadd.f32 %v4384, %v4387
      %vm4389 = vweird.f32 %v3844
      %vm4390 = vweird.f32 %v4384
      %vm4391 = vmor %vm4389, %vm4390
      %v4392 = vsel %vm4391, %v4384, %v4388
      %v4393 = vand.u32 2147483647, %v3844
      %vm4394 = vcmp.eq.f32.partialorder %v4393, 8.507059e+37
      %v4395 = vand.u32 %v3844, 2147483648
      %v4396 = vor.u32 1.1754944e-38, %v4395
      %v4397 = vsel %vm4394, %v4396, %v4392
      %v4398 = vmul.f32 1.0, %v4397
      %v4399 = vrcp.pop %v3845
      %v4400 = vmul.f32 %v3845, %v4399
      %v4401 = vsub.f32 1.0, %v4400
      %v4402 = vmul.f32 %v4399, %v4401
      %v4403 = vadd.f32 %v4399, %v4402
      %vm4404 = vweird.f32 %v3845
      %vm4405 = vweird.f32 %v4399
      %vm4406 = vmor %vm4404, %vm4405
      %v4407 = vsel %vm4406, %v4399, %v4403
      %v4408 = vand.u32 2147483647, %v3845
      %vm4409 = vcmp.eq.f32.partialorder %v4408, 8.507059e+37
      %v4410 = vand.u32 %v3845, 2147483648
      %v4411 = vor.u32 1.1754944e-38, %v4410
      %v4412 = vsel %vm4409, %v4411, %v4407
      %v4413 = vmul.f32 1.0, %v4412
      %v4414 = vrcp.pop %v3846
      %v4415 = vmul.f32 %v3846, %v4414
      %v4416 = vsub.f32 1.0, %v4415
      %v4417 = vmul.f32 %v4414, %v4416
      %v4418 = vadd.f32 %v4414, %v4417
      %vm4419 = vweird.f32 %v3846
      %vm4420 = vweird.f32 %v4414
      %vm4421 = vmor %vm4419, %vm4420
      %v4422 = vsel %vm4421, %v4414, %v4418
      %v4423 = vand.u32 2147483647, %v3846
      %vm4424 = vcmp.eq.f32.partialorder %v4423, 8.507059e+37
      %v4425 = vand.u32 %v3846, 2147483648
      %v4426 = vor.u32 1.1754944e-38, %v4425
      %v4427 = vsel %vm4424, %v4426, %v4422
      %v4428 = vmul.f32 1.0, %v4427
      %v4429 = vrcp.pop %v3847
      %v4430 = vmul.f32 %v3847, %v4429
      %v4431 = vsub.f32 1.0, %v4430
      %v4432 = vmul.f32 %v4429, %v4431
      %v4433 = vadd.f32 %v4429, %v4432
      %vm4434 = vweird.f32 %v3847
      %vm4435 = vweird.f32 %v4429
      %vm4436 = vmor %vm4434, %vm4435
      %v4437 = vsel %vm4436, %v4429, %v4433
      %v4438 = vand.u32 2147483647, %v3847
      %vm4439 = vcmp.eq.f32.partialorder %v4438, 8.507059e+37
      %v4440 = vand.u32 %v3847, 2147483648
      %v4441 = vor.u32 1.1754944e-38, %v4440
      %v4442 = vsel %vm4439, %v4441, %v4437
      %v4443 = vmul.f32 1.0, %v4442
      %v4444 = vrcp.pop %v3848
      %v4445 = vmul.f32 %v3848, %v4444
      %v4446 = vsub.f32 1.0, %v4445
      %v4447 = vmul.f32 %v4444, %v4446
      %v4448 = vadd.f32 %v4444, %v4447
      %vm4449 = vweird.f32 %v3848
      %vm4450 = vweird.f32 %v4444
      %vm4451 = vmor %vm4449, %vm4450
      %v4452 = vsel %vm4451, %v4444, %v4448
      %v4453 = vand.u32 2147483647, %v3848
      %vm4454 = vcmp.eq.f32.partialorder %v4453, 8.507059e+37
      %v4455 = vand.u32 %v3848, 2147483648
      %v4456 = vor.u32 1.1754944e-38, %v4455
      %v4457 = vsel %vm4454, %v4456, %v4452
      %v4458 = vmul.f32 1.0, %v4457
      %v4459 = vrcp.pop %v3849
      %v4460 = vmul.f32 %v3849, %v4459
      %v4461 = vsub.f32 1.0, %v4460
      %v4462 = vmul.f32 %v4459, %v4461
      %v4463 = vadd.f32 %v4459, %v4462
      %vm4464 = vweird.f32 %v3849
      %vm4465 = vweird.f32 %v4459
      %vm4466 = vmor %vm4464, %vm4465
      %v4467 = vsel %vm4466, %v4459, %v4463
      %v4468 = vand.u32 2147483647, %v3849
      %vm4469 = vcmp.eq.f32.partialorder %v4468, 8.507059e+37
      %v4470 = vand.u32 %v3849, 2147483648
      %v4471 = vor.u32 1.1754944e-38, %v4470
      %v4472 = vsel %vm4469, %v4471, %v4467
      %v4473 = vmul.f32 1.0, %v4472
      %v4474 = vrcp.pop %v3850
      %v4475 = vmul.f32 %v3850, %v4474
      %v4476 = vsub.f32 1.0, %v4475
      %v4477 = vmul.f32 %v4474, %v4476
      %v4478 = vadd.f32 %v4474, %v4477
      %vm4479 = vweird.f32 %v3850
      %vm4480 = vweird.f32 %v4474
      %vm4481 = vmor %vm4479, %vm4480
      %v4482 = vsel %vm4481, %v4474, %v4478
      %v4483 = vand.u32 2147483647, %v3850
      %vm4484 = vcmp.eq.f32.partialorder %v4483, 8.507059e+37
      %v4485 = vand.u32 %v3850, 2147483648
      %v4486 = vor.u32 1.1754944e-38, %v4485
      %v4487 = vsel %vm4484, %v4486, %v4482
      %v4488 = vmul.f32 1.0, %v4487
      %v4489 = vrcp.pop %v3851
      %v4490 = vmul.f32 %v3851, %v4489
      %v4491 = vsub.f32 1.0, %v4490
      %v4492 = vmul.f32 %v4489, %v4491
      %v4493 = vadd.f32 %v4489, %v4492
      %vm4494 = vweird.f32 %v3851
      %vm4495 = vweird.f32 %v4489
      %vm4496 = vmor %vm4494, %vm4495
      %v4497 = vsel %vm4496, %v4489, %v4493
      %v4498 = vand.u32 2147483647, %v3851
      %vm4499 = vcmp.eq.f32.partialorder %v4498, 8.507059e+37
      %v4500 = vand.u32 %v3851, 2147483648
      %v4501 = vor.u32 1.1754944e-38, %v4500
      %v4502 = vsel %vm4499, %v4501, %v4497
      %v4503 = vmul.f32 1.0, %v4502
      %v4504 = vrcp.pop %v3852
      %v4505 = vmul.f32 %v3852, %v4504
      %v4506 = vsub.f32 1.0, %v4505
      %v4507 = vmul.f32 %v4504, %v4506
      %v4508 = vadd.f32 %v4504, %v4507
      %vm4509 = vweird.f32 %v3852
      %vm4510 = vweird.f32 %v4504
      %vm4511 = vmor %vm4509, %vm4510
      %v4512 = vsel %vm4511, %v4504, %v4508
      %v4513 = vand.u32 2147483647, %v3852
      %vm4514 = vcmp.eq.f32.partialorder %v4513, 8.507059e+37
      %v4515 = vand.u32 %v3852, 2147483648
      %v4516 = vor.u32 1.1754944e-38, %v4515
      %v4517 = vsel %vm4514, %v4516, %v4512
      %v4518 = vmul.f32 1.0, %v4517
      %v4519 = vrcp.pop %v3853
      %v4520 = vmul.f32 %v3853, %v4519
      %v4521 = vsub.f32 1.0, %v4520
      %v4522 = vmul.f32 %v4519, %v4521
      %v4523 = vadd.f32 %v4519, %v4522
      %vm4524 = vweird.f32 %v3853
      %vm4525 = vweird.f32 %v4519
      %vm4526 = vmor %vm4524, %vm4525
      %v4527 = vsel %vm4526, %v4519, %v4523
      %v4528 = vand.u32 2147483647, %v3853
      %vm4529 = vcmp.eq.f32.partialorder %v4528, 8.507059e+37
      %v4530 = vand.u32 %v3853, 2147483648
      %v4531 = vor.u32 1.1754944e-38, %v4530
      %v4532 = vsel %vm4529, %v4531, %v4527
      %v4533 = vmul.f32 1.0, %v4532
      %v4534 = vrcp.pop %v3854
      %v4535 = vmul.f32 %v3854, %v4534
      %v4536 = vsub.f32 1.0, %v4535
      %v4537 = vmul.f32 %v4534, %v4536
      %v4538 = vadd.f32 %v4534, %v4537
      %vm4539 = vweird.f32 %v3854
      %vm4540 = vweird.f32 %v4534
      %vm4541 = vmor %vm4539, %vm4540
      %v4542 = vsel %vm4541, %v4534, %v4538
      %v4543 = vand.u32 2147483647, %v3854
      %vm4544 = vcmp.eq.f32.partialorder %v4543, 8.507059e+37
      %v4545 = vand.u32 %v3854, 2147483648
      %v4546 = vor.u32 1.1754944e-38, %v4545
      %v4547 = vsel %vm4544, %v4546, %v4542
      %v4548 = vmul.f32 1.0, %v4547
      %v4549 = vrcp.pop %v3855
      %v4550 = vmul.f32 %v3855, %v4549
      %v4551 = vsub.f32 1.0, %v4550
      %v4552 = vmul.f32 %v4549, %v4551
      %v4553 = vadd.f32 %v4549, %v4552
      %vm4554 = vweird.f32 %v3855
      %vm4555 = vweird.f32 %v4549
      %vm4556 = vmor %vm4554, %vm4555
      %v4557 = vsel %vm4556, %v4549, %v4553
      %v4558 = vand.u32 2147483647, %v3855
      %vm4559 = vcmp.eq.f32.partialorder %v4558, 8.507059e+37
      %v4560 = vand.u32 %v3855, 2147483648
      %v4561 = vor.u32 1.1754944e-38, %v4560
      %v4562 = vsel %vm4559, %v4561, %v4557
      %v4563 = vmul.f32 1.0, %v4562
      %v4564 = vrcp.pop %v3856
      %v4565 = vmul.f32 %v3856, %v4564
      %v4566 = vsub.f32 1.0, %v4565
      %v4567 = vmul.f32 %v4564, %v4566
      %v4568 = vadd.f32 %v4564, %v4567
      %vm4569 = vweird.f32 %v3856
      %vm4570 = vweird.f32 %v4564
      %vm4571 = vmor %vm4569, %vm4570
      %v4572 = vsel %vm4571, %v4564, %v4568
      %v4573 = vand.u32 2147483647, %v3856
      %vm4574 = vcmp.eq.f32.partialorder %v4573, 8.507059e+37
      %v4575 = vand.u32 %v3856, 2147483648
      %v4576 = vor.u32 1.1754944e-38, %v4575
      %v4577 = vsel %vm4574, %v4576, %v4572
      %v4578 = vmul.f32 1.0, %v4577
      %v4579 = vrcp.pop %v3857
      %v4580 = vmul.f32 %v3857, %v4579
      %v4581 = vsub.f32 1.0, %v4580
      %v4582 = vmul.f32 %v4579, %v4581
      %v4583 = vadd.f32 %v4579, %v4582
      %vm4584 = vweird.f32 %v3857
      %vm4585 = vweird.f32 %v4579
      %vm4586 = vmor %vm4584, %vm4585
      %v4587 = vsel %vm4586, %v4579, %v4583
      %v4588 = vand.u32 2147483647, %v3857
      %vm4589 = vcmp.eq.f32.partialorder %v4588, 8.507059e+37
      %v4590 = vand.u32 %v3857, 2147483648
      %v4591 = vor.u32 1.1754944e-38, %v4590
      %v4592 = vsel %vm4589, %v4591, %v4587
      %v4593 = vmul.f32 1.0, %v4592
      %v4594 = vrcp.pop %v3858
      %v4595 = vmul.f32 %v3858, %v4594
      %v4596 = vsub.f32 1.0, %v4595
      %v4597 = vmul.f32 %v4594, %v4596
      %v4598 = vadd.f32 %v4594, %v4597
      %vm4599 = vweird.f32 %v3858
      %vm4600 = vweird.f32 %v4594
      %vm4601 = vmor %vm4599, %vm4600
      %v4602 = vsel %vm4601, %v4594, %v4598
      %v4603 = vand.u32 2147483647, %v3858
      %vm4604 = vcmp.eq.f32.partialorder %v4603, 8.507059e+37
      %v4605 = vand.u32 %v3858, 2147483648
      %v4606 = vor.u32 1.1754944e-38, %v4605
      %v4607 = vsel %vm4604, %v4606, %v4602
      %v4608 = vmul.f32 1.0, %v4607
      %v4609 = vrcp.pop %v3859
      %v4610 = vmul.f32 %v3859, %v4609
      %v4611 = vsub.f32 1.0, %v4610
      %v4612 = vmul.f32 %v4609, %v4611
      %v4613 = vadd.f32 %v4609, %v4612
      %vm4614 = vweird.f32 %v3859
      %vm4615 = vweird.f32 %v4609
      %vm4616 = vmor %vm4614, %vm4615
      %v4617 = vsel %vm4616, %v4609, %v4613
      %v4618 = vand.u32 2147483647, %v3859
      %vm4619 = vcmp.eq.f32.partialorder %v4618, 8.507059e+37
      %v4620 = vand.u32 %v3859, 2147483648
      %v4621 = vor.u32 1.1754944e-38, %v4620
      %v4622 = vsel %vm4619, %v4621, %v4617
      %v4623 = vmul.f32 1.0, %v4622
      %v4624 = vrcp.pop %v3860
      %v4625 = vmul.f32 %v3860, %v4624
      %v4626 = vsub.f32 1.0, %v4625
      %v4627 = vmul.f32 %v4624, %v4626
      %v4628 = vadd.f32 %v4624, %v4627
      %vm4629 = vweird.f32 %v3860
      %vm4630 = vweird.f32 %v4624
      %vm4631 = vmor %vm4629, %vm4630
      %v4632 = vsel %vm4631, %v4624, %v4628
      %v4633 = vand.u32 2147483647, %v3860
      %vm4634 = vcmp.eq.f32.partialorder %v4633, 8.507059e+37
      %v4635 = vand.u32 %v3860, 2147483648
      %v4636 = vor.u32 1.1754944e-38, %v4635
      %v4637 = vsel %vm4634, %v4636, %v4632
      %v4638 = vmul.f32 1.0, %v4637
      %v4639 = vrcp.pop %v3861
      %v4640 = vmul.f32 %v3861, %v4639
      %v4641 = vsub.f32 1.0, %v4640
      %v4642 = vmul.f32 %v4639, %v4641
      %v4643 = vadd.f32 %v4639, %v4642
      %vm4644 = vweird.f32 %v3861
      %vm4645 = vweird.f32 %v4639
      %vm4646 = vmor %vm4644, %vm4645
      %v4647 = vsel %vm4646, %v4639, %v4643
      %v4648 = vand.u32 2147483647, %v3861
      %vm4649 = vcmp.eq.f32.partialorder %v4648, 8.507059e+37
      %v4650 = vand.u32 %v3861, 2147483648
      %v4651 = vor.u32 1.1754944e-38, %v4650
      %v4652 = vsel %vm4649, %v4651, %v4647
      %v4653 = vmul.f32 1.0, %v4652
      %v4654 = vrcp.pop %v3862
      %v4655 = vmul.f32 %v3862, %v4654
      %v4656 = vsub.f32 1.0, %v4655
      %v4657 = vmul.f32 %v4654, %v4656
      %v4658 = vadd.f32 %v4654, %v4657
      %vm4659 = vweird.f32 %v3862
      %vm4660 = vweird.f32 %v4654
      %vm4661 = vmor %vm4659, %vm4660
      %v4662 = vsel %vm4661, %v4654, %v4658
      %v4663 = vand.u32 2147483647, %v3862
      %vm4664 = vcmp.eq.f32.partialorder %v4663, 8.507059e+37
      %v4665 = vand.u32 %v3862, 2147483648
      %v4666 = vor.u32 1.1754944e-38, %v4665
      %v4667 = vsel %vm4664, %v4666, %v4662
      %v4668 = vmul.f32 1.0, %v4667
      %v4669 = vrcp.pop %v3863
      %v4670 = vmul.f32 %v3863, %v4669
      %v4671 = vsub.f32 1.0, %v4670
      %v4672 = vmul.f32 %v4669, %v4671
      %v4673 = vadd.f32 %v4669, %v4672
      %vm4674 = vweird.f32 %v3863
      %vm4675 = vweird.f32 %v4669
      %vm4676 = vmor %vm4674, %vm4675
      %v4677 = vsel %vm4676, %v4669, %v4673
      %v4678 = vand.u32 2147483647, %v3863
      %vm4679 = vcmp.eq.f32.partialorder %v4678, 8.507059e+37
      %v4680 = vand.u32 %v3863, 2147483648
      %v4681 = vor.u32 1.1754944e-38, %v4680
      %v4682 = vsel %vm4679, %v4681, %v4677
      %v4683 = vmul.f32 1.0, %v4682
      %v4684 = vrcp.pop %v3864
      %v4685 = vmul.f32 %v3864, %v4684
      %v4686 = vsub.f32 1.0, %v4685
      %v4687 = vmul.f32 %v4684, %v4686
      %v4688 = vadd.f32 %v4684, %v4687
      %vm4689 = vweird.f32 %v3864
      %vm4690 = vweird.f32 %v4684
      %vm4691 = vmor %vm4689, %vm4690
      %v4692 = vsel %vm4691, %v4684, %v4688
      %v4693 = vand.u32 2147483647, %v3864
      %vm4694 = vcmp.eq.f32.partialorder %v4693, 8.507059e+37
      %v4695 = vand.u32 %v3864, 2147483648
      %v4696 = vor.u32 1.1754944e-38, %v4695
      %v4697 = vsel %vm4694, %v4696, %v4692
      %v4698 = vmul.f32 1.0, %v4697
      %v4699 = vrcp.pop %v3865
      %v4700 = vmul.f32 %v3865, %v4699
      %v4701 = vsub.f32 1.0, %v4700
      %v4702 = vmul.f32 %v4699, %v4701
      %v4703 = vadd.f32 %v4699, %v4702
      %vm4704 = vweird.f32 %v3865
      %vm4705 = vweird.f32 %v4699
      %vm4706 = vmor %vm4704, %vm4705
      %v4707 = vsel %vm4706, %v4699, %v4703
      %v4708 = vand.u32 2147483647, %v3865
      %vm4709 = vcmp.eq.f32.partialorder %v4708, 8.507059e+37
      %v4710 = vand.u32 %v3865, 2147483648
      %v4711 = vor.u32 1.1754944e-38, %v4710
      %v4712 = vsel %vm4709, %v4711, %v4707
      %v4713 = vmul.f32 1.0, %v4712
      %v4714 = vrcp.pop %v3866
      %v4715 = vmul.f32 %v3866, %v4714
      %v4716 = vsub.f32 1.0, %v4715
      %v4717 = vmul.f32 %v4714, %v4716
      %v4718 = vadd.f32 %v4714, %v4717
      %vm4719 = vweird.f32 %v3866
      %vm4720 = vweird.f32 %v4714
      %vm4721 = vmor %vm4719, %vm4720
      %v4722 = vsel %vm4721, %v4714, %v4718
      %v4723 = vand.u32 2147483647, %v3866
      %vm4724 = vcmp.eq.f32.partialorder %v4723, 8.507059e+37
      %v4725 = vand.u32 %v3866, 2147483648
      %v4726 = vor.u32 1.1754944e-38, %v4725
      %v4727 = vsel %vm4724, %v4726, %v4722
      %v4728 = vmul.f32 1.0, %v4727
      %v4729 = vrcp.pop %v3867
      %v4730 = vmul.f32 %v3867, %v4729
      %v4731 = vsub.f32 1.0, %v4730
      %v4732 = vmul.f32 %v4729, %v4731
      %v4733 = vadd.f32 %v4729, %v4732
      %vm4734 = vweird.f32 %v3867
      %vm4735 = vweird.f32 %v4729
      %vm4736 = vmor %vm4734, %vm4735
      %v4737 = vsel %vm4736, %v4729, %v4733
      %v4738 = vand.u32 2147483647, %v3867
      %vm4739 = vcmp.eq.f32.partialorder %v4738, 8.507059e+37
      %v4740 = vand.u32 %v3867, 2147483648
      %v4741 = vor.u32 1.1754944e-38, %v4740
      %v4742 = vsel %vm4739, %v4741, %v4737
      %v4743 = vmul.f32 1.0, %v4742
      %v4744 = vrcp.pop %v3868
      %v4745 = vmul.f32 %v3868, %v4744
      %v4746 = vsub.f32 1.0, %v4745
      %v4747 = vmul.f32 %v4744, %v4746
      %v4748 = vadd.f32 %v4744, %v4747
      %vm4749 = vweird.f32 %v3868
      %vm4750 = vweird.f32 %v4744
      %vm4751 = vmor %vm4749, %vm4750
      %v4752 = vsel %vm4751, %v4744, %v4748
      %v4753 = vand.u32 2147483647, %v3868
      %vm4754 = vcmp.eq.f32.partialorder %v4753, 8.507059e+37
      %v4755 = vand.u32 %v3868, 2147483648
      %v4756 = vor.u32 1.1754944e-38, %v4755
      %v4757 = vsel %vm4754, %v4756, %v4752
      %v4758 = vmul.f32 1.0, %v4757
      %v4759 = vrcp.pop %v3869
      %v4760 = vmul.f32 %v3869, %v4759
      %v4761 = vsub.f32 1.0, %v4760
      %v4762 = vmul.f32 %v4759, %v4761
      %v4763 = vadd.f32 %v4759, %v4762
      %vm4764 = vweird.f32 %v3869
      %vm4765 = vweird.f32 %v4759
      %vm4766 = vmor %vm4764, %vm4765
      %v4767 = vsel %vm4766, %v4759, %v4763
      %v4768 = vand.u32 2147483647, %v3869
      %vm4769 = vcmp.eq.f32.partialorder %v4768, 8.507059e+37
      %v4770 = vand.u32 %v3869, 2147483648
      %v4771 = vor.u32 1.1754944e-38, %v4770
      %v4772 = vsel %vm4769, %v4771, %v4767
      %v4773 = vmul.f32 1.0, %v4772
      %v4774 = vrcp.pop %v3870
      %v4775 = vmul.f32 %v3870, %v4774
      %v4776 = vsub.f32 1.0, %v4775
      %v4777 = vmul.f32 %v4774, %v4776
      %v4778 = vadd.f32 %v4774, %v4777
      %vm4779 = vweird.f32 %v3870
      %vm4780 = vweird.f32 %v4774
      %vm4781 = vmor %vm4779, %vm4780
      %v4782 = vsel %vm4781, %v4774, %v4778
      %v4783 = vand.u32 2147483647, %v3870
      %vm4784 = vcmp.eq.f32.partialorder %v4783, 8.507059e+37
      %v4785 = vand.u32 %v3870, 2147483648
      %v4786 = vor.u32 1.1754944e-38, %v4785
      %v4787 = vsel %vm4784, %v4786, %v4782
      %v4788 = vmul.f32 1.0, %v4787
      %v4789 = vrcp.pop %v3871
      %v4790 = vmul.f32 %v3871, %v4789
      %v4791 = vsub.f32 1.0, %v4790
      %v4792 = vmul.f32 %v4789, %v4791
      %v4793 = vadd.f32 %v4789, %v4792
      %vm4794 = vweird.f32 %v3871
      %vm4795 = vweird.f32 %v4789
      %vm4796 = vmor %vm4794, %vm4795
      %v4797 = vsel %vm4796, %v4789, %v4793
      %v4798 = vand.u32 2147483647, %v3871
      %vm4799 = vcmp.eq.f32.partialorder %v4798, 8.507059e+37
      %v4800 = vand.u32 %v3871, 2147483648
      %v4801 = vor.u32 1.1754944e-38, %v4800
      %v4802 = vsel %vm4799, %v4801, %v4797
      %v4803 = vmul.f32 1.0, %v4802
      %v4804 = vrcp.pop %v3872
      %v4805 = vmul.f32 %v3872, %v4804
      %v4806 = vsub.f32 1.0, %v4805
      %v4807 = vmul.f32 %v4804, %v4806
      %v4808 = vadd.f32 %v4804, %v4807
      %vm4809 = vweird.f32 %v3872
      %vm4810 = vweird.f32 %v4804
      %vm4811 = vmor %vm4809, %vm4810
      %v4812 = vsel %vm4811, %v4804, %v4808
      %v4813 = vand.u32 2147483647, %v3872
      %vm4814 = vcmp.eq.f32.partialorder %v4813, 8.507059e+37
      %v4815 = vand.u32 %v3872, 2147483648
      %v4816 = vor.u32 1.1754944e-38, %v4815
      %v4817 = vsel %vm4814, %v4816, %v4812
      %v4818 = vmul.f32 1.0, %v4817
      %v4819 = vrcp.pop %v3873
      %v4820 = vmul.f32 %v3873, %v4819
      %v4821 = vsub.f32 1.0, %v4820
      %v4822 = vmul.f32 %v4819, %v4821
      %v4823 = vadd.f32 %v4819, %v4822
      %vm4824 = vweird.f32 %v3873
      %vm4825 = vweird.f32 %v4819
      %vm4826 = vmor %vm4824, %vm4825
      %v4827 = vsel %vm4826, %v4819, %v4823
      %v4828 = vand.u32 2147483647, %v3873
      %vm4829 = vcmp.eq.f32.partialorder %v4828, 8.507059e+37
      %v4830 = vand.u32 %v3873, 2147483648
      %v4831 = vor.u32 1.1754944e-38, %v4830
      %v4832 = vsel %vm4829, %v4831, %v4827
      %v4833 = vmul.f32 1.0, %v4832
      %v4834 = vpack.c.bf16 %v3903, %v3888
      %v4835 = vpack.c.bf16 %v3933, %v3918
      %v4836 = vpack.c.bf16 %v3963, %v3948
      %v4837 = vpack.c.bf16 %v3993, %v3978
      %v4838 = vpack.c.bf16 %v4023, %v4008
      %v4839 = vpack.c.bf16 %v4053, %v4038
      %v4840 = vpack.c.bf16 %v4083, %v4068
      %v4841 = vpack.c.bf16 %v4113, %v4098
      %v4842 = vpack.c.bf16 %v4143, %v4128
      %v4843 = vpack.c.bf16 %v4173, %v4158
      %v4844 = vpack.c.bf16 %v4203, %v4188
      %v4845 = vpack.c.bf16 %v4233, %v4218
      %v4846 = vpack.c.bf16 %v4263, %v4248
      %v4847 = vpack.c.bf16 %v4293, %v4278
      %v4848 = vpack.c.bf16 %v4323, %v4308
      %v4849 = vpack.c.bf16 %v4353, %v4338
      %v4850 = vpack.c.bf16 %v4383, %v4368
      %v4851 = vpack.c.bf16 %v4413, %v4398
      %v4852 = vpack.c.bf16 %v4443, %v4428
      %v4853 = vpack.c.bf16 %v4473, %v4458
      %v4854 = vpack.c.bf16 %v4503, %v4488
      %v4855 = vpack.c.bf16 %v4533, %v4518
      %v4856 = vpack.c.bf16 %v4563, %v4548
      %v4857 = vpack.c.bf16 %v4593, %v4578
      %v4858 = vpack.c.bf16 %v4623, %v4608
      %v4859 = vpack.c.bf16 %v4653, %v4638
      %v4860 = vpack.c.bf16 %v4683, %v4668
      %v4861 = vpack.c.bf16 %v4713, %v4698
      %v4862 = vpack.c.bf16 %v4743, %v4728
      %v4863 = vpack.c.bf16 %v4773, %v4758
      %v4864 = vpack.c.bf16 %v4803, %v4788
      %v4865 = vpack.c.bf16 %v4833, %v4818
      %v4866 = vld [vmem:[%s9] sm:$0xf]
      %v4867 = vld [vmem:[%s9 + $0x4] sm:$0xf]
      %v4868 = vld [vmem:[%s10] sm:$0x1]
      %v4870 = vperm.slane %v4868, 0
      %v4874 = vunpack.c.l.b16 %v4866
      %v4875 = vunpack.c.l.b16 %v4867
      %v4876 = vpack.c.b16 %v4875, %v4874
      %v4879 = vsel %vm3288, %v4834, 0
      %v4882 = vsel %vm3288, %v4835, 0
      %v4885 = vsel %vm3288, %v4836, 0
      %v4888 = vsel %vm3288, %v4837, 0
      %v4891 = vsel %vm3288, %v4838, 0
      %v4894 = vsel %vm3288, %v4839, 0
      %v4897 = vsel %vm3288, %v4840, 0
      %v4900 = vsel %vm3288, %v4841, 0
      %v4903 = vsel %vm3288, %v4842, 0
      %v4906 = vsel %vm3288, %v4843, 0
      %v4909 = vsel %vm3288, %v4844, 0
      %v4912 = vsel %vm3288, %v4845, 0
      %v4915 = vsel %vm3288, %v4846, 0
      %v4918 = vsel %vm3288, %v4847, 0
      %v4921 = vsel %vm3288, %v4848, 0
      %v4924 = vsel %vm3288, %v4849, 0
      %v4927 = vsel %vm3288, %v4850, 0
      %v4930 = vsel %vm3288, %v4851, 0
      %v4933 = vsel %vm3288, %v4852, 0
      %v4936 = vsel %vm3288, %v4853, 0
      %v4939 = vsel %vm3288, %v4854, 0
      %v4942 = vsel %vm3288, %v4855, 0
      %v4945 = vsel %vm3288, %v4856, 0
      %v4948 = vsel %vm3288, %v4857, 0
      %v4951 = vsel %vm3288, %v4858, 0
      %v4954 = vsel %vm3288, %v4859, 0
      %v4957 = vsel %vm3288, %v4860, 0
      %v4960 = vsel %vm3288, %v4861, 0
      %v4963 = vsel %vm3288, %v4862, 0
      %v4966 = vsel %vm3288, %v4863, 0
      %v4969 = vsel %vm3288, %v4864, 0
      %v4972 = vsel %vm3288, %v4865, 0
      %4974 = vmatpush.bf16.msra.mxu0 0
      %4975 = vmatpush.bf16.msra.mxu0 0
      %4976 = vmatpush.bf16.msra.mxu0 0
      %4977 = vmatpush.bf16.msra.mxu0 0
      %4978 = vmatpush.bf16.msra.mxu0 0
      %4979 = vmatpush.bf16.msra.mxu0 0
      %4980 = vmatpush.bf16.msra.mxu0 0
      %4981 = vmatpush.bf16.msra.mxu0 %v4876
      %4982 = vmatmul.bf16.gmra.mxu0 %v4879
      %v4983 = vpop.f32.mrf.mxu0
      %v4984 = vadd.f32 %v4870, %v4983
      %v4985 = vpop.f32.mrf.mxu0
      %v4986 = vadd.f32 %v4870, %v4985
      %4987 = vmatmul.bf16.gmra.mxu0 %v4882
      %v4988 = vpop.f32.mrf.mxu0
      %v4989 = vadd.f32 %v4870, %v4988
      %v4990 = vpop.f32.mrf.mxu0
      %v4991 = vadd.f32 %v4870, %v4990
      %4992 = vmatmul.bf16.gmra.mxu0 %v4885
      %v4993 = vpop.f32.mrf.mxu0
      %v4994 = vadd.f32 %v4870, %v4993
      %v4995 = vpop.f32.mrf.mxu0
      %v4996 = vadd.f32 %v4870, %v4995
      %4997 = vmatmul.bf16.gmra.mxu0 %v4888
      %v4998 = vpop.f32.mrf.mxu0
      %v4999 = vadd.f32 %v4870, %v4998
      %v5000 = vpop.f32.mrf.mxu0
      %v5001 = vadd.f32 %v4870, %v5000
      %5002 = vmatmul.bf16.gmra.mxu0 %v4891
      %v5003 = vpop.f32.mrf.mxu0
      %v5004 = vadd.f32 %v4870, %v5003
      %v5005 = vpop.f32.mrf.mxu0
      %v5006 = vadd.f32 %v4870, %v5005
      %5007 = vmatmul.bf16.gmra.mxu0 %v4894
      %v5008 = vpop.f32.mrf.mxu0
      %v5009 = vadd.f32 %v4870, %v5008
      %v5010 = vpop.f32.mrf.mxu0
      %v5011 = vadd.f32 %v4870, %v5010
      %5012 = vmatmul.bf16.gmra.mxu0 %v4897
      %v5013 = vpop.f32.mrf.mxu0
      %v5014 = vadd.f32 %v4870, %v5013
      %v5015 = vpop.f32.mrf.mxu0
      %v5016 = vadd.f32 %v4870, %v5015
      %5017 = vmatmul.bf16.gmra.mxu0 %v4900
      %v5018 = vpop.f32.mrf.mxu0
      %v5019 = vadd.f32 %v4870, %v5018
      %v5020 = vpop.f32.mrf.mxu0
      %v5021 = vadd.f32 %v4870, %v5020
      %5022 = vmatmul.bf16.gmra.mxu0 %v4903
      %v5023 = vpop.f32.mrf.mxu0
      %v5024 = vadd.f32 %v4870, %v5023
      %v5025 = vpop.f32.mrf.mxu0
      %v5026 = vadd.f32 %v4870, %v5025
      %5027 = vmatmul.bf16.gmra.mxu0 %v4906
      %v5028 = vpop.f32.mrf.mxu0
      %v5029 = vadd.f32 %v4870, %v5028
      %v5030 = vpop.f32.mrf.mxu0
      %v5031 = vadd.f32 %v4870, %v5030
      %5032 = vmatmul.bf16.gmra.mxu0 %v4909
      %v5033 = vpop.f32.mrf.mxu0
      %v5034 = vadd.f32 %v4870, %v5033
      %v5035 = vpop.f32.mrf.mxu0
      %v5036 = vadd.f32 %v4870, %v5035
      %5037 = vmatmul.bf16.gmra.mxu0 %v4912
      %v5038 = vpop.f32.mrf.mxu0
      %v5039 = vadd.f32 %v4870, %v5038
      %v5040 = vpop.f32.mrf.mxu0
      %v5041 = vadd.f32 %v4870, %v5040
      %5042 = vmatmul.bf16.gmra.mxu0 %v4915
      %v5043 = vpop.f32.mrf.mxu0
      %v5044 = vadd.f32 %v4870, %v5043
      %v5045 = vpop.f32.mrf.mxu0
      %v5046 = vadd.f32 %v4870, %v5045
      %5047 = vmatmul.bf16.gmra.mxu0 %v4918
      %v5048 = vpop.f32.mrf.mxu0
      %v5049 = vadd.f32 %v4870, %v5048
      %v5050 = vpop.f32.mrf.mxu0
      %v5051 = vadd.f32 %v4870, %v5050
      %5052 = vmatmul.bf16.gmra.mxu0 %v4921
      %v5053 = vpop.f32.mrf.mxu0
      %v5054 = vadd.f32 %v4870, %v5053
      %v5055 = vpop.f32.mrf.mxu0
      %v5056 = vadd.f32 %v4870, %v5055
      %5057 = vmatmul.bf16.gmra.mxu0 %v4924
      %v5058 = vpop.f32.mrf.mxu0
      %v5059 = vadd.f32 %v4870, %v5058
      %v5060 = vpop.f32.mrf.mxu0
      %v5061 = vadd.f32 %v4870, %v5060
      %5062 = vmatmul.bf16.gmra.mxu0 %v4927
      %v5063 = vpop.f32.mrf.mxu0
      %v5064 = vadd.f32 %v4870, %v5063
      %v5065 = vpop.f32.mrf.mxu0
      %v5066 = vadd.f32 %v4870, %v5065
      %5067 = vmatmul.bf16.gmra.mxu0 %v4930
      %v5068 = vpop.f32.mrf.mxu0
      %v5069 = vadd.f32 %v4870, %v5068
      %v5070 = vpop.f32.mrf.mxu0
      %v5071 = vadd.f32 %v4870, %v5070
      %5072 = vmatmul.bf16.gmra.mxu0 %v4933
      %v5073 = vpop.f32.mrf.mxu0
      %v5074 = vadd.f32 %v4870, %v5073
      %v5075 = vpop.f32.mrf.mxu0
      %v5076 = vadd.f32 %v4870, %v5075
      %5077 = vmatmul.bf16.gmra.mxu0 %v4936
      %v5078 = vpop.f32.mrf.mxu0
      %v5079 = vadd.f32 %v4870, %v5078
      %v5080 = vpop.f32.mrf.mxu0
      %v5081 = vadd.f32 %v4870, %v5080
      %5082 = vmatmul.bf16.gmra.mxu0 %v4939
      %v5083 = vpop.f32.mrf.mxu0
      %v5084 = vadd.f32 %v4870, %v5083
      %v5085 = vpop.f32.mrf.mxu0
      %v5086 = vadd.f32 %v4870, %v5085
      %5087 = vmatmul.bf16.gmra.mxu0 %v4942
      %v5088 = vpop.f32.mrf.mxu0
      %v5089 = vadd.f32 %v4870, %v5088
      %v5090 = vpop.f32.mrf.mxu0
      %v5091 = vadd.f32 %v4870, %v5090
      %5092 = vmatmul.bf16.gmra.mxu0 %v4945
      %v5093 = vpop.f32.mrf.mxu0
      %v5094 = vadd.f32 %v4870, %v5093
      %v5095 = vpop.f32.mrf.mxu0
      %v5096 = vadd.f32 %v4870, %v5095
      %5097 = vmatmul.bf16.gmra.mxu0 %v4948
      %v5098 = vpop.f32.mrf.mxu0
      %v5099 = vadd.f32 %v4870, %v5098
      %v5100 = vpop.f32.mrf.mxu0
      %v5101 = vadd.f32 %v4870, %v5100
      %5102 = vmatmul.bf16.gmra.mxu0 %v4951
      %v5103 = vpop.f32.mrf.mxu0
      %v5104 = vadd.f32 %v4870, %v5103
      %v5105 = vpop.f32.mrf.mxu0
      %v5106 = vadd.f32 %v4870, %v5105
      %5107 = vmatmul.bf16.gmra.mxu0 %v4954
      %v5108 = vpop.f32.mrf.mxu0
      %v5109 = vadd.f32 %v4870, %v5108
      %v5110 = vpop.f32.mrf.mxu0
      %v5111 = vadd.f32 %v4870, %v5110
      %5112 = vmatmul.bf16.gmra.mxu0 %v4957
      %v5113 = vpop.f32.mrf.mxu0
      %v5114 = vadd.f32 %v4870, %v5113
      %v5115 = vpop.f32.mrf.mxu0
      %v5116 = vadd.f32 %v4870, %v5115
      %5117 = vmatmul.bf16.gmra.mxu0 %v4960
      %v5118 = vpop.f32.mrf.mxu0
      %v5119 = vadd.f32 %v4870, %v5118
      %v5120 = vpop.f32.mrf.mxu0
      %v5121 = vadd.f32 %v4870, %v5120
      %5122 = vmatmul.bf16.gmra.mxu0 %v4963
      %v5123 = vpop.f32.mrf.mxu0
      %v5124 = vadd.f32 %v4870, %v5123
      %v5125 = vpop.f32.mrf.mxu0
      %v5126 = vadd.f32 %v4870, %v5125
      %5127 = vmatmul.bf16.gmra.mxu0 %v4966
      %v5128 = vpop.f32.mrf.mxu0
      %v5129 = vadd.f32 %v4870, %v5128
      %v5130 = vpop.f32.mrf.mxu0
      %v5131 = vadd.f32 %v4870, %v5130
      %5132 = vmatmul.bf16.gmra.mxu0 %v4969
      %v5133 = vpop.f32.mrf.mxu0
      %v5134 = vadd.f32 %v4870, %v5133
      %v5135 = vpop.f32.mrf.mxu0
      %v5136 = vadd.f32 %v4870, %v5135
      %5137 = vmatmul.bf16.gmra.mxu0 %v4972
      %v5138 = vpop.f32.mrf.mxu0
      %v5139 = vadd.f32 %v4870, %v5138
      %v5140 = vpop.f32.mrf.mxu0
      %v5141 = vadd.f32 %v4870, %v5140
      %5142 = vdwg.mxu0
      %v5143 = vmax.f32 %v4984, %v4986
      %v5144 = vmax.f32 %v5143, %v4989
      %v5145 = vmax.f32 %v5144, %v4991
      %v5146 = vrot.slane %v5145, 4
      %v5147 = vmax.f32 %v5145, %v5146
      %v5148 = vrot.slane %v5147, 2
      %v5149 = vmax.f32 %v5147, %v5148
      %v5150 = vrot.slane %v5149, 1
      %v5151 = vmax.f32 %v5149, %v5150
      %v5152 = vmax.f32 %v4994, %v4996
      %v5153 = vmax.f32 %v5152, %v4999
      %v5154 = vmax.f32 %v5153, %v5001
      %v5155 = vrot.slane %v5154, 4
      %v5156 = vmax.f32 %v5154, %v5155
      %v5157 = vrot.slane %v5156, 2
      %v5158 = vmax.f32 %v5156, %v5157
      %v5159 = vrot.slane %v5158, 1
      %v5160 = vmax.f32 %v5158, %v5159
      %v5161 = vmax.f32 %v5004, %v5006
      %v5162 = vmax.f32 %v5161, %v5009
      %v5163 = vmax.f32 %v5162, %v5011
      %v5164 = vrot.slane %v5163, 4
      %v5165 = vmax.f32 %v5163, %v5164
      %v5166 = vrot.slane %v5165, 2
      %v5167 = vmax.f32 %v5165, %v5166
      %v5168 = vrot.slane %v5167, 1
      %v5169 = vmax.f32 %v5167, %v5168
      %v5170 = vmax.f32 %v5014, %v5016
      %v5171 = vmax.f32 %v5170, %v5019
      %v5172 = vmax.f32 %v5171, %v5021
      %v5173 = vrot.slane %v5172, 4
      %v5174 = vmax.f32 %v5172, %v5173
      %v5175 = vrot.slane %v5174, 2
      %v5176 = vmax.f32 %v5174, %v5175
      %v5177 = vrot.slane %v5176, 1
      %v5178 = vmax.f32 %v5176, %v5177
      %v5179 = vmax.f32 %v5024, %v5026
      %v5180 = vmax.f32 %v5179, %v5029
      %v5181 = vmax.f32 %v5180, %v5031
      %v5182 = vrot.slane %v5181, 4
      %v5183 = vmax.f32 %v5181, %v5182
      %v5184 = vrot.slane %v5183, 2
      %v5185 = vmax.f32 %v5183, %v5184
      %v5186 = vrot.slane %v5185, 1
      %v5187 = vmax.f32 %v5185, %v5186
      %v5188 = vmax.f32 %v5034, %v5036
      %v5189 = vmax.f32 %v5188, %v5039
      %v5190 = vmax.f32 %v5189, %v5041
      %v5191 = vrot.slane %v5190, 4
      %v5192 = vmax.f32 %v5190, %v5191
      %v5193 = vrot.slane %v5192, 2
      %v5194 = vmax.f32 %v5192, %v5193
      %v5195 = vrot.slane %v5194, 1
      %v5196 = vmax.f32 %v5194, %v5195
      %v5197 = vmax.f32 %v5044, %v5046
      %v5198 = vmax.f32 %v5197, %v5049
      %v5199 = vmax.f32 %v5198, %v5051
      %v5200 = vrot.slane %v5199, 4
      %v5201 = vmax.f32 %v5199, %v5200
      %v5202 = vrot.slane %v5201, 2
      %v5203 = vmax.f32 %v5201, %v5202
      %v5204 = vrot.slane %v5203, 1
      %v5205 = vmax.f32 %v5203, %v5204
      %v5206 = vmax.f32 %v5054, %v5056
      %v5207 = vmax.f32 %v5206, %v5059
      %v5208 = vmax.f32 %v5207, %v5061
      %v5209 = vrot.slane %v5208, 4
      %v5210 = vmax.f32 %v5208, %v5209
      %v5211 = vrot.slane %v5210, 2
      %v5212 = vmax.f32 %v5210, %v5211
      %v5213 = vrot.slane %v5212, 1
      %v5214 = vmax.f32 %v5212, %v5213
      %v5215 = vmax.f32 %v5064, %v5066
      %v5216 = vmax.f32 %v5215, %v5069
      %v5217 = vmax.f32 %v5216, %v5071
      %v5218 = vrot.slane %v5217, 4
      %v5219 = vmax.f32 %v5217, %v5218
      %v5220 = vrot.slane %v5219, 2
      %v5221 = vmax.f32 %v5219, %v5220
      %v5222 = vrot.slane %v5221, 1
      %v5223 = vmax.f32 %v5221, %v5222
      %v5224 = vmax.f32 %v5074, %v5076
      %v5225 = vmax.f32 %v5224, %v5079
      %v5226 = vmax.f32 %v5225, %v5081
      %v5227 = vrot.slane %v5226, 4
      %v5228 = vmax.f32 %v5226, %v5227
      %v5229 = vrot.slane %v5228, 2
      %v5230 = vmax.f32 %v5228, %v5229
      %v5231 = vrot.slane %v5230, 1
      %v5232 = vmax.f32 %v5230, %v5231
      %v5233 = vmax.f32 %v5084, %v5086
      %v5234 = vmax.f32 %v5233, %v5089
      %v5235 = vmax.f32 %v5234, %v5091
      %v5236 = vrot.slane %v5235, 4
      %v5237 = vmax.f32 %v5235, %v5236
      %v5238 = vrot.slane %v5237, 2
      %v5239 = vmax.f32 %v5237, %v5238
      %v5240 = vrot.slane %v5239, 1
      %v5241 = vmax.f32 %v5239, %v5240
      %v5242 = vmax.f32 %v5094, %v5096
      %v5243 = vmax.f32 %v5242, %v5099
      %v5244 = vmax.f32 %v5243, %v5101
      %v5245 = vrot.slane %v5244, 4
      %v5246 = vmax.f32 %v5244, %v5245
      %v5247 = vrot.slane %v5246, 2
      %v5248 = vmax.f32 %v5246, %v5247
      %v5249 = vrot.slane %v5248, 1
      %v5250 = vmax.f32 %v5248, %v5249
      %v5251 = vmax.f32 %v5104, %v5106
      %v5252 = vmax.f32 %v5251, %v5109
      %v5253 = vmax.f32 %v5252, %v5111
      %v5254 = vrot.slane %v5253, 4
      %v5255 = vmax.f32 %v5253, %v5254
      %v5256 = vrot.slane %v5255, 2
      %v5257 = vmax.f32 %v5255, %v5256
      %v5258 = vrot.slane %v5257, 1
      %v5259 = vmax.f32 %v5257, %v5258
      %v5260 = vmax.f32 %v5114, %v5116
      %v5261 = vmax.f32 %v5260, %v5119
      %v5262 = vmax.f32 %v5261, %v5121
      %v5263 = vrot.slane %v5262, 4
      %v5264 = vmax.f32 %v5262, %v5263
      %v5265 = vrot.slane %v5264, 2
      %v5266 = vmax.f32 %v5264, %v5265
      %v5267 = vrot.slane %v5266, 1
      %v5268 = vmax.f32 %v5266, %v5267
      %v5269 = vmax.f32 %v5124, %v5126
      %v5270 = vmax.f32 %v5269, %v5129
      %v5271 = vmax.f32 %v5270, %v5131
      %v5272 = vrot.slane %v5271, 4
      %v5273 = vmax.f32 %v5271, %v5272
      %v5274 = vrot.slane %v5273, 2
      %v5275 = vmax.f32 %v5273, %v5274
      %v5276 = vrot.slane %v5275, 1
      %v5277 = vmax.f32 %v5275, %v5276
      %v5278 = vmax.f32 %v5134, %v5136
      %v5279 = vmax.f32 %v5278, %v5139
      %v5280 = vmax.f32 %v5279, %v5141
      %v5281 = vrot.slane %v5280, 4
      %v5282 = vmax.f32 %v5280, %v5281
      %v5283 = vrot.slane %v5282, 2
      %v5284 = vmax.f32 %v5282, %v5283
      %v5285 = vrot.slane %v5284, 1
      %v5286 = vmax.f32 %v5284, %v5285
      %v5287 = vmax.f32 %v5151, 0.0
      %v5288 = vmax.f32 %v5160, 0.0
      %v5289 = vmax.f32 %v5169, 0.0
      %v5290 = vmax.f32 %v5178, 0.0
      %v5291 = vmax.f32 %v5187, 0.0
      %v5292 = vmax.f32 %v5196, 0.0
      %v5293 = vmax.f32 %v5205, 0.0
      %v5294 = vmax.f32 %v5214, 0.0
      %v5295 = vmax.f32 %v5223, 0.0
      %v5296 = vmax.f32 %v5232, 0.0
      %v5297 = vmax.f32 %v5241, 0.0
      %v5298 = vmax.f32 %v5250, 0.0
      %v5299 = vmax.f32 %v5259, 0.0
      %v5300 = vmax.f32 %v5268, 0.0
      %v5301 = vmax.f32 %v5277, 0.0
      %v5302 = vmax.f32 %v5286, 0.0
      %vm5319 = vcmask 1041409
      %v5320 = vsel %vm5319, %v5288, %v5287
      %vm5321 = vcmask 1042434
      %v5322 = vsel %vm5321, %v5289, %v5320
      %vm5323 = vcmask 1043459
      %v5324 = vsel %vm5323, %v5290, %v5322
      %vm5325 = vcmask 1044484
      %v5326 = vsel %vm5325, %v5291, %v5324
      %vm5327 = vcmask 1045509
      %v5328 = vsel %vm5327, %v5292, %v5326
      %vm5329 = vcmask 1046534
      %v5330 = vsel %vm5329, %v5293, %v5328
      %vm5331 = vcmask 1047559
      %v5332 = vsel %vm5331, %v5294, %v5330
      %v5333 = vsel %vm5319, %v5296, %v5295
      %v5334 = vsel %vm5321, %v5297, %v5333
      %v5335 = vsel %vm5323, %v5298, %v5334
      %v5336 = vsel %vm5325, %v5299, %v5335
      %v5337 = vsel %vm5327, %v5300, %v5336
      %v5338 = vsel %vm5329, %v5301, %v5337
      %v5339 = vsel %vm5331, %v5302, %v5338
      %5342 = vst [vmem:[%s440] sm:$0xff] %v5332
      %5343 = vst [vmem:[%s440 + $0x8] sm:$0xff] %v5339
      %p5344 = scmp.lt.s32.totalorder %s22, 1
      %s5345 = scalar_select %p5344, %s22, 1
      %s5346 = smul.addr %s5345, 2
      %s5347 = smul.addr %s5346, 8
      %s5348 = scalar_lea.vmem %s11, %s5347
      // Predicated region
      $region65: #{feature_model_forward.3} parent=63 // pred_check
        %p5349 = pneg %p291
      $region66: #{feature_model_forward.3} parent=63 // pred_check_branch
        %5351 = sbr.rel (%p5349) target = $region68
      $region67: #{feature_model_forward.3} parent=63 // pred_region
        _
      $region68: #{feature_model_forward.3} parent=63 // pred_fallthru
        _
    $region64: #{feature_model_forward.3} parent=5 // pred_fallthru
      _
    %p5352 = scmp.le.s32.totalorder 2, %s17
    // Predicated region
    $region69: #{feature_model_forward.3} parent=5 // pred_check
      %p5353 = pneg %p5352
    $region70: #{feature_model_forward.3} parent=5 // pred_check_branch
      %5355 = sbr.rel (%p5353) target = $region72
    $region71: #{feature_model_forward.3} parent=5 // pred_region
      %s5356 = ssub.s32 %s17, 2
      // Predicated region
      $region73: #{feature_model_forward.3} parent=71 // pred_check
        %p5357 = pneg %p297
      $region74: #{feature_model_forward.3} parent=71 // pred_check_branch
        %5359 = sbr.rel (%p5357) target = $region76
      $region75: #{feature_model_forward.3} parent=71 // pred_region
        %p5360 = scmp.lt.s32.totalorder %s23, 1
        %s5361 = scalar_select %p5360, %s23, 1
        %s5362 = smul.addr %s5361, 2
        %s5363 = smul.addr %s5362, 8
        %s5364 = scalar_lea.vmem %s11, %s5363
      $region76: #{feature_model_forward.3} parent=71 // pred_fallthru
        _
    $region72: #{feature_model_forward.3} parent=5 // pred_fallthru
      _
  $region6: #{feature_model_forward.3} parent=0 // loop_footer
    %s21 = sadd.s32 1, %s17
  $region7: #{feature_model_forward.3} parent=0 // loop_footer_branch
    %16 = sbr.rel target = $region3
  $region8: #{feature_model_forward.3} parent=0 // loop_exit
    _

</llo_original>
